<compile_context>
chip_gen: v7x
topology: tpu7x:2x2x1
jax: 0.10.0
libtpu: 0.0.40
codegen_flags: <defaults>
</compile_context>

<pallas_src>
import functools

import jax
import jax.numpy as jnp
from jax.experimental import pallas as pl
from jax.experimental.pallas import tpu as pltpu


_K_TILE_TARGET = 1024   # K reduction tile target (multiple of 128)
_M_TILE_TARGET = 512    # M tile target (multiple of 16)


def _rup(x, m):
    return ((x + m - 1) // m) * m


def _k_tiles(K):
    """(tk, nk, Kp): tk multiple of 128, Kp = tk * nk >= K."""
    Kp0 = _rup(K, 128)
    nk = max(1, -(-Kp0 // _K_TILE_TARGET))
    tk = _rup(-(-Kp0 // nk), 128)
    return tk, nk, tk * nk


def _m_tiles(M):
    """(tm, nm, Mp): tm multiple of 16 (bf16 sublane), Mp = tm * nm >= M.

    nm >= 2 whenever there is enough work, so the "parallel" M axis can be
    sharded across v7x's two TensorCores (costs ~one extra 0.35us grid step on
    single-TC chips, negligible)."""
    Mp0 = _rup(M, 16)
    nm = max(1, -(-Mp0 // _M_TILE_TARGET))
    if Mp0 >= 64:
        nm = max(nm, 2)
    tm = _rup(-(-Mp0 // nm), 16)
    return tm, nm, tm * nm


_VMEM_CAP = None


def _vmem_cap():
    """Generation-aware VMEM cap (3/4 of physical), with a safe fallback."""
    global _VMEM_CAP
    if _VMEM_CAP is None:
        cap = 64 * 1024 * 1024
        try:
            info = pltpu.get_tpu_info()
            cap = int(getattr(info, "vmem_capacity_bytes", cap)) or cap
        except Exception:
            pass
        _VMEM_CAP = max(16 * 1024 * 1024, (3 * cap) // 4)
    return _VMEM_CAP


# ----------------------------------------------------------------------------
# Pallas kernels: tiled (M, K) matmul + bias + optional ReLU
# ----------------------------------------------------------------------------
def _mm_kernel_direct(a_ref, b_ref, bias_ref, o_ref, *, relu_out):
    """Single K step: no accumulator needed at all."""
    r = jnp.dot(a_ref[...], b_ref[...], preferred_element_type=jnp.float32)
    r = r + bias_ref[...]
    if relu_out:
        r = jnp.maximum(r, 0.0)
    o_ref[...] = r.astype(o_ref.dtype)


def _mm_kernel_accum_out(a_ref, b_ref, bias_ref, o_ref, *, relu_out, nk):
    """Multi K step, f32 output: accumulate directly into the resident output
    block (no VMEM scratch, no epilogue copy)."""
    k = pl.program_id(1)

    @pl.when(k == 0)
    def _init():
        o_ref[...] = jnp.zeros_like(o_ref)

    o_ref[...] += jnp.dot(a_ref[...], b_ref[...],
                          preferred_element_type=jnp.float32)

    @pl.when(k == nk - 1)
    def _finalize():
        r = o_ref[...] + bias_ref[...]
        if relu_out:
            r = jnp.maximum(r, 0.0)
        o_ref[...] = r


def _mm_kernel_accum_scratch(a_ref, b_ref, bias_ref, o_ref, acc_ref, *,
                             relu_out, nk):
    """Multi K step, narrow (bf16) output: f32 scratch accumulator."""
    k = pl.program_id(1)

    @pl.when(k == 0)
    def _init():
        acc_ref[...] = jnp.zeros_like(acc_ref)

    acc_ref[...] += jnp.dot(a_ref[...], b_ref[...],
                            preferred_element_type=jnp.float32)

    @pl.when(k == nk - 1)
    def _finalize():
        r = acc_ref[...] + bias_ref[...]
        if relu_out:
            r = jnp.maximum(r, 0.0)
        o_ref[...] = r.astype(o_ref.dtype)


def matmul_bias(a, b, bias, *, relu_out=False, out_dtype=jnp.float32):
    """out = a @ b + bias (optional fused ReLU).

    a:    (M, K)    bf16 (padded to (Mp, Kp) here)
    b:    (Kp, Np)  bf16, K-padded at param-construction time, Np % 128 == 0
    bias: (1, Np)   f32
    returns (Mp, Np) out_dtype; caller slices rows / cols.
    """
    M, K = a.shape
    tk, nk, Kp = _k_tiles(K)
    Kb, Np = b.shape
    assert Kb == Kp and Np % 128 == 0, (b.shape, Kp)
    assert bias.shape == (1, Np), bias.shape
    tm, nm, Mp = _m_tiles(M)
    if (Mp, Kp) != (M, K):
        a = jnp.pad(a, ((0, Mp - M), (0, Kp - K)))

    out_is_f32 = jnp.dtype(out_dtype) == jnp.dtype(jnp.float32)
    out_bytes = jnp.dtype(out_dtype).itemsize
    use_scratch = (nk > 1) and not out_is_f32

    # Shape-derived VMEM budget (double-buffered tiles) + fixed margin,
    # capped per generation.
    need = (2 * tm * tk * 2) + (2 * tk * Np * 2) + (2 * tm * Np * out_bytes) \
        + (2 * Np * 4) + (tm * Np * 4 if use_scratch else 0)
    vmem_limit = int(min(_vmem_cap(),
                         max(8 * 1024 * 1024, need + 4 * 1024 * 1024)))

    if nk == 1:
        kern = functools.partial(_mm_kernel_direct, relu_out=relu_out)
        scratch = []
    elif out_is_f32:
        kern = functools.partial(_mm_kernel_accum_out, relu_out=relu_out, nk=nk)
        scratch = []
    else:
        kern = functools.partial(_mm_kernel_accum_scratch, relu_out=relu_out,
                                 nk=nk)
        scratch = [pltpu.VMEM((tm, Np), jnp.float32)]

    out = pl.pallas_call(
        kern,
        out_shape=jax.ShapeDtypeStruct((Mp, Np), out_dtype),
        grid_spec=pltpu.PrefetchScalarGridSpec(
            num_scalar_prefetch=0,
            grid=(nm, nk),
            in_specs=[
                pl.BlockSpec((tm, tk), lambda i, k: (i, k)),
                pl.BlockSpec((tk, Np), lambda i, k: (k, 0)),
                pl.BlockSpec((1, Np), lambda i, k: (0, 0)),
            ],
            out_specs=pl.BlockSpec((tm, Np), lambda i, k: (i, 0)),
            scratch_shapes=scratch,
        ),
        compiler_params=pltpu.CompilerParams(
            dimension_semantics=("parallel", "arbitrary"),
            vmem_limit_bytes=vmem_limit,
        ),
    )(a, b, bias)
    return out


# ----------------------------------------------------------------------------
# Conv / linear layers built on the Pallas matmul (channels-last, true C)
# ----------------------------------------------------------------------------
def conv_patches(x, ksize, stride):
    """(N, H, W, C) bf16 -> (N*OH*OW, C*k*k) patches, feature order (c, kh, kw)."""
    N = x.shape[0]
    C = x.shape[3]
    p = jax.lax.conv_general_dilated_patches(
        x, (ksize, ksize), (stride, stride), "VALID",
        dimension_numbers=("NHWC", "HWIO", "NHWC"))
    OH, OW = p.shape[1], p.shape[2]
    return p.reshape(N * OH * OW, C * ksize * ksize), (N, OH, OW)


def conv_layer(xs, B, bias, ksize, stride, *, relu_out, n_out,
               out_dtype=jnp.bfloat16):
    """sum_i conv2d(xs[i], W_i) + bias, adapters fused along K.

    xs are channels-last bf16 activations at their true channel counts; B is
    the pre-prepped, K-concatenated, K-padded bf16 weight matrix."""
    segs, dims = [], None
    for x in xs:
        p, dims = conv_patches(x.astype(jnp.bfloat16), ksize, stride)
        segs.append(p)
    A = segs[0] if len(segs) == 1 else jnp.concatenate(segs, axis=1)
    out = matmul_bias(A, B, bias, relu_out=relu_out, out_dtype=out_dtype)
    N, OH, OW = dims
    M = N * OH * OW
    return out[:M, :n_out].reshape(N, OH, OW, n_out)


def linear_head(flats, B, bias, out_dim):
    """sum_i flats[i] @ W_i.T + bias, fused along K, f32 output."""
    A = flats[0] if len(flats) == 1 else jnp.concatenate(flats, axis=1)
    out = matmul_bias(A.astype(jnp.bfloat16), B, bias, relu_out=False,
                      out_dtype=jnp.float32)
    return out[:A.shape[0], :out_dim]


# ----------------------------------------------------------------------------
# Parameters: raw (PyTorch-convention) weights + hoisted Pallas-ready prep
# ----------------------------------------------------------------------------
def _conv_params(key, oc, ic, kh, kw, bias=True):
    kw_, kb_ = jax.random.split(key)
    return {
        "w": jax.random.normal(kw_, (oc, ic, kh, kw), jnp.float32) * 0.05,
        "b": jax.random.normal(kb_, (oc,), jnp.float32) * 0.01 if bias else None,
    }


def _linear_params(key, out_dim, in_dim, bias=True):
    kw_, kb_ = jax.random.split(key)
    return {
        "w": jax.random.normal(kw_, (out_dim, in_dim), jnp.float32) * 0.02,
        "b": jax.random.normal(kb_, (out_dim,), jnp.float32) * 0.01 if bias else None,
    }


def _prep_conv_w(w, n_pad=None):
    """(OC, IC, KH, KW) -> (IC*KH*KW, n_pad or OC) bf16; row order (c, kh, kw)
    matching lax.conv_general_dilated_patches."""
    oc, ic, kh, kw = w.shape
    wt = jnp.transpose(w, (1, 2, 3, 0)).reshape(ic * kh * kw, oc)
    wt = wt.astype(jnp.float32)
    if n_pad is not None and n_pad != oc:
        wt = jnp.pad(wt, ((0, 0), (0, n_pad - oc)))
    return wt.astype(jnp.bfloat16)


def _prep_head_w(w, c, h, ww, n_pad):
    """(out_dim, c*h*w) with PyTorch (C,H,W) flatten -> (h*w*c, n_pad) bf16 rows
    matching the channels-last (h, w, c) flatten used in-kernel."""
    od = w.shape[0]
    wr = w.reshape(od, c, h, ww).astype(jnp.float32)
    wr = jnp.transpose(wr, (2, 3, 1, 0)).reshape(h * ww * c, od)
    wr = jnp.pad(wr, ((0, 0), (0, n_pad - od)))
    return wr.astype(jnp.bfloat16)


def _prep_bias(b, n_pad):
    out = jnp.zeros((1, n_pad), jnp.float32)
    if b is None:
        return out
    return out.at[0, :b.shape[0]].set(b.astype(jnp.float32))


def _pad_k(B):
    K = B.shape[0]
    _, _, Kp = _k_tiles(K)
    if Kp != K:
        B = jnp.pad(B, ((0, Kp - K), (0, 0)))
    return B


def make_progressive_net(key, out_dim, n_prev, previous_models=()):
    ks = jax.random.split(key, 7)
    split = lambda k: (list(jax.random.split(k, n_prev)) if n_prev > 0 else [])
    p = {
        "n_prev": n_prev,
        "out_dim": out_dim,
        "c1": _conv_params(ks[0], 32, 4, 8, 8),
        "c2": _conv_params(ks[1], 64, 32, 4, 4),
        "c3": _conv_params(ks[2], 64, 64, 3, 3),
        "o1": _linear_params(ks[3], out_dim, 64 * 7 * 7),
        "u2": [_conv_params(k, 64, 32, 4, 4, bias=False) for k in split(ks[4])],
        "u3": [_conv_params(k, 64, 64, 3, 3, bias=False) for k in split(ks[5])],
        "uo1": [_linear_params(k, out_dim, 64 * 7 * 7, bias=False)
                for k in split(ks[6])],
        "previous_models": list(previous_models),
    }
    np_conv = 128                      # all per-column conv outs (32/64) <= 128
    np_head = _rup(out_dim, 128)

    # ---- hoisted Pallas weight prep (once per column, NOT per forward) ----
    p["b1_np"] = _prep_conv_w(p["c1"]["w"])                  # (256, 32), no pad
    p["B1"] = _pad_k(_prep_conv_w(p["c1"]["w"], np_conv))    # standalone column
    p["bias1"] = _prep_bias(p["c1"]["b"], np_conv)

    b2 = _prep_conv_w(p["c2"]["w"], np_conv)                 # (512, 128)
    b3 = _prep_conv_w(p["c3"]["w"], np_conv)                 # (576, 128)
    bo = _prep_head_w(p["o1"]["w"], 64, 7, 7, np_head)       # (3136, np_head)
    p["B2_first"] = _pad_k(b2)
    p["B3_first"] = _pad_k(b3)
    p["Bo_first"] = _pad_k(bo)
    p["B2_other"] = _pad_k(jnp.concatenate(
        [b2] + [_prep_conv_w(u["w"], np_conv) for u in p["u2"]], axis=0))
    p["B3_other"] = _pad_k(jnp.concatenate(
        [b3] + [_prep_conv_w(u["w"], np_conv) for u in p["u3"]], axis=0))
    p["Bo_other"] = _pad_k(jnp.concatenate(
        [bo] + [_prep_head_w(u["w"], 64, 7, 7, np_head) for u in p["uo1"]],
        axis=0))
    p["bias2"] = _prep_bias(p["c2"]["b"], np_conv)
    p["bias3"] = _prep_bias(p["c3"]["b"], np_conv)
    p["biaso"] = _prep_bias(p["o1"]["b"], np_head)

    # Wide-N conv1 across all columns that actually run ([self] + prev[1:]):
    # they all share im2col(x), so one matmul computes every column's conv1.
    if previous_models:
        cols = [p] + list(previous_models)[1:]
        n_tot = 32 * len(cols)
        np_all = _rup(n_tot, 128)
        b1_all = jnp.concatenate([m["b1_np"] for m in cols], axis=1)
        b1_all = jnp.pad(b1_all, ((0, 0), (0, np_all - n_tot)))
        p["B1_all"] = _pad_k(b1_all)
        bias_all = jnp.zeros((1, np_all), jnp.float32)
        for i, m in enumerate(cols):
            bias_all = bias_all.at[0, 32 * i:32 * i + 32].set(m["c1"]["b"])
        p["bias1_all"] = bias_all
    return p


# ----------------------------------------------------------------------------
# ProgressiveNet forward (mirrors the PyTorch module; internal layout NHWC)
# ----------------------------------------------------------------------------
def forward_first(params, x_nhwc, *, compute_head=True, c1_pre=None):
    # c1/c2/c3 are PRE-activation here, exactly like the PyTorch forward_first.
    if c1_pre is None:
        c1_pre = conv_layer([x_nhwc], params["B1"], params["bias1"], 8, 4,
                            relu_out=False, n_out=32)
    c1 = c1_pre
    # ReLU is applied on the compact bf16 activation in the consumer's path
    # (fuses with patch extraction) -- never on the kh*kw-amplified patches.
    c2 = conv_layer([jnp.maximum(c1, 0)], params["B2_first"], params["bias2"],
                    4, 2, relu_out=False, n_out=64)
    c3 = conv_layer([jnp.maximum(c2, 0)], params["B3_first"], params["bias3"],
                    3, 1, relu_out=False, n_out=64)
    out = None
    if compute_head:
        flat = jnp.maximum(c3, 0).reshape(c3.shape[0], -1)
        out = linear_head([flat], params["Bo_first"], params["biaso"],
                          params["out_dim"])
    return out, c1, c2, c3


def forward_other(params, c1_pre_own, c1s, c2s, c3s, *, compute_head=True):
    assert len(c1s) == params["n_prev"], \
        "previous-output / adapter count mismatch"
    c1 = jnp.maximum(c1_pre_own, 0)                      # post-activation
    c2 = conv_layer([c1] + list(c1s), params["B2_other"], params["bias2"],
                    4, 2, relu_out=True, n_out=64)
    c3 = conv_layer([c2] + list(c2s), params["B3_other"], params["bias3"],
                    3, 1, relu_out=True, n_out=64)
    out = None
    if compute_head:
        flats = [c3.reshape(c3.shape[0], -1)] + \
                [c.reshape(c.shape[0], -1) for c in c3s]
        out = linear_head(flats, params["Bo_other"], params["biaso"],
                          params["out_dim"])
    return out, c1, c2, c3


def forward(params, x):
    """x is NCHW (PyTorch convention); converted once to channels-last bf16."""
    x_nhwc = jnp.transpose(x, (0, 2, 3, 1)).astype(jnp.bfloat16)
    prev = list(params["previous_models"])
    if not prev:
        out, _, _, _ = forward_first(params, x_nhwc, compute_head=True)
        return out

    # One wide-N matmul = conv1 of every active column (shared im2col(x)).
    A1, (N, OH, OW) = conv_patches(x_nhwc, 8, 4)
    c1_all = matmul_bias(A1, params["B1_all"], params["bias1_all"],
                         relu_out=False, out_dtype=jnp.bfloat16)
    M = N * OH * OW
    cols = [params] + prev[1:]
    c1_pre = [c1_all[:M, 32 * i:32 * i + 32].reshape(N, OH, OW, 32)
              for i in range(len(cols))]

    # forward() discards every head output except the final column's -> skip
    # the dead head matmuls explicitly.
    _, c1, c2, c3 = forward_first(params, x_nhwc, compute_head=False,
                                  c1_pre=c1_pre[0])
    c1s, c2s, c3s = [c1], [c2], [c3]
    for i, m in enumerate(prev[1:]):
        _, c1, c2, c3 = forward_other(m, c1_pre[i + 1], c1s, c2s, c3s,
                                      compute_head=False)
        c1s.append(c1)
        c2s.append(c2)
        c3s.append(c3)
    out, _, _, _ = forward_other(params, c1_pre[0], c1s, c2s, c3s,
                                 compute_head=True)
    return out


# ----------------------------------------------------------------------------
# Pure-JAX reference (lax.conv, f32, NCHW) for correctness checking
# ----------------------------------------------------------------------------
def _conv_ref(x, p, stride):
    y = jax.lax.conv_general_dilated(
        x, p["w"], (stride, stride), "VALID",
        dimension_numbers=("NCHW", "OIHW", "NCHW"))
    if p["b"] is not None:
        y = y + p["b"][None, :, None, None]
    return y


def _linear_ref(x, p):
    y = x @ p["w"].T
    if p["b"] is not None:
        y = y + p["b"][None, :]
    return y


def forward_first_ref(params, x):
    r = jax.nn.relu
    c1 = _conv_ref(x, params["c1"], 4)
    c2 = _conv_ref(r(c1), params["c2"], 2)
    c3 = _conv_ref(r(c2), params["c3"], 1)
    out = _linear_ref(r(c3).reshape(c3.shape[0], -1), params["o1"])
    return out, c1, c2, c3


def forward_other_ref(params, x, c1s, c2s, c3s):
    r = jax.nn.relu
    c1 = r(_conv_ref(x, params["c1"], 4))
    c2 = r(_conv_ref(c1, params["c2"], 2)
           + sum(_conv_ref(c1s[i], u, 2) for i, u in enumerate(params["u2"])))
    c3 = r(_conv_ref(c2, params["c3"], 1)
           + sum(_conv_ref(c2s[i], u, 1) for i, u in enumerate(params["u3"])))
    out = (_linear_ref(c3.reshape(c3.shape[0], -1), params["o1"])
           + sum(_linear_ref(c3s[i].reshape(c3s[i].shape[0], -1), u)
                 for i, u in enumerate(params["uo1"])))
    return out, c1, c2, c3


def forward_ref(params, x):
    prev = params["previous_models"]
    if len(prev) == 0:
        return forward_first_ref(params, x)[0]
    _, c1, c2, c3 = forward_first_ref(params, x)
    c1s, c2s, c3s = [c1], [c2], [c3]
    for m in prev[1:]:
        _, c1, c2, c3 = forward_other_ref(m, x, c1s, c2s, c3s)
        c1s.append(c1)
        c2s.append(c2)
        c3s.append(c3)
    out, _, _, _ = forward_other_ref(params, x, c1s, c2s, c3s)
    return out


# ----------------------------------------------------------------------------
if __name__ == "__main__":
    key = jax.random.PRNGKey(0)
    k_x, k0, k1, k2 = jax.random.split(key, 4)

    # Spatial size must be 84x84: the Linear head is hard-coded to 64*7*7.
    x = jax.random.normal(k_x, (2, 4, 84, 84), jnp.float32)
    out_dim = 6

    # Two previous columns + the current column (n_prev=2): exercises the full
    # progressive forward (shared wide-N conv1, forward_first + forward_other).
    m0 = make_progressive_net(k0, out_dim, n_prev=0)               # placeholder column
    m1 = make_progressive_net(k1, out_dim, n_prev=1)
    net = make_progressive_net(k2, out_dim, n_prev=2, previous_models=[m0, m1])

    fwd = jax.jit(lambda inp: forward(net, inp))
    out = jax.block_until_ready(fwd(x))
    assert out.shape == (2, out_dim), out.shape

    ref = forward_ref(net, x)
    max_diff = float(jnp.max(jnp.abs(out - ref)))
    # bf16 MXU inputs / bf16 inter-layer activations (f32 accumulation)
    # -> slightly looser tolerance than pure f32.
    if not bool(jnp.allclose(out, ref, rtol=5e-2, atol=5e-2)):
        raise AssertionError(f"mismatch vs reference, max abs diff = {max_diff}")

    print("KERNEL_OK")
</pallas_src>

<mosaic_0001>
module attributes {stable_mosaic.version = 11 : i64} {
  func.func @_mm_kernel_direct(%arg0: i32, %arg1: i32, %arg2: memref<400x256xbf16, #tpu.memory_space<vmem>>, %arg3: memref<256x128xbf16, #tpu.memory_space<vmem>>, %arg4: memref<1x128xf32, #tpu.memory_space<vmem>>, %arg5: memref<400x128xbf16, #tpu.memory_space<vmem>>) attributes {dimension_semantics = [#tpu.dimension_semantics<parallel>, #tpu.dimension_semantics<arbitrary>], iteration_bounds = array<i64: 2, 1>, scalar_prefetch = 0 : i64, scratch_operands = 0 : i64, tpu.core_type = #tpu.core_type<tc>, window_params = [{transform_indices = @transform_0, window_bounds = array<i64: 400, 256>}, {transform_indices = @transform_1, window_bounds = array<i64: 256, 128>}, {pipeline_mode = #tpu.pipeline_mode<synchronous>, transform_indices = @transform_2, window_bounds = array<i64: 1, 128>}, {transform_indices = @transform_3, window_bounds = array<i64: 400, 128>}]} {
    %c0 = arith.constant 0 : index
    %c0_0 = arith.constant 0 : index
    %0 = vector.load %arg2[%c0, %c0_0] : memref<400x256xbf16, #tpu.memory_space<vmem>>, vector<400x256xbf16>
    %c0_1 = arith.constant 0 : index
    %c0_2 = arith.constant 0 : index
    %1 = vector.load %arg3[%c0_1, %c0_2] : memref<256x128xbf16, #tpu.memory_space<vmem>>, vector<256x128xbf16>
    %cst = arith.constant dense<0.000000e+00> : vector<400x128xf32>
    %2 = tpu.matmul %0, %1, %cst {dimension_numbers = #tpu.dot_dimension_numbers<[1], [0], [0], [1], [0, 0, 1, 1], [], []>} : vector<400x256xbf16>, vector<256x128xbf16>, vector<400x128xf32> -> vector<400x128xf32>
    %c0_3 = arith.constant 0 : index
    %c0_4 = arith.constant 0 : index
    %3 = vector.load %arg4[%c0_3, %c0_4] : memref<1x128xf32, #tpu.memory_space<vmem>>, vector<1x128xf32>
    %4 = vector.broadcast %3 : vector<1x128xf32> to vector<400x128xf32>
    %5 = arith.addf %2, %4 : vector<400x128xf32>
    %6 = arith.truncf %5 : vector<400x128xf32> to vector<400x128xbf16>
    %c0_5 = arith.constant 0 : index
    %c0_6 = arith.constant 0 : index
    %7 = vector.load %arg5[%c0_5, %c0_6] : memref<400x128xbf16, #tpu.memory_space<vmem>>, vector<400x128xbf16>
    tpu.vector_store %arg5[%c0_5, %c0_6], %6 {strides = array<i32>} : memref<400x128xbf16, #tpu.memory_space<vmem>>, vector<400x128xbf16>,
    return
  }
  func.func @transform_0(%arg0: i32, %arg1: i32) -> (i32, i32) {
    %c0_i32 = arith.constant 0 : i32
    return %arg0, %arg1 : i32, i32
  }
  func.func @transform_1(%arg0: i32, %arg1: i32) -> (i32, i32) {
    %c0_i32 = arith.constant 0 : i32
    %c0_i32_0 = arith.constant 0 : i32
    return %arg1, %c0_i32 : i32, i32
  }
  func.func @transform_2(%arg0: i32, %arg1: i32) -> (i32, i32) {
    %c0_i32 = arith.constant 0 : i32
    %c0_i32_0 = arith.constant 0 : i32
    %c0_i32_1 = arith.constant 0 : i32
    return %c0_i32, %c0_i32_0 : i32, i32
  }
  func.func @transform_3(%arg0: i32, %arg1: i32) -> (i32, i32) {
    %c0_i32 = arith.constant 0 : i32
    %c0_i32_0 = arith.constant 0 : i32
    return %arg0, %c0_i32 : i32, i32
  }
}

module attributes {stable_mosaic.version = 11 : i64} {
  func.func @_mm_kernel_accum_scratch(%arg0: i32, %arg1: i32, %arg2: memref<96x768xbf16, #tpu.memory_space<vmem>>, %arg3: memref<768x128xbf16, #tpu.memory_space<vmem>>, %arg4: memref<1x128xf32, #tpu.memory_space<vmem>>, %arg5: memref<96x128xbf16, #tpu.memory_space<vmem>>, %arg6: memref<96x128xf32, #tpu.memory_space<vmem>>) attributes {dimension_semantics = [#tpu.dimension_semantics<parallel>, #tpu.dimension_semantics<arbitrary>], iteration_bounds = array<i64: 2, 2>, scalar_prefetch = 0 : i64, scratch_operands = 1 : i64, tpu.core_type = #tpu.core_type<tc>, window_params = [{transform_indices = @transform_0, window_bounds = array<i64: 96, 768>}, {transform_indices = @transform_1, window_bounds = array<i64: 768, 128>}, {pipeline_mode = #tpu.pipeline_mode<synchronous>, transform_indices = @transform_2, window_bounds = array<i64: 1, 128>}, {transform_indices = @transform_3, window_bounds = array<i64: 96, 128>}]} {
    %c0_i32 = arith.constant 0 : i32
    %0 = arith.cmpi eq, %arg1, %c0_i32 : i32
    %1 = arith.extui %0 : i1 to i32
    %c0_i32_0 = arith.constant 0 : i32
    %2 = arith.cmpi ne, %1, %c0_i32_0 : i32
    scf.if %2 {
      %cst_9 = arith.constant 0.000000e+00 : f32
      %12 = vector.broadcast %cst_9 : f32 to vector<96x128xf32>
      %c0_10 = arith.constant 0 : index
      %c0_11 = arith.constant 0 : index
      %13 = vector.load %arg6[%c0_10, %c0_11] : memref<96x128xf32, #tpu.memory_space<vmem>>, vector<96x128xf32>
      tpu.vector_store %arg6[%c0_10, %c0_11], %12 {strides = array<i32>} : memref<96x128xf32, #tpu.memory_space<vmem>>, vector<96x128xf32>,
    } else {
    }
    %c0 = arith.constant 0 : index
    %c0_1 = arith.constant 0 : index
    %3 = vector.load %arg6[%c0, %c0_1] : memref<96x128xf32, #tpu.memory_space<vmem>>, vector<96x128xf32>
    %c0_2 = arith.constant 0 : index
    %c0_3 = arith.constant 0 : index
    %4 = vector.load %arg2[%c0_2, %c0_3] : memref<96x768xbf16, #tpu.memory_space<vmem>>, vector<96x768xbf16>
    %c0_4 = arith.constant 0 : index
    %c0_5 = arith.constant 0 : index
    %5 = vector.load %arg3[%c0_4, %c0_5] : memref<768x128xbf16, #tpu.memory_space<vmem>>, vector<768x128xbf16>
    %cst = arith.constant dense<0.000000e+00> : vector<96x128xf32>
    %6 = tpu.matmul %4, %5, %cst {dimension_numbers = #tpu.dot_dimension_numbers<[1], [0], [0], [1], [0, 0, 1, 1], [], []>} : vector<96x768xbf16>, vector<768x128xbf16>, vector<96x128xf32> -> vector<96x128xf32>
    %7 = arith.addf %3, %6 : vector<96x128xf32>
    %c0_6 = arith.constant 0 : index
    %c0_7 = arith.constant 0 : index
    %8 = vector.load %arg6[%c0_6, %c0_7] : memref<96x128xf32, #tpu.memory_space<vmem>>, vector<96x128xf32>
    tpu.vector_store %arg6[%c0_6, %c0_7], %7 {strides = array<i32>} : memref<96x128xf32, #tpu.memory_space<vmem>>, vector<96x128xf32>,
    %c1_i32 = arith.constant 1 : i32
    %9 = arith.cmpi eq, %arg1, %c1_i32 : i32
    %10 = arith.extui %9 : i1 to i32
    %c0_i32_8 = arith.constant 0 : i32
    %11 = arith.cmpi ne, %10, %c0_i32_8 : i32
    scf.if %11 {
      %c0_9 = arith.constant 0 : index
      %c0_10 = arith.constant 0 : index
      %12 = vector.load %arg6[%c0_9, %c0_10] : memref<96x128xf32, #tpu.memory_space<vmem>>, vector<96x128xf32>
      %c0_11 = arith.constant 0 : index
      %c0_12 = arith.constant 0 : index
      %13 = vector.load %arg4[%c0_11, %c0_12] : memref<1x128xf32, #tpu.memory_space<vmem>>, vector<1x128xf32>
      %14 = vector.broadcast %13 : vector<1x128xf32> to vector<96x128xf32>
      %15 = arith.addf %12, %14 : vector<96x128xf32>
      %cst_13 = arith.constant 0.000000e+00 : f32
      %16 = vector.broadcast %cst_13 : f32 to vector<96x128xf32>
      %17 = arith.maximumf %15, %16 : vector<96x128xf32>
      %18 = arith.truncf %17 : vector<96x128xf32> to vector<96x128xbf16>
      %c0_14 = arith.constant 0 : index
      %c0_15 = arith.constant 0 : index
      %19 = vector.load %arg5[%c0_14, %c0_15] : memref<96x128xbf16, #tpu.memory_space<vmem>>, vector<96x128xbf16>
      tpu.vector_store %arg5[%c0_14, %c0_15], %18 {strides = array<i32>} : memref<96x128xbf16, #tpu.memory_space<vmem>>, vector<96x128xbf16>,
    } else {
    }
    return
  }
  func.func @transform_0(%arg0: i32, %arg1: i32) -> (i32, i32) {
    %c0_i32 = arith.constant 0 : i32
    return %arg0, %arg1 : i32, i32
  }
  func.func @transform_1(%arg0: i32, %arg1: i32) -> (i32, i32) {
    %c0_i32 = arith.constant 0 : i32
    %c0_i32_0 = arith.constant 0 : i32
    return %arg1, %c0_i32 : i32, i32
  }
  func.func @transform_2(%arg0: i32, %arg1: i32) -> (i32, i32) {
    %c0_i32 = arith.constant 0 : i32
    %c0_i32_0 = arith.constant 0 : i32
    %c0_i32_1 = arith.constant 0 : i32
    return %c0_i32, %c0_i32_0 : i32, i32
  }
  func.func @transform_3(%arg0: i32, %arg1: i32) -> (i32, i32) {
    %c0_i32 = arith.constant 0 : i32
    %c0_i32_0 = arith.constant 0 : i32
    return %arg0, %c0_i32 : i32, i32
  }
}

module attributes {stable_mosaic.version = 11 : i64} {
  func.func @_mm_kernel_direct(%arg0: i32, %arg1: i32, %arg2: memref<96x1024xbf16, #tpu.memory_space<vmem>>, %arg3: memref<1024x128xbf16, #tpu.memory_space<vmem>>, %arg4: memref<1x128xf32, #tpu.memory_space<vmem>>, %arg5: memref<96x128xbf16, #tpu.memory_space<vmem>>) attributes {dimension_semantics = [#tpu.dimension_semantics<parallel>, #tpu.dimension_semantics<arbitrary>], iteration_bounds = array<i64: 2, 1>, scalar_prefetch = 0 : i64, scratch_operands = 0 : i64, tpu.core_type = #tpu.core_type<tc>, window_params = [{transform_indices = @transform_0, window_bounds = array<i64: 96, 1024>}, {transform_indices = @transform_1, window_bounds = array<i64: 1024, 128>}, {pipeline_mode = #tpu.pipeline_mode<synchronous>, transform_indices = @transform_2, window_bounds = array<i64: 1, 128>}, {transform_indices = @transform_3, window_bounds = array<i64: 96, 128>}]} {
    %c0 = arith.constant 0 : index
    %c0_0 = arith.constant 0 : index
    %0 = vector.load %arg2[%c0, %c0_0] : memref<96x1024xbf16, #tpu.memory_space<vmem>>, vector<96x1024xbf16>
    %c0_1 = arith.constant 0 : index
    %c0_2 = arith.constant 0 : index
    %1 = vector.load %arg3[%c0_1, %c0_2] : memref<1024x128xbf16, #tpu.memory_space<vmem>>, vector<1024x128xbf16>
    %cst = arith.constant dense<0.000000e+00> : vector<96x128xf32>
    %2 = tpu.matmul %0, %1, %cst {dimension_numbers = #tpu.dot_dimension_numbers<[1], [0], [0], [1], [0, 0, 1, 1], [], []>} : vector<96x1024xbf16>, vector<1024x128xbf16>, vector<96x128xf32> -> vector<96x128xf32>
    %c0_3 = arith.constant 0 : index
    %c0_4 = arith.constant 0 : index
    %3 = vector.load %arg4[%c0_3, %c0_4] : memref<1x128xf32, #tpu.memory_space<vmem>>, vector<1x128xf32>
    %4 = vector.broadcast %3 : vector<1x128xf32> to vector<96x128xf32>
    %5 = arith.addf %2, %4 : vector<96x128xf32>
    %cst_5 = arith.constant 0.000000e+00 : f32
    %6 = vector.broadcast %cst_5 : f32 to vector<96x128xf32>
    %7 = arith.maximumf %5, %6 : vector<96x128xf32>
    %8 = arith.truncf %7 : vector<96x128xf32> to vector<96x128xbf16>
    %c0_6 = arith.constant 0 : index
    %c0_7 = arith.constant 0 : index
    %9 = vector.load %arg5[%c0_6, %c0_7] : memref<96x128xbf16, #tpu.memory_space<vmem>>, vector<96x128xbf16>
    tpu.vector_store %arg5[%c0_6, %c0_7], %8 {strides = array<i32>} : memref<96x128xbf16, #tpu.memory_space<vmem>>, vector<96x128xbf16>,
    return
  }
  func.func @transform_0(%arg0: i32, %arg1: i32) -> (i32, i32) {
    %c0_i32 = arith.constant 0 : i32
    return %arg0, %arg1 : i32, i32
  }
  func.func @transform_1(%arg0: i32, %arg1: i32) -> (i32, i32) {
    %c0_i32 = arith.constant 0 : i32
    %c0_i32_0 = arith.constant 0 : i32
    return %arg1, %c0_i32 : i32, i32
  }
  func.func @transform_2(%arg0: i32, %arg1: i32) -> (i32, i32) {
    %c0_i32 = arith.constant 0 : i32
    %c0_i32_0 = arith.constant 0 : i32
    %c0_i32_1 = arith.constant 0 : i32
    return %c0_i32, %c0_i32_0 : i32, i32
  }
  func.func @transform_3(%arg0: i32, %arg1: i32) -> (i32, i32) {
    %c0_i32 = arith.constant 0 : i32
    %c0_i32_0 = arith.constant 0 : i32
    return %arg0, %c0_i32 : i32, i32
  }
}

module attributes {stable_mosaic.version = 11 : i64} {
  func.func @_mm_kernel_direct(%arg0: i32, %arg1: i32, %arg2: memref<96x512xbf16, #tpu.memory_space<vmem>>, %arg3: memref<512x128xbf16, #tpu.memory_space<vmem>>, %arg4: memref<1x128xf32, #tpu.memory_space<vmem>>, %arg5: memref<96x128xbf16, #tpu.memory_space<vmem>>) attributes {dimension_semantics = [#tpu.dimension_semantics<parallel>, #tpu.dimension_semantics<arbitrary>], iteration_bounds = array<i64: 2, 1>, scalar_prefetch = 0 : i64, scratch_operands = 0 : i64, tpu.core_type = #tpu.core_type<tc>, window_params = [{transform_indices = @transform_0, window_bounds = array<i64: 96, 512>}, {transform_indices = @transform_1, window_bounds = array<i64: 512, 128>}, {pipeline_mode = #tpu.pipeline_mode<synchronous>, transform_indices = @transform_2, window_bounds = array<i64: 1, 128>}, {transform_indices = @transform_3, window_bounds = array<i64: 96, 128>}]} {
    %c0 = arith.constant 0 : index
    %c0_0 = arith.constant 0 : index
    %0 = vector.load %arg2[%c0, %c0_0] : memref<96x512xbf16, #tpu.memory_space<vmem>>, vector<96x512xbf16>
    %c0_1 = arith.constant 0 : index
    %c0_2 = arith.constant 0 : index
    %1 = vector.load %arg3[%c0_1, %c0_2] : memref<512x128xbf16, #tpu.memory_space<vmem>>, vector<512x128xbf16>
    %cst = arith.constant dense<0.000000e+00> : vector<96x128xf32>
    %2 = tpu.matmul %0, %1, %cst {dimension_numbers = #tpu.dot_dimension_numbers<[1], [0], [0], [1], [0, 0, 1, 1], [], []>} : vector<96x512xbf16>, vector<512x128xbf16>, vector<96x128xf32> -> vector<96x128xf32>
    %c0_3 = arith.constant 0 : index
    %c0_4 = arith.constant 0 : index
    %3 = vector.load %arg4[%c0_3, %c0_4] : memref<1x128xf32, #tpu.memory_space<vmem>>, vector<1x128xf32>
    %4 = vector.broadcast %3 : vector<1x128xf32> to vector<96x128xf32>
    %5 = arith.addf %2, %4 : vector<96x128xf32>
    %6 = arith.truncf %5 : vector<96x128xf32> to vector<96x128xbf16>
    %c0_5 = arith.constant 0 : index
    %c0_6 = arith.constant 0 : index
    %7 = vector.load %arg5[%c0_5, %c0_6] : memref<96x128xbf16, #tpu.memory_space<vmem>>, vector<96x128xbf16>
    tpu.vector_store %arg5[%c0_5, %c0_6], %6 {strides = array<i32>} : memref<96x128xbf16, #tpu.memory_space<vmem>>, vector<96x128xbf16>,
    return
  }
  func.func @transform_0(%arg0: i32, %arg1: i32) -> (i32, i32) {
    %c0_i32 = arith.constant 0 : i32
    return %arg0, %arg1 : i32, i32
  }
  func.func @transform_1(%arg0: i32, %arg1: i32) -> (i32, i32) {
    %c0_i32 = arith.constant 0 : i32
    %c0_i32_0 = arith.constant 0 : i32
    return %arg1, %c0_i32 : i32, i32
  }
  func.func @transform_2(%arg0: i32, %arg1: i32) -> (i32, i32) {
    %c0_i32 = arith.constant 0 : i32
    %c0_i32_0 = arith.constant 0 : i32
    %c0_i32_1 = arith.constant 0 : i32
    return %c0_i32, %c0_i32_0 : i32, i32
  }
  func.func @transform_3(%arg0: i32, %arg1: i32) -> (i32, i32) {
    %c0_i32 = arith.constant 0 : i32
    %c0_i32_0 = arith.constant 0 : i32
    return %arg0, %c0_i32 : i32, i32
  }
}

module attributes {stable_mosaic.version = 11 : i64} {
  func.func @_mm_kernel_accum_scratch(%arg0: i32, %arg1: i32, %arg2: memref<64x896xbf16, #tpu.memory_space<vmem>>, %arg3: memref<896x128xbf16, #tpu.memory_space<vmem>>, %arg4: memref<1x128xf32, #tpu.memory_space<vmem>>, %arg5: memref<64x128xbf16, #tpu.memory_space<vmem>>, %arg6: memref<64x128xf32, #tpu.memory_space<vmem>>) attributes {dimension_semantics = [#tpu.dimension_semantics<parallel>, #tpu.dimension_semantics<arbitrary>], iteration_bounds = array<i64: 2, 2>, scalar_prefetch = 0 : i64, scratch_operands = 1 : i64, tpu.core_type = #tpu.core_type<tc>, window_params = [{transform_indices = @transform_0, window_bounds = array<i64: 64, 896>}, {transform_indices = @transform_1, window_bounds = array<i64: 896, 128>}, {pipeline_mode = #tpu.pipeline_mode<synchronous>, transform_indices = @transform_2, window_bounds = array<i64: 1, 128>}, {transform_indices = @transform_3, window_bounds = array<i64: 64, 128>}]} {
    %c0_i32 = arith.constant 0 : i32
    %0 = arith.cmpi eq, %arg1, %c0_i32 : i32
    %1 = arith.extui %0 : i1 to i32
    %c0_i32_0 = arith.constant 0 : i32
    %2 = arith.cmpi ne, %1, %c0_i32_0 : i32
    scf.if %2 {
      %cst_9 = arith.constant 0.000000e+00 : f32
      %12 = vector.broadcast %cst_9 : f32 to vector<64x128xf32>
      %c0_10 = arith.constant 0 : index
      %c0_11 = arith.constant 0 : index
      %13 = vector.load %arg6[%c0_10, %c0_11] : memref<64x128xf32, #tpu.memory_space<vmem>>, vector<64x128xf32>
      tpu.vector_store %arg6[%c0_10, %c0_11], %12 {strides = array<i32>} : memref<64x128xf32, #tpu.memory_space<vmem>>, vector<64x128xf32>,
    } else {
    }
    %c0 = arith.constant 0 : index
    %c0_1 = arith.constant 0 : index
    %3 = vector.load %arg6[%c0, %c0_1] : memref<64x128xf32, #tpu.memory_space<vmem>>, vector<64x128xf32>
    %c0_2 = arith.constant 0 : index
    %c0_3 = arith.constant 0 : index
    %4 = vector.load %arg2[%c0_2, %c0_3] : memref<64x896xbf16, #tpu.memory_space<vmem>>, vector<64x896xbf16>
    %c0_4 = arith.constant 0 : index
    %c0_5 = arith.constant 0 : index
    %5 = vector.load %arg3[%c0_4, %c0_5] : memref<896x128xbf16, #tpu.memory_space<vmem>>, vector<896x128xbf16>
    %cst = arith.constant dense<0.000000e+00> : vector<64x128xf32>
    %6 = tpu.matmul %4, %5, %cst {dimension_numbers = #tpu.dot_dimension_numbers<[1], [0], [0], [1], [0, 0, 1, 1], [], []>} : vector<64x896xbf16>, vector<896x128xbf16>, vector<64x128xf32> -> vector<64x128xf32>
    %7 = arith.addf %3, %6 : vector<64x128xf32>
    %c0_6 = arith.constant 0 : index
    %c0_7 = arith.constant 0 : index
    %8 = vector.load %arg6[%c0_6, %c0_7] : memref<64x128xf32, #tpu.memory_space<vmem>>, vector<64x128xf32>
    tpu.vector_store %arg6[%c0_6, %c0_7], %7 {strides = array<i32>} : memref<64x128xf32, #tpu.memory_space<vmem>>, vector<64x128xf32>,
    %c1_i32 = arith.constant 1 : i32
    %9 = arith.cmpi eq, %arg1, %c1_i32 : i32
    %10 = arith.extui %9 : i1 to i32
    %c0_i32_8 = arith.constant 0 : i32
    %11 = arith.cmpi ne, %10, %c0_i32_8 : i32
    scf.if %11 {
      %c0_9 = arith.constant 0 : index
      %c0_10 = arith.constant 0 : index
      %12 = vector.load %arg6[%c0_9, %c0_10] : memref<64x128xf32, #tpu.memory_space<vmem>>, vector<64x128xf32>
      %c0_11 = arith.constant 0 : index
      %c0_12 = arith.constant 0 : index
      %13 = vector.load %arg4[%c0_11, %c0_12] : memref<1x128xf32, #tpu.memory_space<vmem>>, vector<1x128xf32>
      %14 = vector.broadcast %13 : vector<1x128xf32> to vector<64x128xf32>
      %15 = arith.addf %12, %14 : vector<64x128xf32>
      %cst_13 = arith.constant 0.000000e+00 : f32
      %16 = vector.broadcast %cst_13 : f32 to vector<64x128xf32>
      %17 = arith.maximumf %15, %16 : vector<64x128xf32>
      %18 = arith.truncf %17 : vector<64x128xf32> to vector<64x128xbf16>
      %c0_14 = arith.constant 0 : index
      %c0_15 = arith.constant 0 : index
      %19 = vector.load %arg5[%c0_14, %c0_15] : memref<64x128xbf16, #tpu.memory_space<vmem>>, vector<64x128xbf16>
      tpu.vector_store %arg5[%c0_14, %c0_15], %18 {strides = array<i32>} : memref<64x128xbf16, #tpu.memory_space<vmem>>, vector<64x128xbf16>,
    } else {
    }
    return
  }
  func.func @transform_0(%arg0: i32, %arg1: i32) -> (i32, i32) {
    %c0_i32 = arith.constant 0 : i32
    return %arg0, %arg1 : i32, i32
  }
  func.func @transform_1(%arg0: i32, %arg1: i32) -> (i32, i32) {
    %c0_i32 = arith.constant 0 : i32
    %c0_i32_0 = arith.constant 0 : i32
    return %arg1, %c0_i32 : i32, i32
  }
  func.func @transform_2(%arg0: i32, %arg1: i32) -> (i32, i32) {
    %c0_i32 = arith.constant 0 : i32
    %c0_i32_0 = arith.constant 0 : i32
    %c0_i32_1 = arith.constant 0 : i32
    return %c0_i32, %c0_i32_0 : i32, i32
  }
  func.func @transform_3(%arg0: i32, %arg1: i32) -> (i32, i32) {
    %c0_i32 = arith.constant 0 : i32
    %c0_i32_0 = arith.constant 0 : i32
    return %arg0, %c0_i32 : i32, i32
  }
}

module attributes {stable_mosaic.version = 11 : i64} {
  func.func @_mm_kernel_accum_scratch(%arg0: i32, %arg1: i32, %arg2: memref<64x640xbf16, #tpu.memory_space<vmem>>, %arg3: memref<640x128xbf16, #tpu.memory_space<vmem>>, %arg4: memref<1x128xf32, #tpu.memory_space<vmem>>, %arg5: memref<64x128xbf16, #tpu.memory_space<vmem>>, %arg6: memref<64x128xf32, #tpu.memory_space<vmem>>) attributes {dimension_semantics = [#tpu.dimension_semantics<parallel>, #tpu.dimension_semantics<arbitrary>], iteration_bounds = array<i64: 2, 2>, scalar_prefetch = 0 : i64, scratch_operands = 1 : i64, tpu.core_type = #tpu.core_type<tc>, window_params = [{transform_indices = @transform_0, window_bounds = array<i64: 64, 640>}, {transform_indices = @transform_1, window_bounds = array<i64: 640, 128>}, {pipeline_mode = #tpu.pipeline_mode<synchronous>, transform_indices = @transform_2, window_bounds = array<i64: 1, 128>}, {transform_indices = @transform_3, window_bounds = array<i64: 64, 128>}]} {
    %c0_i32 = arith.constant 0 : i32
    %0 = arith.cmpi eq, %arg1, %c0_i32 : i32
    %1 = arith.extui %0 : i1 to i32
    %c0_i32_0 = arith.constant 0 : i32
    %2 = arith.cmpi ne, %1, %c0_i32_0 : i32
    scf.if %2 {
      %cst_9 = arith.constant 0.000000e+00 : f32
      %12 = vector.broadcast %cst_9 : f32 to vector<64x128xf32>
      %c0_10 = arith.constant 0 : index
      %c0_11 = arith.constant 0 : index
      %13 = vector.load %arg6[%c0_10, %c0_11] : memref<64x128xf32, #tpu.memory_space<vmem>>, vector<64x128xf32>
      tpu.vector_store %arg6[%c0_10, %c0_11], %12 {strides = array<i32>} : memref<64x128xf32, #tpu.memory_space<vmem>>, vector<64x128xf32>,
    } else {
    }
    %c0 = arith.constant 0 : index
    %c0_1 = arith.constant 0 : index
    %3 = vector.load %arg6[%c0, %c0_1] : memref<64x128xf32, #tpu.memory_space<vmem>>, vector<64x128xf32>
    %c0_2 = arith.constant 0 : index
    %c0_3 = arith.constant 0 : index
    %4 = vector.load %arg2[%c0_2, %c0_3] : memref<64x640xbf16, #tpu.memory_space<vmem>>, vector<64x640xbf16>
    %c0_4 = arith.constant 0 : index
    %c0_5 = arith.constant 0 : index
    %5 = vector.load %arg3[%c0_4, %c0_5] : memref<640x128xbf16, #tpu.memory_space<vmem>>, vector<640x128xbf16>
    %cst = arith.constant dense<0.000000e+00> : vector<64x128xf32>
    %6 = tpu.matmul %4, %5, %cst {dimension_numbers = #tpu.dot_dimension_numbers<[1], [0], [0], [1], [0, 0, 1, 1], [], []>} : vector<64x640xbf16>, vector<640x128xbf16>, vector<64x128xf32> -> vector<64x128xf32>
    %7 = arith.addf %3, %6 : vector<64x128xf32>
    %c0_6 = arith.constant 0 : index
    %c0_7 = arith.constant 0 : index
    %8 = vector.load %arg6[%c0_6, %c0_7] : memref<64x128xf32, #tpu.memory_space<vmem>>, vector<64x128xf32>
    tpu.vector_store %arg6[%c0_6, %c0_7], %7 {strides = array<i32>} : memref<64x128xf32, #tpu.memory_space<vmem>>, vector<64x128xf32>,
    %c1_i32 = arith.constant 1 : i32
    %9 = arith.cmpi eq, %arg1, %c1_i32 : i32
    %10 = arith.extui %9 : i1 to i32
    %c0_i32_8 = arith.constant 0 : i32
    %11 = arith.cmpi ne, %10, %c0_i32_8 : i32
    scf.if %11 {
      %c0_9 = arith.constant 0 : index
      %c0_10 = arith.constant 0 : index
      %12 = vector.load %arg6[%c0_9, %c0_10] : memref<64x128xf32, #tpu.memory_space<vmem>>, vector<64x128xf32>
      %c0_11 = arith.constant 0 : index
      %c0_12 = arith.constant 0 : index
      %13 = vector.load %arg4[%c0_11, %c0_12] : memref<1x128xf32, #tpu.memory_space<vmem>>, vector<1x128xf32>
      %14 = vector.broadcast %13 : vector<1x128xf32> to vector<64x128xf32>
      %15 = arith.addf %12, %14 : vector<64x128xf32>
      %cst_13 = arith.constant 0.000000e+00 : f32
      %16 = vector.broadcast %cst_13 : f32 to vector<64x128xf32>
      %17 = arith.maximumf %15, %16 : vector<64x128xf32>
      %18 = arith.truncf %17 : vector<64x128xf32> to vector<64x128xbf16>
      %c0_14 = arith.constant 0 : index
      %c0_15 = arith.constant 0 : index
      %19 = vector.load %arg5[%c0_14, %c0_15] : memref<64x128xbf16, #tpu.memory_space<vmem>>, vector<64x128xbf16>
      tpu.vector_store %arg5[%c0_14, %c0_15], %18 {strides = array<i32>} : memref<64x128xbf16, #tpu.memory_space<vmem>>, vector<64x128xbf16>,
    } else {
    }
    return
  }
  func.func @transform_0(%arg0: i32, %arg1: i32) -> (i32, i32) {
    %c0_i32 = arith.constant 0 : i32
    return %arg0, %arg1 : i32, i32
  }
  func.func @transform_1(%arg0: i32, %arg1: i32) -> (i32, i32) {
    %c0_i32 = arith.constant 0 : i32
    %c0_i32_0 = arith.constant 0 : i32
    return %arg1, %c0_i32 : i32, i32
  }
  func.func @transform_2(%arg0: i32, %arg1: i32) -> (i32, i32) {
    %c0_i32 = arith.constant 0 : i32
    %c0_i32_0 = arith.constant 0 : i32
    %c0_i32_1 = arith.constant 0 : i32
    return %c0_i32, %c0_i32_0 : i32, i32
  }
  func.func @transform_3(%arg0: i32, %arg1: i32) -> (i32, i32) {
    %c0_i32 = arith.constant 0 : i32
    %c0_i32_0 = arith.constant 0 : i32
    return %arg0, %c0_i32 : i32, i32
  }
}

module attributes {stable_mosaic.version = 11 : i64} {
  func.func @_mm_kernel_direct(%arg0: i32, %arg1: i32, %arg2: memref<64x640xbf16, #tpu.memory_space<vmem>>, %arg3: memref<640x128xbf16, #tpu.memory_space<vmem>>, %arg4: memref<1x128xf32, #tpu.memory_space<vmem>>, %arg5: memref<64x128xbf16, #tpu.memory_space<vmem>>) attributes {dimension_semantics = [#tpu.dimension_semantics<parallel>, #tpu.dimension_semantics<arbitrary>], iteration_bounds = array<i64: 2, 1>, scalar_prefetch = 0 : i64, scratch_operands = 0 : i64, tpu.core_type = #tpu.core_type<tc>, window_params = [{transform_indices = @transform_0, window_bounds = array<i64: 64, 640>}, {transform_indices = @transform_1, window_bounds = array<i64: 640, 128>}, {pipeline_mode = #tpu.pipeline_mode<synchronous>, transform_indices = @transform_2, window_bounds = array<i64: 1, 128>}, {transform_indices = @transform_3, window_bounds = array<i64: 64, 128>}]} {
    %c0 = arith.constant 0 : index
    %c0_0 = arith.constant 0 : index
    %0 = vector.load %arg2[%c0, %c0_0] : memref<64x640xbf16, #tpu.memory_space<vmem>>, vector<64x640xbf16>
    %c0_1 = arith.constant 0 : index
    %c0_2 = arith.constant 0 : index
    %1 = vector.load %arg3[%c0_1, %c0_2] : memref<640x128xbf16, #tpu.memory_space<vmem>>, vector<640x128xbf16>
    %cst = arith.constant dense<0.000000e+00> : vector<64x128xf32>
    %2 = tpu.matmul %0, %1, %cst {dimension_numbers = #tpu.dot_dimension_numbers<[1], [0], [0], [1], [0, 0, 1, 1], [], []>} : vector<64x640xbf16>, vector<640x128xbf16>, vector<64x128xf32> -> vector<64x128xf32>
    %c0_3 = arith.constant 0 : index
    %c0_4 = arith.constant 0 : index
    %3 = vector.load %arg4[%c0_3, %c0_4] : memref<1x128xf32, #tpu.memory_space<vmem>>, vector<1x128xf32>
    %4 = vector.broadcast %3 : vector<1x128xf32> to vector<64x128xf32>
    %5 = arith.addf %2, %4 : vector<64x128xf32>
    %6 = arith.truncf %5 : vector<64x128xf32> to vector<64x128xbf16>
    %c0_5 = arith.constant 0 : index
    %c0_6 = arith.constant 0 : index
    %7 = vector.load %arg5[%c0_5, %c0_6] : memref<64x128xbf16, #tpu.memory_space<vmem>>, vector<64x128xbf16>
    tpu.vector_store %arg5[%c0_5, %c0_6], %6 {strides = array<i32>} : memref<64x128xbf16, #tpu.memory_space<vmem>>, vector<64x128xbf16>,
    return
  }
  func.func @transform_0(%arg0: i32, %arg1: i32) -> (i32, i32) {
    %c0_i32 = arith.constant 0 : i32
    return %arg0, %arg1 : i32, i32
  }
  func.func @transform_1(%arg0: i32, %arg1: i32) -> (i32, i32) {
    %c0_i32 = arith.constant 0 : i32
    %c0_i32_0 = arith.constant 0 : i32
    return %arg1, %c0_i32 : i32, i32
  }
  func.func @transform_2(%arg0: i32, %arg1: i32) -> (i32, i32) {
    %c0_i32 = arith.constant 0 : i32
    %c0_i32_0 = arith.constant 0 : i32
    %c0_i32_1 = arith.constant 0 : i32
    return %c0_i32, %c0_i32_0 : i32, i32
  }
  func.func @transform_3(%arg0: i32, %arg1: i32) -> (i32, i32) {
    %c0_i32 = arith.constant 0 : i32
    %c0_i32_0 = arith.constant 0 : i32
    return %arg0, %c0_i32 : i32, i32
  }
}

module attributes {stable_mosaic.version = 11 : i64} {
  func.func @_mm_kernel_accum_out(%arg0: i32, %arg1: i32, %arg2: memref<16x1024xbf16, #tpu.memory_space<vmem>>, %arg3: memref<1024x128xbf16, #tpu.memory_space<vmem>>, %arg4: memref<1x128xf32, #tpu.memory_space<vmem>>, %arg5: memref<16x128xf32, #tpu.memory_space<vmem>>) attributes {dimension_semantics = [#tpu.dimension_semantics<parallel>, #tpu.dimension_semantics<arbitrary>], iteration_bounds = array<i64: 1, 10>, scalar_prefetch = 0 : i64, scratch_operands = 0 : i64, tpu.core_type = #tpu.core_type<tc>, window_params = [{transform_indices = @transform_0, window_bounds = array<i64: 16, 1024>}, {transform_indices = @transform_1, window_bounds = array<i64: 1024, 128>}, {pipeline_mode = #tpu.pipeline_mode<synchronous>, transform_indices = @transform_2, window_bounds = array<i64: 1, 128>}, {transform_indices = @transform_3, window_bounds = array<i64: 16, 128>}]} {
    %c0_i32 = arith.constant 0 : i32
    %0 = arith.cmpi eq, %arg1, %c0_i32 : i32
    %1 = arith.extui %0 : i1 to i32
    %c0_i32_0 = arith.constant 0 : i32
    %2 = arith.cmpi ne, %1, %c0_i32_0 : i32
    scf.if %2 {
      %cst_9 = arith.constant 0.000000e+00 : f32
      %12 = vector.broadcast %cst_9 : f32 to vector<16x128xf32>
      %c0_10 = arith.constant 0 : index
      %c0_11 = arith.constant 0 : index
      %13 = vector.load %arg5[%c0_10, %c0_11] : memref<16x128xf32, #tpu.memory_space<vmem>>, vector<16x128xf32>
      tpu.vector_store %arg5[%c0_10, %c0_11], %12 {strides = array<i32>} : memref<16x128xf32, #tpu.memory_space<vmem>>, vector<16x128xf32>,
    } else {
    }
    %c0 = arith.constant 0 : index
    %c0_1 = arith.constant 0 : index
    %3 = vector.load %arg5[%c0, %c0_1] : memref<16x128xf32, #tpu.memory_space<vmem>>, vector<16x128xf32>
    %c0_2 = arith.constant 0 : index
    %c0_3 = arith.constant 0 : index
    %4 = vector.load %arg2[%c0_2, %c0_3] : memref<16x1024xbf16, #tpu.memory_space<vmem>>, vector<16x1024xbf16>
    %c0_4 = arith.constant 0 : index
    %c0_5 = arith.constant 0 : index
    %5 = vector.load %arg3[%c0_4, %c0_5] : memref<1024x128xbf16, #tpu.memory_space<vmem>>, vector<1024x128xbf16>
    %cst = arith.constant dense<0.000000e+00> : vector<16x128xf32>
    %6 = tpu.matmul %4, %5, %cst {dimension_numbers = #tpu.dot_dimension_numbers<[1], [0], [0], [1], [0, 0, 1, 1], [], []>} : vector<16x1024xbf16>, vector<1024x128xbf16>, vector<16x128xf32> -> vector<16x128xf32>
    %7 = arith.addf %3, %6 : vector<16x128xf32>
    %c0_6 = arith.constant 0 : index
    %c0_7 = arith.constant 0 : index
    %8 = vector.load %arg5[%c0_6, %c0_7] : memref<16x128xf32, #tpu.memory_space<vmem>>, vector<16x128xf32>
    tpu.vector_store %arg5[%c0_6, %c0_7], %7 {strides = array<i32>} : memref<16x128xf32, #tpu.memory_space<vmem>>, vector<16x128xf32>,
    %c9_i32 = arith.constant 9 : i32
    %9 = arith.cmpi eq, %arg1, %c9_i32 : i32
    %10 = arith.extui %9 : i1 to i32
    %c0_i32_8 = arith.constant 0 : i32
    %11 = arith.cmpi ne, %10, %c0_i32_8 : i32
    scf.if %11 {
      %c0_9 = arith.constant 0 : index
      %c0_10 = arith.constant 0 : index
      %12 = vector.load %arg5[%c0_9, %c0_10] : memref<16x128xf32, #tpu.memory_space<vmem>>, vector<16x128xf32>
      %c0_11 = arith.constant 0 : index
      %c0_12 = arith.constant 0 : index
      %13 = vector.load %arg4[%c0_11, %c0_12] : memref<1x128xf32, #tpu.memory_space<vmem>>, vector<1x128xf32>
      %14 = vector.broadcast %13 : vector<1x128xf32> to vector<16x128xf32>
      %15 = arith.addf %12, %14 : vector<16x128xf32>
      %c0_13 = arith.constant 0 : index
      %c0_14 = arith.constant 0 : index
      %16 = vector.load %arg5[%c0_13, %c0_14] : memref<16x128xf32, #tpu.memory_space<vmem>>, vector<16x128xf32>
      tpu.vector_store %arg5[%c0_13, %c0_14], %15 {strides = array<i32>} : memref<16x128xf32, #tpu.memory_space<vmem>>, vector<16x128xf32>,
    } else {
    }
    return
  }
  func.func @transform_0(%arg0: i32, %arg1: i32) -> (i32, i32) {
    %c0_i32 = arith.constant 0 : i32
    return %arg0, %arg1 : i32, i32
  }
  func.func @transform_1(%arg0: i32, %arg1: i32) -> (i32, i32) {
    %c0_i32 = arith.constant 0 : i32
    %c0_i32_0 = arith.constant 0 : i32
    return %arg1, %c0_i32 : i32, i32
  }
  func.func @transform_2(%arg0: i32, %arg1: i32) -> (i32, i32) {
    %c0_i32 = arith.constant 0 : i32
    %c0_i32_0 = arith.constant 0 : i32
    %c0_i32_1 = arith.constant 0 : i32
    return %c0_i32, %c0_i32_0 : i32, i32
  }
  func.func @transform_3(%arg0: i32, %arg1: i32) -> (i32, i32) {
    %c0_i32 = arith.constant 0 : i32
    %c0_i32_0 = arith.constant 0 : i32
    return %arg0, %c0_i32 : i32, i32
  }
}

</mosaic_0001>

<llo_original>
// kernel: _lambda_.8
$region0: #{_lambda_.8}
  #allocation0 [shape = 'u32[]', space=smem, size = 0x4, offset = 0x4, fixed_abs, tag = 'smem constant byte address 0x4 - core index']
  #allocation1 [shape = 'u32[144,128]{1,0:T(1,128)}', space=vmem, size = 0x12000, scoped, tag = 'internal scratch']
  %s0 = inlined_call_operand.vmem [shape: bf16[800,256], index: 0, kind: input, shape index: {}]
  %s1 = inlined_call_operand.vmem [shape: bf16[256,128], index: 1, kind: input, shape index: {}]
  %s2 = inlined_call_operand.vmem [shape: f32[1,128], index: 2, kind: input, shape index: {}]
  %s3 = inlined_call_operand.vmem [shape: bf16[800,128], index: 3, kind: output, shape index: {}]
  %s4 = sld [smem:[#allocation0]]
  $region45: #{_lambda_.8} parent=0
    _
  %s6 = ssub.s32 1, %s4
  %s7 = scalar_select 0, %s6, %s4
  loop: start=0, step=1, limit=4
  $region2: #{_lambda_.8} parent=0 // loop_pre_header
    _
  $region3: #{_lambda_.8} parent=0 // loop_header
    %s9 = sphi 0, %s13
    %p10 = scmp.ge.s32.totalorder %s9, 4
    %s16 = sphi 0, %s28
    %s17 = sphi 0, %s24
    %s18 = sphi 0, %s16
    %s19 = sphi 0, %s17
    %s20 = sphi 0, %s18
    %s21 = sphi 0, %s19
    %s33 = sphi 0, %s35
    %s36 = sphi 0, %s33
    %s37 = sphi 0, %s36
    %s53 = sphi 0, %s37
    %s59 = sphi 0, %s61
    %s62 = sphi 0, %s59
    %s63 = sphi 0, %s62
    %s79 = sphi 0, %s63
    %s83 = sphi 0, %s83
    %s85 = sphi 0, %s83
    %s86 = sphi 0, %s85
    %s100 = sphi 0, %s86
    %s106 = sphi 0, %s108
    %s109 = sphi 0, %s106
    %s110 = sphi 0, %s109
    %s126 = sphi 0, %s110
  $region4: #{_lambda_.8} parent=0 // loop_header_branch
    %12 = sbr.rel (%p10) target = $region8
  $region5: #{_lambda_.8} parent=0 // loop_body
    %s14 = ssub.s32 %s9, 1
    %s15 = ssub.s32 %s9, 2
    %s22 = sadd.s32 1, %s17
    %p23 = scmp.ge.s32.totalorder %s22, 1
    %s24 = scalar_select %p23, 0, %s22
    %s25 = sadd.s32 1, %s16
    %s26 = scalar_select %p23, %s25, %s16
    %p27 = scmp.ge.s32.totalorder %s26, 2
    %s28 = scalar_select %p27, 0, %s26
    %s29 = ssub.s32 %s16, %s28
    %s30 = ssub.s32 %s17, %s24
    %s31 = sor.u32 %s29, %s30
    %p32 = scmp.eq.s32.totalorder %s31, 0
    %s34 = sadd.s32 %s33, 1
    %s35 = scalar_select %p32, %s33, %s34
    %p38 = pneg %p32
    %p39 = scmp.eq.s32.totalorder %s9, 1
    %p40 = por %p38, %p39
    %p41 = scmp.ne.s32.totalorder %s33, %s36
    %p42 = scmp.eq.s32.totalorder %s9, 0
    %p43 = por %p41, %p42
    %p44 = scmp.ne.s32.totalorder %s33, %s36
    %p45 = scmp.eq.s32.totalorder %s14, 1
    %p46 = por %p44, %p45
    %p47 = scmp.ne.s32.totalorder %s36, %s37
    %p48 = scmp.eq.s32.totalorder %s14, 0
    %p49 = por %p47, %p48
    %p50 = scmp.ne.s32.totalorder %s36, %s37
    %p51 = scmp.eq.s32.totalorder %s15, 1
    %p52 = por %p50, %p51
    %p54 = scmp.ne.s32.totalorder %s37, %s53
    %p55 = scmp.eq.s32.totalorder %s15, 0
    %p56 = por %p54, %p55
    %s57 = ssub.s32 %s17, %s24
    %p58 = scmp.eq.s32.totalorder %s57, 0
    %s60 = sadd.s32 %s59, 1
    %s61 = scalar_select %p58, %s59, %s60
    %p64 = pneg %p58
    %p65 = scmp.eq.s32.totalorder %s9, 1
    %p66 = por %p64, %p65
    %p67 = scmp.ne.s32.totalorder %s59, %s62
    %p68 = scmp.eq.s32.totalorder %s9, 0
    %p69 = por %p67, %p68
    %p70 = scmp.ne.s32.totalorder %s59, %s62
    %p71 = scmp.eq.s32.totalorder %s14, 1
    %p72 = por %p70, %p71
    %p73 = scmp.ne.s32.totalorder %s62, %s63
    %p74 = scmp.eq.s32.totalorder %s14, 0
    %p75 = por %p73, %p74
    %p76 = scmp.ne.s32.totalorder %s62, %s63
    %p77 = scmp.eq.s32.totalorder %s15, 1
    %p78 = por %p76, %p77
    %p80 = scmp.ne.s32.totalorder %s63, %s79
    %p81 = scmp.eq.s32.totalorder %s15, 0
    %p82 = por %p80, %p81
    %s84 = sadd.s32 %s83, 1
    %p87 = scmp.eq.s32.totalorder %s9, 1
    %p88 = scmp.ne.s32.totalorder %s83, %s85
    %p89 = scmp.eq.s32.totalorder %s9, 0
    %p90 = por %p88, %p89
    %p91 = scmp.ne.s32.totalorder %s83, %s85
    %p92 = scmp.eq.s32.totalorder %s14, 1
    %p93 = por %p91, %p92
    %p94 = scmp.ne.s32.totalorder %s85, %s86
    %p95 = scmp.eq.s32.totalorder %s14, 0
    %p96 = por %p94, %p95
    %p97 = scmp.ne.s32.totalorder %s85, %s86
    %p98 = scmp.eq.s32.totalorder %s15, 1
    %p99 = por %p97, %p98
    %p101 = scmp.ne.s32.totalorder %s86, %s100
    %p102 = scmp.eq.s32.totalorder %s15, 0
    %p103 = por %p101, %p102
    %s104 = ssub.s32 %s16, %s28
    %p105 = scmp.eq.s32.totalorder %s104, 0
    %s107 = sadd.s32 %s106, 1
    %s108 = scalar_select %p105, %s106, %s107
    %p111 = pneg %p105
    %p112 = scmp.eq.s32.totalorder %s9, 1
    %p113 = por %p111, %p112
    %p114 = scmp.ne.s32.totalorder %s106, %s109
    %p115 = scmp.eq.s32.totalorder %s9, 0
    %p116 = por %p114, %p115
    %p117 = scmp.ne.s32.totalorder %s106, %s109
    %p118 = scmp.eq.s32.totalorder %s14, 1
    %p119 = por %p117, %p118
    %p120 = scmp.ne.s32.totalorder %s109, %s110
    %p121 = scmp.eq.s32.totalorder %s14, 0
    %p122 = por %p120, %p121
    %p123 = scmp.ne.s32.totalorder %s109, %s110
    %p124 = scmp.eq.s32.totalorder %s15, 1
    %p125 = por %p123, %p124
    %p127 = scmp.ne.s32.totalorder %s110, %s126
    %p128 = scmp.eq.s32.totalorder %s15, 0
    %p129 = por %p127, %p128
    %p130 = scmp.le.s32.totalorder 1, %s9
    %p131 = scmp.lt.s32.totalorder %s9, 3
    %p132 = pnand %p130, %p131
    %p133 = pneg %p132
    // Predicated region
    $region9: #{_lambda_.8} parent=5 // pred_check
      _
    $region10: #{_lambda_.8} parent=5 // pred_check_branch
      %135 = sbr.rel (%p132) target = $region12
    $region11: #{_lambda_.8} parent=5 // pred_region
      %s136 = ssub.s32 %s9, 1
      // Predicated region
      $region13: #{_lambda_.8} parent=11 // pred_check
        %p137 = pneg %p75
      $region14: #{_lambda_.8} parent=11 // pred_check_branch
        %139 = sbr.rel (%p137) target = $region16
      $region15: #{_lambda_.8} parent=11 // pred_region
        %s140 = smul.u32 32, %s19
        %p141 = scmp.lt.s32.totalorder %s140, 31
        %s142 = scalar_select %p141, %s140, 31
        %s143 = smul.addr %s142, 4
        %s144 = scalar_lea.vmem %s1, %s143
        %s145 = smul.u32 32, %s19
      $region16: #{_lambda_.8} parent=11 // pred_fallthru
        _
      // Predicated region
      $region17: #{_lambda_.8} parent=11 // pred_check
        %p146 = pneg %p96
      $region18: #{_lambda_.8} parent=11 // pred_check_branch
        %148 = sbr.rel (%p146) target = $region20
      $region19: #{_lambda_.8} parent=11 // pred_region
        _
      $region20: #{_lambda_.8} parent=11 // pred_fallthru
        _
    $region12: #{_lambda_.8} parent=5 // pred_fallthru
      _
    %p149 = scmp.lt.s32.totalorder %s9, 2
    // Predicated region
    $region21: #{_lambda_.8} parent=5 // pred_check
      %p150 = pneg %p149
    $region22: #{_lambda_.8} parent=5 // pred_check_branch
      %152 = sbr.rel (%p150) target = $region24
    $region23: #{_lambda_.8} parent=5 // pred_region
      // Predicated region
      $region25: #{_lambda_.8} parent=23 // pred_check
        %p153 = pneg %p43
      $region26: #{_lambda_.8} parent=23 // pred_check_branch
        %155 = sbr.rel (%p153) target = $region28
      $region27: #{_lambda_.8} parent=23 // pred_region
        %s156 = smul.u32 50, %s16
        %s157 = smul.u32 2, %s17
        %p158 = scmp.lt.s32.totalorder %s156, 99
        %s159 = scalar_select %p158, %s156, 99
        %p160 = scmp.lt.s32.totalorder %s157, 1
        %s161 = scalar_select %p160, %s157, 1
        %s162 = smul.addr %s159, 2
        %s163 = sadd.s32 %s161, %s162
        %s164 = smul.addr %s163, 4
        %s165 = scalar_lea.vmem %s0, %s164
        %s166 = smul.u32 50, %s16
        %s167 = smul.u32 2, %s17
      $region28: #{_lambda_.8} parent=23 // pred_fallthru
        _
    $region24: #{_lambda_.8} parent=5 // pred_fallthru
      _
    %p168 = scmp.le.s32.totalorder 1, %s9
    %p169 = scmp.lt.s32.totalorder %s9, 3
    %p170 = pnand %p168, %p169
    %p171 = pneg %p170
    // Predicated region
    $region29: #{_lambda_.8} parent=5 // pred_check
      _
    $region30: #{_lambda_.8} parent=5 // pred_check_branch
      %173 = sbr.rel (%p170) target = $region32
    $region31: #{_lambda_.8} parent=5 // pred_region
      %s174 = ssub.s32 %s9, 1
      %s175 = smul.u32 50, %s18
      %s176 = smul.u32 2, %s19
      %p177 = scmp.lt.s32.totalorder %s175, 99
      %s178 = scalar_select %p177, %s175, 99
      %p179 = scmp.lt.s32.totalorder %s176, 1
      %s180 = scalar_select %p179, %s176, 1
      %s181 = smul.addr %s178, 2
      %s182 = sadd.s32 %s180, %s181
      %s183 = smul.addr %s182, 4
      %s184 = scalar_lea.vmem %s0, %s183
      %p185 = pneg %p49
      %p186 = pneg %p46
      %s187 = smul.u32 32, %s19
      %p188 = scmp.lt.s32.totalorder %s187, 31
      %s189 = scalar_select %p188, %s187, 31
      %s190 = smul.addr %s189, 4
      %s191 = scalar_lea.vmem %s1, %s190
      %p192 = pneg %p75
      %p193 = pneg %p72
      %p194 = pneg %p96
      %p195 = pneg %p93
      %p196 = pneg %p122
      %p197 = pneg %p119
      %s198 = smul.u32 50, %s18
      %p199 = scmp.lt.s32.totalorder %s198, 99
      %s200 = scalar_select %p199, %s198, 99
      %s201 = smul.addr %s200, 4
      %s202 = scalar_lea.vmem %s3, %s201
      %s203 = smul.u32 50, %s18
      %s204 = smul.u32 2, %s19
      %p205 = scmp.lt.s32.totalorder %s203, 99
      %s206 = scalar_select %p205, %s203, 99
      %p207 = scmp.lt.s32.totalorder %s204, 1
      %s208 = scalar_select %p207, %s204, 1
      %s209 = smul.addr %s206, 2
      %s210 = sadd.s32 %s208, %s209
      %s211 = smul.addr %s210, 4
      %s212 = scalar_lea.vmem %s0, %s211
      %s213 = smul.u32 50, %s18
      %s214 = smul.u32 2, %s19
      %s215 = smul.u32 32, %s19
      %p216 = scmp.lt.s32.totalorder %s215, 31
      %s217 = scalar_select %p216, %s215, 31
      %s218 = smul.addr %s217, 4
      %s219 = scalar_lea.vmem %s1, %s218
      %s220 = smul.u32 32, %s19
      %s221 = smul.u32 50, %s18
      %p222 = scmp.lt.s32.totalorder %s221, 99
      %s223 = scalar_select %p222, %s221, 99
      %s224 = smul.addr %s223, 4
      %s225 = scalar_lea.vmem %s3, %s224
      %s226 = smul.u32 50, %s18
      %v228 = vld [vmem:[%s212] sm:$0xff]
      %v229 = vld [vmem:[%s212 + $0x8] sm:$0xff]
      %v230 = vld [vmem:[%s212 + $0x10] sm:$0xff]
      %v231 = vld [vmem:[%s212 + $0x18] sm:$0xff]
      %v232 = vld [vmem:[%s212 + $0x20] sm:$0xff]
      %v233 = vld [vmem:[%s212 + $0x28] sm:$0xff]
      %v234 = vld [vmem:[%s212 + $0x30] sm:$0xff]
      %v235 = vld [vmem:[%s212 + $0x38] sm:$0xff]
      %v236 = vld [vmem:[%s212 + $0x40] sm:$0xff]
      %v237 = vld [vmem:[%s212 + $0x48] sm:$0xff]
      %v238 = vld [vmem:[%s212 + $0x50] sm:$0xff]
      %v239 = vld [vmem:[%s212 + $0x58] sm:$0xff]
      %v240 = vld [vmem:[%s212 + $0x60] sm:$0xff]
      %v241 = vld [vmem:[%s212 + $0x68] sm:$0xff]
      %v242 = vld [vmem:[%s212 + $0x70] sm:$0xff]
      %v243 = vld [vmem:[%s212 + $0x78] sm:$0xff]
      %v244 = vld [vmem:[%s212 + $0x80] sm:$0xff]
      %v245 = vld [vmem:[%s212 + $0x88] sm:$0xff]
      %v246 = vld [vmem:[%s212 + $0x90] sm:$0xff]
      %v247 = vld [vmem:[%s212 + $0x98] sm:$0xff]
      %v248 = vld [vmem:[%s212 + $0xa0] sm:$0xff]
      %v249 = vld [vmem:[%s212 + $0xa8] sm:$0xff]
      %v250 = vld [vmem:[%s212 + $0xb0] sm:$0xff]
      %v251 = vld [vmem:[%s212 + $0xb8] sm:$0xff]
      %v252 = vld [vmem:[%s212 + $0xc0] sm:$0xff]
      %v253 = vld [vmem:[%s212 + $0xc8] sm:$0xff]
      %v254 = vld [vmem:[%s212 + $0xd0] sm:$0xff]
      %v255 = vld [vmem:[%s212 + $0xd8] sm:$0xff]
      %v256 = vld [vmem:[%s212 + $0xe0] sm:$0xff]
      %v257 = vld [vmem:[%s212 + $0xe8] sm:$0xff]
      %v258 = vld [vmem:[%s212 + $0xf0] sm:$0xff]
      %v259 = vld [vmem:[%s212 + $0xf8] sm:$0xff]
      %v260 = vld [vmem:[%s212 + $0x100] sm:$0xff]
      %v261 = vld [vmem:[%s212 + $0x108] sm:$0xff]
      %v262 = vld [vmem:[%s212 + $0x110] sm:$0xff]
      %v263 = vld [vmem:[%s212 + $0x118] sm:$0xff]
      %v264 = vld [vmem:[%s212 + $0x120] sm:$0xff]
      %v265 = vld [vmem:[%s212 + $0x128] sm:$0xff]
      %v266 = vld [vmem:[%s212 + $0x130] sm:$0xff]
      %v267 = vld [vmem:[%s212 + $0x138] sm:$0xff]
      %v268 = vld [vmem:[%s212 + $0x140] sm:$0xff]
      %v269 = vld [vmem:[%s212 + $0x148] sm:$0xff]
      %v270 = vld [vmem:[%s212 + $0x150] sm:$0xff]
      %v271 = vld [vmem:[%s212 + $0x158] sm:$0xff]
      %v272 = vld [vmem:[%s212 + $0x160] sm:$0xff]
      %v273 = vld [vmem:[%s212 + $0x168] sm:$0xff]
      %v274 = vld [vmem:[%s212 + $0x170] sm:$0xff]
      %v275 = vld [vmem:[%s212 + $0x178] sm:$0xff]
      %v276 = vld [vmem:[%s212 + $0x180] sm:$0xff]
      %v277 = vld [vmem:[%s212 + $0x188] sm:$0xff]
      %v278 = vld [vmem:[%s219] sm:$0xf]
      %v279 = vld [vmem:[%s219 + $0x4] sm:$0xf]
      %v280 = vld [vmem:[%s219 + $0x8] sm:$0xf]
      %v281 = vld [vmem:[%s219 + $0xc] sm:$0xf]
      %v282 = vld [vmem:[%s219 + $0x10] sm:$0xf]
      %v283 = vld [vmem:[%s219 + $0x14] sm:$0xf]
      %v284 = vld [vmem:[%s219 + $0x18] sm:$0xf]
      %v285 = vld [vmem:[%s219 + $0x1c] sm:$0xf]
      %v286 = vld [vmem:[%s219 + $0x20] sm:$0xf]
      %v287 = vld [vmem:[%s219 + $0x24] sm:$0xf]
      %v288 = vld [vmem:[%s219 + $0x28] sm:$0xf]
      %v289 = vld [vmem:[%s219 + $0x2c] sm:$0xf]
      %v290 = vld [vmem:[%s219 + $0x30] sm:$0xf]
      %v291 = vld [vmem:[%s219 + $0x34] sm:$0xf]
      %v292 = vld [vmem:[%s219 + $0x38] sm:$0xf]
      %v293 = vld [vmem:[%s219 + $0x3c] sm:$0xf]
      %v294 = vld [vmem:[%s219 + $0x40] sm:$0xf]
      %v295 = vld [vmem:[%s219 + $0x44] sm:$0xf]
      %v296 = vld [vmem:[%s219 + $0x48] sm:$0xf]
      %v297 = vld [vmem:[%s219 + $0x4c] sm:$0xf]
      %v298 = vld [vmem:[%s219 + $0x50] sm:$0xf]
      %v299 = vld [vmem:[%s219 + $0x54] sm:$0xf]
      %v300 = vld [vmem:[%s219 + $0x58] sm:$0xf]
      %v301 = vld [vmem:[%s219 + $0x5c] sm:$0xf]
      %v302 = vld [vmem:[%s219 + $0x60] sm:$0xf]
      %v303 = vld [vmem:[%s219 + $0x64] sm:$0xf]
      %v304 = vld [vmem:[%s219 + $0x68] sm:$0xf]
      %v305 = vld [vmem:[%s219 + $0x6c] sm:$0xf]
      %v306 = vld [vmem:[%s219 + $0x70] sm:$0xf]
      %v307 = vld [vmem:[%s219 + $0x74] sm:$0xf]
      %v308 = vld [vmem:[%s219 + $0x78] sm:$0xf]
      %v309 = vld [vmem:[%s219 + $0x7c] sm:$0xf]
      %v310 = vld [vmem:[%s2] sm:$0x1]
      %v312 = vlaneseq
      %v313 = vshrl.u32 %v312, 7
      %v314 = vsub.s32 0, %v313
      %v315 = vrot.slane %v310, %v314
      %v367 = vunpack.c.l.b16 %v228
      %v368 = vunpack.c.h.b16 %v228
      %v369 = vunpack.c.l.b16 %v229
      %v370 = vunpack.c.h.b16 %v229
      %v371 = vunpack.c.l.b16 %v230
      %v372 = vunpack.c.h.b16 %v230
      %v373 = vunpack.c.l.b16 %v231
      %v374 = vunpack.c.h.b16 %v231
      %v375 = vunpack.c.l.b16 %v232
      %v376 = vunpack.c.h.b16 %v232
      %v377 = vunpack.c.l.b16 %v233
      %v378 = vunpack.c.h.b16 %v233
      %v379 = vunpack.c.l.b16 %v234
      %v380 = vunpack.c.h.b16 %v234
      %v381 = vunpack.c.l.b16 %v235
      %v382 = vunpack.c.h.b16 %v235
      %v383 = vunpack.c.l.b16 %v236
      %v384 = vunpack.c.h.b16 %v236
      %v385 = vunpack.c.l.b16 %v237
      %v386 = vunpack.c.h.b16 %v237
      %v387 = vunpack.c.l.b16 %v238
      %v388 = vunpack.c.h.b16 %v238
      %v389 = vunpack.c.l.b16 %v239
      %v390 = vunpack.c.h.b16 %v239
      %v391 = vunpack.c.l.b16 %v240
      %v392 = vunpack.c.h.b16 %v240
      %v393 = vunpack.c.l.b16 %v241
      %v394 = vunpack.c.h.b16 %v241
      %v395 = vunpack.c.l.b16 %v242
      %v396 = vunpack.c.h.b16 %v242
      %v397 = vunpack.c.l.b16 %v243
      %v398 = vunpack.c.h.b16 %v243
      %v399 = vunpack.c.l.b16 %v244
      %v400 = vunpack.c.h.b16 %v244
      %v401 = vunpack.c.l.b16 %v245
      %v402 = vunpack.c.h.b16 %v245
      %v403 = vunpack.c.l.b16 %v246
      %v404 = vunpack.c.h.b16 %v246
      %v405 = vunpack.c.l.b16 %v247
      %v406 = vunpack.c.h.b16 %v247
      %v407 = vunpack.c.l.b16 %v248
      %v408 = vunpack.c.h.b16 %v248
      %v409 = vunpack.c.l.b16 %v249
      %v410 = vunpack.c.h.b16 %v249
      %v411 = vunpack.c.l.b16 %v250
      %v412 = vunpack.c.h.b16 %v250
      %v413 = vunpack.c.l.b16 %v251
      %v414 = vunpack.c.h.b16 %v251
      %v415 = vunpack.c.l.b16 %v252
      %v416 = vunpack.c.h.b16 %v252
      %v417 = vunpack.c.l.b16 %v253
      %v418 = vunpack.c.h.b16 %v253
      %v419 = vunpack.c.l.b16 %v254
      %v420 = vunpack.c.h.b16 %v254
      %v421 = vunpack.c.l.b16 %v255
      %v422 = vunpack.c.h.b16 %v255
      %v423 = vunpack.c.l.b16 %v256
      %v424 = vunpack.c.h.b16 %v256
      %v425 = vunpack.c.l.b16 %v257
      %v426 = vunpack.c.h.b16 %v257
      %v427 = vunpack.c.l.b16 %v258
      %v428 = vunpack.c.h.b16 %v258
      %v429 = vunpack.c.l.b16 %v259
      %v430 = vunpack.c.h.b16 %v259
      %v431 = vunpack.c.l.b16 %v260
      %v432 = vunpack.c.h.b16 %v260
      %v433 = vunpack.c.l.b16 %v261
      %v434 = vunpack.c.h.b16 %v261
      %v435 = vunpack.c.l.b16 %v262
      %v436 = vunpack.c.h.b16 %v262
      %v437 = vunpack.c.l.b16 %v263
      %v438 = vunpack.c.h.b16 %v263
      %v439 = vunpack.c.l.b16 %v264
      %v440 = vunpack.c.h.b16 %v264
      %v441 = vunpack.c.l.b16 %v265
      %v442 = vunpack.c.h.b16 %v265
      %v443 = vunpack.c.l.b16 %v266
      %v444 = vunpack.c.h.b16 %v266
      %v445 = vunpack.c.l.b16 %v267
      %v446 = vunpack.c.h.b16 %v267
      %v447 = vunpack.c.l.b16 %v268
      %v448 = vunpack.c.h.b16 %v268
      %v449 = vunpack.c.l.b16 %v269
      %v450 = vunpack.c.h.b16 %v269
      %v451 = vunpack.c.l.b16 %v270
      %v452 = vunpack.c.h.b16 %v270
      %v453 = vunpack.c.l.b16 %v271
      %v454 = vunpack.c.h.b16 %v271
      %v455 = vunpack.c.l.b16 %v272
      %v456 = vunpack.c.h.b16 %v272
      %v457 = vunpack.c.l.b16 %v273
      %v458 = vunpack.c.h.b16 %v273
      %v459 = vunpack.c.l.b16 %v274
      %v460 = vunpack.c.h.b16 %v274
      %v461 = vunpack.c.l.b16 %v275
      %v462 = vunpack.c.h.b16 %v275
      %v463 = vunpack.c.l.b16 %v276
      %v464 = vunpack.c.h.b16 %v276
      %v465 = vunpack.c.l.b16 %v277
      %v466 = vunpack.c.h.b16 %v277
      %v467 = vpack.c.b16 %v369, %v367
      %v468 = vpack.c.b16 %v370, %v368
      %v469 = vpack.c.b16 %v373, %v371
      %v470 = vpack.c.b16 %v374, %v372
      %v471 = vpack.c.b16 %v377, %v375
      %v472 = vpack.c.b16 %v378, %v376
      %v473 = vpack.c.b16 %v381, %v379
      %v474 = vpack.c.b16 %v382, %v380
      %v475 = vpack.c.b16 %v385, %v383
      %v476 = vpack.c.b16 %v386, %v384
      %v477 = vpack.c.b16 %v389, %v387
      %v478 = vpack.c.b16 %v390, %v388
      %v479 = vpack.c.b16 %v393, %v391
      %v480 = vpack.c.b16 %v394, %v392
      %v481 = vpack.c.b16 %v397, %v395
      %v482 = vpack.c.b16 %v398, %v396
      %v483 = vpack.c.b16 %v401, %v399
      %v484 = vpack.c.b16 %v402, %v400
      %v485 = vpack.c.b16 %v405, %v403
      %v486 = vpack.c.b16 %v406, %v404
      %v487 = vpack.c.b16 %v409, %v407
      %v488 = vpack.c.b16 %v410, %v408
      %v489 = vpack.c.b16 %v413, %v411
      %v490 = vpack.c.b16 %v414, %v412
      %v491 = vpack.c.b16 %v417, %v415
      %v492 = vpack.c.b16 %v418, %v416
      %v493 = vpack.c.b16 %v421, %v419
      %v494 = vpack.c.b16 %v422, %v420
      %v495 = vpack.c.b16 %v425, %v423
      %v496 = vpack.c.b16 %v426, %v424
      %v497 = vpack.c.b16 %v429, %v427
      %v498 = vpack.c.b16 %v430, %v428
      %v499 = vpack.c.b16 %v433, %v431
      %v500 = vpack.c.b16 %v434, %v432
      %v501 = vpack.c.b16 %v437, %v435
      %v502 = vpack.c.b16 %v438, %v436
      %v503 = vpack.c.b16 %v441, %v439
      %v504 = vpack.c.b16 %v442, %v440
      %v505 = vpack.c.b16 %v445, %v443
      %v506 = vpack.c.b16 %v446, %v444
      %v507 = vpack.c.b16 %v449, %v447
      %v508 = vpack.c.b16 %v450, %v448
      %v509 = vpack.c.b16 %v453, %v451
      %v510 = vpack.c.b16 %v454, %v452
      %v511 = vpack.c.b16 %v457, %v455
      %v512 = vpack.c.b16 %v458, %v456
      %v513 = vpack.c.b16 %v461, %v459
      %v514 = vpack.c.b16 %v462, %v460
      %v515 = vpack.c.b16 %v465, %v463
      %v516 = vpack.c.b16 %v466, %v464
      %v599 = vunpack.c.l.b16 %v278
      %v600 = vunpack.c.l.b16 %v279
      %v601 = vunpack.c.l.b16 %v280
      %v602 = vunpack.c.l.b16 %v281
      %v603 = vunpack.c.l.b16 %v282
      %v604 = vunpack.c.l.b16 %v283
      %v605 = vunpack.c.l.b16 %v284
      %v606 = vunpack.c.l.b16 %v285
      %v607 = vunpack.c.l.b16 %v286
      %v608 = vunpack.c.l.b16 %v287
      %v609 = vunpack.c.l.b16 %v288
      %v610 = vunpack.c.l.b16 %v289
      %v611 = vunpack.c.l.b16 %v290
      %v612 = vunpack.c.l.b16 %v291
      %v613 = vunpack.c.l.b16 %v292
      %v614 = vunpack.c.l.b16 %v293
      %v615 = vunpack.c.l.b16 %v294
      %v616 = vunpack.c.l.b16 %v295
      %v617 = vunpack.c.l.b16 %v296
      %v618 = vunpack.c.l.b16 %v297
      %v619 = vunpack.c.l.b16 %v298
      %v620 = vunpack.c.l.b16 %v299
      %v621 = vunpack.c.l.b16 %v300
      %v622 = vunpack.c.l.b16 %v301
      %v623 = vunpack.c.l.b16 %v302
      %v624 = vunpack.c.l.b16 %v303
      %v625 = vunpack.c.l.b16 %v304
      %v626 = vunpack.c.l.b16 %v305
      %v627 = vunpack.c.l.b16 %v306
      %v628 = vunpack.c.l.b16 %v307
      %v629 = vunpack.c.l.b16 %v308
      %v630 = vunpack.c.l.b16 %v309
      %v631 = vpack.c.b16 %v600, %v599
      %v632 = vpack.c.b16 %v602, %v601
      %v633 = vpack.c.b16 %v604, %v603
      %v634 = vpack.c.b16 %v606, %v605
      %v635 = vpack.c.b16 %v608, %v607
      %v636 = vpack.c.b16 %v610, %v609
      %v637 = vpack.c.b16 %v612, %v611
      %v638 = vpack.c.b16 %v614, %v613
      %v639 = vpack.c.b16 %v616, %v615
      %v640 = vpack.c.b16 %v618, %v617
      %v641 = vpack.c.b16 %v620, %v619
      %v642 = vpack.c.b16 %v622, %v621
      %v643 = vpack.c.b16 %v624, %v623
      %v644 = vpack.c.b16 %v626, %v625
      %v645 = vpack.c.b16 %v628, %v627
      %v646 = vpack.c.b16 %v630, %v629
      %663 = vmatprep.subr.bf16.mxu0 0
      %664 = vmatpush1.bf16.msra.mxu0 %v631
      %665 = vmatprep.subr.bf16.mxu0 0
      %666 = vmatpush1.bf16.msra.mxu0 %v632
      %667 = vmatprep.subr.bf16.mxu0 0
      %668 = vmatpush1.bf16.msra.mxu0 %v633
      %669 = vmatprep.subr.bf16.mxu0 0
      %670 = vmatpush1.bf16.msra.mxu0 %v634
      %671 = vmatprep.subr.bf16.mxu0 0
      %672 = vmatpush1.bf16.msra.mxu0 %v635
      %673 = vmatprep.subr.bf16.mxu0 0
      %674 = vmatpush1.bf16.msra.mxu0 %v636
      %675 = vmatprep.subr.bf16.mxu0 0
      %676 = vmatpush1.bf16.msra.mxu0 %v637
      %677 = vmatprep.subr.bf16.mxu0 0
      %678 = vmatpush1.bf16.msra.mxu0 %v638
      %679 = vmatprep.subr.bf16.mxu0 0
      %680 = vmatpush1.bf16.msra.mxu0 %v639
      %681 = vmatprep.subr.bf16.mxu0 0
      %682 = vmatpush1.bf16.msra.mxu0 %v640
      %683 = vmatprep.subr.bf16.mxu0 0
      %684 = vmatpush1.bf16.msra.mxu0 %v641
      %685 = vmatprep.subr.bf16.mxu0 0
      %686 = vmatpush1.bf16.msra.mxu0 %v642
      %687 = vmatprep.subr.bf16.mxu0 0
      %688 = vmatpush1.bf16.msra.mxu0 %v643
      %689 = vmatprep.subr.bf16.mxu0 0
      %690 = vmatpush1.bf16.msra.mxu0 %v644
      %691 = vmatprep.subr.bf16.mxu0 0
      %692 = vmatpush1.bf16.msra.mxu0 %v645
      %693 = vmatprep.subr.bf16.mxu0 0
      %694 = vmatpush1.bf16.msra.mxu0 %v646
      %695 = vmatprep.mubr.bf16.mxu0 %v468
      %696 = vmatmul.mubr.bf16.gmra.mrb[0].mxu0 %v467
      %v697 = vpop.f32.mrb[0].mxu0
      %v698 = vadd.f32 %v315, %v697
      %v699 = vpop.f32.mrb[0].mxu0
      %v700 = vpop.f32.mrb[0].mxu0
      %v701 = vadd.f32 %v315, %v700
      %v702 = vpop.f32.mrb[0].mxu0
      %703 = vmatprep.mubr.bf16.mxu0 %v470
      %704 = vmatmul.mubr.bf16.gmra.mrb[0].mxu0 %v469
      %v705 = vpop.f32.mrb[0].mxu0
      %v706 = vadd.f32 %v315, %v705
      %v707 = vpop.f32.mrb[0].mxu0
      %v708 = vpop.f32.mrb[0].mxu0
      %v709 = vadd.f32 %v315, %v708
      %v710 = vpop.f32.mrb[0].mxu0
      %711 = vmatprep.mubr.bf16.mxu0 %v472
      %712 = vmatmul.mubr.bf16.gmra.mrb[0].mxu0 %v471
      %v713 = vpop.f32.mrb[0].mxu0
      %v714 = vadd.f32 %v315, %v713
      %v715 = vpop.f32.mrb[0].mxu0
      %v716 = vpop.f32.mrb[0].mxu0
      %v717 = vadd.f32 %v315, %v716
      %v718 = vpop.f32.mrb[0].mxu0
      %719 = vmatprep.mubr.bf16.mxu0 %v474
      %720 = vmatmul.mubr.bf16.gmra.mrb[0].mxu0 %v473
      %v721 = vpop.f32.mrb[0].mxu0
      %v722 = vadd.f32 %v315, %v721
      %v723 = vpop.f32.mrb[0].mxu0
      %v724 = vpop.f32.mrb[0].mxu0
      %v725 = vadd.f32 %v315, %v724
      %v726 = vpop.f32.mrb[0].mxu0
      %727 = vmatprep.mubr.bf16.mxu0 %v476
      %728 = vmatmul.mubr.bf16.gmra.mrb[0].mxu0 %v475
      %v729 = vpop.f32.mrb[0].mxu0
      %v730 = vadd.f32 %v315, %v729
      %v731 = vpop.f32.mrb[0].mxu0
      %v732 = vpop.f32.mrb[0].mxu0
      %v733 = vadd.f32 %v315, %v732
      %v734 = vpop.f32.mrb[0].mxu0
      %735 = vmatprep.mubr.bf16.mxu0 %v478
      %736 = vmatmul.mubr.bf16.gmra.mrb[0].mxu0 %v477
      %v737 = vpop.f32.mrb[0].mxu0
      %v738 = vadd.f32 %v315, %v737
      %v739 = vpop.f32.mrb[0].mxu0
      %v740 = vpop.f32.mrb[0].mxu0
      %v741 = vadd.f32 %v315, %v740
      %v742 = vpop.f32.mrb[0].mxu0
      %743 = vmatprep.mubr.bf16.mxu0 %v480
      %744 = vmatmul.mubr.bf16.gmra.mrb[0].mxu0 %v479
      %v745 = vpop.f32.mrb[0].mxu0
      %v746 = vadd.f32 %v315, %v745
      %v747 = vpop.f32.mrb[0].mxu0
      %v748 = vpop.f32.mrb[0].mxu0
      %v749 = vadd.f32 %v315, %v748
      %v750 = vpop.f32.mrb[0].mxu0
      %751 = vmatprep.mubr.bf16.mxu0 %v482
      %752 = vmatmul.mubr.bf16.gmra.mrb[0].mxu0 %v481
      %v753 = vpop.f32.mrb[0].mxu0
      %v754 = vadd.f32 %v315, %v753
      %v755 = vpop.f32.mrb[0].mxu0
      %v756 = vpop.f32.mrb[0].mxu0
      %v757 = vadd.f32 %v315, %v756
      %v758 = vpop.f32.mrb[0].mxu0
      %759 = vmatprep.mubr.bf16.mxu0 %v484
      %760 = vmatmul.mubr.bf16.gmra.mrb[0].mxu0 %v483
      %v761 = vpop.f32.mrb[0].mxu0
      %v762 = vadd.f32 %v315, %v761
      %v763 = vpop.f32.mrb[0].mxu0
      %v764 = vpop.f32.mrb[0].mxu0
      %v765 = vadd.f32 %v315, %v764
      %v766 = vpop.f32.mrb[0].mxu0
      %767 = vmatprep.mubr.bf16.mxu0 %v486
      %768 = vmatmul.mubr.bf16.gmra.mrb[0].mxu0 %v485
      %v769 = vpop.f32.mrb[0].mxu0
      %v770 = vadd.f32 %v315, %v769
      %v771 = vpop.f32.mrb[0].mxu0
      %v772 = vpop.f32.mrb[0].mxu0
      %v773 = vadd.f32 %v315, %v772
      %v774 = vpop.f32.mrb[0].mxu0
      %775 = vmatprep.mubr.bf16.mxu0 %v488
      %776 = vmatmul.mubr.bf16.gmra.mrb[0].mxu0 %v487
      %v777 = vpop.f32.mrb[0].mxu0
      %v778 = vadd.f32 %v315, %v777
      %v779 = vpop.f32.mrb[0].mxu0
      %v780 = vpop.f32.mrb[0].mxu0
      %v781 = vadd.f32 %v315, %v780
      %v782 = vpop.f32.mrb[0].mxu0
      %783 = vmatprep.mubr.bf16.mxu0 %v490
      %784 = vmatmul.mubr.bf16.gmra.mrb[0].mxu0 %v489
      %v785 = vpop.f32.mrb[0].mxu0
      %v786 = vadd.f32 %v315, %v785
      %v787 = vpop.f32.mrb[0].mxu0
      %v788 = vpop.f32.mrb[0].mxu0
      %v789 = vadd.f32 %v315, %v788
      %v790 = vpop.f32.mrb[0].mxu0
      %791 = vmatprep.mubr.bf16.mxu0 %v492
      %792 = vmatmul.mubr.bf16.gmra.mrb[0].mxu0 %v491
      %v793 = vpop.f32.mrb[0].mxu0
      %v794 = vadd.f32 %v315, %v793
      %v795 = vpop.f32.mrb[0].mxu0
      %v796 = vpop.f32.mrb[0].mxu0
      %v797 = vadd.f32 %v315, %v796
      %v798 = vpop.f32.mrb[0].mxu0
      %799 = vmatprep.mubr.bf16.mxu0 %v494
      %800 = vmatmul.mubr.bf16.gmra.mrb[0].mxu0 %v493
      %v801 = vpop.f32.mrb[0].mxu0
      %v802 = vadd.f32 %v315, %v801
      %v803 = vpop.f32.mrb[0].mxu0
      %v804 = vpop.f32.mrb[0].mxu0
      %v805 = vadd.f32 %v315, %v804
      %v806 = vpop.f32.mrb[0].mxu0
      %807 = vmatprep.mubr.bf16.mxu0 %v496
      %808 = vmatmul.mubr.bf16.gmra.mrb[0].mxu0 %v495
      %v809 = vpop.f32.mrb[0].mxu0
      %v810 = vadd.f32 %v315, %v809
      %v811 = vpop.f32.mrb[0].mxu0
      %v812 = vpop.f32.mrb[0].mxu0
      %v813 = vadd.f32 %v315, %v812
      %v814 = vpop.f32.mrb[0].mxu0
      %815 = vmatprep.mubr.bf16.mxu0 %v498
      %816 = vmatmul.mubr.bf16.gmra.mrb[0].mxu0 %v497
      %v817 = vpop.f32.mrb[0].mxu0
      %v818 = vadd.f32 %v315, %v817
      %v819 = vpop.f32.mrb[0].mxu0
      %v820 = vpop.f32.mrb[0].mxu0
      %v821 = vadd.f32 %v315, %v820
      %v822 = vpop.f32.mrb[0].mxu0
      %823 = vmatprep.mubr.bf16.mxu0 %v500
      %824 = vmatmul.mubr.bf16.gmra.mrb[0].mxu0 %v499
      %v825 = vpop.f32.mrb[0].mxu0
      %v826 = vadd.f32 %v315, %v825
      %v827 = vpop.f32.mrb[0].mxu0
      %v828 = vpop.f32.mrb[0].mxu0
      %v829 = vadd.f32 %v315, %v828
      %v830 = vpop.f32.mrb[0].mxu0
      %831 = vmatprep.mubr.bf16.mxu0 %v502
      %832 = vmatmul.mubr.bf16.gmra.mrb[0].mxu0 %v501
      %v833 = vpop.f32.mrb[0].mxu0
      %v834 = vadd.f32 %v315, %v833
      %v835 = vpop.f32.mrb[0].mxu0
      %v836 = vpop.f32.mrb[0].mxu0
      %v837 = vadd.f32 %v315, %v836
      %v838 = vpop.f32.mrb[0].mxu0
      %839 = vmatprep.mubr.bf16.mxu0 %v504
      %840 = vmatmul.mubr.bf16.gmra.mrb[0].mxu0 %v503
      %v841 = vpop.f32.mrb[0].mxu0
      %v842 = vadd.f32 %v315, %v841
      %v843 = vpop.f32.mrb[0].mxu0
      %v844 = vpop.f32.mrb[0].mxu0
      %v845 = vadd.f32 %v315, %v844
      %v846 = vpop.f32.mrb[0].mxu0
      %847 = vmatprep.mubr.bf16.mxu0 %v506
      %848 = vmatmul.mubr.bf16.gmra.mrb[0].mxu0 %v505
      %v849 = vpop.f32.mrb[0].mxu0
      %v850 = vadd.f32 %v315, %v849
      %v851 = vpop.f32.mrb[0].mxu0
      %v852 = vpop.f32.mrb[0].mxu0
      %v853 = vadd.f32 %v315, %v852
      %v854 = vpop.f32.mrb[0].mxu0
      %855 = vmatprep.mubr.bf16.mxu0 %v508
      %856 = vmatmul.mubr.bf16.gmra.mrb[0].mxu0 %v507
      %v857 = vpop.f32.mrb[0].mxu0
      %v858 = vadd.f32 %v315, %v857
      %v859 = vpop.f32.mrb[0].mxu0
      %v860 = vpop.f32.mrb[0].mxu0
      %v861 = vadd.f32 %v315, %v860
      %v862 = vpop.f32.mrb[0].mxu0
      %863 = vmatprep.mubr.bf16.mxu0 %v510
      %864 = vmatmul.mubr.bf16.gmra.mrb[0].mxu0 %v509
      %v865 = vpop.f32.mrb[0].mxu0
      %v866 = vadd.f32 %v315, %v865
      %v867 = vpop.f32.mrb[0].mxu0
      %v868 = vpop.f32.mrb[0].mxu0
      %v869 = vadd.f32 %v315, %v868
      %v870 = vpop.f32.mrb[0].mxu0
      %871 = vmatprep.mubr.bf16.mxu0 %v512
      %872 = vmatmul.mubr.bf16.gmra.mrb[0].mxu0 %v511
      %v873 = vpop.f32.mrb[0].mxu0
      %v874 = vadd.f32 %v315, %v873
      %v875 = vpop.f32.mrb[0].mxu0
      %v876 = vpop.f32.mrb[0].mxu0
      %v877 = vadd.f32 %v315, %v876
      %v878 = vpop.f32.mrb[0].mxu0
      %879 = vmatprep.mubr.bf16.mxu0 %v514
      %880 = vmatmul.mubr.bf16.gmra.mrb[0].mxu0 %v513
      %v881 = vpop.f32.mrb[0].mxu0
      %v882 = vadd.f32 %v315, %v881
      %v883 = vpop.f32.mrb[0].mxu0
      %v884 = vpop.f32.mrb[0].mxu0
      %v885 = vadd.f32 %v315, %v884
      %v886 = vpop.f32.mrb[0].mxu0
      %887 = vmatprep.mubr.bf16.mxu0 %v516
      %888 = vmatmul.mubr.bf16.gmra.mrb[0].mxu0 %v515
      %v889 = vpop.f32.mrb[0].mxu0
      %v890 = vadd.f32 %v315, %v889
      %v891 = vpop.f32.mrb[0].mxu0
      %v892 = vpop.f32.mrb[0].mxu0
      %v893 = vadd.f32 %v315, %v892
      %v894 = vpop.f32.mrb[0].mxu0
      %895 = vdwg.mxu0
      %v896 = vpack.c.bf16 %v701, %v698
      %v897 = vpack.c.bf16 %v709, %v706
      %v898 = vpack.c.bf16 %v717, %v714
      %v899 = vpack.c.bf16 %v725, %v722
      %v900 = vpack.c.bf16 %v733, %v730
      %v901 = vpack.c.bf16 %v741, %v738
      %v902 = vpack.c.bf16 %v749, %v746
      %v903 = vpack.c.bf16 %v757, %v754
      %v904 = vpack.c.bf16 %v765, %v762
      %v905 = vpack.c.bf16 %v773, %v770
      %v906 = vpack.c.bf16 %v781, %v778
      %v907 = vpack.c.bf16 %v789, %v786
      %v908 = vpack.c.bf16 %v797, %v794
      %v909 = vpack.c.bf16 %v805, %v802
      %v910 = vpack.c.bf16 %v813, %v810
      %v911 = vpack.c.bf16 %v821, %v818
      %v912 = vpack.c.bf16 %v829, %v826
      %v913 = vpack.c.bf16 %v837, %v834
      %v914 = vpack.c.bf16 %v845, %v842
      %v915 = vpack.c.bf16 %v853, %v850
      %v916 = vpack.c.bf16 %v861, %v858
      %v917 = vpack.c.bf16 %v869, %v866
      %v918 = vpack.c.bf16 %v877, %v874
      %v919 = vpack.c.bf16 %v885, %v882
      %v920 = vpack.c.bf16 %v893, %v890
      %v946 = vunpack.c.l.b16 %v896
      %v947 = vunpack.c.h.b16 %v896
      %v948 = vunpack.c.l.b16 %v897
      %v949 = vunpack.c.h.b16 %v897
      %v950 = vunpack.c.l.b16 %v898
      %v951 = vunpack.c.h.b16 %v898
      %v952 = vunpack.c.l.b16 %v899
      %v953 = vunpack.c.h.b16 %v899
      %v954 = vunpack.c.l.b16 %v900
      %v955 = vunpack.c.h.b16 %v900
      %v956 = vunpack.c.l.b16 %v901
      %v957 = vunpack.c.h.b16 %v901
      %v958 = vunpack.c.l.b16 %v902
      %v959 = vunpack.c.h.b16 %v902
      %v960 = vunpack.c.l.b16 %v903
      %v961 = vunpack.c.h.b16 %v903
      %v962 = vunpack.c.l.b16 %v904
      %v963 = vunpack.c.h.b16 %v904
      %v964 = vunpack.c.l.b16 %v905
      %v965 = vunpack.c.h.b16 %v905
      %v966 = vunpack.c.l.b16 %v906
      %v967 = vunpack.c.h.b16 %v906
      %v968 = vunpack.c.l.b16 %v907
      %v969 = vunpack.c.h.b16 %v907
      %v970 = vunpack.c.l.b16 %v908
      %v971 = vunpack.c.h.b16 %v908
      %v972 = vunpack.c.l.b16 %v909
      %v973 = vunpack.c.h.b16 %v909
      %v974 = vunpack.c.l.b16 %v910
      %v975 = vunpack.c.h.b16 %v910
      %v976 = vunpack.c.l.b16 %v911
      %v977 = vunpack.c.h.b16 %v911
      %v978 = vunpack.c.l.b16 %v912
      %v979 = vunpack.c.h.b16 %v912
      %v980 = vunpack.c.l.b16 %v913
      %v981 = vunpack.c.h.b16 %v913
      %v982 = vunpack.c.l.b16 %v914
      %v983 = vunpack.c.h.b16 %v914
      %v984 = vunpack.c.l.b16 %v915
      %v985 = vunpack.c.h.b16 %v915
      %v986 = vunpack.c.l.b16 %v916
      %v987 = vunpack.c.h.b16 %v916
      %v988 = vunpack.c.l.b16 %v917
      %v989 = vunpack.c.h.b16 %v917
      %v990 = vunpack.c.l.b16 %v918
      %v991 = vunpack.c.h.b16 %v918
      %v992 = vunpack.c.l.b16 %v919
      %v993 = vunpack.c.h.b16 %v919
      %v994 = vunpack.c.l.b16 %v920
      %v995 = vunpack.c.h.b16 %v920
      %v996 = vpack.c.b16 %v946, %v946
      %v997 = vpack.c.b16 %v947, %v947
      %v998 = vpack.c.b16 %v948, %v948
      %v999 = vpack.c.b16 %v949, %v949
      %v1000 = vpack.c.b16 %v950, %v950
      %v1001 = vpack.c.b16 %v951, %v951
      %v1002 = vpack.c.b16 %v952, %v952
      %v1003 = vpack.c.b16 %v953, %v953
      %v1004 = vpack.c.b16 %v954, %v954
      %v1005 = vpack.c.b16 %v955, %v955
      %v1006 = vpack.c.b16 %v956, %v956
      %v1007 = vpack.c.b16 %v957, %v957
      %v1008 = vpack.c.b16 %v958, %v958
      %v1009 = vpack.c.b16 %v959, %v959
      %v1010 = vpack.c.b16 %v960, %v960
      %v1011 = vpack.c.b16 %v961, %v961
      %v1012 = vpack.c.b16 %v962, %v962
      %v1013 = vpack.c.b16 %v963, %v963
      %v1014 = vpack.c.b16 %v964, %v964
      %v1015 = vpack.c.b16 %v965, %v965
      %v1016 = vpack.c.b16 %v966, %v966
      %v1017 = vpack.c.b16 %v967, %v967
      %v1018 = vpack.c.b16 %v968, %v968
      %v1019 = vpack.c.b16 %v969, %v969
      %v1020 = vpack.c.b16 %v970, %v970
      %v1021 = vpack.c.b16 %v971, %v971
      %v1022 = vpack.c.b16 %v972, %v972
      %v1023 = vpack.c.b16 %v973, %v973
      %v1024 = vpack.c.b16 %v974, %v974
      %v1025 = vpack.c.b16 %v975, %v975
      %v1026 = vpack.c.b16 %v976, %v976
      %v1027 = vpack.c.b16 %v977, %v977
      %v1028 = vpack.c.b16 %v978, %v978
      %v1029 = vpack.c.b16 %v979, %v979
      %v1030 = vpack.c.b16 %v980, %v980
      %v1031 = vpack.c.b16 %v981, %v981
      %v1032 = vpack.c.b16 %v982, %v982
      %v1033 = vpack.c.b16 %v983, %v983
      %v1034 = vpack.c.b16 %v984, %v984
      %v1035 = vpack.c.b16 %v985, %v985
      %v1036 = vpack.c.b16 %v986, %v986
      %v1037 = vpack.c.b16 %v987, %v987
      %v1038 = vpack.c.b16 %v988, %v988
      %v1039 = vpack.c.b16 %v989, %v989
      %v1040 = vpack.c.b16 %v990, %v990
      %v1041 = vpack.c.b16 %v991, %v991
      %v1042 = vpack.c.b16 %v992, %v992
      %v1043 = vpack.c.b16 %v993, %v993
      %v1044 = vpack.c.b16 %v994, %v994
      %v1045 = vpack.c.b16 %v995, %v995
      %1096 = vst [vmem:[%s225] sm:$0xf] %v996
      %1097 = vst [vmem:[%s225 + $0x4] sm:$0xf] %v997
      %1098 = vst [vmem:[%s225 + $0x8] sm:$0xf] %v998
      %1099 = vst [vmem:[%s225 + $0xc] sm:$0xf] %v999
      %1100 = vst [vmem:[%s225 + $0x10] sm:$0xf] %v1000
      %1101 = vst [vmem:[%s225 + $0x14] sm:$0xf] %v1001
      %1102 = vst [vmem:[%s225 + $0x18] sm:$0xf] %v1002
      %1103 = vst [vmem:[%s225 + $0x1c] sm:$0xf] %v1003
      %1104 = vst [vmem:[%s225 + $0x20] sm:$0xf] %v1004
      %1105 = vst [vmem:[%s225 + $0x24] sm:$0xf] %v1005
      %1106 = vst [vmem:[%s225 + $0x28] sm:$0xf] %v1006
      %1107 = vst [vmem:[%s225 + $0x2c] sm:$0xf] %v1007
      %1108 = vst [vmem:[%s225 + $0x30] sm:$0xf] %v1008
      %1109 = vst [vmem:[%s225 + $0x34] sm:$0xf] %v1009
      %1110 = vst [vmem:[%s225 + $0x38] sm:$0xf] %v1010
      %1111 = vst [vmem:[%s225 + $0x3c] sm:$0xf] %v1011
      %1112 = vst [vmem:[%s225 + $0x40] sm:$0xf] %v1012
      %1113 = vst [vmem:[%s225 + $0x44] sm:$0xf] %v1013
      %1114 = vst [vmem:[%s225 + $0x48] sm:$0xf] %v1014
      %1115 = vst [vmem:[%s225 + $0x4c] sm:$0xf] %v1015
      %1116 = vst [vmem:[%s225 + $0x50] sm:$0xf] %v1016
      %1117 = vst [vmem:[%s225 + $0x54] sm:$0xf] %v1017
      %1118 = vst [vmem:[%s225 + $0x58] sm:$0xf] %v1018
      %1119 = vst [vmem:[%s225 + $0x5c] sm:$0xf] %v1019
      %1120 = vst [vmem:[%s225 + $0x60] sm:$0xf] %v1020
      %1121 = vst [vmem:[%s225 + $0x64] sm:$0xf] %v1021
      %1122 = vst [vmem:[%s225 + $0x68] sm:$0xf] %v1022
      %1123 = vst [vmem:[%s225 + $0x6c] sm:$0xf] %v1023
      %1124 = vst [vmem:[%s225 + $0x70] sm:$0xf] %v1024
      %1125 = vst [vmem:[%s225 + $0x74] sm:$0xf] %v1025
      %1126 = vst [vmem:[%s225 + $0x78] sm:$0xf] %v1026
      %1127 = vst [vmem:[%s225 + $0x7c] sm:$0xf] %v1027
      %1128 = vst [vmem:[%s225 + $0x80] sm:$0xf] %v1028
      %1129 = vst [vmem:[%s225 + $0x84] sm:$0xf] %v1029
      %1130 = vst [vmem:[%s225 + $0x88] sm:$0xf] %v1030
      %1131 = vst [vmem:[%s225 + $0x8c] sm:$0xf] %v1031
      %1132 = vst [vmem:[%s225 + $0x90] sm:$0xf] %v1032
      %1133 = vst [vmem:[%s225 + $0x94] sm:$0xf] %v1033
      %1134 = vst [vmem:[%s225 + $0x98] sm:$0xf] %v1034
      %1135 = vst [vmem:[%s225 + $0x9c] sm:$0xf] %v1035
      %1136 = vst [vmem:[%s225 + $0xa0] sm:$0xf] %v1036
      %1137 = vst [vmem:[%s225 + $0xa4] sm:$0xf] %v1037
      %1138 = vst [vmem:[%s225 + $0xa8] sm:$0xf] %v1038
      %1139 = vst [vmem:[%s225 + $0xac] sm:$0xf] %v1039
      %1140 = vst [vmem:[%s225 + $0xb0] sm:$0xf] %v1040
      %1141 = vst [vmem:[%s225 + $0xb4] sm:$0xf] %v1041
      %1142 = vst [vmem:[%s225 + $0xb8] sm:$0xf] %v1042
      %1143 = vst [vmem:[%s225 + $0xbc] sm:$0xf] %v1043
      %1144 = vst [vmem:[%s225 + $0xc0] sm:$0xf] %v1044
      %1145 = vst [vmem:[%s225 + $0xc4] sm:$0xf] %v1045
      %s1146 = smul.u32 50, %s18
      %p1147 = scmp.lt.s32.totalorder %s1146, 99
      %s1148 = scalar_select %p1147, %s1146, 99
      %s1149 = smul.addr %s1148, 4
      %s1150 = scalar_lea.vmem %s3, %s1149
      // Predicated region
      $region33: #{_lambda_.8} parent=31 // pred_check
        %p1151 = pneg %p119
      $region34: #{_lambda_.8} parent=31 // pred_check_branch
        %1153 = sbr.rel (%p1151) target = $region36
      $region35: #{_lambda_.8} parent=31 // pred_region
        %s1154 = smul.u32 50, %s18
      $region36: #{_lambda_.8} parent=31 // pred_fallthru
        _
    $region32: #{_lambda_.8} parent=5 // pred_fallthru
      _
    %p1155 = scmp.le.s32.totalorder 2, %s9
    // Predicated region
    $region37: #{_lambda_.8} parent=5 // pred_check
      %p1156 = pneg %p1155
    $region38: #{_lambda_.8} parent=5 // pred_check_branch
      %1158 = sbr.rel (%p1156) target = $region40
    $region39: #{_lambda_.8} parent=5 // pred_region
      %s1159 = ssub.s32 %s9, 2
      // Predicated region
      $region41: #{_lambda_.8} parent=39 // pred_check
        %p1160 = pneg %p125
      $region42: #{_lambda_.8} parent=39 // pred_check_branch
        %1162 = sbr.rel (%p1160) target = $region44
      $region43: #{_lambda_.8} parent=39 // pred_region
        %s1163 = smul.u32 50, %s20
        %p1164 = scmp.lt.s32.totalorder %s1163, 99
        %s1165 = scalar_select %p1164, %s1163, 99
        %s1166 = smul.addr %s1165, 4
        %s1167 = scalar_lea.vmem %s3, %s1166
      $region44: #{_lambda_.8} parent=39 // pred_fallthru
        _
    $region40: #{_lambda_.8} parent=5 // pred_fallthru
      _
  $region6: #{_lambda_.8} parent=0 // loop_footer
    %s13 = sadd.s32 1, %s9
  $region7: #{_lambda_.8} parent=0 // loop_footer_branch
    %8 = sbr.rel target = $region3
  $region8: #{_lambda_.8} parent=0 // loop_exit
    _

// kernel: _lambda_.13
$region0: #{_lambda_.13}
  #allocation0 [shape = 'u32[]', space=smem, size = 0x4, offset = 0x4, fixed_abs, tag = 'smem constant byte address 0x4 - core index']
  #allocation1 [shape = 'u32[144,128]{1,0:T(1,128)}', space=vmem, size = 0x12000, scoped, tag = 'internal scratch']
  #allocation2 [shape = 'f32[96,128]{1,0:T(8,128)}', space=vmem, size = 0xc000, scoped, tag = 'scratch operand']
  %s0 = inlined_call_operand.vmem [shape: bf16[192,1536], index: 0, kind: input, shape index: {}]
  %s1 = inlined_call_operand.vmem [shape: bf16[1536,128], index: 1, kind: input, shape index: {}]
  %s2 = inlined_call_operand.vmem [shape: f32[1,128], index: 2, kind: input, shape index: {}]
  %s3 = inlined_call_operand.vmem [shape: bf16[192,128], index: 3, kind: output, shape index: {}]
  %s4 = sld [smem:[#allocation0]]
  $region76: #{_lambda_.13} parent=0
    _
  %s6 = ssub.s32 1, %s4
  %s7 = scalar_select 0, %s6, %s4
  $region1: #{_lambda_.13} parent=0
    #allocation3 [shape = 'u8[294912]{0}', space=vmem, size = 0x48000, scoped, tag = 'input window, operand 0']
    loop: start=0, step=1, limit=6
    $region2: #{_lambda_.13} parent=1 // loop_pre_header
      _
    $region3: #{_lambda_.13} parent=1 // loop_header
      %s9 = sphi 0, %s13
      %p10 = scmp.ge.s32.totalorder %s9, 6
      %s16 = sphi 0, %s28
      %s17 = sphi 0, %s24
      %s18 = sphi 0, %s16
      %s19 = sphi 0, %s17
      %s20 = sphi 0, %s18
      %s21 = sphi 0, %s19
      %s33 = sphi 0, %s35
      %s36 = sphi 0, %s33
      %s37 = sphi 0, %s36
      %s53 = sphi 0, %s37
      %s59 = sphi 0, %s61
      %s62 = sphi 0, %s59
      %s63 = sphi 0, %s62
      %s79 = sphi 0, %s63
      %s83 = sphi 0, %s83
      %s85 = sphi 0, %s83
      %s86 = sphi 0, %s85
      %s100 = sphi 0, %s86
      %s106 = sphi 0, %s108
      %s109 = sphi 0, %s106
      %s110 = sphi 0, %s109
      %s126 = sphi 0, %s110
    $region4: #{_lambda_.13} parent=1 // loop_header_branch
      %12 = sbr.rel (%p10) target = $region8
    $region5: #{_lambda_.13} parent=1 // loop_body
      %s14 = ssub.s32 %s9, 1
      %s15 = ssub.s32 %s9, 2
      %s22 = sadd.s32 1, %s17
      %p23 = scmp.ge.s32.totalorder %s22, 2
      %s24 = scalar_select %p23, 0, %s22
      %s25 = sadd.s32 1, %s16
      %s26 = scalar_select %p23, %s25, %s16
      %p27 = scmp.ge.s32.totalorder %s26, 2
      %s28 = scalar_select %p27, 0, %s26
      %s29 = ssub.s32 %s16, %s28
      %s30 = ssub.s32 %s17, %s24
      %s31 = sor.u32 %s29, %s30
      %p32 = scmp.eq.s32.totalorder %s31, 0
      %s34 = sadd.s32 %s33, 1
      %s35 = scalar_select %p32, %s33, %s34
      %p38 = pneg %p32
      %p39 = scmp.eq.s32.totalorder %s9, 3
      %p40 = por %p38, %p39
      %p41 = scmp.ne.s32.totalorder %s33, %s36
      %p42 = scmp.eq.s32.totalorder %s9, 0
      %p43 = por %p41, %p42
      %p44 = scmp.ne.s32.totalorder %s33, %s36
      %p45 = scmp.eq.s32.totalorder %s14, 3
      %p46 = por %p44, %p45
      %p47 = scmp.ne.s32.totalorder %s36, %s37
      %p48 = scmp.eq.s32.totalorder %s14, 0
      %p49 = por %p47, %p48
      %p50 = scmp.ne.s32.totalorder %s36, %s37
      %p51 = scmp.eq.s32.totalorder %s15, 3
      %p52 = por %p50, %p51
      %p54 = scmp.ne.s32.totalorder %s37, %s53
      %p55 = scmp.eq.s32.totalorder %s15, 0
      %p56 = por %p54, %p55
      %s57 = ssub.s32 %s17, %s24
      %p58 = scmp.eq.s32.totalorder %s57, 0
      %s60 = sadd.s32 %s59, 1
      %s61 = scalar_select %p58, %s59, %s60
      %p64 = pneg %p58
      %p65 = scmp.eq.s32.totalorder %s9, 3
      %p66 = por %p64, %p65
      %p67 = scmp.ne.s32.totalorder %s59, %s62
      %p68 = scmp.eq.s32.totalorder %s9, 0
      %p69 = por %p67, %p68
      %p70 = scmp.ne.s32.totalorder %s59, %s62
      %p71 = scmp.eq.s32.totalorder %s14, 3
      %p72 = por %p70, %p71
      %p73 = scmp.ne.s32.totalorder %s62, %s63
      %p74 = scmp.eq.s32.totalorder %s14, 0
      %p75 = por %p73, %p74
      %p76 = scmp.ne.s32.totalorder %s62, %s63
      %p77 = scmp.eq.s32.totalorder %s15, 3
      %p78 = por %p76, %p77
      %p80 = scmp.ne.s32.totalorder %s63, %s79
      %p81 = scmp.eq.s32.totalorder %s15, 0
      %p82 = por %p80, %p81
      %s84 = sadd.s32 %s83, 1
      %p87 = scmp.eq.s32.totalorder %s9, 3
      %p88 = scmp.ne.s32.totalorder %s83, %s85
      %p89 = scmp.eq.s32.totalorder %s9, 0
      %p90 = por %p88, %p89
      %p91 = scmp.ne.s32.totalorder %s83, %s85
      %p92 = scmp.eq.s32.totalorder %s14, 3
      %p93 = por %p91, %p92
      %p94 = scmp.ne.s32.totalorder %s85, %s86
      %p95 = scmp.eq.s32.totalorder %s14, 0
      %p96 = por %p94, %p95
      %p97 = scmp.ne.s32.totalorder %s85, %s86
      %p98 = scmp.eq.s32.totalorder %s15, 3
      %p99 = por %p97, %p98
      %p101 = scmp.ne.s32.totalorder %s86, %s100
      %p102 = scmp.eq.s32.totalorder %s15, 0
      %p103 = por %p101, %p102
      %s104 = ssub.s32 %s16, %s28
      %p105 = scmp.eq.s32.totalorder %s104, 0
      %s107 = sadd.s32 %s106, 1
      %s108 = scalar_select %p105, %s106, %s107
      %p111 = pneg %p105
      %p112 = scmp.eq.s32.totalorder %s9, 3
      %p113 = por %p111, %p112
      %p114 = scmp.ne.s32.totalorder %s106, %s109
      %p115 = scmp.eq.s32.totalorder %s9, 0
      %p116 = por %p114, %p115
      %p117 = scmp.ne.s32.totalorder %s106, %s109
      %p118 = scmp.eq.s32.totalorder %s14, 3
      %p119 = por %p117, %p118
      %p120 = scmp.ne.s32.totalorder %s109, %s110
      %p121 = scmp.eq.s32.totalorder %s14, 0
      %p122 = por %p120, %p121
      %p123 = scmp.ne.s32.totalorder %s109, %s110
      %p124 = scmp.eq.s32.totalorder %s15, 3
      %p125 = por %p123, %p124
      %p127 = scmp.ne.s32.totalorder %s110, %s126
      %p128 = scmp.eq.s32.totalorder %s15, 0
      %p129 = por %p127, %p128
      %p130 = scmp.le.s32.totalorder 1, %s9
      %p131 = scmp.lt.s32.totalorder %s9, 5
      %p132 = pnand %p130, %p131
      %p133 = pneg %p132
      // Predicated region
      $region9: #{_lambda_.13} parent=5 // pred_check
        _
      $region10: #{_lambda_.13} parent=5 // pred_check_branch
        %135 = sbr.rel (%p132) target = $region12
      $region11: #{_lambda_.13} parent=5 // pred_region
        %s136 = ssub.s32 %s9, 1
        // Predicated region
        $region13: #{_lambda_.13} parent=11 // pred_check
          %p137 = pneg %p96
        $region14: #{_lambda_.13} parent=11 // pred_check_branch
          %139 = sbr.rel (%p137) target = $region16
        $region15: #{_lambda_.13} parent=11 // pred_region
          _
        $region16: #{_lambda_.13} parent=11 // pred_fallthru
          _
      $region12: #{_lambda_.13} parent=5 // pred_fallthru
        _
      %p140 = scmp.lt.s32.totalorder %s9, 4
      // Predicated region
      $region17: #{_lambda_.13} parent=5 // pred_check
        %p141 = pneg %p140
      $region18: #{_lambda_.13} parent=5 // pred_check_branch
        %143 = sbr.rel (%p141) target = $region20
      $region19: #{_lambda_.13} parent=5 // pred_region
        // Predicated region
        $region21: #{_lambda_.13} parent=19 // pred_check
          %p144 = pneg %p43
        $region22: #{_lambda_.13} parent=19 // pred_check_branch
          %146 = sbr.rel (%p144) target = $region24
        $region23: #{_lambda_.13} parent=19 // pred_region
          %s147 = sand.u32 %s33, 1
          %s148 = sand.u32 %s33, 1
          %s149 = smul.addr %s148, 288
          %s150 = scalar_lea.vmem [#allocation3], %s149
          %s151 = smul.u32 12, %s16
          %s152 = smul.u32 6, %s17
          %s153 = smul.addr %s151, 12
          %s154 = sadd.s32 %s152, %s153
          %s155 = smul.addr %s154, 4
          %s156 = scalar_lea.vmem %s0, %s155
          // Predicated region
          $region25: #{_lambda_.13} parent=23 // pred_check
            _
          $region26: #{_lambda_.13} parent=23 // pred_check_branch
            %158 = sbr.rel (0) target = $region28
          $region27: #{_lambda_.13} parent=23 // pred_region
            // Predicated region
            $region29: #{_lambda_.13} parent=27 // pred_check
              _
            $region30: #{_lambda_.13} parent=27 // pred_check_branch
              %160 = sbr.rel (0) target = $region32
            $region31: #{_lambda_.13} parent=27 // pred_region
              loop: start=0, step=1, limit=1
              $region33: #{_lambda_.13} parent=31 // loop_pre_header
                _
              $region34: #{_lambda_.13} parent=31 // loop_header
                %s162 = sphi 0, %s166
                %p163 = scmp.ge.s32.totalorder %s162, 1
                %s167 = sphi %s156, %s156
                %s168 = sphi %s150, %s150
              $region35: #{_lambda_.13} parent=31 // loop_header_branch
                %165 = sbr.rel (%p163) target = $region39
              $region36: #{_lambda_.13} parent=31 // loop_body
                %v169 = vld [vmem:[%s167] sm:$0xff]
                %170 = vst [vmem:[%s168] sm:$0xff] %v169
                %v171 = vld [vmem:[%s167 + $0x8] sm:$0xff]
                %172 = vst [vmem:[%s168 + $0x8] sm:$0xff] %v171
                %v173 = vld [vmem:[%s167 + $0x10] sm:$0xff]
                %174 = vst [vmem:[%s168 + $0x10] sm:$0xff] %v173
                %v175 = vld [vmem:[%s167 + $0x30] sm:$0xff]
                %176 = vst [vmem:[%s168 + $0x18] sm:$0xff] %v175
                %v177 = vld [vmem:[%s167 + $0x38] sm:$0xff]
                %178 = vst [vmem:[%s168 + $0x20] sm:$0xff] %v177
                %v179 = vld [vmem:[%s167 + $0x40] sm:$0xff]
                %180 = vst [vmem:[%s168 + $0x28] sm:$0xff] %v179
                %v181 = vld [vmem:[%s167 + $0x60] sm:$0xff]
                %182 = vst [vmem:[%s168 + $0x30] sm:$0xff] %v181
                %v183 = vld [vmem:[%s167 + $0x68] sm:$0xff]
                %184 = vst [vmem:[%s168 + $0x38] sm:$0xff] %v183
                %v185 = vld [vmem:[%s167 + $0x70] sm:$0xff]
                %186 = vst [vmem:[%s168 + $0x40] sm:$0xff] %v185
                %v187 = vld [vmem:[%s167 + $0x90] sm:$0xff]
                %188 = vst [vmem:[%s168 + $0x48] sm:$0xff] %v187
                %v189 = vld [vmem:[%s167 + $0x98] sm:$0xff]
                %190 = vst [vmem:[%s168 + $0x50] sm:$0xff] %v189
                %v191 = vld [vmem:[%s167 + $0xa0] sm:$0xff]
                %192 = vst [vmem:[%s168 + $0x58] sm:$0xff] %v191
                %v193 = vld [vmem:[%s167 + $0xc0] sm:$0xff]
                %194 = vst [vmem:[%s168 + $0x60] sm:$0xff] %v193
                %v195 = vld [vmem:[%s167 + $0xc8] sm:$0xff]
                %196 = vst [vmem:[%s168 + $0x68] sm:$0xff] %v195
                %v197 = vld [vmem:[%s167 + $0xd0] sm:$0xff]
                %198 = vst [vmem:[%s168 + $0x70] sm:$0xff] %v197
                %v199 = vld [vmem:[%s167 + $0xf0] sm:$0xff]
                %200 = vst [vmem:[%s168 + $0x78] sm:$0xff] %v199
                %v201 = vld [vmem:[%s167 + $0xf8] sm:$0xff]
                %202 = vst [vmem:[%s168 + $0x80] sm:$0xff] %v201
                %v203 = vld [vmem:[%s167 + $0x100] sm:$0xff]
                %204 = vst [vmem:[%s168 + $0x88] sm:$0xff] %v203
                %v205 = vld [vmem:[%s167 + $0x120] sm:$0xff]
                %206 = vst [vmem:[%s168 + $0x90] sm:$0xff] %v205
                %v207 = vld [vmem:[%s167 + $0x128] sm:$0xff]
                %208 = vst [vmem:[%s168 + $0x98] sm:$0xff] %v207
                %v209 = vld [vmem:[%s167 + $0x130] sm:$0xff]
                %210 = vst [vmem:[%s168 + $0xa0] sm:$0xff] %v209
                %v211 = vld [vmem:[%s167 + $0x150] sm:$0xff]
                %212 = vst [vmem:[%s168 + $0xa8] sm:$0xff] %v211
                %v213 = vld [vmem:[%s167 + $0x158] sm:$0xff]
                %214 = vst [vmem:[%s168 + $0xb0] sm:$0xff] %v213
                %v215 = vld [vmem:[%s167 + $0x160] sm:$0xff]
                %216 = vst [vmem:[%s168 + $0xb8] sm:$0xff] %v215
                %v217 = vld [vmem:[%s167 + $0x180] sm:$0xff]
                %218 = vst [vmem:[%s168 + $0xc0] sm:$0xff] %v217
                %v219 = vld [vmem:[%s167 + $0x188] sm:$0xff]
                %220 = vst [vmem:[%s168 + $0xc8] sm:$0xff] %v219
                %v221 = vld [vmem:[%s167 + $0x190] sm:$0xff]
                %222 = vst [vmem:[%s168 + $0xd0] sm:$0xff] %v221
                %v223 = vld [vmem:[%s167 + $0x1b0] sm:$0xff]
                %224 = vst [vmem:[%s168 + $0xd8] sm:$0xff] %v223
                %v225 = vld [vmem:[%s167 + $0x1b8] sm:$0xff]
                %226 = vst [vmem:[%s168 + $0xe0] sm:$0xff] %v225
                %v227 = vld [vmem:[%s167 + $0x1c0] sm:$0xff]
                %228 = vst [vmem:[%s168 + $0xe8] sm:$0xff] %v227
                %v229 = vld [vmem:[%s167 + $0x1e0] sm:$0xff]
                %230 = vst [vmem:[%s168 + $0xf0] sm:$0xff] %v229
                %v231 = vld [vmem:[%s167 + $0x1e8] sm:$0xff]
                %232 = vst [vmem:[%s168 + $0xf8] sm:$0xff] %v231
                %v233 = vld [vmem:[%s167 + $0x1f0] sm:$0xff]
                %234 = vst [vmem:[%s168 + $0x100] sm:$0xff] %v233
                %v235 = vld [vmem:[%s167 + $0x210] sm:$0xff]
                %236 = vst [vmem:[%s168 + $0x108] sm:$0xff] %v235
                %v237 = vld [vmem:[%s167 + $0x218] sm:$0xff]
                %238 = vst [vmem:[%s168 + $0x110] sm:$0xff] %v237
                %v239 = vld [vmem:[%s167 + $0x220] sm:$0xff]
                %240 = vst [vmem:[%s168 + $0x118] sm:$0xff] %v239
              $region37: #{_lambda_.13} parent=31 // loop_footer
                %s166 = sadd.s32 1, %s162
              $region38: #{_lambda_.13} parent=31 // loop_footer_branch
                %161 = sbr.rel target = $region34
              $region39: #{_lambda_.13} parent=31 // loop_exit
                _
            $region32: #{_lambda_.13} parent=27 // pred_fallthru
              _
            // Predicated region
            $region40: #{_lambda_.13} parent=27 // pred_check
              _
            $region41: #{_lambda_.13} parent=27 // pred_check_branch
              %242 = sbr.rel target = $region43
            $region42: #{_lambda_.13} parent=27 // pred_region
              _
            $region43: #{_lambda_.13} parent=27 // pred_fallthru
              _
          $region28: #{_lambda_.13} parent=23 // pred_fallthru
            _
          %243 = vnop
        $region24: #{_lambda_.13} parent=19 // pred_fallthru
          _
        // Predicated region
        $region44: #{_lambda_.13} parent=19 // pred_check
          %p244 = pneg %p69
        $region45: #{_lambda_.13} parent=19 // pred_check_branch
          %246 = sbr.rel (%p244) target = $region47
        $region46: #{_lambda_.13} parent=19 // pred_region
          %s247 = smul.u32 96, %s17
          %p248 = scmp.lt.s32.totalorder %s247, 191
          %s249 = scalar_select %p248, %s247, 191
          %s250 = smul.addr %s249, 4
          %s251 = scalar_lea.vmem %s1, %s250
          %s252 = smul.u32 96, %s17
        $region47: #{_lambda_.13} parent=19 // pred_fallthru
          _
      $region20: #{_lambda_.13} parent=5 // pred_fallthru
        _
      %p253 = scmp.le.s32.totalorder 1, %s9
      %p254 = scmp.lt.s32.totalorder %s9, 5
      %p255 = pnand %p253, %p254
      %p256 = pneg %p255
      // Predicated region
      $region48: #{_lambda_.13} parent=5 // pred_check
        _
      $region49: #{_lambda_.13} parent=5 // pred_check_branch
        %258 = sbr.rel (%p255) target = $region51
      $region50: #{_lambda_.13} parent=5 // pred_region
        %s259 = ssub.s32 %s9, 1
        %s260 = sand.u32 %s36, 1
        %s261 = sand.u32 %s36, 1
        %s262 = smul.addr %s261, 288
        %s263 = scalar_lea.vmem [#allocation3], %s262
        // Predicated region
        $region52: #{_lambda_.13} parent=50 // pred_check
          %p264 = pneg %p49
        $region53: #{_lambda_.13} parent=50 // pred_check_branch
          %266 = sbr.rel (%p264) target = $region55
        $region54: #{_lambda_.13} parent=50 // pred_region
          _
        $region55: #{_lambda_.13} parent=50 // pred_fallthru
          _
        %s267 = sand.u32 %s36, 1
        %s268 = sand.u32 %s36, 1
        %s269 = smul.addr %s268, 288
        %s270 = scalar_lea.vmem [#allocation3], %s269
        %p271 = pneg %p49
        %p272 = pneg %p46
        %s273 = smul.u32 96, %s19
        %p274 = scmp.lt.s32.totalorder %s273, 191
        %s275 = scalar_select %p274, %s273, 191
        %s276 = smul.addr %s275, 4
        %s277 = scalar_lea.vmem %s1, %s276
        %p278 = pneg %p75
        %p279 = pneg %p72
        %p280 = pneg %p96
        %p281 = pneg %p93
        %p282 = pneg %p122
        %p283 = pneg %p119
        %s284 = smul.u32 12, %s18
        %p285 = scmp.lt.s32.totalorder %s284, 23
        %s286 = scalar_select %p285, %s284, 23
        %s287 = smul.addr %s286, 4
        %s288 = scalar_lea.vmem %s3, %s287
        %s289 = smul.u32 12, %s18
        %s290 = smul.u32 6, %s19
        %s291 = smul.u32 96, %s19
        %p292 = scmp.lt.s32.totalorder %s291, 191
        %s293 = scalar_select %p292, %s291, 191
        %s294 = smul.addr %s293, 4
        %s295 = scalar_lea.vmem %s1, %s294
        %s296 = smul.u32 96, %s19
        %s297 = smul.u32 12, %s18
        %p298 = scmp.lt.s32.totalorder %s297, 23
        %s299 = scalar_select %p298, %s297, 23
        %s300 = smul.addr %s299, 4
        %s301 = scalar_lea.vmem %s3, %s300
        %s302 = smul.u32 12, %s18
        %p304 = scmp.eq.s32.totalorder %s19, 0
        // Predicated region
        $region56: #{_lambda_.13} parent=50 // pred_check
          %p305 = pneg %p304
        $region57: #{_lambda_.13} parent=50 // pred_check_branch
          %307 = sbr.rel (%p305) target = $region59
        $region58: #{_lambda_.13} parent=50 // pred_region
          %308 = vst [vmem:[#allocation2] sm:$0xff] 0.0
          %309 = vst [vmem:[#allocation2 + $0x8] sm:$0xff] 0.0
          %310 = vst [vmem:[#allocation2 + $0x10] sm:$0xff] 0.0
          %311 = vst [vmem:[#allocation2 + $0x18] sm:$0xff] 0.0
          %312 = vst [vmem:[#allocation2 + $0x20] sm:$0xff] 0.0
          %313 = vst [vmem:[#allocation2 + $0x28] sm:$0xff] 0.0
          %314 = vst [vmem:[#allocation2 + $0x30] sm:$0xff] 0.0
          %315 = vst [vmem:[#allocation2 + $0x38] sm:$0xff] 0.0
          %316 = vst [vmem:[#allocation2 + $0x40] sm:$0xff] 0.0
          %317 = vst [vmem:[#allocation2 + $0x48] sm:$0xff] 0.0
          %318 = vst [vmem:[#allocation2 + $0x50] sm:$0xff] 0.0
          %319 = vst [vmem:[#allocation2 + $0x58] sm:$0xff] 0.0
        $region59: #{_lambda_.13} parent=50 // pred_fallthru
          _
        %v320 = vld [vmem:[#allocation2] sm:$0xff]
        %v321 = vld [vmem:[#allocation2 + $0x8] sm:$0xff]
        %v322 = vld [vmem:[#allocation2 + $0x10] sm:$0xff]
        %v323 = vld [vmem:[#allocation2 + $0x18] sm:$0xff]
        %v324 = vld [vmem:[#allocation2 + $0x20] sm:$0xff]
        %v325 = vld [vmem:[#allocation2 + $0x28] sm:$0xff]
        %v326 = vld [vmem:[#allocation2 + $0x30] sm:$0xff]
        %v327 = vld [vmem:[#allocation2 + $0x38] sm:$0xff]
        %v328 = vld [vmem:[#allocation2 + $0x40] sm:$0xff]
        %v329 = vld [vmem:[#allocation2 + $0x48] sm:$0xff]
        %v330 = vld [vmem:[#allocation2 + $0x50] sm:$0xff]
        %v331 = vld [vmem:[#allocation2 + $0x58] sm:$0xff]
        %v332 = vld [vmem:[%s263] sm:$0xff]
        %v333 = vld [vmem:[%s263 + $0x8] sm:$0xff]
        %v334 = vld [vmem:[%s263 + $0x10] sm:$0xff]
        %v335 = vld [vmem:[%s263 + $0x18] sm:$0xff]
        %v336 = vld [vmem:[%s263 + $0x20] sm:$0xff]
        %v337 = vld [vmem:[%s263 + $0x28] sm:$0xff]
        %v338 = vld [vmem:[%s263 + $0x30] sm:$0xff]
        %v339 = vld [vmem:[%s263 + $0x38] sm:$0xff]
        %v340 = vld [vmem:[%s263 + $0x40] sm:$0xff]
        %v341 = vld [vmem:[%s263 + $0x48] sm:$0xff]
        %v342 = vld [vmem:[%s263 + $0x50] sm:$0xff]
        %v343 = vld [vmem:[%s263 + $0x58] sm:$0xff]
        %v344 = vld [vmem:[%s263 + $0x60] sm:$0xff]
        %v345 = vld [vmem:[%s263 + $0x68] sm:$0xff]
        %v346 = vld [vmem:[%s263 + $0x70] sm:$0xff]
        %v347 = vld [vmem:[%s263 + $0x78] sm:$0xff]
        %v348 = vld [vmem:[%s263 + $0x80] sm:$0xff]
        %v349 = vld [vmem:[%s263 + $0x88] sm:$0xff]
        %v350 = vld [vmem:[%s263 + $0x90] sm:$0xff]
        %v351 = vld [vmem:[%s263 + $0x98] sm:$0xff]
        %v352 = vld [vmem:[%s263 + $0xa0] sm:$0xff]
        %v353 = vld [vmem:[%s263 + $0xa8] sm:$0xff]
        %v354 = vld [vmem:[%s263 + $0xb0] sm:$0xff]
        %v355 = vld [vmem:[%s263 + $0xb8] sm:$0xff]
        %v356 = vld [vmem:[%s263 + $0xc0] sm:$0xff]
        %v357 = vld [vmem:[%s263 + $0xc8] sm:$0xff]
        %v358 = vld [vmem:[%s263 + $0xd0] sm:$0xff]
        %v359 = vld [vmem:[%s263 + $0xd8] sm:$0xff]
        %v360 = vld [vmem:[%s263 + $0xe0] sm:$0xff]
        %v361 = vld [vmem:[%s263 + $0xe8] sm:$0xff]
        %v362 = vld [vmem:[%s263 + $0xf0] sm:$0xff]
        %v363 = vld [vmem:[%s263 + $0xf8] sm:$0xff]
        %v364 = vld [vmem:[%s263 + $0x100] sm:$0xff]
        %v365 = vld [vmem:[%s263 + $0x108] sm:$0xff]
        %v366 = vld [vmem:[%s263 + $0x110] sm:$0xff]
        %v367 = vld [vmem:[%s263 + $0x118] sm:$0xff]
        %v368 = vld [vmem:[%s295] sm:$0xf]
        %v369 = vld [vmem:[%s295 + $0x4] sm:$0xf]
        %v370 = vld [vmem:[%s295 + $0x8] sm:$0xf]
        %v371 = vld [vmem:[%s295 + $0xc] sm:$0xf]
        %v372 = vld [vmem:[%s295 + $0x10] sm:$0xf]
        %v373 = vld [vmem:[%s295 + $0x14] sm:$0xf]
        %v374 = vld [vmem:[%s295 + $0x18] sm:$0xf]
        %v375 = vld [vmem:[%s295 + $0x1c] sm:$0xf]
        %v376 = vld [vmem:[%s295 + $0x20] sm:$0xf]
        %v377 = vld [vmem:[%s295 + $0x24] sm:$0xf]
        %v378 = vld [vmem:[%s295 + $0x28] sm:$0xf]
        %v379 = vld [vmem:[%s295 + $0x2c] sm:$0xf]
        %v380 = vld [vmem:[%s295 + $0x30] sm:$0xf]
        %v381 = vld [vmem:[%s295 + $0x34] sm:$0xf]
        %v382 = vld [vmem:[%s295 + $0x38] sm:$0xf]
        %v383 = vld [vmem:[%s295 + $0x3c] sm:$0xf]
        %v384 = vld [vmem:[%s295 + $0x40] sm:$0xf]
        %v385 = vld [vmem:[%s295 + $0x44] sm:$0xf]
        %v386 = vld [vmem:[%s295 + $0x48] sm:$0xf]
        %v387 = vld [vmem:[%s295 + $0x4c] sm:$0xf]
        %v388 = vld [vmem:[%s295 + $0x50] sm:$0xf]
        %v389 = vld [vmem:[%s295 + $0x54] sm:$0xf]
        %v390 = vld [vmem:[%s295 + $0x58] sm:$0xf]
        %v391 = vld [vmem:[%s295 + $0x5c] sm:$0xf]
        %v392 = vld [vmem:[%s295 + $0x60] sm:$0xf]
        %v393 = vld [vmem:[%s295 + $0x64] sm:$0xf]
        %v394 = vld [vmem:[%s295 + $0x68] sm:$0xf]
        %v395 = vld [vmem:[%s295 + $0x6c] sm:$0xf]
        %v396 = vld [vmem:[%s295 + $0x70] sm:$0xf]
        %v397 = vld [vmem:[%s295 + $0x74] sm:$0xf]
        %v398 = vld [vmem:[%s295 + $0x78] sm:$0xf]
        %v399 = vld [vmem:[%s295 + $0x7c] sm:$0xf]
        %v400 = vld [vmem:[%s295 + $0x80] sm:$0xf]
        %v401 = vld [vmem:[%s295 + $0x84] sm:$0xf]
        %v402 = vld [vmem:[%s295 + $0x88] sm:$0xf]
        %v403 = vld [vmem:[%s295 + $0x8c] sm:$0xf]
        %v404 = vld [vmem:[%s295 + $0x90] sm:$0xf]
        %v405 = vld [vmem:[%s295 + $0x94] sm:$0xf]
        %v406 = vld [vmem:[%s295 + $0x98] sm:$0xf]
        %v407 = vld [vmem:[%s295 + $0x9c] sm:$0xf]
        %v408 = vld [vmem:[%s295 + $0xa0] sm:$0xf]
        %v409 = vld [vmem:[%s295 + $0xa4] sm:$0xf]
        %v410 = vld [vmem:[%s295 + $0xa8] sm:$0xf]
        %v411 = vld [vmem:[%s295 + $0xac] sm:$0xf]
        %v412 = vld [vmem:[%s295 + $0xb0] sm:$0xf]
        %v413 = vld [vmem:[%s295 + $0xb4] sm:$0xf]
        %v414 = vld [vmem:[%s295 + $0xb8] sm:$0xf]
        %v415 = vld [vmem:[%s295 + $0xbc] sm:$0xf]
        %v416 = vld [vmem:[%s295 + $0xc0] sm:$0xf]
        %v417 = vld [vmem:[%s295 + $0xc4] sm:$0xf]
        %v418 = vld [vmem:[%s295 + $0xc8] sm:$0xf]
        %v419 = vld [vmem:[%s295 + $0xcc] sm:$0xf]
        %v420 = vld [vmem:[%s295 + $0xd0] sm:$0xf]
        %v421 = vld [vmem:[%s295 + $0xd4] sm:$0xf]
        %v422 = vld [vmem:[%s295 + $0xd8] sm:$0xf]
        %v423 = vld [vmem:[%s295 + $0xdc] sm:$0xf]
        %v424 = vld [vmem:[%s295 + $0xe0] sm:$0xf]
        %v425 = vld [vmem:[%s295 + $0xe4] sm:$0xf]
        %v426 = vld [vmem:[%s295 + $0xe8] sm:$0xf]
        %v427 = vld [vmem:[%s295 + $0xec] sm:$0xf]
        %v428 = vld [vmem:[%s295 + $0xf0] sm:$0xf]
        %v429 = vld [vmem:[%s295 + $0xf4] sm:$0xf]
        %v430 = vld [vmem:[%s295 + $0xf8] sm:$0xf]
        %v431 = vld [vmem:[%s295 + $0xfc] sm:$0xf]
        %v432 = vld [vmem:[%s295 + $0x100] sm:$0xf]
        %v433 = vld [vmem:[%s295 + $0x104] sm:$0xf]
        %v434 = vld [vmem:[%s295 + $0x108] sm:$0xf]
        %v435 = vld [vmem:[%s295 + $0x10c] sm:$0xf]
        %v436 = vld [vmem:[%s295 + $0x110] sm:$0xf]
        %v437 = vld [vmem:[%s295 + $0x114] sm:$0xf]
        %v438 = vld [vmem:[%s295 + $0x118] sm:$0xf]
        %v439 = vld [vmem:[%s295 + $0x11c] sm:$0xf]
        %v440 = vld [vmem:[%s295 + $0x120] sm:$0xf]
        %v441 = vld [vmem:[%s295 + $0x124] sm:$0xf]
        %v442 = vld [vmem:[%s295 + $0x128] sm:$0xf]
        %v443 = vld [vmem:[%s295 + $0x12c] sm:$0xf]
        %v444 = vld [vmem:[%s295 + $0x130] sm:$0xf]
        %v445 = vld [vmem:[%s295 + $0x134] sm:$0xf]
        %v446 = vld [vmem:[%s295 + $0x138] sm:$0xf]
        %v447 = vld [vmem:[%s295 + $0x13c] sm:$0xf]
        %v448 = vld [vmem:[%s295 + $0x140] sm:$0xf]
        %v449 = vld [vmem:[%s295 + $0x144] sm:$0xf]
        %v450 = vld [vmem:[%s295 + $0x148] sm:$0xf]
        %v451 = vld [vmem:[%s295 + $0x14c] sm:$0xf]
        %v452 = vld [vmem:[%s295 + $0x150] sm:$0xf]
        %v453 = vld [vmem:[%s295 + $0x154] sm:$0xf]
        %v454 = vld [vmem:[%s295 + $0x158] sm:$0xf]
        %v455 = vld [vmem:[%s295 + $0x15c] sm:$0xf]
        %v456 = vld [vmem:[%s295 + $0x160] sm:$0xf]
        %v457 = vld [vmem:[%s295 + $0x164] sm:$0xf]
        %v458 = vld [vmem:[%s295 + $0x168] sm:$0xf]
        %v459 = vld [vmem:[%s295 + $0x16c] sm:$0xf]
        %v460 = vld [vmem:[%s295 + $0x170] sm:$0xf]
        %v461 = vld [vmem:[%s295 + $0x174] sm:$0xf]
        %v462 = vld [vmem:[%s295 + $0x178] sm:$0xf]
        %v463 = vld [vmem:[%s295 + $0x17c] sm:$0xf]
        %v500 = vunpack.c.l.b16 %v332
        %v501 = vunpack.c.h.b16 %v332
        %v502 = vunpack.c.l.b16 %v333
        %v503 = vunpack.c.h.b16 %v333
        %v504 = vunpack.c.l.b16 %v334
        %v505 = vunpack.c.h.b16 %v334
        %v506 = vunpack.c.l.b16 %v335
        %v507 = vunpack.c.h.b16 %v335
        %v508 = vunpack.c.l.b16 %v336
        %v509 = vunpack.c.h.b16 %v336
        %v510 = vunpack.c.l.b16 %v337
        %v511 = vunpack.c.h.b16 %v337
        %v512 = vunpack.c.l.b16 %v338
        %v513 = vunpack.c.h.b16 %v338
        %v514 = vunpack.c.l.b16 %v339
        %v515 = vunpack.c.h.b16 %v339
        %v516 = vunpack.c.l.b16 %v340
        %v517 = vunpack.c.h.b16 %v340
        %v518 = vunpack.c.l.b16 %v341
        %v519 = vunpack.c.h.b16 %v341
        %v520 = vunpack.c.l.b16 %v342
        %v521 = vunpack.c.h.b16 %v342
        %v522 = vunpack.c.l.b16 %v343
        %v523 = vunpack.c.h.b16 %v343
        %v524 = vunpack.c.l.b16 %v344
        %v525 = vunpack.c.h.b16 %v344
        %v526 = vunpack.c.l.b16 %v345
        %v527 = vunpack.c.h.b16 %v345
        %v528 = vunpack.c.l.b16 %v346
        %v529 = vunpack.c.h.b16 %v346
        %v530 = vunpack.c.l.b16 %v347
        %v531 = vunpack.c.h.b16 %v347
        %v532 = vunpack.c.l.b16 %v348
        %v533 = vunpack.c.h.b16 %v348
        %v534 = vunpack.c.l.b16 %v349
        %v535 = vunpack.c.h.b16 %v349
        %v536 = vunpack.c.l.b16 %v350
        %v537 = vunpack.c.h.b16 %v350
        %v538 = vunpack.c.l.b16 %v351
        %v539 = vunpack.c.h.b16 %v351
        %v540 = vunpack.c.l.b16 %v352
        %v541 = vunpack.c.h.b16 %v352
        %v542 = vunpack.c.l.b16 %v353
        %v543 = vunpack.c.h.b16 %v353
        %v544 = vunpack.c.l.b16 %v354
        %v545 = vunpack.c.h.b16 %v354
        %v546 = vunpack.c.l.b16 %v355
        %v547 = vunpack.c.h.b16 %v355
        %v548 = vunpack.c.l.b16 %v356
        %v549 = vunpack.c.h.b16 %v356
        %v550 = vunpack.c.l.b16 %v357
        %v551 = vunpack.c.h.b16 %v357
        %v552 = vunpack.c.l.b16 %v358
        %v553 = vunpack.c.h.b16 %v358
        %v554 = vunpack.c.l.b16 %v359
        %v555 = vunpack.c.h.b16 %v359
        %v556 = vunpack.c.l.b16 %v360
        %v557 = vunpack.c.h.b16 %v360
        %v558 = vunpack.c.l.b16 %v361
        %v559 = vunpack.c.h.b16 %v361
        %v560 = vunpack.c.l.b16 %v362
        %v561 = vunpack.c.h.b16 %v362
        %v562 = vunpack.c.l.b16 %v363
        %v563 = vunpack.c.h.b16 %v363
        %v564 = vunpack.c.l.b16 %v364
        %v565 = vunpack.c.h.b16 %v364
        %v566 = vunpack.c.l.b16 %v365
        %v567 = vunpack.c.h.b16 %v365
        %v568 = vunpack.c.l.b16 %v366
        %v569 = vunpack.c.h.b16 %v366
        %v570 = vunpack.c.l.b16 %v367
        %v571 = vunpack.c.h.b16 %v367
        %v572 = vpack.c.b16 %v506, %v500
        %v573 = vpack.c.b16 %v507, %v501
        %v574 = vpack.c.b16 %v508, %v502
        %v575 = vpack.c.b16 %v509, %v503
        %v576 = vpack.c.b16 %v510, %v504
        %v577 = vpack.c.b16 %v511, %v505
        %v578 = vpack.c.b16 %v518, %v512
        %v579 = vpack.c.b16 %v519, %v513
        %v580 = vpack.c.b16 %v520, %v514
        %v581 = vpack.c.b16 %v521, %v515
        %v582 = vpack.c.b16 %v522, %v516
        %v583 = vpack.c.b16 %v523, %v517
        %v584 = vpack.c.b16 %v530, %v524
        %v585 = vpack.c.b16 %v531, %v525
        %v586 = vpack.c.b16 %v532, %v526
        %v587 = vpack.c.b16 %v533, %v527
        %v588 = vpack.c.b16 %v534, %v528
        %v589 = vpack.c.b16 %v535, %v529
        %v590 = vpack.c.b16 %v542, %v536
        %v591 = vpack.c.b16 %v543, %v537
        %v592 = vpack.c.b16 %v544, %v538
        %v593 = vpack.c.b16 %v545, %v539
        %v594 = vpack.c.b16 %v546, %v540
        %v595 = vpack.c.b16 %v547, %v541
        %v596 = vpack.c.b16 %v554, %v548
        %v597 = vpack.c.b16 %v555, %v549
        %v598 = vpack.c.b16 %v556, %v550
        %v599 = vpack.c.b16 %v557, %v551
        %v600 = vpack.c.b16 %v558, %v552
        %v601 = vpack.c.b16 %v559, %v553
        %v602 = vpack.c.b16 %v566, %v560
        %v603 = vpack.c.b16 %v567, %v561
        %v604 = vpack.c.b16 %v568, %v562
        %v605 = vpack.c.b16 %v569, %v563
        %v606 = vpack.c.b16 %v570, %v564
        %v607 = vpack.c.b16 %v571, %v565
        %v740 = vunpack.c.l.b16 %v368
        %v741 = vunpack.c.l.b16 %v369
        %v742 = vunpack.c.l.b16 %v370
        %v743 = vunpack.c.l.b16 %v371
        %v744 = vunpack.c.l.b16 %v372
        %v745 = vunpack.c.l.b16 %v373
        %v746 = vunpack.c.l.b16 %v374
        %v747 = vunpack.c.l.b16 %v375
        %v748 = vunpack.c.l.b16 %v376
        %v749 = vunpack.c.l.b16 %v377
        %v750 = vunpack.c.l.b16 %v378
        %v751 = vunpack.c.l.b16 %v379
        %v752 = vunpack.c.l.b16 %v380
        %v753 = vunpack.c.l.b16 %v381
        %v754 = vunpack.c.l.b16 %v382
        %v755 = vunpack.c.l.b16 %v383
        %v756 = vunpack.c.l.b16 %v384
        %v757 = vunpack.c.l.b16 %v385
        %v758 = vunpack.c.l.b16 %v386
        %v759 = vunpack.c.l.b16 %v387
        %v760 = vunpack.c.l.b16 %v388
        %v761 = vunpack.c.l.b16 %v389
        %v762 = vunpack.c.l.b16 %v390
        %v763 = vunpack.c.l.b16 %v391
        %v764 = vunpack.c.l.b16 %v392
        %v765 = vunpack.c.l.b16 %v393
        %v766 = vunpack.c.l.b16 %v394
        %v767 = vunpack.c.l.b16 %v395
        %v768 = vunpack.c.l.b16 %v396
        %v769 = vunpack.c.l.b16 %v397
        %v770 = vunpack.c.l.b16 %v398
        %v771 = vunpack.c.l.b16 %v399
        %v772 = vunpack.c.l.b16 %v400
        %v773 = vunpack.c.l.b16 %v401
        %v774 = vunpack.c.l.b16 %v402
        %v775 = vunpack.c.l.b16 %v403
        %v776 = vunpack.c.l.b16 %v404
        %v777 = vunpack.c.l.b16 %v405
        %v778 = vunpack.c.l.b16 %v406
        %v779 = vunpack.c.l.b16 %v407
        %v780 = vunpack.c.l.b16 %v408
        %v781 = vunpack.c.l.b16 %v409
        %v782 = vunpack.c.l.b16 %v410
        %v783 = vunpack.c.l.b16 %v411
        %v784 = vunpack.c.l.b16 %v412
        %v785 = vunpack.c.l.b16 %v413
        %v786 = vunpack.c.l.b16 %v414
        %v787 = vunpack.c.l.b16 %v415
        %v788 = vunpack.c.l.b16 %v416
        %v789 = vunpack.c.l.b16 %v417
        %v790 = vunpack.c.l.b16 %v418
        %v791 = vunpack.c.l.b16 %v419
        %v792 = vunpack.c.l.b16 %v420
        %v793 = vunpack.c.l.b16 %v421
        %v794 = vunpack.c.l.b16 %v422
        %v795 = vunpack.c.l.b16 %v423
        %v796 = vunpack.c.l.b16 %v424
        %v797 = vunpack.c.l.b16 %v425
        %v798 = vunpack.c.l.b16 %v426
        %v799 = vunpack.c.l.b16 %v427
        %v800 = vunpack.c.l.b16 %v428
        %v801 = vunpack.c.l.b16 %v429
        %v802 = vunpack.c.l.b16 %v430
        %v803 = vunpack.c.l.b16 %v431
        %v804 = vunpack.c.l.b16 %v432
        %v805 = vunpack.c.l.b16 %v433
        %v806 = vunpack.c.l.b16 %v434
        %v807 = vunpack.c.l.b16 %v435
        %v808 = vunpack.c.l.b16 %v436
        %v809 = vunpack.c.l.b16 %v437
        %v810 = vunpack.c.l.b16 %v438
        %v811 = vunpack.c.l.b16 %v439
        %v812 = vunpack.c.l.b16 %v440
        %v813 = vunpack.c.l.b16 %v441
        %v814 = vunpack.c.l.b16 %v442
        %v815 = vunpack.c.l.b16 %v443
        %v816 = vunpack.c.l.b16 %v444
        %v817 = vunpack.c.l.b16 %v445
        %v818 = vunpack.c.l.b16 %v446
        %v819 = vunpack.c.l.b16 %v447
        %v820 = vunpack.c.l.b16 %v448
        %v821 = vunpack.c.l.b16 %v449
        %v822 = vunpack.c.l.b16 %v450
        %v823 = vunpack.c.l.b16 %v451
        %v824 = vunpack.c.l.b16 %v452
        %v825 = vunpack.c.l.b16 %v453
        %v826 = vunpack.c.l.b16 %v454
        %v827 = vunpack.c.l.b16 %v455
        %v828 = vunpack.c.l.b16 %v456
        %v829 = vunpack.c.l.b16 %v457
        %v830 = vunpack.c.l.b16 %v458
        %v831 = vunpack.c.l.b16 %v459
        %v832 = vunpack.c.l.b16 %v460
        %v833 = vunpack.c.l.b16 %v461
        %v834 = vunpack.c.l.b16 %v462
        %v835 = vunpack.c.l.b16 %v463
        %v836 = vpack.c.b16 %v741, %v740
        %v837 = vpack.c.b16 %v743, %v742
        %v838 = vpack.c.b16 %v745, %v744
        %v839 = vpack.c.b16 %v747, %v746
        %v840 = vpack.c.b16 %v749, %v748
        %v841 = vpack.c.b16 %v751, %v750
        %v842 = vpack.c.b16 %v753, %v752
        %v843 = vpack.c.b16 %v755, %v754
        %v844 = vpack.c.b16 %v757, %v756
        %v845 = vpack.c.b16 %v759, %v758
        %v846 = vpack.c.b16 %v761, %v760
        %v847 = vpack.c.b16 %v763, %v762
        %v848 = vpack.c.b16 %v765, %v764
        %v849 = vpack.c.b16 %v767, %v766
        %v850 = vpack.c.b16 %v769, %v768
        %v851 = vpack.c.b16 %v771, %v770
        %v852 = vpack.c.b16 %v773, %v772
        %v853 = vpack.c.b16 %v775, %v774
        %v854 = vpack.c.b16 %v777, %v776
        %v855 = vpack.c.b16 %v779, %v778
        %v856 = vpack.c.b16 %v781, %v780
        %v857 = vpack.c.b16 %v783, %v782
        %v858 = vpack.c.b16 %v785, %v784
        %v859 = vpack.c.b16 %v787, %v786
        %v860 = vpack.c.b16 %v789, %v788
        %v861 = vpack.c.b16 %v791, %v790
        %v862 = vpack.c.b16 %v793, %v792
        %v863 = vpack.c.b16 %v795, %v794
        %v864 = vpack.c.b16 %v797, %v796
        %v865 = vpack.c.b16 %v799, %v798
        %v866 = vpack.c.b16 %v801, %v800
        %v867 = vpack.c.b16 %v803, %v802
        %v868 = vpack.c.b16 %v805, %v804
        %v869 = vpack.c.b16 %v807, %v806
        %v870 = vpack.c.b16 %v809, %v808
        %v871 = vpack.c.b16 %v811, %v810
        %v872 = vpack.c.b16 %v813, %v812
        %v873 = vpack.c.b16 %v815, %v814
        %v874 = vpack.c.b16 %v817, %v816
        %v875 = vpack.c.b16 %v819, %v818
        %v876 = vpack.c.b16 %v821, %v820
        %v877 = vpack.c.b16 %v823, %v822
        %v878 = vpack.c.b16 %v825, %v824
        %v879 = vpack.c.b16 %v827, %v826
        %v880 = vpack.c.b16 %v829, %v828
        %v881 = vpack.c.b16 %v831, %v830
        %v882 = vpack.c.b16 %v833, %v832
        %v883 = vpack.c.b16 %v835, %v834
        %932 = vmatprep.subr.bf16.mxu0 0
        %933 = vmatpush1.bf16.msra.mxu0 %v836
        %934 = vmatprep.subr.bf16.mxu0 0
        %935 = vmatpush1.bf16.msra.mxu0 %v837
        %936 = vmatprep.subr.bf16.mxu0 0
        %937 = vmatpush1.bf16.msra.mxu0 %v838
        %938 = vmatprep.subr.bf16.mxu0 0
        %939 = vmatpush1.bf16.msra.mxu0 %v839
        %940 = vmatprep.subr.bf16.mxu0 0
        %941 = vmatpush1.bf16.msra.mxu0 %v840
        %942 = vmatprep.subr.bf16.mxu0 0
        %943 = vmatpush1.bf16.msra.mxu0 %v841
        %944 = vmatprep.subr.bf16.mxu0 0
        %945 = vmatpush1.bf16.msra.mxu0 %v842
        %946 = vmatprep.subr.bf16.mxu0 0
        %947 = vmatpush1.bf16.msra.mxu0 %v843
        %948 = vmatprep.subr.bf16.mxu0 0
        %949 = vmatpush1.bf16.msra.mxu0 %v844
        %950 = vmatprep.subr.bf16.mxu0 0
        %951 = vmatpush1.bf16.msra.mxu0 %v845
        %952 = vmatprep.subr.bf16.mxu0 0
        %953 = vmatpush1.bf16.msra.mxu0 %v846
        %954 = vmatprep.subr.bf16.mxu0 0
        %955 = vmatpush1.bf16.msra.mxu0 %v847
        %956 = vmatprep.subr.bf16.mxu0 0
        %957 = vmatpush1.bf16.msra.mxu0 %v848
        %958 = vmatprep.subr.bf16.mxu0 0
        %959 = vmatpush1.bf16.msra.mxu0 %v849
        %960 = vmatprep.subr.bf16.mxu0 0
        %961 = vmatpush1.bf16.msra.mxu0 %v850
        %962 = vmatprep.subr.bf16.mxu0 0
        %963 = vmatpush1.bf16.msra.mxu0 %v851
        %964 = vmatprep.mubr.bf16.mxu0 %v573
        %965 = vmatmul.mubr.bf16.gmra.mrb[0].mxu0 %v572
        %v966 = vpop.f32.mrb[0].mxu0
        %v967 = vadd.f32 0.0, %v966
        %v968 = vpop.f32.mrb[0].mxu0
        %v969 = vpop.f32.mrb[0].mxu0
        %v970 = vadd.f32 0.0, %v969
        %v971 = vpop.f32.mrb[0].mxu0
        %972 = vmatprep.mubr.bf16.mxu0 %v579
        %973 = vmatmul.mubr.bf16.gmra.mrb[0].mxu0 %v578
        %v974 = vpop.f32.mrb[0].mxu0
        %v975 = vadd.f32 0.0, %v974
        %v976 = vpop.f32.mrb[0].mxu0
        %v977 = vpop.f32.mrb[0].mxu0
        %v978 = vadd.f32 0.0, %v977
        %v979 = vpop.f32.mrb[0].mxu0
        %980 = vmatprep.mubr.bf16.mxu0 %v585
        %981 = vmatmul.mubr.bf16.gmra.mrb[0].mxu0 %v584
        %v982 = vpop.f32.mrb[0].mxu0
        %v983 = vadd.f32 0.0, %v982
        %v984 = vpop.f32.mrb[0].mxu0
        %v985 = vpop.f32.mrb[0].mxu0
        %v986 = vadd.f32 0.0, %v985
        %v987 = vpop.f32.mrb[0].mxu0
        %988 = vmatprep.mubr.bf16.mxu0 %v591
        %989 = vmatmul.mubr.bf16.gmra.mrb[0].mxu0 %v590
        %v990 = vpop.f32.mrb[0].mxu0
        %v991 = vadd.f32 0.0, %v990
        %v992 = vpop.f32.mrb[0].mxu0
        %v993 = vpop.f32.mrb[0].mxu0
        %v994 = vadd.f32 0.0, %v993
        %v995 = vpop.f32.mrb[0].mxu0
        %996 = vmatprep.mubr.bf16.mxu0 %v597
        %997 = vmatmul.mubr.bf16.gmra.mrb[0].mxu0 %v596
        %v998 = vpop.f32.mrb[0].mxu0
        %v999 = vadd.f32 0.0, %v998
        %v1000 = vpop.f32.mrb[0].mxu0
        %v1001 = vpop.f32.mrb[0].mxu0
        %v1002 = vadd.f32 0.0, %v1001
        %v1003 = vpop.f32.mrb[0].mxu0
        %1004 = vmatprep.mubr.bf16.mxu0 %v603
        %1005 = vmatmul.mubr.bf16.gmra.mrb[0].mxu0 %v602
        %v1006 = vpop.f32.mrb[0].mxu0
        %v1007 = vadd.f32 0.0, %v1006
        %v1008 = vpop.f32.mrb[0].mxu0
        %v1009 = vpop.f32.mrb[0].mxu0
        %v1010 = vadd.f32 0.0, %v1009
        %v1011 = vpop.f32.mrb[0].mxu0
        %1012 = vdwg.mxu0
        %1013 = vmatprep.subr.bf16.mxu0 0
        %1014 = vmatpush1.bf16.msra.mxu0 %v852
        %1015 = vmatprep.subr.bf16.mxu0 0
        %1016 = vmatpush1.bf16.msra.mxu0 %v853
        %1017 = vmatprep.subr.bf16.mxu0 0
        %1018 = vmatpush1.bf16.msra.mxu0 %v854
        %1019 = vmatprep.subr.bf16.mxu0 0
        %1020 = vmatpush1.bf16.msra.mxu0 %v855
        %1021 = vmatprep.subr.bf16.mxu0 0
        %1022 = vmatpush1.bf16.msra.mxu0 %v856
        %1023 = vmatprep.subr.bf16.mxu0 0
        %1024 = vmatpush1.bf16.msra.mxu0 %v857
        %1025 = vmatprep.subr.bf16.mxu0 0
        %1026 = vmatpush1.bf16.msra.mxu0 %v858
        %1027 = vmatprep.subr.bf16.mxu0 0
        %1028 = vmatpush1.bf16.msra.mxu0 %v859
        %1029 = vmatprep.subr.bf16.mxu0 0
        %1030 = vmatpush1.bf16.msra.mxu0 %v860
        %1031 = vmatprep.subr.bf16.mxu0 0
        %1032 = vmatpush1.bf16.msra.mxu0 %v861
        %1033 = vmatprep.subr.bf16.mxu0 0
        %1034 = vmatpush1.bf16.msra.mxu0 %v862
        %1035 = vmatprep.subr.bf16.mxu0 0
        %1036 = vmatpush1.bf16.msra.mxu0 %v863
        %1037 = vmatprep.subr.bf16.mxu0 0
        %1038 = vmatpush1.bf16.msra.mxu0 %v864
        %1039 = vmatprep.subr.bf16.mxu0 0
        %1040 = vmatpush1.bf16.msra.mxu0 %v865
        %1041 = vmatprep.subr.bf16.mxu0 0
        %1042 = vmatpush1.bf16.msra.mxu0 %v866
        %1043 = vmatprep.subr.bf16.mxu0 0
        %1044 = vmatpush1.bf16.msra.mxu0 %v867
        %1045 = vmatprep.mubr.bf16.mxu0 %v575
        %1046 = vmatmul.mubr.bf16.gmra.mrb[0].mxu0 %v574
        %v1047 = vpop.f32.mrb[0].mxu0
        %v1048 = vadd.f32 %v967, %v1047
        %v1049 = vpop.f32.mrb[0].mxu0
        %v1050 = vpop.f32.mrb[0].mxu0
        %v1051 = vadd.f32 %v970, %v1050
        %v1052 = vpop.f32.mrb[0].mxu0
        %1053 = vmatprep.mubr.bf16.mxu0 %v581
        %1054 = vmatmul.mubr.bf16.gmra.mrb[0].mxu0 %v580
        %v1055 = vpop.f32.mrb[0].mxu0
        %v1056 = vadd.f32 %v975, %v1055
        %v1057 = vpop.f32.mrb[0].mxu0
        %v1058 = vpop.f32.mrb[0].mxu0
        %v1059 = vadd.f32 %v978, %v1058
        %v1060 = vpop.f32.mrb[0].mxu0
        %1061 = vmatprep.mubr.bf16.mxu0 %v587
        %1062 = vmatmul.mubr.bf16.gmra.mrb[0].mxu0 %v586
        %v1063 = vpop.f32.mrb[0].mxu0
        %v1064 = vadd.f32 %v983, %v1063
        %v1065 = vpop.f32.mrb[0].mxu0
        %v1066 = vpop.f32.mrb[0].mxu0
        %v1067 = vadd.f32 %v986, %v1066
        %v1068 = vpop.f32.mrb[0].mxu0
        %1069 = vmatprep.mubr.bf16.mxu0 %v593
        %1070 = vmatmul.mubr.bf16.gmra.mrb[0].mxu0 %v592
        %v1071 = vpop.f32.mrb[0].mxu0
        %v1072 = vadd.f32 %v991, %v1071
        %v1073 = vpop.f32.mrb[0].mxu0
        %v1074 = vpop.f32.mrb[0].mxu0
        %v1075 = vadd.f32 %v994, %v1074
        %v1076 = vpop.f32.mrb[0].mxu0
        %1077 = vmatprep.mubr.bf16.mxu0 %v599
        %1078 = vmatmul.mubr.bf16.gmra.mrb[0].mxu0 %v598
        %v1079 = vpop.f32.mrb[0].mxu0
        %v1080 = vadd.f32 %v999, %v1079
        %v1081 = vpop.f32.mrb[0].mxu0
        %v1082 = vpop.f32.mrb[0].mxu0
        %v1083 = vadd.f32 %v1002, %v1082
        %v1084 = vpop.f32.mrb[0].mxu0
        %1085 = vmatprep.mubr.bf16.mxu0 %v605
        %1086 = vmatmul.mubr.bf16.gmra.mrb[0].mxu0 %v604
        %v1087 = vpop.f32.mrb[0].mxu0
        %v1088 = vadd.f32 %v1007, %v1087
        %v1089 = vpop.f32.mrb[0].mxu0
        %v1090 = vpop.f32.mrb[0].mxu0
        %v1091 = vadd.f32 %v1010, %v1090
        %v1092 = vpop.f32.mrb[0].mxu0
        %1093 = vdwg.mxu0
        %1094 = vmatprep.subr.bf16.mxu0 0
        %1095 = vmatpush1.bf16.msra.mxu0 %v868
        %1096 = vmatprep.subr.bf16.mxu0 0
        %1097 = vmatpush1.bf16.msra.mxu0 %v869
        %1098 = vmatprep.subr.bf16.mxu0 0
        %1099 = vmatpush1.bf16.msra.mxu0 %v870
        %1100 = vmatprep.subr.bf16.mxu0 0
        %1101 = vmatpush1.bf16.msra.mxu0 %v871
        %1102 = vmatprep.subr.bf16.mxu0 0
        %1103 = vmatpush1.bf16.msra.mxu0 %v872
        %1104 = vmatprep.subr.bf16.mxu0 0
        %1105 = vmatpush1.bf16.msra.mxu0 %v873
        %1106 = vmatprep.subr.bf16.mxu0 0
        %1107 = vmatpush1.bf16.msra.mxu0 %v874
        %1108 = vmatprep.subr.bf16.mxu0 0
        %1109 = vmatpush1.bf16.msra.mxu0 %v875
        %1110 = vmatprep.subr.bf16.mxu0 0
        %1111 = vmatpush1.bf16.msra.mxu0 %v876
        %1112 = vmatprep.subr.bf16.mxu0 0
        %1113 = vmatpush1.bf16.msra.mxu0 %v877
        %1114 = vmatprep.subr.bf16.mxu0 0
        %1115 = vmatpush1.bf16.msra.mxu0 %v878
        %1116 = vmatprep.subr.bf16.mxu0 0
        %1117 = vmatpush1.bf16.msra.mxu0 %v879
        %1118 = vmatprep.subr.bf16.mxu0 0
        %1119 = vmatpush1.bf16.msra.mxu0 %v880
        %1120 = vmatprep.subr.bf16.mxu0 0
        %1121 = vmatpush1.bf16.msra.mxu0 %v881
        %1122 = vmatprep.subr.bf16.mxu0 0
        %1123 = vmatpush1.bf16.msra.mxu0 %v882
        %1124 = vmatprep.subr.bf16.mxu0 0
        %1125 = vmatpush1.bf16.msra.mxu0 %v883
        %1126 = vmatprep.mubr.bf16.mxu0 %v577
        %1127 = vmatmul.mubr.bf16.gmra.mrb[0].mxu0 %v576
        %v1128 = vpop.f32.mrb[0].mxu0
        %v1129 = vadd.f32 %v1048, %v1128
        %v1130 = vpop.f32.mrb[0].mxu0
        %v1131 = vpop.f32.mrb[0].mxu0
        %v1132 = vadd.f32 %v1051, %v1131
        %v1133 = vpop.f32.mrb[0].mxu0
        %1134 = vmatprep.mubr.bf16.mxu0 %v583
        %1135 = vmatmul.mubr.bf16.gmra.mrb[0].mxu0 %v582
        %v1136 = vpop.f32.mrb[0].mxu0
        %v1137 = vadd.f32 %v1056, %v1136
        %v1138 = vpop.f32.mrb[0].mxu0
        %v1139 = vpop.f32.mrb[0].mxu0
        %v1140 = vadd.f32 %v1059, %v1139
        %v1141 = vpop.f32.mrb[0].mxu0
        %1142 = vmatprep.mubr.bf16.mxu0 %v589
        %1143 = vmatmul.mubr.bf16.gmra.mrb[0].mxu0 %v588
        %v1144 = vpop.f32.mrb[0].mxu0
        %v1145 = vadd.f32 %v1064, %v1144
        %v1146 = vpop.f32.mrb[0].mxu0
        %v1147 = vpop.f32.mrb[0].mxu0
        %v1148 = vadd.f32 %v1067, %v1147
        %v1149 = vpop.f32.mrb[0].mxu0
        %1150 = vmatprep.mubr.bf16.mxu0 %v595
        %1151 = vmatmul.mubr.bf16.gmra.mrb[0].mxu0 %v594
        %v1152 = vpop.f32.mrb[0].mxu0
        %v1153 = vadd.f32 %v1072, %v1152
        %v1154 = vpop.f32.mrb[0].mxu0
        %v1155 = vpop.f32.mrb[0].mxu0
        %v1156 = vadd.f32 %v1075, %v1155
        %v1157 = vpop.f32.mrb[0].mxu0
        %1158 = vmatprep.mubr.bf16.mxu0 %v601
        %1159 = vmatmul.mubr.bf16.gmra.mrb[0].mxu0 %v600
        %v1160 = vpop.f32.mrb[0].mxu0
        %v1161 = vadd.f32 %v1080, %v1160
        %v1162 = vpop.f32.mrb[0].mxu0
        %v1163 = vpop.f32.mrb[0].mxu0
        %v1164 = vadd.f32 %v1083, %v1163
        %v1165 = vpop.f32.mrb[0].mxu0
        %1166 = vmatprep.mubr.bf16.mxu0 %v607
        %1167 = vmatmul.mubr.bf16.gmra.mrb[0].mxu0 %v606
        %v1168 = vpop.f32.mrb[0].mxu0
        %v1169 = vadd.f32 %v1088, %v1168
        %v1170 = vpop.f32.mrb[0].mxu0
        %v1171 = vpop.f32.mrb[0].mxu0
        %v1172 = vadd.f32 %v1091, %v1171
        %v1173 = vpop.f32.mrb[0].mxu0
        %1174 = vdwg.mxu0
        %v1175 = vadd.f32 %v320, %v1129
        %v1176 = vadd.f32 %v321, %v1132
        %v1177 = vadd.f32 %v322, %v1137
        %v1178 = vadd.f32 %v323, %v1140
        %v1179 = vadd.f32 %v324, %v1145
        %v1180 = vadd.f32 %v325, %v1148
        %v1181 = vadd.f32 %v326, %v1153
        %v1182 = vadd.f32 %v327, %v1156
        %v1183 = vadd.f32 %v328, %v1161
        %v1184 = vadd.f32 %v329, %v1164
        %v1185 = vadd.f32 %v330, %v1169
        %v1186 = vadd.f32 %v331, %v1172
        %1187 = vst [vmem:[#allocation2] sm:$0xff] %v1175
        %1188 = vst [vmem:[#allocation2 + $0x8] sm:$0xff] %v1176
        %1189 = vst [vmem:[#allocation2 + $0x10] sm:$0xff] %v1177
        %1190 = vst [vmem:[#allocation2 + $0x18] sm:$0xff] %v1178
        %1191 = vst [vmem:[#allocation2 + $0x20] sm:$0xff] %v1179
        %1192 = vst [vmem:[#allocation2 + $0x28] sm:$0xff] %v1180
        %1193 = vst [vmem:[#allocation2 + $0x30] sm:$0xff] %v1181
        %1194 = vst [vmem:[#allocation2 + $0x38] sm:$0xff] %v1182
        %1195 = vst [vmem:[#allocation2 + $0x40] sm:$0xff] %v1183
        %1196 = vst [vmem:[#allocation2 + $0x48] sm:$0xff] %v1184
        %1197 = vst [vmem:[#allocation2 + $0x50] sm:$0xff] %v1185
        %1198 = vst [vmem:[#allocation2 + $0x58] sm:$0xff] %v1186
        %p1199 = scmp.eq.s32.totalorder %s19, 1
        // Predicated region
        $region60: #{_lambda_.13} parent=50 // pred_check
          %p1200 = pneg %p1199
        $region61: #{_lambda_.13} parent=50 // pred_check_branch
          %1202 = sbr.rel (%p1200) target = $region63
        $region62: #{_lambda_.13} parent=50 // pred_region
          %v1203 = vld [vmem:[#allocation2] sm:$0xff]
          %v1204 = vld [vmem:[#allocation2 + $0x8] sm:$0xff]
          %v1205 = vld [vmem:[#allocation2 + $0x10] sm:$0xff]
          %v1206 = vld [vmem:[#allocation2 + $0x18] sm:$0xff]
          %v1207 = vld [vmem:[#allocation2 + $0x20] sm:$0xff]
          %v1208 = vld [vmem:[#allocation2 + $0x28] sm:$0xff]
          %v1209 = vld [vmem:[#allocation2 + $0x30] sm:$0xff]
          %v1210 = vld [vmem:[#allocation2 + $0x38] sm:$0xff]
          %v1211 = vld [vmem:[#allocation2 + $0x40] sm:$0xff]
          %v1212 = vld [vmem:[#allocation2 + $0x48] sm:$0xff]
          %v1213 = vld [vmem:[#allocation2 + $0x50] sm:$0xff]
          %v1214 = vld [vmem:[#allocation2 + $0x58] sm:$0xff]
          %v1215 = vld [vmem:[%s2] sm:$0x1]
          %v1217 = vlaneseq
          %v1218 = vshrl.u32 %v1217, 7
          %v1219 = vsub.s32 0, %v1218
          %v1220 = vrot.slane %v1215, %v1219
          %v1222 = vadd.f32 %v1203, %v1220
          %v1223 = vadd.f32 %v1204, %v1220
          %v1224 = vadd.f32 %v1205, %v1220
          %v1225 = vadd.f32 %v1206, %v1220
          %v1226 = vadd.f32 %v1207, %v1220
          %v1227 = vadd.f32 %v1208, %v1220
          %v1228 = vadd.f32 %v1209, %v1220
          %v1229 = vadd.f32 %v1210, %v1220
          %v1230 = vadd.f32 %v1211, %v1220
          %v1231 = vadd.f32 %v1212, %v1220
          %v1232 = vadd.f32 %v1213, %v1220
          %v1233 = vadd.f32 %v1214, %v1220
          %v1234 = vmax.f32 %v1222, 0.0
          %v1235 = vmax.f32 %v1223, 0.0
          %v1236 = vmax.f32 %v1224, 0.0
          %v1237 = vmax.f32 %v1225, 0.0
          %v1238 = vmax.f32 %v1226, 0.0
          %v1239 = vmax.f32 %v1227, 0.0
          %v1240 = vmax.f32 %v1228, 0.0
          %v1241 = vmax.f32 %v1229, 0.0
          %v1242 = vmax.f32 %v1230, 0.0
          %v1243 = vmax.f32 %v1231, 0.0
          %v1244 = vmax.f32 %v1232, 0.0
          %v1245 = vmax.f32 %v1233, 0.0
          %v1246 = vpack.c.bf16 %v1235, %v1234
          %v1247 = vpack.c.bf16 %v1237, %v1236
          %v1248 = vpack.c.bf16 %v1239, %v1238
          %v1249 = vpack.c.bf16 %v1241, %v1240
          %v1250 = vpack.c.bf16 %v1243, %v1242
          %v1251 = vpack.c.bf16 %v1245, %v1244
          %v1258 = vunpack.c.l.b16 %v1246
          %v1259 = vunpack.c.h.b16 %v1246
          %v1260 = vunpack.c.l.b16 %v1247
          %v1261 = vunpack.c.h.b16 %v1247
          %v1262 = vunpack.c.l.b16 %v1248
          %v1263 = vunpack.c.h.b16 %v1248
          %v1264 = vunpack.c.l.b16 %v1249
          %v1265 = vunpack.c.h.b16 %v1249
          %v1266 = vunpack.c.l.b16 %v1250
          %v1267 = vunpack.c.h.b16 %v1250
          %v1268 = vunpack.c.l.b16 %v1251
          %v1269 = vunpack.c.h.b16 %v1251
          %v1270 = vpack.c.b16 %v1258, %v1258
          %v1271 = vpack.c.b16 %v1259, %v1259
          %v1272 = vpack.c.b16 %v1260, %v1260
          %v1273 = vpack.c.b16 %v1261, %v1261
          %v1274 = vpack.c.b16 %v1262, %v1262
          %v1275 = vpack.c.b16 %v1263, %v1263
          %v1276 = vpack.c.b16 %v1264, %v1264
          %v1277 = vpack.c.b16 %v1265, %v1265
          %v1278 = vpack.c.b16 %v1266, %v1266
          %v1279 = vpack.c.b16 %v1267, %v1267
          %v1280 = vpack.c.b16 %v1268, %v1268
          %v1281 = vpack.c.b16 %v1269, %v1269
          %1294 = vst [vmem:[%s301] sm:$0xf] %v1270
          %1295 = vst [vmem:[%s301 + $0x4] sm:$0xf] %v1271
          %1296 = vst [vmem:[%s301 + $0x8] sm:$0xf] %v1272
          %1297 = vst [vmem:[%s301 + $0xc] sm:$0xf] %v1273
          %1298 = vst [vmem:[%s301 + $0x10] sm:$0xf] %v1274
          %1299 = vst [vmem:[%s301 + $0x14] sm:$0xf] %v1275
          %1300 = vst [vmem:[%s301 + $0x18] sm:$0xf] %v1276
          %1301 = vst [vmem:[%s301 + $0x1c] sm:$0xf] %v1277
          %1302 = vst [vmem:[%s301 + $0x20] sm:$0xf] %v1278
          %1303 = vst [vmem:[%s301 + $0x24] sm:$0xf] %v1279
          %1304 = vst [vmem:[%s301 + $0x28] sm:$0xf] %v1280
          %1305 = vst [vmem:[%s301 + $0x2c] sm:$0xf] %v1281
        $region63: #{_lambda_.13} parent=50 // pred_fallthru
          _
        %s1306 = smul.u32 12, %s18
        %p1307 = scmp.lt.s32.totalorder %s1306, 23
        %s1308 = scalar_select %p1307, %s1306, 23
        %s1309 = smul.addr %s1308, 4
        %s1310 = scalar_lea.vmem %s3, %s1309
        // Predicated region
        $region64: #{_lambda_.13} parent=50 // pred_check
          %p1311 = pneg %p119
        $region65: #{_lambda_.13} parent=50 // pred_check_branch
          %1313 = sbr.rel (%p1311) target = $region67
        $region66: #{_lambda_.13} parent=50 // pred_region
          %s1314 = smul.u32 12, %s18
        $region67: #{_lambda_.13} parent=50 // pred_fallthru
          _
      $region51: #{_lambda_.13} parent=5 // pred_fallthru
        _
      %p1315 = scmp.le.s32.totalorder 2, %s9
      // Predicated region
      $region68: #{_lambda_.13} parent=5 // pred_check
        %p1316 = pneg %p1315
      $region69: #{_lambda_.13} parent=5 // pred_check_branch
        %1318 = sbr.rel (%p1316) target = $region71
      $region70: #{_lambda_.13} parent=5 // pred_region
        %s1319 = ssub.s32 %s9, 2
        // Predicated region
        $region72: #{_lambda_.13} parent=70 // pred_check
          %p1320 = pneg %p125
        $region73: #{_lambda_.13} parent=70 // pred_check_branch
          %1322 = sbr.rel (%p1320) target = $region75
        $region74: #{_lambda_.13} parent=70 // pred_region
          %s1323 = smul.u32 12, %s20
          %p1324 = scmp.lt.s32.totalorder %s1323, 23
          %s1325 = scalar_select %p1324, %s1323, 23
          %s1326 = smul.addr %s1325, 4
          %s1327 = scalar_lea.vmem %s3, %s1326
        $region75: #{_lambda_.13} parent=70 // pred_fallthru
          _
      $region71: #{_lambda_.13} parent=5 // pred_fallthru
        _
    $region6: #{_lambda_.13} parent=1 // loop_footer
      %s13 = sadd.s32 1, %s9
    $region7: #{_lambda_.13} parent=1 // loop_footer_branch
      %8 = sbr.rel target = $region3
    $region8: #{_lambda_.13} parent=1 // loop_exit
      _

// kernel: _lambda_.11
$region0: #{_lambda_.11}
  #allocation0 [shape = 'u32[]', space=smem, size = 0x4, offset = 0x4, fixed_abs, tag = 'smem constant byte address 0x4 - core index']
  #allocation1 [shape = 'u32[144,128]{1,0:T(1,128)}', space=vmem, size = 0x12000, scoped, tag = 'internal scratch']
  %s0 = inlined_call_operand.vmem [shape: bf16[192,1024], index: 0, kind: input, shape index: {}]
  %s1 = inlined_call_operand.vmem [shape: bf16[1024,128], index: 1, kind: input, shape index: {}]
  %s2 = inlined_call_operand.vmem [shape: f32[1,128], index: 2, kind: input, shape index: {}]
  %s3 = inlined_call_operand.vmem [shape: bf16[192,128], index: 3, kind: output, shape index: {}]
  %s4 = sld [smem:[#allocation0]]
  $region45: #{_lambda_.11} parent=0
    _
  %s6 = ssub.s32 1, %s4
  %s7 = scalar_select 0, %s6, %s4
  loop: start=0, step=1, limit=4
  $region2: #{_lambda_.11} parent=0 // loop_pre_header
    _
  $region3: #{_lambda_.11} parent=0 // loop_header
    %s9 = sphi 0, %s13
    %p10 = scmp.ge.s32.totalorder %s9, 4
    %s16 = sphi 0, %s28
    %s17 = sphi 0, %s24
    %s18 = sphi 0, %s16
    %s19 = sphi 0, %s17
    %s20 = sphi 0, %s18
    %s21 = sphi 0, %s19
    %s33 = sphi 0, %s35
    %s36 = sphi 0, %s33
    %s37 = sphi 0, %s36
    %s53 = sphi 0, %s37
    %s59 = sphi 0, %s61
    %s62 = sphi 0, %s59
    %s63 = sphi 0, %s62
    %s79 = sphi 0, %s63
    %s83 = sphi 0, %s83
    %s85 = sphi 0, %s83
    %s86 = sphi 0, %s85
    %s100 = sphi 0, %s86
    %s106 = sphi 0, %s108
    %s109 = sphi 0, %s106
    %s110 = sphi 0, %s109
    %s126 = sphi 0, %s110
  $region4: #{_lambda_.11} parent=0 // loop_header_branch
    %12 = sbr.rel (%p10) target = $region8
  $region5: #{_lambda_.11} parent=0 // loop_body
    %s14 = ssub.s32 %s9, 1
    %s15 = ssub.s32 %s9, 2
    %s22 = sadd.s32 1, %s17
    %p23 = scmp.ge.s32.totalorder %s22, 1
    %s24 = scalar_select %p23, 0, %s22
    %s25 = sadd.s32 1, %s16
    %s26 = scalar_select %p23, %s25, %s16
    %p27 = scmp.ge.s32.totalorder %s26, 2
    %s28 = scalar_select %p27, 0, %s26
    %s29 = ssub.s32 %s16, %s28
    %s30 = ssub.s32 %s17, %s24
    %s31 = sor.u32 %s29, %s30
    %p32 = scmp.eq.s32.totalorder %s31, 0
    %s34 = sadd.s32 %s33, 1
    %s35 = scalar_select %p32, %s33, %s34
    %p38 = pneg %p32
    %p39 = scmp.eq.s32.totalorder %s9, 1
    %p40 = por %p38, %p39
    %p41 = scmp.ne.s32.totalorder %s33, %s36
    %p42 = scmp.eq.s32.totalorder %s9, 0
    %p43 = por %p41, %p42
    %p44 = scmp.ne.s32.totalorder %s33, %s36
    %p45 = scmp.eq.s32.totalorder %s14, 1
    %p46 = por %p44, %p45
    %p47 = scmp.ne.s32.totalorder %s36, %s37
    %p48 = scmp.eq.s32.totalorder %s14, 0
    %p49 = por %p47, %p48
    %p50 = scmp.ne.s32.totalorder %s36, %s37
    %p51 = scmp.eq.s32.totalorder %s15, 1
    %p52 = por %p50, %p51
    %p54 = scmp.ne.s32.totalorder %s37, %s53
    %p55 = scmp.eq.s32.totalorder %s15, 0
    %p56 = por %p54, %p55
    %s57 = ssub.s32 %s17, %s24
    %p58 = scmp.eq.s32.totalorder %s57, 0
    %s60 = sadd.s32 %s59, 1
    %s61 = scalar_select %p58, %s59, %s60
    %p64 = pneg %p58
    %p65 = scmp.eq.s32.totalorder %s9, 1
    %p66 = por %p64, %p65
    %p67 = scmp.ne.s32.totalorder %s59, %s62
    %p68 = scmp.eq.s32.totalorder %s9, 0
    %p69 = por %p67, %p68
    %p70 = scmp.ne.s32.totalorder %s59, %s62
    %p71 = scmp.eq.s32.totalorder %s14, 1
    %p72 = por %p70, %p71
    %p73 = scmp.ne.s32.totalorder %s62, %s63
    %p74 = scmp.eq.s32.totalorder %s14, 0
    %p75 = por %p73, %p74
    %p76 = scmp.ne.s32.totalorder %s62, %s63
    %p77 = scmp.eq.s32.totalorder %s15, 1
    %p78 = por %p76, %p77
    %p80 = scmp.ne.s32.totalorder %s63, %s79
    %p81 = scmp.eq.s32.totalorder %s15, 0
    %p82 = por %p80, %p81
    %s84 = sadd.s32 %s83, 1
    %p87 = scmp.eq.s32.totalorder %s9, 1
    %p88 = scmp.ne.s32.totalorder %s83, %s85
    %p89 = scmp.eq.s32.totalorder %s9, 0
    %p90 = por %p88, %p89
    %p91 = scmp.ne.s32.totalorder %s83, %s85
    %p92 = scmp.eq.s32.totalorder %s14, 1
    %p93 = por %p91, %p92
    %p94 = scmp.ne.s32.totalorder %s85, %s86
    %p95 = scmp.eq.s32.totalorder %s14, 0
    %p96 = por %p94, %p95
    %p97 = scmp.ne.s32.totalorder %s85, %s86
    %p98 = scmp.eq.s32.totalorder %s15, 1
    %p99 = por %p97, %p98
    %p101 = scmp.ne.s32.totalorder %s86, %s100
    %p102 = scmp.eq.s32.totalorder %s15, 0
    %p103 = por %p101, %p102
    %s104 = ssub.s32 %s16, %s28
    %p105 = scmp.eq.s32.totalorder %s104, 0
    %s107 = sadd.s32 %s106, 1
    %s108 = scalar_select %p105, %s106, %s107
    %p111 = pneg %p105
    %p112 = scmp.eq.s32.totalorder %s9, 1
    %p113 = por %p111, %p112
    %p114 = scmp.ne.s32.totalorder %s106, %s109
    %p115 = scmp.eq.s32.totalorder %s9, 0
    %p116 = por %p114, %p115
    %p117 = scmp.ne.s32.totalorder %s106, %s109
    %p118 = scmp.eq.s32.totalorder %s14, 1
    %p119 = por %p117, %p118
    %p120 = scmp.ne.s32.totalorder %s109, %s110
    %p121 = scmp.eq.s32.totalorder %s14, 0
    %p122 = por %p120, %p121
    %p123 = scmp.ne.s32.totalorder %s109, %s110
    %p124 = scmp.eq.s32.totalorder %s15, 1
    %p125 = por %p123, %p124
    %p127 = scmp.ne.s32.totalorder %s110, %s126
    %p128 = scmp.eq.s32.totalorder %s15, 0
    %p129 = por %p127, %p128
    %p130 = scmp.le.s32.totalorder 1, %s9
    %p131 = scmp.lt.s32.totalorder %s9, 3
    %p132 = pnand %p130, %p131
    %p133 = pneg %p132
    // Predicated region
    $region9: #{_lambda_.11} parent=5 // pred_check
      _
    $region10: #{_lambda_.11} parent=5 // pred_check_branch
      %135 = sbr.rel (%p132) target = $region12
    $region11: #{_lambda_.11} parent=5 // pred_region
      %s136 = ssub.s32 %s9, 1
      // Predicated region
      $region13: #{_lambda_.11} parent=11 // pred_check
        %p137 = pneg %p75
      $region14: #{_lambda_.11} parent=11 // pred_check_branch
        %139 = sbr.rel (%p137) target = $region16
      $region15: #{_lambda_.11} parent=11 // pred_region
        %s140 = smul.u32 128, %s19
        %p141 = scmp.lt.s32.totalorder %s140, 127
        %s142 = scalar_select %p141, %s140, 127
        %s143 = smul.addr %s142, 4
        %s144 = scalar_lea.vmem %s1, %s143
        %s145 = smul.u32 128, %s19
      $region16: #{_lambda_.11} parent=11 // pred_fallthru
        _
      // Predicated region
      $region17: #{_lambda_.11} parent=11 // pred_check
        %p146 = pneg %p96
      $region18: #{_lambda_.11} parent=11 // pred_check_branch
        %148 = sbr.rel (%p146) target = $region20
      $region19: #{_lambda_.11} parent=11 // pred_region
        _
      $region20: #{_lambda_.11} parent=11 // pred_fallthru
        _
    $region12: #{_lambda_.11} parent=5 // pred_fallthru
      _
    %p149 = scmp.lt.s32.totalorder %s9, 2
    // Predicated region
    $region21: #{_lambda_.11} parent=5 // pred_check
      %p150 = pneg %p149
    $region22: #{_lambda_.11} parent=5 // pred_check_branch
      %152 = sbr.rel (%p150) target = $region24
    $region23: #{_lambda_.11} parent=5 // pred_region
      // Predicated region
      $region25: #{_lambda_.11} parent=23 // pred_check
        %p153 = pneg %p43
      $region26: #{_lambda_.11} parent=23 // pred_check_branch
        %155 = sbr.rel (%p153) target = $region28
      $region27: #{_lambda_.11} parent=23 // pred_region
        %s156 = smul.u32 12, %s16
        %s157 = smul.u32 8, %s17
        %p158 = scmp.lt.s32.totalorder %s156, 23
        %s159 = scalar_select %p158, %s156, 23
        %p160 = scmp.lt.s32.totalorder %s157, 7
        %s161 = scalar_select %p160, %s157, 7
        %s162 = smul.addr %s159, 8
        %s163 = sadd.s32 %s161, %s162
        %s164 = smul.addr %s163, 4
        %s165 = scalar_lea.vmem %s0, %s164
        %s166 = smul.u32 12, %s16
        %s167 = smul.u32 8, %s17
      $region28: #{_lambda_.11} parent=23 // pred_fallthru
        _
    $region24: #{_lambda_.11} parent=5 // pred_fallthru
      _
    %p168 = scmp.le.s32.totalorder 1, %s9
    %p169 = scmp.lt.s32.totalorder %s9, 3
    %p170 = pnand %p168, %p169
    %p171 = pneg %p170
    // Predicated region
    $region29: #{_lambda_.11} parent=5 // pred_check
      _
    $region30: #{_lambda_.11} parent=5 // pred_check_branch
      %173 = sbr.rel (%p170) target = $region32
    $region31: #{_lambda_.11} parent=5 // pred_region
      %s174 = ssub.s32 %s9, 1
      %s175 = smul.u32 12, %s18
      %s176 = smul.u32 8, %s19
      %p177 = scmp.lt.s32.totalorder %s175, 23
      %s178 = scalar_select %p177, %s175, 23
      %p179 = scmp.lt.s32.totalorder %s176, 7
      %s180 = scalar_select %p179, %s176, 7
      %s181 = smul.addr %s178, 8
      %s182 = sadd.s32 %s180, %s181
      %s183 = smul.addr %s182, 4
      %s184 = scalar_lea.vmem %s0, %s183
      %p185 = pneg %p49
      %p186 = pneg %p46
      %s187 = smul.u32 128, %s19
      %p188 = scmp.lt.s32.totalorder %s187, 127
      %s189 = scalar_select %p188, %s187, 127
      %s190 = smul.addr %s189, 4
      %s191 = scalar_lea.vmem %s1, %s190
      %p192 = pneg %p75
      %p193 = pneg %p72
      %p194 = pneg %p96
      %p195 = pneg %p93
      %p196 = pneg %p122
      %p197 = pneg %p119
      %s198 = smul.u32 12, %s18
      %p199 = scmp.lt.s32.totalorder %s198, 23
      %s200 = scalar_select %p199, %s198, 23
      %s201 = smul.addr %s200, 4
      %s202 = scalar_lea.vmem %s3, %s201
      %s203 = smul.u32 12, %s18
      %s204 = smul.u32 8, %s19
      %p205 = scmp.lt.s32.totalorder %s203, 23
      %s206 = scalar_select %p205, %s203, 23
      %p207 = scmp.lt.s32.totalorder %s204, 7
      %s208 = scalar_select %p207, %s204, 7
      %s209 = smul.addr %s206, 8
      %s210 = sadd.s32 %s208, %s209
      %s211 = smul.addr %s210, 4
      %s212 = scalar_lea.vmem %s0, %s211
      %s213 = smul.u32 12, %s18
      %s214 = smul.u32 8, %s19
      %s215 = smul.u32 128, %s19
      %p216 = scmp.lt.s32.totalorder %s215, 127
      %s217 = scalar_select %p216, %s215, 127
      %s218 = smul.addr %s217, 4
      %s219 = scalar_lea.vmem %s1, %s218
      %s220 = smul.u32 128, %s19
      %s221 = smul.u32 12, %s18
      %p222 = scmp.lt.s32.totalorder %s221, 23
      %s223 = scalar_select %p222, %s221, 23
      %s224 = smul.addr %s223, 4
      %s225 = scalar_lea.vmem %s3, %s224
      %s226 = smul.u32 12, %s18
      %v228 = vld [vmem:[%s212] sm:$0xff]
      %v229 = vld [vmem:[%s212 + $0x8] sm:$0xff]
      %v230 = vld [vmem:[%s212 + $0x10] sm:$0xff]
      %v231 = vld [vmem:[%s212 + $0x18] sm:$0xff]
      %v232 = vld [vmem:[%s212 + $0x20] sm:$0xff]
      %v233 = vld [vmem:[%s212 + $0x28] sm:$0xff]
      %v234 = vld [vmem:[%s212 + $0x30] sm:$0xff]
      %v235 = vld [vmem:[%s212 + $0x38] sm:$0xff]
      %v236 = vld [vmem:[%s212 + $0x40] sm:$0xff]
      %v237 = vld [vmem:[%s212 + $0x48] sm:$0xff]
      %v238 = vld [vmem:[%s212 + $0x50] sm:$0xff]
      %v239 = vld [vmem:[%s212 + $0x58] sm:$0xff]
      %v240 = vld [vmem:[%s212 + $0x60] sm:$0xff]
      %v241 = vld [vmem:[%s212 + $0x68] sm:$0xff]
      %v242 = vld [vmem:[%s212 + $0x70] sm:$0xff]
      %v243 = vld [vmem:[%s212 + $0x78] sm:$0xff]
      %v244 = vld [vmem:[%s212 + $0x80] sm:$0xff]
      %v245 = vld [vmem:[%s212 + $0x88] sm:$0xff]
      %v246 = vld [vmem:[%s212 + $0x90] sm:$0xff]
      %v247 = vld [vmem:[%s212 + $0x98] sm:$0xff]
      %v248 = vld [vmem:[%s212 + $0xa0] sm:$0xff]
      %v249 = vld [vmem:[%s212 + $0xa8] sm:$0xff]
      %v250 = vld [vmem:[%s212 + $0xb0] sm:$0xff]
      %v251 = vld [vmem:[%s212 + $0xb8] sm:$0xff]
      %v252 = vld [vmem:[%s212 + $0xc0] sm:$0xff]
      %v253 = vld [vmem:[%s212 + $0xc8] sm:$0xff]
      %v254 = vld [vmem:[%s212 + $0xd0] sm:$0xff]
      %v255 = vld [vmem:[%s212 + $0xd8] sm:$0xff]
      %v256 = vld [vmem:[%s212 + $0xe0] sm:$0xff]
      %v257 = vld [vmem:[%s212 + $0xe8] sm:$0xff]
      %v258 = vld [vmem:[%s212 + $0xf0] sm:$0xff]
      %v259 = vld [vmem:[%s212 + $0xf8] sm:$0xff]
      %v260 = vld [vmem:[%s212 + $0x100] sm:$0xff]
      %v261 = vld [vmem:[%s212 + $0x108] sm:$0xff]
      %v262 = vld [vmem:[%s212 + $0x110] sm:$0xff]
      %v263 = vld [vmem:[%s212 + $0x118] sm:$0xff]
      %v264 = vld [vmem:[%s212 + $0x120] sm:$0xff]
      %v265 = vld [vmem:[%s212 + $0x128] sm:$0xff]
      %v266 = vld [vmem:[%s212 + $0x130] sm:$0xff]
      %v267 = vld [vmem:[%s212 + $0x138] sm:$0xff]
      %v268 = vld [vmem:[%s212 + $0x140] sm:$0xff]
      %v269 = vld [vmem:[%s212 + $0x148] sm:$0xff]
      %v270 = vld [vmem:[%s212 + $0x150] sm:$0xff]
      %v271 = vld [vmem:[%s212 + $0x158] sm:$0xff]
      %v272 = vld [vmem:[%s212 + $0x160] sm:$0xff]
      %v273 = vld [vmem:[%s212 + $0x168] sm:$0xff]
      %v274 = vld [vmem:[%s212 + $0x170] sm:$0xff]
      %v275 = vld [vmem:[%s212 + $0x178] sm:$0xff]
      %v276 = vld [vmem:[%s219] sm:$0xf]
      %v277 = vld [vmem:[%s219 + $0x4] sm:$0xf]
      %v278 = vld [vmem:[%s219 + $0x8] sm:$0xf]
      %v279 = vld [vmem:[%s219 + $0xc] sm:$0xf]
      %v280 = vld [vmem:[%s219 + $0x10] sm:$0xf]
      %v281 = vld [vmem:[%s219 + $0x14] sm:$0xf]
      %v282 = vld [vmem:[%s219 + $0x18] sm:$0xf]
      %v283 = vld [vmem:[%s219 + $0x1c] sm:$0xf]
      %v284 = vld [vmem:[%s219 + $0x20] sm:$0xf]
      %v285 = vld [vmem:[%s219 + $0x24] sm:$0xf]
      %v286 = vld [vmem:[%s219 + $0x28] sm:$0xf]
      %v287 = vld [vmem:[%s219 + $0x2c] sm:$0xf]
      %v288 = vld [vmem:[%s219 + $0x30] sm:$0xf]
      %v289 = vld [vmem:[%s219 + $0x34] sm:$0xf]
      %v290 = vld [vmem:[%s219 + $0x38] sm:$0xf]
      %v291 = vld [vmem:[%s219 + $0x3c] sm:$0xf]
      %v292 = vld [vmem:[%s219 + $0x40] sm:$0xf]
      %v293 = vld [vmem:[%s219 + $0x44] sm:$0xf]
      %v294 = vld [vmem:[%s219 + $0x48] sm:$0xf]
      %v295 = vld [vmem:[%s219 + $0x4c] sm:$0xf]
      %v296 = vld [vmem:[%s219 + $0x50] sm:$0xf]
      %v297 = vld [vmem:[%s219 + $0x54] sm:$0xf]
      %v298 = vld [vmem:[%s219 + $0x58] sm:$0xf]
      %v299 = vld [vmem:[%s219 + $0x5c] sm:$0xf]
      %v300 = vld [vmem:[%s219 + $0x60] sm:$0xf]
      %v301 = vld [vmem:[%s219 + $0x64] sm:$0xf]
      %v302 = vld [vmem:[%s219 + $0x68] sm:$0xf]
      %v303 = vld [vmem:[%s219 + $0x6c] sm:$0xf]
      %v304 = vld [vmem:[%s219 + $0x70] sm:$0xf]
      %v305 = vld [vmem:[%s219 + $0x74] sm:$0xf]
      %v306 = vld [vmem:[%s219 + $0x78] sm:$0xf]
      %v307 = vld [vmem:[%s219 + $0x7c] sm:$0xf]
      %v308 = vld [vmem:[%s219 + $0x80] sm:$0xf]
      %v309 = vld [vmem:[%s219 + $0x84] sm:$0xf]
      %v310 = vld [vmem:[%s219 + $0x88] sm:$0xf]
      %v311 = vld [vmem:[%s219 + $0x8c] sm:$0xf]
      %v312 = vld [vmem:[%s219 + $0x90] sm:$0xf]
      %v313 = vld [vmem:[%s219 + $0x94] sm:$0xf]
      %v314 = vld [vmem:[%s219 + $0x98] sm:$0xf]
      %v315 = vld [vmem:[%s219 + $0x9c] sm:$0xf]
      %v316 = vld [vmem:[%s219 + $0xa0] sm:$0xf]
      %v317 = vld [vmem:[%s219 + $0xa4] sm:$0xf]
      %v318 = vld [vmem:[%s219 + $0xa8] sm:$0xf]
      %v319 = vld [vmem:[%s219 + $0xac] sm:$0xf]
      %v320 = vld [vmem:[%s219 + $0xb0] sm:$0xf]
      %v321 = vld [vmem:[%s219 + $0xb4] sm:$0xf]
      %v322 = vld [vmem:[%s219 + $0xb8] sm:$0xf]
      %v323 = vld [vmem:[%s219 + $0xbc] sm:$0xf]
      %v324 = vld [vmem:[%s219 + $0xc0] sm:$0xf]
      %v325 = vld [vmem:[%s219 + $0xc4] sm:$0xf]
      %v326 = vld [vmem:[%s219 + $0xc8] sm:$0xf]
      %v327 = vld [vmem:[%s219 + $0xcc] sm:$0xf]
      %v328 = vld [vmem:[%s219 + $0xd0] sm:$0xf]
      %v329 = vld [vmem:[%s219 + $0xd4] sm:$0xf]
      %v330 = vld [vmem:[%s219 + $0xd8] sm:$0xf]
      %v331 = vld [vmem:[%s219 + $0xdc] sm:$0xf]
      %v332 = vld [vmem:[%s219 + $0xe0] sm:$0xf]
      %v333 = vld [vmem:[%s219 + $0xe4] sm:$0xf]
      %v334 = vld [vmem:[%s219 + $0xe8] sm:$0xf]
      %v335 = vld [vmem:[%s219 + $0xec] sm:$0xf]
      %v336 = vld [vmem:[%s219 + $0xf0] sm:$0xf]
      %v337 = vld [vmem:[%s219 + $0xf4] sm:$0xf]
      %v338 = vld [vmem:[%s219 + $0xf8] sm:$0xf]
      %v339 = vld [vmem:[%s219 + $0xfc] sm:$0xf]
      %v340 = vld [vmem:[%s219 + $0x100] sm:$0xf]
      %v341 = vld [vmem:[%s219 + $0x104] sm:$0xf]
      %v342 = vld [vmem:[%s219 + $0x108] sm:$0xf]
      %v343 = vld [vmem:[%s219 + $0x10c] sm:$0xf]
      %v344 = vld [vmem:[%s219 + $0x110] sm:$0xf]
      %v345 = vld [vmem:[%s219 + $0x114] sm:$0xf]
      %v346 = vld [vmem:[%s219 + $0x118] sm:$0xf]
      %v347 = vld [vmem:[%s219 + $0x11c] sm:$0xf]
      %v348 = vld [vmem:[%s219 + $0x120] sm:$0xf]
      %v349 = vld [vmem:[%s219 + $0x124] sm:$0xf]
      %v350 = vld [vmem:[%s219 + $0x128] sm:$0xf]
      %v351 = vld [vmem:[%s219 + $0x12c] sm:$0xf]
      %v352 = vld [vmem:[%s219 + $0x130] sm:$0xf]
      %v353 = vld [vmem:[%s219 + $0x134] sm:$0xf]
      %v354 = vld [vmem:[%s219 + $0x138] sm:$0xf]
      %v355 = vld [vmem:[%s219 + $0x13c] sm:$0xf]
      %v356 = vld [vmem:[%s219 + $0x140] sm:$0xf]
      %v357 = vld [vmem:[%s219 + $0x144] sm:$0xf]
      %v358 = vld [vmem:[%s219 + $0x148] sm:$0xf]
      %v359 = vld [vmem:[%s219 + $0x14c] sm:$0xf]
      %v360 = vld [vmem:[%s219 + $0x150] sm:$0xf]
      %v361 = vld [vmem:[%s219 + $0x154] sm:$0xf]
      %v362 = vld [vmem:[%s219 + $0x158] sm:$0xf]
      %v363 = vld [vmem:[%s219 + $0x15c] sm:$0xf]
      %v364 = vld [vmem:[%s219 + $0x160] sm:$0xf]
      %v365 = vld [vmem:[%s219 + $0x164] sm:$0xf]
      %v366 = vld [vmem:[%s219 + $0x168] sm:$0xf]
      %v367 = vld [vmem:[%s219 + $0x16c] sm:$0xf]
      %v368 = vld [vmem:[%s219 + $0x170] sm:$0xf]
      %v369 = vld [vmem:[%s219 + $0x174] sm:$0xf]
      %v370 = vld [vmem:[%s219 + $0x178] sm:$0xf]
      %v371 = vld [vmem:[%s219 + $0x17c] sm:$0xf]
      %v372 = vld [vmem:[%s219 + $0x180] sm:$0xf]
      %v373 = vld [vmem:[%s219 + $0x184] sm:$0xf]
      %v374 = vld [vmem:[%s219 + $0x188] sm:$0xf]
      %v375 = vld [vmem:[%s219 + $0x18c] sm:$0xf]
      %v376 = vld [vmem:[%s219 + $0x190] sm:$0xf]
      %v377 = vld [vmem:[%s219 + $0x194] sm:$0xf]
      %v378 = vld [vmem:[%s219 + $0x198] sm:$0xf]
      %v379 = vld [vmem:[%s219 + $0x19c] sm:$0xf]
      %v380 = vld [vmem:[%s219 + $0x1a0] sm:$0xf]
      %v381 = vld [vmem:[%s219 + $0x1a4] sm:$0xf]
      %v382 = vld [vmem:[%s219 + $0x1a8] sm:$0xf]
      %v383 = vld [vmem:[%s219 + $0x1ac] sm:$0xf]
      %v384 = vld [vmem:[%s219 + $0x1b0] sm:$0xf]
      %v385 = vld [vmem:[%s219 + $0x1b4] sm:$0xf]
      %v386 = vld [vmem:[%s219 + $0x1b8] sm:$0xf]
      %v387 = vld [vmem:[%s219 + $0x1bc] sm:$0xf]
      %v388 = vld [vmem:[%s219 + $0x1c0] sm:$0xf]
      %v389 = vld [vmem:[%s219 + $0x1c4] sm:$0xf]
      %v390 = vld [vmem:[%s219 + $0x1c8] sm:$0xf]
      %v391 = vld [vmem:[%s219 + $0x1cc] sm:$0xf]
      %v392 = vld [vmem:[%s219 + $0x1d0] sm:$0xf]
      %v393 = vld [vmem:[%s219 + $0x1d4] sm:$0xf]
      %v394 = vld [vmem:[%s219 + $0x1d8] sm:$0xf]
      %v395 = vld [vmem:[%s219 + $0x1dc] sm:$0xf]
      %v396 = vld [vmem:[%s219 + $0x1e0] sm:$0xf]
      %v397 = vld [vmem:[%s219 + $0x1e4] sm:$0xf]
      %v398 = vld [vmem:[%s219 + $0x1e8] sm:$0xf]
      %v399 = vld [vmem:[%s219 + $0x1ec] sm:$0xf]
      %v400 = vld [vmem:[%s219 + $0x1f0] sm:$0xf]
      %v401 = vld [vmem:[%s219 + $0x1f4] sm:$0xf]
      %v402 = vld [vmem:[%s219 + $0x1f8] sm:$0xf]
      %v403 = vld [vmem:[%s219 + $0x1fc] sm:$0xf]
      %v404 = vld [vmem:[%s2] sm:$0x1]
      %v406 = vlaneseq
      %v407 = vshrl.u32 %v406, 7
      %v408 = vsub.s32 0, %v407
      %v409 = vrot.slane %v404, %v408
      %v459 = vunpack.c.l.b16 %v228
      %v460 = vunpack.c.h.b16 %v228
      %v461 = vunpack.c.l.b16 %v229
      %v462 = vunpack.c.h.b16 %v229
      %v463 = vunpack.c.l.b16 %v230
      %v464 = vunpack.c.h.b16 %v230
      %v465 = vunpack.c.l.b16 %v231
      %v466 = vunpack.c.h.b16 %v231
      %v467 = vunpack.c.l.b16 %v232
      %v468 = vunpack.c.h.b16 %v232
      %v469 = vunpack.c.l.b16 %v233
      %v470 = vunpack.c.h.b16 %v233
      %v471 = vunpack.c.l.b16 %v234
      %v472 = vunpack.c.h.b16 %v234
      %v473 = vunpack.c.l.b16 %v235
      %v474 = vunpack.c.h.b16 %v235
      %v475 = vunpack.c.l.b16 %v236
      %v476 = vunpack.c.h.b16 %v236
      %v477 = vunpack.c.l.b16 %v237
      %v478 = vunpack.c.h.b16 %v237
      %v479 = vunpack.c.l.b16 %v238
      %v480 = vunpack.c.h.b16 %v238
      %v481 = vunpack.c.l.b16 %v239
      %v482 = vunpack.c.h.b16 %v239
      %v483 = vunpack.c.l.b16 %v240
      %v484 = vunpack.c.h.b16 %v240
      %v485 = vunpack.c.l.b16 %v241
      %v486 = vunpack.c.h.b16 %v241
      %v487 = vunpack.c.l.b16 %v242
      %v488 = vunpack.c.h.b16 %v242
      %v489 = vunpack.c.l.b16 %v243
      %v490 = vunpack.c.h.b16 %v243
      %v491 = vunpack.c.l.b16 %v244
      %v492 = vunpack.c.h.b16 %v244
      %v493 = vunpack.c.l.b16 %v245
      %v494 = vunpack.c.h.b16 %v245
      %v495 = vunpack.c.l.b16 %v246
      %v496 = vunpack.c.h.b16 %v246
      %v497 = vunpack.c.l.b16 %v247
      %v498 = vunpack.c.h.b16 %v247
      %v499 = vunpack.c.l.b16 %v248
      %v500 = vunpack.c.h.b16 %v248
      %v501 = vunpack.c.l.b16 %v249
      %v502 = vunpack.c.h.b16 %v249
      %v503 = vunpack.c.l.b16 %v250
      %v504 = vunpack.c.h.b16 %v250
      %v505 = vunpack.c.l.b16 %v251
      %v506 = vunpack.c.h.b16 %v251
      %v507 = vunpack.c.l.b16 %v252
      %v508 = vunpack.c.h.b16 %v252
      %v509 = vunpack.c.l.b16 %v253
      %v510 = vunpack.c.h.b16 %v253
      %v511 = vunpack.c.l.b16 %v254
      %v512 = vunpack.c.h.b16 %v254
      %v513 = vunpack.c.l.b16 %v255
      %v514 = vunpack.c.h.b16 %v255
      %v515 = vunpack.c.l.b16 %v256
      %v516 = vunpack.c.h.b16 %v256
      %v517 = vunpack.c.l.b16 %v257
      %v518 = vunpack.c.h.b16 %v257
      %v519 = vunpack.c.l.b16 %v258
      %v520 = vunpack.c.h.b16 %v258
      %v521 = vunpack.c.l.b16 %v259
      %v522 = vunpack.c.h.b16 %v259
      %v523 = vunpack.c.l.b16 %v260
      %v524 = vunpack.c.h.b16 %v260
      %v525 = vunpack.c.l.b16 %v261
      %v526 = vunpack.c.h.b16 %v261
      %v527 = vunpack.c.l.b16 %v262
      %v528 = vunpack.c.h.b16 %v262
      %v529 = vunpack.c.l.b16 %v263
      %v530 = vunpack.c.h.b16 %v263
      %v531 = vunpack.c.l.b16 %v264
      %v532 = vunpack.c.h.b16 %v264
      %v533 = vunpack.c.l.b16 %v265
      %v534 = vunpack.c.h.b16 %v265
      %v535 = vunpack.c.l.b16 %v266
      %v536 = vunpack.c.h.b16 %v266
      %v537 = vunpack.c.l.b16 %v267
      %v538 = vunpack.c.h.b16 %v267
      %v539 = vunpack.c.l.b16 %v268
      %v540 = vunpack.c.h.b16 %v268
      %v541 = vunpack.c.l.b16 %v269
      %v542 = vunpack.c.h.b16 %v269
      %v543 = vunpack.c.l.b16 %v270
      %v544 = vunpack.c.h.b16 %v270
      %v545 = vunpack.c.l.b16 %v271
      %v546 = vunpack.c.h.b16 %v271
      %v547 = vunpack.c.l.b16 %v272
      %v548 = vunpack.c.h.b16 %v272
      %v549 = vunpack.c.l.b16 %v273
      %v550 = vunpack.c.h.b16 %v273
      %v551 = vunpack.c.l.b16 %v274
      %v552 = vunpack.c.h.b16 %v274
      %v553 = vunpack.c.l.b16 %v275
      %v554 = vunpack.c.h.b16 %v275
      %v555 = vpack.c.b16 %v467, %v459
      %v556 = vpack.c.b16 %v468, %v460
      %v557 = vpack.c.b16 %v469, %v461
      %v558 = vpack.c.b16 %v470, %v462
      %v559 = vpack.c.b16 %v471, %v463
      %v560 = vpack.c.b16 %v472, %v464
      %v561 = vpack.c.b16 %v473, %v465
      %v562 = vpack.c.b16 %v474, %v466
      %v563 = vpack.c.b16 %v483, %v475
      %v564 = vpack.c.b16 %v484, %v476
      %v565 = vpack.c.b16 %v485, %v477
      %v566 = vpack.c.b16 %v486, %v478
      %v567 = vpack.c.b16 %v487, %v479
      %v568 = vpack.c.b16 %v488, %v480
      %v569 = vpack.c.b16 %v489, %v481
      %v570 = vpack.c.b16 %v490, %v482
      %v571 = vpack.c.b16 %v499, %v491
      %v572 = vpack.c.b16 %v500, %v492
      %v573 = vpack.c.b16 %v501, %v493
      %v574 = vpack.c.b16 %v502, %v494
      %v575 = vpack.c.b16 %v503, %v495
      %v576 = vpack.c.b16 %v504, %v496
      %v577 = vpack.c.b16 %v505, %v497
      %v578 = vpack.c.b16 %v506, %v498
      %v579 = vpack.c.b16 %v515, %v507
      %v580 = vpack.c.b16 %v516, %v508
      %v581 = vpack.c.b16 %v517, %v509
      %v582 = vpack.c.b16 %v518, %v510
      %v583 = vpack.c.b16 %v519, %v511
      %v584 = vpack.c.b16 %v520, %v512
      %v585 = vpack.c.b16 %v521, %v513
      %v586 = vpack.c.b16 %v522, %v514
      %v587 = vpack.c.b16 %v531, %v523
      %v588 = vpack.c.b16 %v532, %v524
      %v589 = vpack.c.b16 %v533, %v525
      %v590 = vpack.c.b16 %v534, %v526
      %v591 = vpack.c.b16 %v535, %v527
      %v592 = vpack.c.b16 %v536, %v528
      %v593 = vpack.c.b16 %v537, %v529
      %v594 = vpack.c.b16 %v538, %v530
      %v595 = vpack.c.b16 %v547, %v539
      %v596 = vpack.c.b16 %v548, %v540
      %v597 = vpack.c.b16 %v549, %v541
      %v598 = vpack.c.b16 %v550, %v542
      %v599 = vpack.c.b16 %v551, %v543
      %v600 = vpack.c.b16 %v552, %v544
      %v601 = vpack.c.b16 %v553, %v545
      %v602 = vpack.c.b16 %v554, %v546
      %v779 = vunpack.c.l.b16 %v276
      %v780 = vunpack.c.l.b16 %v277
      %v781 = vunpack.c.l.b16 %v278
      %v782 = vunpack.c.l.b16 %v279
      %v783 = vunpack.c.l.b16 %v280
      %v784 = vunpack.c.l.b16 %v281
      %v785 = vunpack.c.l.b16 %v282
      %v786 = vunpack.c.l.b16 %v283
      %v787 = vunpack.c.l.b16 %v284
      %v788 = vunpack.c.l.b16 %v285
      %v789 = vunpack.c.l.b16 %v286
      %v790 = vunpack.c.l.b16 %v287
      %v791 = vunpack.c.l.b16 %v288
      %v792 = vunpack.c.l.b16 %v289
      %v793 = vunpack.c.l.b16 %v290
      %v794 = vunpack.c.l.b16 %v291
      %v795 = vunpack.c.l.b16 %v292
      %v796 = vunpack.c.l.b16 %v293
      %v797 = vunpack.c.l.b16 %v294
      %v798 = vunpack.c.l.b16 %v295
      %v799 = vunpack.c.l.b16 %v296
      %v800 = vunpack.c.l.b16 %v297
      %v801 = vunpack.c.l.b16 %v298
      %v802 = vunpack.c.l.b16 %v299
      %v803 = vunpack.c.l.b16 %v300
      %v804 = vunpack.c.l.b16 %v301
      %v805 = vunpack.c.l.b16 %v302
      %v806 = vunpack.c.l.b16 %v303
      %v807 = vunpack.c.l.b16 %v304
      %v808 = vunpack.c.l.b16 %v305
      %v809 = vunpack.c.l.b16 %v306
      %v810 = vunpack.c.l.b16 %v307
      %v811 = vunpack.c.l.b16 %v308
      %v812 = vunpack.c.l.b16 %v309
      %v813 = vunpack.c.l.b16 %v310
      %v814 = vunpack.c.l.b16 %v311
      %v815 = vunpack.c.l.b16 %v312
      %v816 = vunpack.c.l.b16 %v313
      %v817 = vunpack.c.l.b16 %v314
      %v818 = vunpack.c.l.b16 %v315
      %v819 = vunpack.c.l.b16 %v316
      %v820 = vunpack.c.l.b16 %v317
      %v821 = vunpack.c.l.b16 %v318
      %v822 = vunpack.c.l.b16 %v319
      %v823 = vunpack.c.l.b16 %v320
      %v824 = vunpack.c.l.b16 %v321
      %v825 = vunpack.c.l.b16 %v322
      %v826 = vunpack.c.l.b16 %v323
      %v827 = vunpack.c.l.b16 %v324
      %v828 = vunpack.c.l.b16 %v325
      %v829 = vunpack.c.l.b16 %v326
      %v830 = vunpack.c.l.b16 %v327
      %v831 = vunpack.c.l.b16 %v328
      %v832 = vunpack.c.l.b16 %v329
      %v833 = vunpack.c.l.b16 %v330
      %v834 = vunpack.c.l.b16 %v331
      %v835 = vunpack.c.l.b16 %v332
      %v836 = vunpack.c.l.b16 %v333
      %v837 = vunpack.c.l.b16 %v334
      %v838 = vunpack.c.l.b16 %v335
      %v839 = vunpack.c.l.b16 %v336
      %v840 = vunpack.c.l.b16 %v337
      %v841 = vunpack.c.l.b16 %v338
      %v842 = vunpack.c.l.b16 %v339
      %v843 = vunpack.c.l.b16 %v340
      %v844 = vunpack.c.l.b16 %v341
      %v845 = vunpack.c.l.b16 %v342
      %v846 = vunpack.c.l.b16 %v343
      %v847 = vunpack.c.l.b16 %v344
      %v848 = vunpack.c.l.b16 %v345
      %v849 = vunpack.c.l.b16 %v346
      %v850 = vunpack.c.l.b16 %v347
      %v851 = vunpack.c.l.b16 %v348
      %v852 = vunpack.c.l.b16 %v349
      %v853 = vunpack.c.l.b16 %v350
      %v854 = vunpack.c.l.b16 %v351
      %v855 = vunpack.c.l.b16 %v352
      %v856 = vunpack.c.l.b16 %v353
      %v857 = vunpack.c.l.b16 %v354
      %v858 = vunpack.c.l.b16 %v355
      %v859 = vunpack.c.l.b16 %v356
      %v860 = vunpack.c.l.b16 %v357
      %v861 = vunpack.c.l.b16 %v358
      %v862 = vunpack.c.l.b16 %v359
      %v863 = vunpack.c.l.b16 %v360
      %v864 = vunpack.c.l.b16 %v361
      %v865 = vunpack.c.l.b16 %v362
      %v866 = vunpack.c.l.b16 %v363
      %v867 = vunpack.c.l.b16 %v364
      %v868 = vunpack.c.l.b16 %v365
      %v869 = vunpack.c.l.b16 %v366
      %v870 = vunpack.c.l.b16 %v367
      %v871 = vunpack.c.l.b16 %v368
      %v872 = vunpack.c.l.b16 %v369
      %v873 = vunpack.c.l.b16 %v370
      %v874 = vunpack.c.l.b16 %v371
      %v875 = vunpack.c.l.b16 %v372
      %v876 = vunpack.c.l.b16 %v373
      %v877 = vunpack.c.l.b16 %v374
      %v878 = vunpack.c.l.b16 %v375
      %v879 = vunpack.c.l.b16 %v376
      %v880 = vunpack.c.l.b16 %v377
      %v881 = vunpack.c.l.b16 %v378
      %v882 = vunpack.c.l.b16 %v379
      %v883 = vunpack.c.l.b16 %v380
      %v884 = vunpack.c.l.b16 %v381
      %v885 = vunpack.c.l.b16 %v382
      %v886 = vunpack.c.l.b16 %v383
      %v887 = vunpack.c.l.b16 %v384
      %v888 = vunpack.c.l.b16 %v385
      %v889 = vunpack.c.l.b16 %v386
      %v890 = vunpack.c.l.b16 %v387
      %v891 = vunpack.c.l.b16 %v388
      %v892 = vunpack.c.l.b16 %v389
      %v893 = vunpack.c.l.b16 %v390
      %v894 = vunpack.c.l.b16 %v391
      %v895 = vunpack.c.l.b16 %v392
      %v896 = vunpack.c.l.b16 %v393
      %v897 = vunpack.c.l.b16 %v394
      %v898 = vunpack.c.l.b16 %v395
      %v899 = vunpack.c.l.b16 %v396
      %v900 = vunpack.c.l.b16 %v397
      %v901 = vunpack.c.l.b16 %v398
      %v902 = vunpack.c.l.b16 %v399
      %v903 = vunpack.c.l.b16 %v400
      %v904 = vunpack.c.l.b16 %v401
      %v905 = vunpack.c.l.b16 %v402
      %v906 = vunpack.c.l.b16 %v403
      %v907 = vpack.c.b16 %v780, %v779
      %v908 = vpack.c.b16 %v782, %v781
      %v909 = vpack.c.b16 %v784, %v783
      %v910 = vpack.c.b16 %v786, %v785
      %v911 = vpack.c.b16 %v788, %v787
      %v912 = vpack.c.b16 %v790, %v789
      %v913 = vpack.c.b16 %v792, %v791
      %v914 = vpack.c.b16 %v794, %v793
      %v915 = vpack.c.b16 %v796, %v795
      %v916 = vpack.c.b16 %v798, %v797
      %v917 = vpack.c.b16 %v800, %v799
      %v918 = vpack.c.b16 %v802, %v801
      %v919 = vpack.c.b16 %v804, %v803
      %v920 = vpack.c.b16 %v806, %v805
      %v921 = vpack.c.b16 %v808, %v807
      %v922 = vpack.c.b16 %v810, %v809
      %v923 = vpack.c.b16 %v812, %v811
      %v924 = vpack.c.b16 %v814, %v813
      %v925 = vpack.c.b16 %v816, %v815
      %v926 = vpack.c.b16 %v818, %v817
      %v927 = vpack.c.b16 %v820, %v819
      %v928 = vpack.c.b16 %v822, %v821
      %v929 = vpack.c.b16 %v824, %v823
      %v930 = vpack.c.b16 %v826, %v825
      %v931 = vpack.c.b16 %v828, %v827
      %v932 = vpack.c.b16 %v830, %v829
      %v933 = vpack.c.b16 %v832, %v831
      %v934 = vpack.c.b16 %v834, %v833
      %v935 = vpack.c.b16 %v836, %v835
      %v936 = vpack.c.b16 %v838, %v837
      %v937 = vpack.c.b16 %v840, %v839
      %v938 = vpack.c.b16 %v842, %v841
      %v939 = vpack.c.b16 %v844, %v843
      %v940 = vpack.c.b16 %v846, %v845
      %v941 = vpack.c.b16 %v848, %v847
      %v942 = vpack.c.b16 %v850, %v849
      %v943 = vpack.c.b16 %v852, %v851
      %v944 = vpack.c.b16 %v854, %v853
      %v945 = vpack.c.b16 %v856, %v855
      %v946 = vpack.c.b16 %v858, %v857
      %v947 = vpack.c.b16 %v860, %v859
      %v948 = vpack.c.b16 %v862, %v861
      %v949 = vpack.c.b16 %v864, %v863
      %v950 = vpack.c.b16 %v866, %v865
      %v951 = vpack.c.b16 %v868, %v867
      %v952 = vpack.c.b16 %v870, %v869
      %v953 = vpack.c.b16 %v872, %v871
      %v954 = vpack.c.b16 %v874, %v873
      %v955 = vpack.c.b16 %v876, %v875
      %v956 = vpack.c.b16 %v878, %v877
      %v957 = vpack.c.b16 %v880, %v879
      %v958 = vpack.c.b16 %v882, %v881
      %v959 = vpack.c.b16 %v884, %v883
      %v960 = vpack.c.b16 %v886, %v885
      %v961 = vpack.c.b16 %v888, %v887
      %v962 = vpack.c.b16 %v890, %v889
      %v963 = vpack.c.b16 %v892, %v891
      %v964 = vpack.c.b16 %v894, %v893
      %v965 = vpack.c.b16 %v896, %v895
      %v966 = vpack.c.b16 %v898, %v897
      %v967 = vpack.c.b16 %v900, %v899
      %v968 = vpack.c.b16 %v902, %v901
      %v969 = vpack.c.b16 %v904, %v903
      %v970 = vpack.c.b16 %v906, %v905
      %1035 = vmatprep.subr.bf16.mxu0 0
      %1036 = vmatpush1.bf16.msra.mxu0 %v907
      %1037 = vmatprep.subr.bf16.mxu0 0
      %1038 = vmatpush1.bf16.msra.mxu0 %v908
      %1039 = vmatprep.subr.bf16.mxu0 0
      %1040 = vmatpush1.bf16.msra.mxu0 %v909
      %1041 = vmatprep.subr.bf16.mxu0 0
      %1042 = vmatpush1.bf16.msra.mxu0 %v910
      %1043 = vmatprep.subr.bf16.mxu0 0
      %1044 = vmatpush1.bf16.msra.mxu0 %v911
      %1045 = vmatprep.subr.bf16.mxu0 0
      %1046 = vmatpush1.bf16.msra.mxu0 %v912
      %1047 = vmatprep.subr.bf16.mxu0 0
      %1048 = vmatpush1.bf16.msra.mxu0 %v913
      %1049 = vmatprep.subr.bf16.mxu0 0
      %1050 = vmatpush1.bf16.msra.mxu0 %v914
      %1051 = vmatprep.subr.bf16.mxu0 0
      %1052 = vmatpush1.bf16.msra.mxu0 %v915
      %1053 = vmatprep.subr.bf16.mxu0 0
      %1054 = vmatpush1.bf16.msra.mxu0 %v916
      %1055 = vmatprep.subr.bf16.mxu0 0
      %1056 = vmatpush1.bf16.msra.mxu0 %v917
      %1057 = vmatprep.subr.bf16.mxu0 0
      %1058 = vmatpush1.bf16.msra.mxu0 %v918
      %1059 = vmatprep.subr.bf16.mxu0 0
      %1060 = vmatpush1.bf16.msra.mxu0 %v919
      %1061 = vmatprep.subr.bf16.mxu0 0
      %1062 = vmatpush1.bf16.msra.mxu0 %v920
      %1063 = vmatprep.subr.bf16.mxu0 0
      %1064 = vmatpush1.bf16.msra.mxu0 %v921
      %1065 = vmatprep.subr.bf16.mxu0 0
      %1066 = vmatpush1.bf16.msra.mxu0 %v922
      %1067 = vmatprep.mubr.bf16.mxu0 %v556
      %1068 = vmatmul.mubr.bf16.gmra.mrb[0].mxu0 %v555
      %v1069 = vpop.f32.mrb[0].mxu0
      %v1070 = vadd.f32 %v409, %v1069
      %v1071 = vpop.f32.mrb[0].mxu0
      %v1072 = vpop.f32.mrb[0].mxu0
      %v1073 = vadd.f32 %v409, %v1072
      %v1074 = vpop.f32.mrb[0].mxu0
      %1075 = vmatprep.mubr.bf16.mxu0 %v564
      %1076 = vmatmul.mubr.bf16.gmra.mrb[0].mxu0 %v563
      %v1077 = vpop.f32.mrb[0].mxu0
      %v1078 = vadd.f32 %v409, %v1077
      %v1079 = vpop.f32.mrb[0].mxu0
      %v1080 = vpop.f32.mrb[0].mxu0
      %v1081 = vadd.f32 %v409, %v1080
      %v1082 = vpop.f32.mrb[0].mxu0
      %1083 = vmatprep.mubr.bf16.mxu0 %v572
      %1084 = vmatmul.mubr.bf16.gmra.mrb[0].mxu0 %v571
      %v1085 = vpop.f32.mrb[0].mxu0
      %v1086 = vadd.f32 %v409, %v1085
      %v1087 = vpop.f32.mrb[0].mxu0
      %v1088 = vpop.f32.mrb[0].mxu0
      %v1089 = vadd.f32 %v409, %v1088
      %v1090 = vpop.f32.mrb[0].mxu0
      %1091 = vmatprep.mubr.bf16.mxu0 %v580
      %1092 = vmatmul.mubr.bf16.gmra.mrb[0].mxu0 %v579
      %v1093 = vpop.f32.mrb[0].mxu0
      %v1094 = vadd.f32 %v409, %v1093
      %v1095 = vpop.f32.mrb[0].mxu0
      %v1096 = vpop.f32.mrb[0].mxu0
      %v1097 = vadd.f32 %v409, %v1096
      %v1098 = vpop.f32.mrb[0].mxu0
      %1099 = vmatprep.mubr.bf16.mxu0 %v588
      %1100 = vmatmul.mubr.bf16.gmra.mrb[0].mxu0 %v587
      %v1101 = vpop.f32.mrb[0].mxu0
      %v1102 = vadd.f32 %v409, %v1101
      %v1103 = vpop.f32.mrb[0].mxu0
      %v1104 = vpop.f32.mrb[0].mxu0
      %v1105 = vadd.f32 %v409, %v1104
      %v1106 = vpop.f32.mrb[0].mxu0
      %1107 = vmatprep.mubr.bf16.mxu0 %v596
      %1108 = vmatmul.mubr.bf16.gmra.mrb[0].mxu0 %v595
      %v1109 = vpop.f32.mrb[0].mxu0
      %v1110 = vadd.f32 %v409, %v1109
      %v1111 = vpop.f32.mrb[0].mxu0
      %v1112 = vpop.f32.mrb[0].mxu0
      %v1113 = vadd.f32 %v409, %v1112
      %v1114 = vpop.f32.mrb[0].mxu0
      %1115 = vdwg.mxu0
      %1116 = vmatprep.subr.bf16.mxu0 0
      %1117 = vmatpush1.bf16.msra.mxu0 %v923
      %1118 = vmatprep.subr.bf16.mxu0 0
      %1119 = vmatpush1.bf16.msra.mxu0 %v924
      %1120 = vmatprep.subr.bf16.mxu0 0
      %1121 = vmatpush1.bf16.msra.mxu0 %v925
      %1122 = vmatprep.subr.bf16.mxu0 0
      %1123 = vmatpush1.bf16.msra.mxu0 %v926
      %1124 = vmatprep.subr.bf16.mxu0 0
      %1125 = vmatpush1.bf16.msra.mxu0 %v927
      %1126 = vmatprep.subr.bf16.mxu0 0
      %1127 = vmatpush1.bf16.msra.mxu0 %v928
      %1128 = vmatprep.subr.bf16.mxu0 0
      %1129 = vmatpush1.bf16.msra.mxu0 %v929
      %1130 = vmatprep.subr.bf16.mxu0 0
      %1131 = vmatpush1.bf16.msra.mxu0 %v930
      %1132 = vmatprep.subr.bf16.mxu0 0
      %1133 = vmatpush1.bf16.msra.mxu0 %v931
      %1134 = vmatprep.subr.bf16.mxu0 0
      %1135 = vmatpush1.bf16.msra.mxu0 %v932
      %1136 = vmatprep.subr.bf16.mxu0 0
      %1137 = vmatpush1.bf16.msra.mxu0 %v933
      %1138 = vmatprep.subr.bf16.mxu0 0
      %1139 = vmatpush1.bf16.msra.mxu0 %v934
      %1140 = vmatprep.subr.bf16.mxu0 0
      %1141 = vmatpush1.bf16.msra.mxu0 %v935
      %1142 = vmatprep.subr.bf16.mxu0 0
      %1143 = vmatpush1.bf16.msra.mxu0 %v936
      %1144 = vmatprep.subr.bf16.mxu0 0
      %1145 = vmatpush1.bf16.msra.mxu0 %v937
      %1146 = vmatprep.subr.bf16.mxu0 0
      %1147 = vmatpush1.bf16.msra.mxu0 %v938
      %1148 = vmatprep.mubr.bf16.mxu0 %v558
      %1149 = vmatmul.mubr.bf16.gmra.mrb[0].mxu0 %v557
      %v1150 = vpop.f32.mrb[0].mxu0
      %v1151 = vadd.f32 %v1070, %v1150
      %v1152 = vpop.f32.mrb[0].mxu0
      %v1153 = vpop.f32.mrb[0].mxu0
      %v1154 = vadd.f32 %v1073, %v1153
      %v1155 = vpop.f32.mrb[0].mxu0
      %1156 = vmatprep.mubr.bf16.mxu0 %v566
      %1157 = vmatmul.mubr.bf16.gmra.mrb[0].mxu0 %v565
      %v1158 = vpop.f32.mrb[0].mxu0
      %v1159 = vadd.f32 %v1078, %v1158
      %v1160 = vpop.f32.mrb[0].mxu0
      %v1161 = vpop.f32.mrb[0].mxu0
      %v1162 = vadd.f32 %v1081, %v1161
      %v1163 = vpop.f32.mrb[0].mxu0
      %1164 = vmatprep.mubr.bf16.mxu0 %v574
      %1165 = vmatmul.mubr.bf16.gmra.mrb[0].mxu0 %v573
      %v1166 = vpop.f32.mrb[0].mxu0
      %v1167 = vadd.f32 %v1086, %v1166
      %v1168 = vpop.f32.mrb[0].mxu0
      %v1169 = vpop.f32.mrb[0].mxu0
      %v1170 = vadd.f32 %v1089, %v1169
      %v1171 = vpop.f32.mrb[0].mxu0
      %1172 = vmatprep.mubr.bf16.mxu0 %v582
      %1173 = vmatmul.mubr.bf16.gmra.mrb[0].mxu0 %v581
      %v1174 = vpop.f32.mrb[0].mxu0
      %v1175 = vadd.f32 %v1094, %v1174
      %v1176 = vpop.f32.mrb[0].mxu0
      %v1177 = vpop.f32.mrb[0].mxu0
      %v1178 = vadd.f32 %v1097, %v1177
      %v1179 = vpop.f32.mrb[0].mxu0
      %1180 = vmatprep.mubr.bf16.mxu0 %v590
      %1181 = vmatmul.mubr.bf16.gmra.mrb[0].mxu0 %v589
      %v1182 = vpop.f32.mrb[0].mxu0
      %v1183 = vadd.f32 %v1102, %v1182
      %v1184 = vpop.f32.mrb[0].mxu0
      %v1185 = vpop.f32.mrb[0].mxu0
      %v1186 = vadd.f32 %v1105, %v1185
      %v1187 = vpop.f32.mrb[0].mxu0
      %1188 = vmatprep.mubr.bf16.mxu0 %v598
      %1189 = vmatmul.mubr.bf16.gmra.mrb[0].mxu0 %v597
      %v1190 = vpop.f32.mrb[0].mxu0
      %v1191 = vadd.f32 %v1110, %v1190
      %v1192 = vpop.f32.mrb[0].mxu0
      %v1193 = vpop.f32.mrb[0].mxu0
      %v1194 = vadd.f32 %v1113, %v1193
      %v1195 = vpop.f32.mrb[0].mxu0
      %1196 = vdwg.mxu0
      %1197 = vmatprep.subr.bf16.mxu0 0
      %1198 = vmatpush1.bf16.msra.mxu0 %v939
      %1199 = vmatprep.subr.bf16.mxu0 0
      %1200 = vmatpush1.bf16.msra.mxu0 %v940
      %1201 = vmatprep.subr.bf16.mxu0 0
      %1202 = vmatpush1.bf16.msra.mxu0 %v941
      %1203 = vmatprep.subr.bf16.mxu0 0
      %1204 = vmatpush1.bf16.msra.mxu0 %v942
      %1205 = vmatprep.subr.bf16.mxu0 0
      %1206 = vmatpush1.bf16.msra.mxu0 %v943
      %1207 = vmatprep.subr.bf16.mxu0 0
      %1208 = vmatpush1.bf16.msra.mxu0 %v944
      %1209 = vmatprep.subr.bf16.mxu0 0
      %1210 = vmatpush1.bf16.msra.mxu0 %v945
      %1211 = vmatprep.subr.bf16.mxu0 0
      %1212 = vmatpush1.bf16.msra.mxu0 %v946
      %1213 = vmatprep.subr.bf16.mxu0 0
      %1214 = vmatpush1.bf16.msra.mxu0 %v947
      %1215 = vmatprep.subr.bf16.mxu0 0
      %1216 = vmatpush1.bf16.msra.mxu0 %v948
      %1217 = vmatprep.subr.bf16.mxu0 0
      %1218 = vmatpush1.bf16.msra.mxu0 %v949
      %1219 = vmatprep.subr.bf16.mxu0 0
      %1220 = vmatpush1.bf16.msra.mxu0 %v950
      %1221 = vmatprep.subr.bf16.mxu0 0
      %1222 = vmatpush1.bf16.msra.mxu0 %v951
      %1223 = vmatprep.subr.bf16.mxu0 0
      %1224 = vmatpush1.bf16.msra.mxu0 %v952
      %1225 = vmatprep.subr.bf16.mxu0 0
      %1226 = vmatpush1.bf16.msra.mxu0 %v953
      %1227 = vmatprep.subr.bf16.mxu0 0
      %1228 = vmatpush1.bf16.msra.mxu0 %v954
      %1229 = vmatprep.mubr.bf16.mxu0 %v560
      %1230 = vmatmul.mubr.bf16.gmra.mrb[0].mxu0 %v559
      %v1231 = vpop.f32.mrb[0].mxu0
      %v1232 = vadd.f32 %v1151, %v1231
      %v1233 = vpop.f32.mrb[0].mxu0
      %v1234 = vpop.f32.mrb[0].mxu0
      %v1235 = vadd.f32 %v1154, %v1234
      %v1236 = vpop.f32.mrb[0].mxu0
      %1237 = vmatprep.mubr.bf16.mxu0 %v568
      %1238 = vmatmul.mubr.bf16.gmra.mrb[0].mxu0 %v567
      %v1239 = vpop.f32.mrb[0].mxu0
      %v1240 = vadd.f32 %v1159, %v1239
      %v1241 = vpop.f32.mrb[0].mxu0
      %v1242 = vpop.f32.mrb[0].mxu0
      %v1243 = vadd.f32 %v1162, %v1242
      %v1244 = vpop.f32.mrb[0].mxu0
      %1245 = vmatprep.mubr.bf16.mxu0 %v576
      %1246 = vmatmul.mubr.bf16.gmra.mrb[0].mxu0 %v575
      %v1247 = vpop.f32.mrb[0].mxu0
      %v1248 = vadd.f32 %v1167, %v1247
      %v1249 = vpop.f32.mrb[0].mxu0
      %v1250 = vpop.f32.mrb[0].mxu0
      %v1251 = vadd.f32 %v1170, %v1250
      %v1252 = vpop.f32.mrb[0].mxu0
      %1253 = vmatprep.mubr.bf16.mxu0 %v584
      %1254 = vmatmul.mubr.bf16.gmra.mrb[0].mxu0 %v583
      %v1255 = vpop.f32.mrb[0].mxu0
      %v1256 = vadd.f32 %v1175, %v1255
      %v1257 = vpop.f32.mrb[0].mxu0
      %v1258 = vpop.f32.mrb[0].mxu0
      %v1259 = vadd.f32 %v1178, %v1258
      %v1260 = vpop.f32.mrb[0].mxu0
      %1261 = vmatprep.mubr.bf16.mxu0 %v592
      %1262 = vmatmul.mubr.bf16.gmra.mrb[0].mxu0 %v591
      %v1263 = vpop.f32.mrb[0].mxu0
      %v1264 = vadd.f32 %v1183, %v1263
      %v1265 = vpop.f32.mrb[0].mxu0
      %v1266 = vpop.f32.mrb[0].mxu0
      %v1267 = vadd.f32 %v1186, %v1266
      %v1268 = vpop.f32.mrb[0].mxu0
      %1269 = vmatprep.mubr.bf16.mxu0 %v600
      %1270 = vmatmul.mubr.bf16.gmra.mrb[0].mxu0 %v599
      %v1271 = vpop.f32.mrb[0].mxu0
      %v1272 = vadd.f32 %v1191, %v1271
      %v1273 = vpop.f32.mrb[0].mxu0
      %v1274 = vpop.f32.mrb[0].mxu0
      %v1275 = vadd.f32 %v1194, %v1274
      %v1276 = vpop.f32.mrb[0].mxu0
      %1277 = vdwg.mxu0
      %1278 = vmatprep.subr.bf16.mxu0 0
      %1279 = vmatpush1.bf16.msra.mxu0 %v955
      %1280 = vmatprep.subr.bf16.mxu0 0
      %1281 = vmatpush1.bf16.msra.mxu0 %v956
      %1282 = vmatprep.subr.bf16.mxu0 0
      %1283 = vmatpush1.bf16.msra.mxu0 %v957
      %1284 = vmatprep.subr.bf16.mxu0 0
      %1285 = vmatpush1.bf16.msra.mxu0 %v958
      %1286 = vmatprep.subr.bf16.mxu0 0
      %1287 = vmatpush1.bf16.msra.mxu0 %v959
      %1288 = vmatprep.subr.bf16.mxu0 0
      %1289 = vmatpush1.bf16.msra.mxu0 %v960
      %1290 = vmatprep.subr.bf16.mxu0 0
      %1291 = vmatpush1.bf16.msra.mxu0 %v961
      %1292 = vmatprep.subr.bf16.mxu0 0
      %1293 = vmatpush1.bf16.msra.mxu0 %v962
      %1294 = vmatprep.subr.bf16.mxu0 0
      %1295 = vmatpush1.bf16.msra.mxu0 %v963
      %1296 = vmatprep.subr.bf16.mxu0 0
      %1297 = vmatpush1.bf16.msra.mxu0 %v964
      %1298 = vmatprep.subr.bf16.mxu0 0
      %1299 = vmatpush1.bf16.msra.mxu0 %v965
      %1300 = vmatprep.subr.bf16.mxu0 0
      %1301 = vmatpush1.bf16.msra.mxu0 %v966
      %1302 = vmatprep.subr.bf16.mxu0 0
      %1303 = vmatpush1.bf16.msra.mxu0 %v967
      %1304 = vmatprep.subr.bf16.mxu0 0
      %1305 = vmatpush1.bf16.msra.mxu0 %v968
      %1306 = vmatprep.subr.bf16.mxu0 0
      %1307 = vmatpush1.bf16.msra.mxu0 %v969
      %1308 = vmatprep.subr.bf16.mxu0 0
      %1309 = vmatpush1.bf16.msra.mxu0 %v970
      %1310 = vmatprep.mubr.bf16.mxu0 %v562
      %1311 = vmatmul.mubr.bf16.gmra.mrb[0].mxu0 %v561
      %v1312 = vpop.f32.mrb[0].mxu0
      %v1313 = vadd.f32 %v1232, %v1312
      %v1314 = vpop.f32.mrb[0].mxu0
      %v1315 = vpop.f32.mrb[0].mxu0
      %v1316 = vadd.f32 %v1235, %v1315
      %v1317 = vpop.f32.mrb[0].mxu0
      %1318 = vmatprep.mubr.bf16.mxu0 %v570
      %1319 = vmatmul.mubr.bf16.gmra.mrb[0].mxu0 %v569
      %v1320 = vpop.f32.mrb[0].mxu0
      %v1321 = vadd.f32 %v1240, %v1320
      %v1322 = vpop.f32.mrb[0].mxu0
      %v1323 = vpop.f32.mrb[0].mxu0
      %v1324 = vadd.f32 %v1243, %v1323
      %v1325 = vpop.f32.mrb[0].mxu0
      %1326 = vmatprep.mubr.bf16.mxu0 %v578
      %1327 = vmatmul.mubr.bf16.gmra.mrb[0].mxu0 %v577
      %v1328 = vpop.f32.mrb[0].mxu0
      %v1329 = vadd.f32 %v1248, %v1328
      %v1330 = vpop.f32.mrb[0].mxu0
      %v1331 = vpop.f32.mrb[0].mxu0
      %v1332 = vadd.f32 %v1251, %v1331
      %v1333 = vpop.f32.mrb[0].mxu0
      %1334 = vmatprep.mubr.bf16.mxu0 %v586
      %1335 = vmatmul.mubr.bf16.gmra.mrb[0].mxu0 %v585
      %v1336 = vpop.f32.mrb[0].mxu0
      %v1337 = vadd.f32 %v1256, %v1336
      %v1338 = vpop.f32.mrb[0].mxu0
      %v1339 = vpop.f32.mrb[0].mxu0
      %v1340 = vadd.f32 %v1259, %v1339
      %v1341 = vpop.f32.mrb[0].mxu0
      %1342 = vmatprep.mubr.bf16.mxu0 %v594
      %1343 = vmatmul.mubr.bf16.gmra.mrb[0].mxu0 %v593
      %v1344 = vpop.f32.mrb[0].mxu0
      %v1345 = vadd.f32 %v1264, %v1344
      %v1346 = vpop.f32.mrb[0].mxu0
      %v1347 = vpop.f32.mrb[0].mxu0
      %v1348 = vadd.f32 %v1267, %v1347
      %v1349 = vpop.f32.mrb[0].mxu0
      %1350 = vmatprep.mubr.bf16.mxu0 %v602
      %1351 = vmatmul.mubr.bf16.gmra.mrb[0].mxu0 %v601
      %v1352 = vpop.f32.mrb[0].mxu0
      %v1353 = vadd.f32 %v1272, %v1352
      %v1354 = vpop.f32.mrb[0].mxu0
      %v1355 = vpop.f32.mrb[0].mxu0
      %v1356 = vadd.f32 %v1275, %v1355
      %v1357 = vpop.f32.mrb[0].mxu0
      %1358 = vdwg.mxu0
      %v1359 = vmax.f32 %v1313, 0.0
      %v1360 = vmax.f32 %v1316, 0.0
      %v1361 = vmax.f32 %v1321, 0.0
      %v1362 = vmax.f32 %v1324, 0.0
      %v1363 = vmax.f32 %v1329, 0.0
      %v1364 = vmax.f32 %v1332, 0.0
      %v1365 = vmax.f32 %v1337, 0.0
      %v1366 = vmax.f32 %v1340, 0.0
      %v1367 = vmax.f32 %v1345, 0.0
      %v1368 = vmax.f32 %v1348, 0.0
      %v1369 = vmax.f32 %v1353, 0.0
      %v1370 = vmax.f32 %v1356, 0.0
      %v1371 = vpack.c.bf16 %v1360, %v1359
      %v1372 = vpack.c.bf16 %v1362, %v1361
      %v1373 = vpack.c.bf16 %v1364, %v1363
      %v1374 = vpack.c.bf16 %v1366, %v1365
      %v1375 = vpack.c.bf16 %v1368, %v1367
      %v1376 = vpack.c.bf16 %v1370, %v1369
      %v1383 = vunpack.c.l.b16 %v1371
      %v1384 = vunpack.c.h.b16 %v1371
      %v1385 = vunpack.c.l.b16 %v1372
      %v1386 = vunpack.c.h.b16 %v1372
      %v1387 = vunpack.c.l.b16 %v1373
      %v1388 = vunpack.c.h.b16 %v1373
      %v1389 = vunpack.c.l.b16 %v1374
      %v1390 = vunpack.c.h.b16 %v1374
      %v1391 = vunpack.c.l.b16 %v1375
      %v1392 = vunpack.c.h.b16 %v1375
      %v1393 = vunpack.c.l.b16 %v1376
      %v1394 = vunpack.c.h.b16 %v1376
      %v1395 = vpack.c.b16 %v1383, %v1383
      %v1396 = vpack.c.b16 %v1384, %v1384
      %v1397 = vpack.c.b16 %v1385, %v1385
      %v1398 = vpack.c.b16 %v1386, %v1386
      %v1399 = vpack.c.b16 %v1387, %v1387
      %v1400 = vpack.c.b16 %v1388, %v1388
      %v1401 = vpack.c.b16 %v1389, %v1389
      %v1402 = vpack.c.b16 %v1390, %v1390
      %v1403 = vpack.c.b16 %v1391, %v1391
      %v1404 = vpack.c.b16 %v1392, %v1392
      %v1405 = vpack.c.b16 %v1393, %v1393
      %v1406 = vpack.c.b16 %v1394, %v1394
      %1419 = vst [vmem:[%s225] sm:$0xf] %v1395
      %1420 = vst [vmem:[%s225 + $0x4] sm:$0xf] %v1396
      %1421 = vst [vmem:[%s225 + $0x8] sm:$0xf] %v1397
      %1422 = vst [vmem:[%s225 + $0xc] sm:$0xf] %v1398
      %1423 = vst [vmem:[%s225 + $0x10] sm:$0xf] %v1399
      %1424 = vst [vmem:[%s225 + $0x14] sm:$0xf] %v1400
      %1425 = vst [vmem:[%s225 + $0x18] sm:$0xf] %v1401
      %1426 = vst [vmem:[%s225 + $0x1c] sm:$0xf] %v1402
      %1427 = vst [vmem:[%s225 + $0x20] sm:$0xf] %v1403
      %1428 = vst [vmem:[%s225 + $0x24] sm:$0xf] %v1404
      %1429 = vst [vmem:[%s225 + $0x28] sm:$0xf] %v1405
      %1430 = vst [vmem:[%s225 + $0x2c] sm:$0xf] %v1406
      %s1431 = smul.u32 12, %s18
      %p1432 = scmp.lt.s32.totalorder %s1431, 23
      %s1433 = scalar_select %p1432, %s1431, 23
      %s1434 = smul.addr %s1433, 4
      %s1435 = scalar_lea.vmem %s3, %s1434
      // Predicated region
      $region33: #{_lambda_.11} parent=31 // pred_check
        %p1436 = pneg %p119
      $region34: #{_lambda_.11} parent=31 // pred_check_branch
        %1438 = sbr.rel (%p1436) target = $region36
      $region35: #{_lambda_.11} parent=31 // pred_region
        %s1439 = smul.u32 12, %s18
      $region36: #{_lambda_.11} parent=31 // pred_fallthru
        _
    $region32: #{_lambda_.11} parent=5 // pred_fallthru
      _
    %p1440 = scmp.le.s32.totalorder 2, %s9
    // Predicated region
    $region37: #{_lambda_.11} parent=5 // pred_check
      %p1441 = pneg %p1440
    $region38: #{_lambda_.11} parent=5 // pred_check_branch
      %1443 = sbr.rel (%p1441) target = $region40
    $region39: #{_lambda_.11} parent=5 // pred_region
      %s1444 = ssub.s32 %s9, 2
      // Predicated region
      $region41: #{_lambda_.11} parent=39 // pred_check
        %p1445 = pneg %p125
      $region42: #{_lambda_.11} parent=39 // pred_check_branch
        %1447 = sbr.rel (%p1445) target = $region44
      $region43: #{_lambda_.11} parent=39 // pred_region
        %s1448 = smul.u32 12, %s20
        %p1449 = scmp.lt.s32.totalorder %s1448, 23
        %s1450 = scalar_select %p1449, %s1448, 23
        %s1451 = smul.addr %s1450, 4
        %s1452 = scalar_lea.vmem %s3, %s1451
      $region44: #{_lambda_.11} parent=39 // pred_fallthru
        _
    $region40: #{_lambda_.11} parent=5 // pred_fallthru
      _
  $region6: #{_lambda_.11} parent=0 // loop_footer
    %s13 = sadd.s32 1, %s9
  $region7: #{_lambda_.11} parent=0 // loop_footer_branch
    %8 = sbr.rel target = $region3
  $region8: #{_lambda_.11} parent=0 // loop_exit
    _

// kernel: _lambda_.9
$region0: #{_lambda_.9}
  #allocation0 [shape = 'u32[]', space=smem, size = 0x4, offset = 0x4, fixed_abs, tag = 'smem constant byte address 0x4 - core index']
  #allocation1 [shape = 'u32[144,128]{1,0:T(1,128)}', space=vmem, size = 0x12000, scoped, tag = 'internal scratch']
  %s0 = inlined_call_operand.vmem [shape: bf16[192,512], index: 0, kind: input, shape index: {}]
  %s1 = inlined_call_operand.vmem [shape: bf16[512,128], index: 1, kind: input, shape index: {}]
  %s2 = inlined_call_operand.vmem [shape: f32[1,128], index: 2, kind: input, shape index: {}]
  %s3 = inlined_call_operand.vmem [shape: bf16[192,128], index: 3, kind: output, shape index: {}]
  %s4 = sld [smem:[#allocation0]]
  $region45: #{_lambda_.9} parent=0
    _
  %s6 = ssub.s32 1, %s4
  %s7 = scalar_select 0, %s6, %s4
  loop: start=0, step=1, limit=4
  $region2: #{_lambda_.9} parent=0 // loop_pre_header
    _
  $region3: #{_lambda_.9} parent=0 // loop_header
    %s9 = sphi 0, %s13
    %p10 = scmp.ge.s32.totalorder %s9, 4
    %s16 = sphi 0, %s28
    %s17 = sphi 0, %s24
    %s18 = sphi 0, %s16
    %s19 = sphi 0, %s17
    %s20 = sphi 0, %s18
    %s21 = sphi 0, %s19
    %s33 = sphi 0, %s35
    %s36 = sphi 0, %s33
    %s37 = sphi 0, %s36
    %s53 = sphi 0, %s37
    %s59 = sphi 0, %s61
    %s62 = sphi 0, %s59
    %s63 = sphi 0, %s62
    %s79 = sphi 0, %s63
    %s83 = sphi 0, %s83
    %s85 = sphi 0, %s83
    %s86 = sphi 0, %s85
    %s100 = sphi 0, %s86
    %s106 = sphi 0, %s108
    %s109 = sphi 0, %s106
    %s110 = sphi 0, %s109
    %s126 = sphi 0, %s110
  $region4: #{_lambda_.9} parent=0 // loop_header_branch
    %12 = sbr.rel (%p10) target = $region8
  $region5: #{_lambda_.9} parent=0 // loop_body
    %s14 = ssub.s32 %s9, 1
    %s15 = ssub.s32 %s9, 2
    %s22 = sadd.s32 1, %s17
    %p23 = scmp.ge.s32.totalorder %s22, 1
    %s24 = scalar_select %p23, 0, %s22
    %s25 = sadd.s32 1, %s16
    %s26 = scalar_select %p23, %s25, %s16
    %p27 = scmp.ge.s32.totalorder %s26, 2
    %s28 = scalar_select %p27, 0, %s26
    %s29 = ssub.s32 %s16, %s28
    %s30 = ssub.s32 %s17, %s24
    %s31 = sor.u32 %s29, %s30
    %p32 = scmp.eq.s32.totalorder %s31, 0
    %s34 = sadd.s32 %s33, 1
    %s35 = scalar_select %p32, %s33, %s34
    %p38 = pneg %p32
    %p39 = scmp.eq.s32.totalorder %s9, 1
    %p40 = por %p38, %p39
    %p41 = scmp.ne.s32.totalorder %s33, %s36
    %p42 = scmp.eq.s32.totalorder %s9, 0
    %p43 = por %p41, %p42
    %p44 = scmp.ne.s32.totalorder %s33, %s36
    %p45 = scmp.eq.s32.totalorder %s14, 1
    %p46 = por %p44, %p45
    %p47 = scmp.ne.s32.totalorder %s36, %s37
    %p48 = scmp.eq.s32.totalorder %s14, 0
    %p49 = por %p47, %p48
    %p50 = scmp.ne.s32.totalorder %s36, %s37
    %p51 = scmp.eq.s32.totalorder %s15, 1
    %p52 = por %p50, %p51
    %p54 = scmp.ne.s32.totalorder %s37, %s53
    %p55 = scmp.eq.s32.totalorder %s15, 0
    %p56 = por %p54, %p55
    %s57 = ssub.s32 %s17, %s24
    %p58 = scmp.eq.s32.totalorder %s57, 0
    %s60 = sadd.s32 %s59, 1
    %s61 = scalar_select %p58, %s59, %s60
    %p64 = pneg %p58
    %p65 = scmp.eq.s32.totalorder %s9, 1
    %p66 = por %p64, %p65
    %p67 = scmp.ne.s32.totalorder %s59, %s62
    %p68 = scmp.eq.s32.totalorder %s9, 0
    %p69 = por %p67, %p68
    %p70 = scmp.ne.s32.totalorder %s59, %s62
    %p71 = scmp.eq.s32.totalorder %s14, 1
    %p72 = por %p70, %p71
    %p73 = scmp.ne.s32.totalorder %s62, %s63
    %p74 = scmp.eq.s32.totalorder %s14, 0
    %p75 = por %p73, %p74
    %p76 = scmp.ne.s32.totalorder %s62, %s63
    %p77 = scmp.eq.s32.totalorder %s15, 1
    %p78 = por %p76, %p77
    %p80 = scmp.ne.s32.totalorder %s63, %s79
    %p81 = scmp.eq.s32.totalorder %s15, 0
    %p82 = por %p80, %p81
    %s84 = sadd.s32 %s83, 1
    %p87 = scmp.eq.s32.totalorder %s9, 1
    %p88 = scmp.ne.s32.totalorder %s83, %s85
    %p89 = scmp.eq.s32.totalorder %s9, 0
    %p90 = por %p88, %p89
    %p91 = scmp.ne.s32.totalorder %s83, %s85
    %p92 = scmp.eq.s32.totalorder %s14, 1
    %p93 = por %p91, %p92
    %p94 = scmp.ne.s32.totalorder %s85, %s86
    %p95 = scmp.eq.s32.totalorder %s14, 0
    %p96 = por %p94, %p95
    %p97 = scmp.ne.s32.totalorder %s85, %s86
    %p98 = scmp.eq.s32.totalorder %s15, 1
    %p99 = por %p97, %p98
    %p101 = scmp.ne.s32.totalorder %s86, %s100
    %p102 = scmp.eq.s32.totalorder %s15, 0
    %p103 = por %p101, %p102
    %s104 = ssub.s32 %s16, %s28
    %p105 = scmp.eq.s32.totalorder %s104, 0
    %s107 = sadd.s32 %s106, 1
    %s108 = scalar_select %p105, %s106, %s107
    %p111 = pneg %p105
    %p112 = scmp.eq.s32.totalorder %s9, 1
    %p113 = por %p111, %p112
    %p114 = scmp.ne.s32.totalorder %s106, %s109
    %p115 = scmp.eq.s32.totalorder %s9, 0
    %p116 = por %p114, %p115
    %p117 = scmp.ne.s32.totalorder %s106, %s109
    %p118 = scmp.eq.s32.totalorder %s14, 1
    %p119 = por %p117, %p118
    %p120 = scmp.ne.s32.totalorder %s109, %s110
    %p121 = scmp.eq.s32.totalorder %s14, 0
    %p122 = por %p120, %p121
    %p123 = scmp.ne.s32.totalorder %s109, %s110
    %p124 = scmp.eq.s32.totalorder %s15, 1
    %p125 = por %p123, %p124
    %p127 = scmp.ne.s32.totalorder %s110, %s126
    %p128 = scmp.eq.s32.totalorder %s15, 0
    %p129 = por %p127, %p128
    %p130 = scmp.le.s32.totalorder 1, %s9
    %p131 = scmp.lt.s32.totalorder %s9, 3
    %p132 = pnand %p130, %p131
    %p133 = pneg %p132
    // Predicated region
    $region9: #{_lambda_.9} parent=5 // pred_check
      _
    $region10: #{_lambda_.9} parent=5 // pred_check_branch
      %135 = sbr.rel (%p132) target = $region12
    $region11: #{_lambda_.9} parent=5 // pred_region
      %s136 = ssub.s32 %s9, 1
      // Predicated region
      $region13: #{_lambda_.9} parent=11 // pred_check
        %p137 = pneg %p75
      $region14: #{_lambda_.9} parent=11 // pred_check_branch
        %139 = sbr.rel (%p137) target = $region16
      $region15: #{_lambda_.9} parent=11 // pred_region
        %s140 = smul.u32 64, %s19
        %p141 = scmp.lt.s32.totalorder %s140, 63
        %s142 = scalar_select %p141, %s140, 63
        %s143 = smul.addr %s142, 4
        %s144 = scalar_lea.vmem %s1, %s143
        %s145 = smul.u32 64, %s19
      $region16: #{_lambda_.9} parent=11 // pred_fallthru
        _
      // Predicated region
      $region17: #{_lambda_.9} parent=11 // pred_check
        %p146 = pneg %p96
      $region18: #{_lambda_.9} parent=11 // pred_check_branch
        %148 = sbr.rel (%p146) target = $region20
      $region19: #{_lambda_.9} parent=11 // pred_region
        _
      $region20: #{_lambda_.9} parent=11 // pred_fallthru
        _
    $region12: #{_lambda_.9} parent=5 // pred_fallthru
      _
    %p149 = scmp.lt.s32.totalorder %s9, 2
    // Predicated region
    $region21: #{_lambda_.9} parent=5 // pred_check
      %p150 = pneg %p149
    $region22: #{_lambda_.9} parent=5 // pred_check_branch
      %152 = sbr.rel (%p150) target = $region24
    $region23: #{_lambda_.9} parent=5 // pred_region
      // Predicated region
      $region25: #{_lambda_.9} parent=23 // pred_check
        %p153 = pneg %p43
      $region26: #{_lambda_.9} parent=23 // pred_check_branch
        %155 = sbr.rel (%p153) target = $region28
      $region27: #{_lambda_.9} parent=23 // pred_region
        %s156 = smul.u32 12, %s16
        %s157 = smul.u32 4, %s17
        %p158 = scmp.lt.s32.totalorder %s156, 23
        %s159 = scalar_select %p158, %s156, 23
        %p160 = scmp.lt.s32.totalorder %s157, 3
        %s161 = scalar_select %p160, %s157, 3
        %s162 = smul.addr %s159, 4
        %s163 = sadd.s32 %s161, %s162
        %s164 = smul.addr %s163, 4
        %s165 = scalar_lea.vmem %s0, %s164
        %s166 = smul.u32 12, %s16
        %s167 = smul.u32 4, %s17
      $region28: #{_lambda_.9} parent=23 // pred_fallthru
        _
    $region24: #{_lambda_.9} parent=5 // pred_fallthru
      _
    %p168 = scmp.le.s32.totalorder 1, %s9
    %p169 = scmp.lt.s32.totalorder %s9, 3
    %p170 = pnand %p168, %p169
    %p171 = pneg %p170
    // Predicated region
    $region29: #{_lambda_.9} parent=5 // pred_check
      _
    $region30: #{_lambda_.9} parent=5 // pred_check_branch
      %173 = sbr.rel (%p170) target = $region32
    $region31: #{_lambda_.9} parent=5 // pred_region
      %s174 = ssub.s32 %s9, 1
      %s175 = smul.u32 12, %s18
      %s176 = smul.u32 4, %s19
      %p177 = scmp.lt.s32.totalorder %s175, 23
      %s178 = scalar_select %p177, %s175, 23
      %p179 = scmp.lt.s32.totalorder %s176, 3
      %s180 = scalar_select %p179, %s176, 3
      %s181 = smul.addr %s178, 4
      %s182 = sadd.s32 %s180, %s181
      %s183 = smul.addr %s182, 4
      %s184 = scalar_lea.vmem %s0, %s183
      %p185 = pneg %p49
      %p186 = pneg %p46
      %s187 = smul.u32 64, %s19
      %p188 = scmp.lt.s32.totalorder %s187, 63
      %s189 = scalar_select %p188, %s187, 63
      %s190 = smul.addr %s189, 4
      %s191 = scalar_lea.vmem %s1, %s190
      %p192 = pneg %p75
      %p193 = pneg %p72
      %p194 = pneg %p96
      %p195 = pneg %p93
      %p196 = pneg %p122
      %p197 = pneg %p119
      %s198 = smul.u32 12, %s18
      %p199 = scmp.lt.s32.totalorder %s198, 23
      %s200 = scalar_select %p199, %s198, 23
      %s201 = smul.addr %s200, 4
      %s202 = scalar_lea.vmem %s3, %s201
      %s203 = smul.u32 12, %s18
      %s204 = smul.u32 4, %s19
      %p205 = scmp.lt.s32.totalorder %s203, 23
      %s206 = scalar_select %p205, %s203, 23
      %p207 = scmp.lt.s32.totalorder %s204, 3
      %s208 = scalar_select %p207, %s204, 3
      %s209 = smul.addr %s206, 4
      %s210 = sadd.s32 %s208, %s209
      %s211 = smul.addr %s210, 4
      %s212 = scalar_lea.vmem %s0, %s211
      %s213 = smul.u32 12, %s18
      %s214 = smul.u32 4, %s19
      %s215 = smul.u32 64, %s19
      %p216 = scmp.lt.s32.totalorder %s215, 63
      %s217 = scalar_select %p216, %s215, 63
      %s218 = smul.addr %s217, 4
      %s219 = scalar_lea.vmem %s1, %s218
      %s220 = smul.u32 64, %s19
      %s221 = smul.u32 12, %s18
      %p222 = scmp.lt.s32.totalorder %s221, 23
      %s223 = scalar_select %p222, %s221, 23
      %s224 = smul.addr %s223, 4
      %s225 = scalar_lea.vmem %s3, %s224
      %s226 = smul.u32 12, %s18
      %v228 = vld [vmem:[%s212] sm:$0xff]
      %v229 = vld [vmem:[%s212 + $0x8] sm:$0xff]
      %v230 = vld [vmem:[%s212 + $0x10] sm:$0xff]
      %v231 = vld [vmem:[%s212 + $0x18] sm:$0xff]
      %v232 = vld [vmem:[%s212 + $0x20] sm:$0xff]
      %v233 = vld [vmem:[%s212 + $0x28] sm:$0xff]
      %v234 = vld [vmem:[%s212 + $0x30] sm:$0xff]
      %v235 = vld [vmem:[%s212 + $0x38] sm:$0xff]
      %v236 = vld [vmem:[%s212 + $0x40] sm:$0xff]
      %v237 = vld [vmem:[%s212 + $0x48] sm:$0xff]
      %v238 = vld [vmem:[%s212 + $0x50] sm:$0xff]
      %v239 = vld [vmem:[%s212 + $0x58] sm:$0xff]
      %v240 = vld [vmem:[%s212 + $0x60] sm:$0xff]
      %v241 = vld [vmem:[%s212 + $0x68] sm:$0xff]
      %v242 = vld [vmem:[%s212 + $0x70] sm:$0xff]
      %v243 = vld [vmem:[%s212 + $0x78] sm:$0xff]
      %v244 = vld [vmem:[%s212 + $0x80] sm:$0xff]
      %v245 = vld [vmem:[%s212 + $0x88] sm:$0xff]
      %v246 = vld [vmem:[%s212 + $0x90] sm:$0xff]
      %v247 = vld [vmem:[%s212 + $0x98] sm:$0xff]
      %v248 = vld [vmem:[%s212 + $0xa0] sm:$0xff]
      %v249 = vld [vmem:[%s212 + $0xa8] sm:$0xff]
      %v250 = vld [vmem:[%s212 + $0xb0] sm:$0xff]
      %v251 = vld [vmem:[%s212 + $0xb8] sm:$0xff]
      %v252 = vld [vmem:[%s219] sm:$0xf]
      %v253 = vld [vmem:[%s219 + $0x4] sm:$0xf]
      %v254 = vld [vmem:[%s219 + $0x8] sm:$0xf]
      %v255 = vld [vmem:[%s219 + $0xc] sm:$0xf]
      %v256 = vld [vmem:[%s219 + $0x10] sm:$0xf]
      %v257 = vld [vmem:[%s219 + $0x14] sm:$0xf]
      %v258 = vld [vmem:[%s219 + $0x18] sm:$0xf]
      %v259 = vld [vmem:[%s219 + $0x1c] sm:$0xf]
      %v260 = vld [vmem:[%s219 + $0x20] sm:$0xf]
      %v261 = vld [vmem:[%s219 + $0x24] sm:$0xf]
      %v262 = vld [vmem:[%s219 + $0x28] sm:$0xf]
      %v263 = vld [vmem:[%s219 + $0x2c] sm:$0xf]
      %v264 = vld [vmem:[%s219 + $0x30] sm:$0xf]
      %v265 = vld [vmem:[%s219 + $0x34] sm:$0xf]
      %v266 = vld [vmem:[%s219 + $0x38] sm:$0xf]
      %v267 = vld [vmem:[%s219 + $0x3c] sm:$0xf]
      %v268 = vld [vmem:[%s219 + $0x40] sm:$0xf]
      %v269 = vld [vmem:[%s219 + $0x44] sm:$0xf]
      %v270 = vld [vmem:[%s219 + $0x48] sm:$0xf]
      %v271 = vld [vmem:[%s219 + $0x4c] sm:$0xf]
      %v272 = vld [vmem:[%s219 + $0x50] sm:$0xf]
      %v273 = vld [vmem:[%s219 + $0x54] sm:$0xf]
      %v274 = vld [vmem:[%s219 + $0x58] sm:$0xf]
      %v275 = vld [vmem:[%s219 + $0x5c] sm:$0xf]
      %v276 = vld [vmem:[%s219 + $0x60] sm:$0xf]
      %v277 = vld [vmem:[%s219 + $0x64] sm:$0xf]
      %v278 = vld [vmem:[%s219 + $0x68] sm:$0xf]
      %v279 = vld [vmem:[%s219 + $0x6c] sm:$0xf]
      %v280 = vld [vmem:[%s219 + $0x70] sm:$0xf]
      %v281 = vld [vmem:[%s219 + $0x74] sm:$0xf]
      %v282 = vld [vmem:[%s219 + $0x78] sm:$0xf]
      %v283 = vld [vmem:[%s219 + $0x7c] sm:$0xf]
      %v284 = vld [vmem:[%s219 + $0x80] sm:$0xf]
      %v285 = vld [vmem:[%s219 + $0x84] sm:$0xf]
      %v286 = vld [vmem:[%s219 + $0x88] sm:$0xf]
      %v287 = vld [vmem:[%s219 + $0x8c] sm:$0xf]
      %v288 = vld [vmem:[%s219 + $0x90] sm:$0xf]
      %v289 = vld [vmem:[%s219 + $0x94] sm:$0xf]
      %v290 = vld [vmem:[%s219 + $0x98] sm:$0xf]
      %v291 = vld [vmem:[%s219 + $0x9c] sm:$0xf]
      %v292 = vld [vmem:[%s219 + $0xa0] sm:$0xf]
      %v293 = vld [vmem:[%s219 + $0xa4] sm:$0xf]
      %v294 = vld [vmem:[%s219 + $0xa8] sm:$0xf]
      %v295 = vld [vmem:[%s219 + $0xac] sm:$0xf]
      %v296 = vld [vmem:[%s219 + $0xb0] sm:$0xf]
      %v297 = vld [vmem:[%s219 + $0xb4] sm:$0xf]
      %v298 = vld [vmem:[%s219 + $0xb8] sm:$0xf]
      %v299 = vld [vmem:[%s219 + $0xbc] sm:$0xf]
      %v300 = vld [vmem:[%s219 + $0xc0] sm:$0xf]
      %v301 = vld [vmem:[%s219 + $0xc4] sm:$0xf]
      %v302 = vld [vmem:[%s219 + $0xc8] sm:$0xf]
      %v303 = vld [vmem:[%s219 + $0xcc] sm:$0xf]
      %v304 = vld [vmem:[%s219 + $0xd0] sm:$0xf]
      %v305 = vld [vmem:[%s219 + $0xd4] sm:$0xf]
      %v306 = vld [vmem:[%s219 + $0xd8] sm:$0xf]
      %v307 = vld [vmem:[%s219 + $0xdc] sm:$0xf]
      %v308 = vld [vmem:[%s219 + $0xe0] sm:$0xf]
      %v309 = vld [vmem:[%s219 + $0xe4] sm:$0xf]
      %v310 = vld [vmem:[%s219 + $0xe8] sm:$0xf]
      %v311 = vld [vmem:[%s219 + $0xec] sm:$0xf]
      %v312 = vld [vmem:[%s219 + $0xf0] sm:$0xf]
      %v313 = vld [vmem:[%s219 + $0xf4] sm:$0xf]
      %v314 = vld [vmem:[%s219 + $0xf8] sm:$0xf]
      %v315 = vld [vmem:[%s219 + $0xfc] sm:$0xf]
      %v316 = vld [vmem:[%s2] sm:$0x1]
      %v318 = vlaneseq
      %v319 = vshrl.u32 %v318, 7
      %v320 = vsub.s32 0, %v319
      %v321 = vrot.slane %v316, %v320
      %v347 = vunpack.c.l.b16 %v228
      %v348 = vunpack.c.h.b16 %v228
      %v349 = vunpack.c.l.b16 %v229
      %v350 = vunpack.c.h.b16 %v229
      %v351 = vunpack.c.l.b16 %v230
      %v352 = vunpack.c.h.b16 %v230
      %v353 = vunpack.c.l.b16 %v231
      %v354 = vunpack.c.h.b16 %v231
      %v355 = vunpack.c.l.b16 %v232
      %v356 = vunpack.c.h.b16 %v232
      %v357 = vunpack.c.l.b16 %v233
      %v358 = vunpack.c.h.b16 %v233
      %v359 = vunpack.c.l.b16 %v234
      %v360 = vunpack.c.h.b16 %v234
      %v361 = vunpack.c.l.b16 %v235
      %v362 = vunpack.c.h.b16 %v235
      %v363 = vunpack.c.l.b16 %v236
      %v364 = vunpack.c.h.b16 %v236
      %v365 = vunpack.c.l.b16 %v237
      %v366 = vunpack.c.h.b16 %v237
      %v367 = vunpack.c.l.b16 %v238
      %v368 = vunpack.c.h.b16 %v238
      %v369 = vunpack.c.l.b16 %v239
      %v370 = vunpack.c.h.b16 %v239
      %v371 = vunpack.c.l.b16 %v240
      %v372 = vunpack.c.h.b16 %v240
      %v373 = vunpack.c.l.b16 %v241
      %v374 = vunpack.c.h.b16 %v241
      %v375 = vunpack.c.l.b16 %v242
      %v376 = vunpack.c.h.b16 %v242
      %v377 = vunpack.c.l.b16 %v243
      %v378 = vunpack.c.h.b16 %v243
      %v379 = vunpack.c.l.b16 %v244
      %v380 = vunpack.c.h.b16 %v244
      %v381 = vunpack.c.l.b16 %v245
      %v382 = vunpack.c.h.b16 %v245
      %v383 = vunpack.c.l.b16 %v246
      %v384 = vunpack.c.h.b16 %v246
      %v385 = vunpack.c.l.b16 %v247
      %v386 = vunpack.c.h.b16 %v247
      %v387 = vunpack.c.l.b16 %v248
      %v388 = vunpack.c.h.b16 %v248
      %v389 = vunpack.c.l.b16 %v249
      %v390 = vunpack.c.h.b16 %v249
      %v391 = vunpack.c.l.b16 %v250
      %v392 = vunpack.c.h.b16 %v250
      %v393 = vunpack.c.l.b16 %v251
      %v394 = vunpack.c.h.b16 %v251
      %v395 = vpack.c.b16 %v351, %v347
      %v396 = vpack.c.b16 %v352, %v348
      %v397 = vpack.c.b16 %v353, %v349
      %v398 = vpack.c.b16 %v354, %v350
      %v399 = vpack.c.b16 %v359, %v355
      %v400 = vpack.c.b16 %v360, %v356
      %v401 = vpack.c.b16 %v361, %v357
      %v402 = vpack.c.b16 %v362, %v358
      %v403 = vpack.c.b16 %v367, %v363
      %v404 = vpack.c.b16 %v368, %v364
      %v405 = vpack.c.b16 %v369, %v365
      %v406 = vpack.c.b16 %v370, %v366
      %v407 = vpack.c.b16 %v375, %v371
      %v408 = vpack.c.b16 %v376, %v372
      %v409 = vpack.c.b16 %v377, %v373
      %v410 = vpack.c.b16 %v378, %v374
      %v411 = vpack.c.b16 %v383, %v379
      %v412 = vpack.c.b16 %v384, %v380
      %v413 = vpack.c.b16 %v385, %v381
      %v414 = vpack.c.b16 %v386, %v382
      %v415 = vpack.c.b16 %v391, %v387
      %v416 = vpack.c.b16 %v392, %v388
      %v417 = vpack.c.b16 %v393, %v389
      %v418 = vpack.c.b16 %v394, %v390
      %v507 = vunpack.c.l.b16 %v252
      %v508 = vunpack.c.l.b16 %v253
      %v509 = vunpack.c.l.b16 %v254
      %v510 = vunpack.c.l.b16 %v255
      %v511 = vunpack.c.l.b16 %v256
      %v512 = vunpack.c.l.b16 %v257
      %v513 = vunpack.c.l.b16 %v258
      %v514 = vunpack.c.l.b16 %v259
      %v515 = vunpack.c.l.b16 %v260
      %v516 = vunpack.c.l.b16 %v261
      %v517 = vunpack.c.l.b16 %v262
      %v518 = vunpack.c.l.b16 %v263
      %v519 = vunpack.c.l.b16 %v264
      %v520 = vunpack.c.l.b16 %v265
      %v521 = vunpack.c.l.b16 %v266
      %v522 = vunpack.c.l.b16 %v267
      %v523 = vunpack.c.l.b16 %v268
      %v524 = vunpack.c.l.b16 %v269
      %v525 = vunpack.c.l.b16 %v270
      %v526 = vunpack.c.l.b16 %v271
      %v527 = vunpack.c.l.b16 %v272
      %v528 = vunpack.c.l.b16 %v273
      %v529 = vunpack.c.l.b16 %v274
      %v530 = vunpack.c.l.b16 %v275
      %v531 = vunpack.c.l.b16 %v276
      %v532 = vunpack.c.l.b16 %v277
      %v533 = vunpack.c.l.b16 %v278
      %v534 = vunpack.c.l.b16 %v279
      %v535 = vunpack.c.l.b16 %v280
      %v536 = vunpack.c.l.b16 %v281
      %v537 = vunpack.c.l.b16 %v282
      %v538 = vunpack.c.l.b16 %v283
      %v539 = vunpack.c.l.b16 %v284
      %v540 = vunpack.c.l.b16 %v285
      %v541 = vunpack.c.l.b16 %v286
      %v542 = vunpack.c.l.b16 %v287
      %v543 = vunpack.c.l.b16 %v288
      %v544 = vunpack.c.l.b16 %v289
      %v545 = vunpack.c.l.b16 %v290
      %v546 = vunpack.c.l.b16 %v291
      %v547 = vunpack.c.l.b16 %v292
      %v548 = vunpack.c.l.b16 %v293
      %v549 = vunpack.c.l.b16 %v294
      %v550 = vunpack.c.l.b16 %v295
      %v551 = vunpack.c.l.b16 %v296
      %v552 = vunpack.c.l.b16 %v297
      %v553 = vunpack.c.l.b16 %v298
      %v554 = vunpack.c.l.b16 %v299
      %v555 = vunpack.c.l.b16 %v300
      %v556 = vunpack.c.l.b16 %v301
      %v557 = vunpack.c.l.b16 %v302
      %v558 = vunpack.c.l.b16 %v303
      %v559 = vunpack.c.l.b16 %v304
      %v560 = vunpack.c.l.b16 %v305
      %v561 = vunpack.c.l.b16 %v306
      %v562 = vunpack.c.l.b16 %v307
      %v563 = vunpack.c.l.b16 %v308
      %v564 = vunpack.c.l.b16 %v309
      %v565 = vunpack.c.l.b16 %v310
      %v566 = vunpack.c.l.b16 %v311
      %v567 = vunpack.c.l.b16 %v312
      %v568 = vunpack.c.l.b16 %v313
      %v569 = vunpack.c.l.b16 %v314
      %v570 = vunpack.c.l.b16 %v315
      %v571 = vpack.c.b16 %v508, %v507
      %v572 = vpack.c.b16 %v510, %v509
      %v573 = vpack.c.b16 %v512, %v511
      %v574 = vpack.c.b16 %v514, %v513
      %v575 = vpack.c.b16 %v516, %v515
      %v576 = vpack.c.b16 %v518, %v517
      %v577 = vpack.c.b16 %v520, %v519
      %v578 = vpack.c.b16 %v522, %v521
      %v579 = vpack.c.b16 %v524, %v523
      %v580 = vpack.c.b16 %v526, %v525
      %v581 = vpack.c.b16 %v528, %v527
      %v582 = vpack.c.b16 %v530, %v529
      %v583 = vpack.c.b16 %v532, %v531
      %v584 = vpack.c.b16 %v534, %v533
      %v585 = vpack.c.b16 %v536, %v535
      %v586 = vpack.c.b16 %v538, %v537
      %v587 = vpack.c.b16 %v540, %v539
      %v588 = vpack.c.b16 %v542, %v541
      %v589 = vpack.c.b16 %v544, %v543
      %v590 = vpack.c.b16 %v546, %v545
      %v591 = vpack.c.b16 %v548, %v547
      %v592 = vpack.c.b16 %v550, %v549
      %v593 = vpack.c.b16 %v552, %v551
      %v594 = vpack.c.b16 %v554, %v553
      %v595 = vpack.c.b16 %v556, %v555
      %v596 = vpack.c.b16 %v558, %v557
      %v597 = vpack.c.b16 %v560, %v559
      %v598 = vpack.c.b16 %v562, %v561
      %v599 = vpack.c.b16 %v564, %v563
      %v600 = vpack.c.b16 %v566, %v565
      %v601 = vpack.c.b16 %v568, %v567
      %v602 = vpack.c.b16 %v570, %v569
      %635 = vmatprep.subr.bf16.mxu0 0
      %636 = vmatpush1.bf16.msra.mxu0 %v571
      %637 = vmatprep.subr.bf16.mxu0 0
      %638 = vmatpush1.bf16.msra.mxu0 %v572
      %639 = vmatprep.subr.bf16.mxu0 0
      %640 = vmatpush1.bf16.msra.mxu0 %v573
      %641 = vmatprep.subr.bf16.mxu0 0
      %642 = vmatpush1.bf16.msra.mxu0 %v574
      %643 = vmatprep.subr.bf16.mxu0 0
      %644 = vmatpush1.bf16.msra.mxu0 %v575
      %645 = vmatprep.subr.bf16.mxu0 0
      %646 = vmatpush1.bf16.msra.mxu0 %v576
      %647 = vmatprep.subr.bf16.mxu0 0
      %648 = vmatpush1.bf16.msra.mxu0 %v577
      %649 = vmatprep.subr.bf16.mxu0 0
      %650 = vmatpush1.bf16.msra.mxu0 %v578
      %651 = vmatprep.subr.bf16.mxu0 0
      %652 = vmatpush1.bf16.msra.mxu0 %v579
      %653 = vmatprep.subr.bf16.mxu0 0
      %654 = vmatpush1.bf16.msra.mxu0 %v580
      %655 = vmatprep.subr.bf16.mxu0 0
      %656 = vmatpush1.bf16.msra.mxu0 %v581
      %657 = vmatprep.subr.bf16.mxu0 0
      %658 = vmatpush1.bf16.msra.mxu0 %v582
      %659 = vmatprep.subr.bf16.mxu0 0
      %660 = vmatpush1.bf16.msra.mxu0 %v583
      %661 = vmatprep.subr.bf16.mxu0 0
      %662 = vmatpush1.bf16.msra.mxu0 %v584
      %663 = vmatprep.subr.bf16.mxu0 0
      %664 = vmatpush1.bf16.msra.mxu0 %v585
      %665 = vmatprep.subr.bf16.mxu0 0
      %666 = vmatpush1.bf16.msra.mxu0 %v586
      %667 = vmatprep.mubr.bf16.mxu0 %v396
      %668 = vmatmul.mubr.bf16.gmra.mrb[0].mxu0 %v395
      %v669 = vpop.f32.mrb[0].mxu0
      %v670 = vadd.f32 %v321, %v669
      %v671 = vpop.f32.mrb[0].mxu0
      %v672 = vpop.f32.mrb[0].mxu0
      %v673 = vadd.f32 %v321, %v672
      %v674 = vpop.f32.mrb[0].mxu0
      %675 = vmatprep.mubr.bf16.mxu0 %v400
      %676 = vmatmul.mubr.bf16.gmra.mrb[0].mxu0 %v399
      %v677 = vpop.f32.mrb[0].mxu0
      %v678 = vadd.f32 %v321, %v677
      %v679 = vpop.f32.mrb[0].mxu0
      %v680 = vpop.f32.mrb[0].mxu0
      %v681 = vadd.f32 %v321, %v680
      %v682 = vpop.f32.mrb[0].mxu0
      %683 = vmatprep.mubr.bf16.mxu0 %v404
      %684 = vmatmul.mubr.bf16.gmra.mrb[0].mxu0 %v403
      %v685 = vpop.f32.mrb[0].mxu0
      %v686 = vadd.f32 %v321, %v685
      %v687 = vpop.f32.mrb[0].mxu0
      %v688 = vpop.f32.mrb[0].mxu0
      %v689 = vadd.f32 %v321, %v688
      %v690 = vpop.f32.mrb[0].mxu0
      %691 = vmatprep.mubr.bf16.mxu0 %v408
      %692 = vmatmul.mubr.bf16.gmra.mrb[0].mxu0 %v407
      %v693 = vpop.f32.mrb[0].mxu0
      %v694 = vadd.f32 %v321, %v693
      %v695 = vpop.f32.mrb[0].mxu0
      %v696 = vpop.f32.mrb[0].mxu0
      %v697 = vadd.f32 %v321, %v696
      %v698 = vpop.f32.mrb[0].mxu0
      %699 = vmatprep.mubr.bf16.mxu0 %v412
      %700 = vmatmul.mubr.bf16.gmra.mrb[0].mxu0 %v411
      %v701 = vpop.f32.mrb[0].mxu0
      %v702 = vadd.f32 %v321, %v701
      %v703 = vpop.f32.mrb[0].mxu0
      %v704 = vpop.f32.mrb[0].mxu0
      %v705 = vadd.f32 %v321, %v704
      %v706 = vpop.f32.mrb[0].mxu0
      %707 = vmatprep.mubr.bf16.mxu0 %v416
      %708 = vmatmul.mubr.bf16.gmra.mrb[0].mxu0 %v415
      %v709 = vpop.f32.mrb[0].mxu0
      %v710 = vadd.f32 %v321, %v709
      %v711 = vpop.f32.mrb[0].mxu0
      %v712 = vpop.f32.mrb[0].mxu0
      %v713 = vadd.f32 %v321, %v712
      %v714 = vpop.f32.mrb[0].mxu0
      %715 = vdwg.mxu0
      %716 = vmatprep.subr.bf16.mxu0 0
      %717 = vmatpush1.bf16.msra.mxu0 %v587
      %718 = vmatprep.subr.bf16.mxu0 0
      %719 = vmatpush1.bf16.msra.mxu0 %v588
      %720 = vmatprep.subr.bf16.mxu0 0
      %721 = vmatpush1.bf16.msra.mxu0 %v589
      %722 = vmatprep.subr.bf16.mxu0 0
      %723 = vmatpush1.bf16.msra.mxu0 %v590
      %724 = vmatprep.subr.bf16.mxu0 0
      %725 = vmatpush1.bf16.msra.mxu0 %v591
      %726 = vmatprep.subr.bf16.mxu0 0
      %727 = vmatpush1.bf16.msra.mxu0 %v592
      %728 = vmatprep.subr.bf16.mxu0 0
      %729 = vmatpush1.bf16.msra.mxu0 %v593
      %730 = vmatprep.subr.bf16.mxu0 0
      %731 = vmatpush1.bf16.msra.mxu0 %v594
      %732 = vmatprep.subr.bf16.mxu0 0
      %733 = vmatpush1.bf16.msra.mxu0 %v595
      %734 = vmatprep.subr.bf16.mxu0 0
      %735 = vmatpush1.bf16.msra.mxu0 %v596
      %736 = vmatprep.subr.bf16.mxu0 0
      %737 = vmatpush1.bf16.msra.mxu0 %v597
      %738 = vmatprep.subr.bf16.mxu0 0
      %739 = vmatpush1.bf16.msra.mxu0 %v598
      %740 = vmatprep.subr.bf16.mxu0 0
      %741 = vmatpush1.bf16.msra.mxu0 %v599
      %742 = vmatprep.subr.bf16.mxu0 0
      %743 = vmatpush1.bf16.msra.mxu0 %v600
      %744 = vmatprep.subr.bf16.mxu0 0
      %745 = vmatpush1.bf16.msra.mxu0 %v601
      %746 = vmatprep.subr.bf16.mxu0 0
      %747 = vmatpush1.bf16.msra.mxu0 %v602
      %748 = vmatprep.mubr.bf16.mxu0 %v398
      %749 = vmatmul.mubr.bf16.gmra.mrb[0].mxu0 %v397
      %v750 = vpop.f32.mrb[0].mxu0
      %v751 = vadd.f32 %v670, %v750
      %v752 = vpop.f32.mrb[0].mxu0
      %v753 = vpop.f32.mrb[0].mxu0
      %v754 = vadd.f32 %v673, %v753
      %v755 = vpop.f32.mrb[0].mxu0
      %756 = vmatprep.mubr.bf16.mxu0 %v402
      %757 = vmatmul.mubr.bf16.gmra.mrb[0].mxu0 %v401
      %v758 = vpop.f32.mrb[0].mxu0
      %v759 = vadd.f32 %v678, %v758
      %v760 = vpop.f32.mrb[0].mxu0
      %v761 = vpop.f32.mrb[0].mxu0
      %v762 = vadd.f32 %v681, %v761
      %v763 = vpop.f32.mrb[0].mxu0
      %764 = vmatprep.mubr.bf16.mxu0 %v406
      %765 = vmatmul.mubr.bf16.gmra.mrb[0].mxu0 %v405
      %v766 = vpop.f32.mrb[0].mxu0
      %v767 = vadd.f32 %v686, %v766
      %v768 = vpop.f32.mrb[0].mxu0
      %v769 = vpop.f32.mrb[0].mxu0
      %v770 = vadd.f32 %v689, %v769
      %v771 = vpop.f32.mrb[0].mxu0
      %772 = vmatprep.mubr.bf16.mxu0 %v410
      %773 = vmatmul.mubr.bf16.gmra.mrb[0].mxu0 %v409
      %v774 = vpop.f32.mrb[0].mxu0
      %v775 = vadd.f32 %v694, %v774
      %v776 = vpop.f32.mrb[0].mxu0
      %v777 = vpop.f32.mrb[0].mxu0
      %v778 = vadd.f32 %v697, %v777
      %v779 = vpop.f32.mrb[0].mxu0
      %780 = vmatprep.mubr.bf16.mxu0 %v414
      %781 = vmatmul.mubr.bf16.gmra.mrb[0].mxu0 %v413
      %v782 = vpop.f32.mrb[0].mxu0
      %v783 = vadd.f32 %v702, %v782
      %v784 = vpop.f32.mrb[0].mxu0
      %v785 = vpop.f32.mrb[0].mxu0
      %v786 = vadd.f32 %v705, %v785
      %v787 = vpop.f32.mrb[0].mxu0
      %788 = vmatprep.mubr.bf16.mxu0 %v418
      %789 = vmatmul.mubr.bf16.gmra.mrb[0].mxu0 %v417
      %v790 = vpop.f32.mrb[0].mxu0
      %v791 = vadd.f32 %v710, %v790
      %v792 = vpop.f32.mrb[0].mxu0
      %v793 = vpop.f32.mrb[0].mxu0
      %v794 = vadd.f32 %v713, %v793
      %v795 = vpop.f32.mrb[0].mxu0
      %796 = vdwg.mxu0
      %v797 = vpack.c.bf16 %v754, %v751
      %v798 = vpack.c.bf16 %v762, %v759
      %v799 = vpack.c.bf16 %v770, %v767
      %v800 = vpack.c.bf16 %v778, %v775
      %v801 = vpack.c.bf16 %v786, %v783
      %v802 = vpack.c.bf16 %v794, %v791
      %v809 = vunpack.c.l.b16 %v797
      %v810 = vunpack.c.h.b16 %v797
      %v811 = vunpack.c.l.b16 %v798
      %v812 = vunpack.c.h.b16 %v798
      %v813 = vunpack.c.l.b16 %v799
      %v814 = vunpack.c.h.b16 %v799
      %v815 = vunpack.c.l.b16 %v800
      %v816 = vunpack.c.h.b16 %v800
      %v817 = vunpack.c.l.b16 %v801
      %v818 = vunpack.c.h.b16 %v801
      %v819 = vunpack.c.l.b16 %v802
      %v820 = vunpack.c.h.b16 %v802
      %v821 = vpack.c.b16 %v809, %v809
      %v822 = vpack.c.b16 %v810, %v810
      %v823 = vpack.c.b16 %v811, %v811
      %v824 = vpack.c.b16 %v812, %v812
      %v825 = vpack.c.b16 %v813, %v813
      %v826 = vpack.c.b16 %v814, %v814
      %v827 = vpack.c.b16 %v815, %v815
      %v828 = vpack.c.b16 %v816, %v816
      %v829 = vpack.c.b16 %v817, %v817
      %v830 = vpack.c.b16 %v818, %v818
      %v831 = vpack.c.b16 %v819, %v819
      %v832 = vpack.c.b16 %v820, %v820
      %845 = vst [vmem:[%s225] sm:$0xf] %v821
      %846 = vst [vmem:[%s225 + $0x4] sm:$0xf] %v822
      %847 = vst [vmem:[%s225 + $0x8] sm:$0xf] %v823
      %848 = vst [vmem:[%s225 + $0xc] sm:$0xf] %v824
      %849 = vst [vmem:[%s225 + $0x10] sm:$0xf] %v825
      %850 = vst [vmem:[%s225 + $0x14] sm:$0xf] %v826
      %851 = vst [vmem:[%s225 + $0x18] sm:$0xf] %v827
      %852 = vst [vmem:[%s225 + $0x1c] sm:$0xf] %v828
      %853 = vst [vmem:[%s225 + $0x20] sm:$0xf] %v829
      %854 = vst [vmem:[%s225 + $0x24] sm:$0xf] %v830
      %855 = vst [vmem:[%s225 + $0x28] sm:$0xf] %v831
      %856 = vst [vmem:[%s225 + $0x2c] sm:$0xf] %v832
      %s857 = smul.u32 12, %s18
      %p858 = scmp.lt.s32.totalorder %s857, 23
      %s859 = scalar_select %p858, %s857, 23
      %s860 = smul.addr %s859, 4
      %s861 = scalar_lea.vmem %s3, %s860
      // Predicated region
      $region33: #{_lambda_.9} parent=31 // pred_check
        %p862 = pneg %p119
      $region34: #{_lambda_.9} parent=31 // pred_check_branch
        %864 = sbr.rel (%p862) target = $region36
      $region35: #{_lambda_.9} parent=31 // pred_region
        %s865 = smul.u32 12, %s18
      $region36: #{_lambda_.9} parent=31 // pred_fallthru
        _
    $region32: #{_lambda_.9} parent=5 // pred_fallthru
      _
    %p866 = scmp.le.s32.totalorder 2, %s9
    // Predicated region
    $region37: #{_lambda_.9} parent=5 // pred_check
      %p867 = pneg %p866
    $region38: #{_lambda_.9} parent=5 // pred_check_branch
      %869 = sbr.rel (%p867) target = $region40
    $region39: #{_lambda_.9} parent=5 // pred_region
      %s870 = ssub.s32 %s9, 2
      // Predicated region
      $region41: #{_lambda_.9} parent=39 // pred_check
        %p871 = pneg %p125
      $region42: #{_lambda_.9} parent=39 // pred_check_branch
        %873 = sbr.rel (%p871) target = $region44
      $region43: #{_lambda_.9} parent=39 // pred_region
        %s874 = smul.u32 12, %s20
        %p875 = scmp.lt.s32.totalorder %s874, 23
        %s876 = scalar_select %p875, %s874, 23
        %s877 = smul.addr %s876, 4
        %s878 = scalar_lea.vmem %s3, %s877
      $region44: #{_lambda_.9} parent=39 // pred_fallthru
        _
    $region40: #{_lambda_.9} parent=5 // pred_fallthru
      _
  $region6: #{_lambda_.9} parent=0 // loop_footer
    %s13 = sadd.s32 1, %s9
  $region7: #{_lambda_.9} parent=0 // loop_footer_branch
    %8 = sbr.rel target = $region3
  $region8: #{_lambda_.9} parent=0 // loop_exit
    _

// kernel: _lambda_.14
$region0: #{_lambda_.14}
  #allocation0 [shape = 'u32[]', space=smem, size = 0x4, offset = 0x4, fixed_abs, tag = 'smem constant byte address 0x4 - core index']
  #allocation1 [shape = 'u32[144,128]{1,0:T(1,128)}', space=vmem, size = 0x12000, scoped, tag = 'internal scratch']
  #allocation2 [shape = 'f32[64,128]{1,0:T(8,128)}', space=vmem, size = 0x8000, scoped, tag = 'scratch operand']
  %s0 = inlined_call_operand.vmem [shape: bf16[128,1792], index: 0, kind: input, shape index: {}]
  %s1 = inlined_call_operand.vmem [shape: bf16[1792,128], index: 1, kind: input, shape index: {}]
  %s2 = inlined_call_operand.vmem [shape: f32[1,128], index: 2, kind: input, shape index: {}]
  %s3 = inlined_call_operand.vmem [shape: bf16[128,128], index: 3, kind: output, shape index: {}]
  %s4 = sld [smem:[#allocation0]]
  $region79: #{_lambda_.14} parent=0
    _
  %s6 = ssub.s32 1, %s4
  %s7 = scalar_select 0, %s6, %s4
  $region1: #{_lambda_.14} parent=0
    #allocation3 [shape = 'u8[229376]{0}', space=vmem, size = 0x38000, scoped, tag = 'input window, operand 0']
    loop: start=0, step=1, limit=6
    $region2: #{_lambda_.14} parent=1 // loop_pre_header
      _
    $region3: #{_lambda_.14} parent=1 // loop_header
      %s9 = sphi 0, %s13
      %p10 = scmp.ge.s32.totalorder %s9, 6
      %s16 = sphi 0, %s28
      %s17 = sphi 0, %s24
      %s18 = sphi 0, %s16
      %s19 = sphi 0, %s17
      %s20 = sphi 0, %s18
      %s21 = sphi 0, %s19
      %s33 = sphi 0, %s35
      %s36 = sphi 0, %s33
      %s37 = sphi 0, %s36
      %s53 = sphi 0, %s37
      %s59 = sphi 0, %s61
      %s62 = sphi 0, %s59
      %s63 = sphi 0, %s62
      %s79 = sphi 0, %s63
      %s83 = sphi 0, %s83
      %s85 = sphi 0, %s83
      %s86 = sphi 0, %s85
      %s100 = sphi 0, %s86
      %s106 = sphi 0, %s108
      %s109 = sphi 0, %s106
      %s110 = sphi 0, %s109
      %s126 = sphi 0, %s110
    $region4: #{_lambda_.14} parent=1 // loop_header_branch
      %12 = sbr.rel (%p10) target = $region8
    $region5: #{_lambda_.14} parent=1 // loop_body
      %s14 = ssub.s32 %s9, 1
      %s15 = ssub.s32 %s9, 2
      %s22 = sadd.s32 1, %s17
      %p23 = scmp.ge.s32.totalorder %s22, 2
      %s24 = scalar_select %p23, 0, %s22
      %s25 = sadd.s32 1, %s16
      %s26 = scalar_select %p23, %s25, %s16
      %p27 = scmp.ge.s32.totalorder %s26, 2
      %s28 = scalar_select %p27, 0, %s26
      %s29 = ssub.s32 %s16, %s28
      %s30 = ssub.s32 %s17, %s24
      %s31 = sor.u32 %s29, %s30
      %p32 = scmp.eq.s32.totalorder %s31, 0
      %s34 = sadd.s32 %s33, 1
      %s35 = scalar_select %p32, %s33, %s34
      %p38 = pneg %p32
      %p39 = scmp.eq.s32.totalorder %s9, 3
      %p40 = por %p38, %p39
      %p41 = scmp.ne.s32.totalorder %s33, %s36
      %p42 = scmp.eq.s32.totalorder %s9, 0
      %p43 = por %p41, %p42
      %p44 = scmp.ne.s32.totalorder %s33, %s36
      %p45 = scmp.eq.s32.totalorder %s14, 3
      %p46 = por %p44, %p45
      %p47 = scmp.ne.s32.totalorder %s36, %s37
      %p48 = scmp.eq.s32.totalorder %s14, 0
      %p49 = por %p47, %p48
      %p50 = scmp.ne.s32.totalorder %s36, %s37
      %p51 = scmp.eq.s32.totalorder %s15, 3
      %p52 = por %p50, %p51
      %p54 = scmp.ne.s32.totalorder %s37, %s53
      %p55 = scmp.eq.s32.totalorder %s15, 0
      %p56 = por %p54, %p55
      %s57 = ssub.s32 %s17, %s24
      %p58 = scmp.eq.s32.totalorder %s57, 0
      %s60 = sadd.s32 %s59, 1
      %s61 = scalar_select %p58, %s59, %s60
      %p64 = pneg %p58
      %p65 = scmp.eq.s32.totalorder %s9, 3
      %p66 = por %p64, %p65
      %p67 = scmp.ne.s32.totalorder %s59, %s62
      %p68 = scmp.eq.s32.totalorder %s9, 0
      %p69 = por %p67, %p68
      %p70 = scmp.ne.s32.totalorder %s59, %s62
      %p71 = scmp.eq.s32.totalorder %s14, 3
      %p72 = por %p70, %p71
      %p73 = scmp.ne.s32.totalorder %s62, %s63
      %p74 = scmp.eq.s32.totalorder %s14, 0
      %p75 = por %p73, %p74
      %p76 = scmp.ne.s32.totalorder %s62, %s63
      %p77 = scmp.eq.s32.totalorder %s15, 3
      %p78 = por %p76, %p77
      %p80 = scmp.ne.s32.totalorder %s63, %s79
      %p81 = scmp.eq.s32.totalorder %s15, 0
      %p82 = por %p80, %p81
      %s84 = sadd.s32 %s83, 1
      %p87 = scmp.eq.s32.totalorder %s9, 3
      %p88 = scmp.ne.s32.totalorder %s83, %s85
      %p89 = scmp.eq.s32.totalorder %s9, 0
      %p90 = por %p88, %p89
      %p91 = scmp.ne.s32.totalorder %s83, %s85
      %p92 = scmp.eq.s32.totalorder %s14, 3
      %p93 = por %p91, %p92
      %p94 = scmp.ne.s32.totalorder %s85, %s86
      %p95 = scmp.eq.s32.totalorder %s14, 0
      %p96 = por %p94, %p95
      %p97 = scmp.ne.s32.totalorder %s85, %s86
      %p98 = scmp.eq.s32.totalorder %s15, 3
      %p99 = por %p97, %p98
      %p101 = scmp.ne.s32.totalorder %s86, %s100
      %p102 = scmp.eq.s32.totalorder %s15, 0
      %p103 = por %p101, %p102
      %s104 = ssub.s32 %s16, %s28
      %p105 = scmp.eq.s32.totalorder %s104, 0
      %s107 = sadd.s32 %s106, 1
      %s108 = scalar_select %p105, %s106, %s107
      %p111 = pneg %p105
      %p112 = scmp.eq.s32.totalorder %s9, 3
      %p113 = por %p111, %p112
      %p114 = scmp.ne.s32.totalorder %s106, %s109
      %p115 = scmp.eq.s32.totalorder %s9, 0
      %p116 = por %p114, %p115
      %p117 = scmp.ne.s32.totalorder %s106, %s109
      %p118 = scmp.eq.s32.totalorder %s14, 3
      %p119 = por %p117, %p118
      %p120 = scmp.ne.s32.totalorder %s109, %s110
      %p121 = scmp.eq.s32.totalorder %s14, 0
      %p122 = por %p120, %p121
      %p123 = scmp.ne.s32.totalorder %s109, %s110
      %p124 = scmp.eq.s32.totalorder %s15, 3
      %p125 = por %p123, %p124
      %p127 = scmp.ne.s32.totalorder %s110, %s126
      %p128 = scmp.eq.s32.totalorder %s15, 0
      %p129 = por %p127, %p128
      %p130 = scmp.le.s32.totalorder 1, %s9
      %p131 = scmp.lt.s32.totalorder %s9, 5
      %p132 = pnand %p130, %p131
      %p133 = pneg %p132
      // Predicated region
      $region9: #{_lambda_.14} parent=5 // pred_check
        _
      $region10: #{_lambda_.14} parent=5 // pred_check_branch
        %135 = sbr.rel (%p132) target = $region12
      $region11: #{_lambda_.14} parent=5 // pred_region
        %s136 = ssub.s32 %s9, 1
        // Predicated region
        $region13: #{_lambda_.14} parent=11 // pred_check
          %p137 = pneg %p96
        $region14: #{_lambda_.14} parent=11 // pred_check_branch
          %139 = sbr.rel (%p137) target = $region16
        $region15: #{_lambda_.14} parent=11 // pred_region
          _
        $region16: #{_lambda_.14} parent=11 // pred_fallthru
          _
      $region12: #{_lambda_.14} parent=5 // pred_fallthru
        _
      %p140 = scmp.lt.s32.totalorder %s9, 4
      // Predicated region
      $region17: #{_lambda_.14} parent=5 // pred_check
        %p141 = pneg %p140
      $region18: #{_lambda_.14} parent=5 // pred_check_branch
        %143 = sbr.rel (%p141) target = $region20
      $region19: #{_lambda_.14} parent=5 // pred_region
        // Predicated region
        $region21: #{_lambda_.14} parent=19 // pred_check
          %p144 = pneg %p43
        $region22: #{_lambda_.14} parent=19 // pred_check_branch
          %146 = sbr.rel (%p144) target = $region24
        $region23: #{_lambda_.14} parent=19 // pred_region
          %s147 = sand.u32 %s33, 1
          %s148 = sand.u32 %s33, 1
          %s149 = smul.addr %s148, 224
          %s150 = scalar_lea.vmem [#allocation3], %s149
          %s151 = smul.u32 8, %s16
          %s152 = smul.u32 7, %s17
          %s153 = smul.addr %s151, 14
          %s154 = sadd.s32 %s152, %s153
          %s155 = smul.addr %s154, 4
          %s156 = scalar_lea.vmem %s0, %s155
          // Predicated region
          $region25: #{_lambda_.14} parent=23 // pred_check
            _
          $region26: #{_lambda_.14} parent=23 // pred_check_branch
            %158 = sbr.rel (0) target = $region28
          $region27: #{_lambda_.14} parent=23 // pred_region
            // Predicated region
            $region29: #{_lambda_.14} parent=27 // pred_check
              _
            $region30: #{_lambda_.14} parent=27 // pred_check_branch
              %160 = sbr.rel (0) target = $region32
            $region31: #{_lambda_.14} parent=27 // pred_region
              %s161 = scalar_lea.vmem %s156, 24
              %s162 = scalar_lea.vmem %s150, 24 [#allocation3]
              loop: start=0, step=1, limit=1
              $region33: #{_lambda_.14} parent=31 // loop_pre_header
                _
              $region34: #{_lambda_.14} parent=31 // loop_header
                %s164 = sphi 0, %s168
                %p165 = scmp.ge.s32.totalorder %s164, 1
                %s169 = sphi %s156, %s156
                %s170 = sphi %s150, %s150
              $region35: #{_lambda_.14} parent=31 // loop_header_branch
                %167 = sbr.rel (%p165) target = $region39
              $region36: #{_lambda_.14} parent=31 // loop_body
                %v171 = vld [vmem:[%s169] sm:$0xff]
                %172 = vst [vmem:[%s170] sm:$0xff] %v171
                %v173 = vld [vmem:[%s169 + $0x8] sm:$0xff]
                %174 = vst [vmem:[%s170 + $0x8] sm:$0xff] %v173
                %v175 = vld [vmem:[%s169 + $0x10] sm:$0xff]
                %176 = vst [vmem:[%s170 + $0x10] sm:$0xff] %v175
                %v177 = vld [vmem:[%s169 + $0x38] sm:$0xff]
                %178 = vst [vmem:[%s170 + $0x1c] sm:$0xff] %v177
                %v179 = vld [vmem:[%s169 + $0x40] sm:$0xff]
                %180 = vst [vmem:[%s170 + $0x24] sm:$0xff] %v179
                %v181 = vld [vmem:[%s169 + $0x48] sm:$0xff]
                %182 = vst [vmem:[%s170 + $0x2c] sm:$0xff] %v181
                %v183 = vld [vmem:[%s169 + $0x70] sm:$0xff]
                %184 = vst [vmem:[%s170 + $0x38] sm:$0xff] %v183
                %v185 = vld [vmem:[%s169 + $0x78] sm:$0xff]
                %186 = vst [vmem:[%s170 + $0x40] sm:$0xff] %v185
                %v187 = vld [vmem:[%s169 + $0x80] sm:$0xff]
                %188 = vst [vmem:[%s170 + $0x48] sm:$0xff] %v187
                %v189 = vld [vmem:[%s169 + $0xa8] sm:$0xff]
                %190 = vst [vmem:[%s170 + $0x54] sm:$0xff] %v189
                %v191 = vld [vmem:[%s169 + $0xb0] sm:$0xff]
                %192 = vst [vmem:[%s170 + $0x5c] sm:$0xff] %v191
                %v193 = vld [vmem:[%s169 + $0xb8] sm:$0xff]
                %194 = vst [vmem:[%s170 + $0x64] sm:$0xff] %v193
                %v195 = vld [vmem:[%s169 + $0xe0] sm:$0xff]
                %196 = vst [vmem:[%s170 + $0x70] sm:$0xff] %v195
                %v197 = vld [vmem:[%s169 + $0xe8] sm:$0xff]
                %198 = vst [vmem:[%s170 + $0x78] sm:$0xff] %v197
                %v199 = vld [vmem:[%s169 + $0xf0] sm:$0xff]
                %200 = vst [vmem:[%s170 + $0x80] sm:$0xff] %v199
                %v201 = vld [vmem:[%s169 + $0x118] sm:$0xff]
                %202 = vst [vmem:[%s170 + $0x8c] sm:$0xff] %v201
                %v203 = vld [vmem:[%s169 + $0x120] sm:$0xff]
                %204 = vst [vmem:[%s170 + $0x94] sm:$0xff] %v203
                %v205 = vld [vmem:[%s169 + $0x128] sm:$0xff]
                %206 = vst [vmem:[%s170 + $0x9c] sm:$0xff] %v205
                %v207 = vld [vmem:[%s169 + $0x150] sm:$0xff]
                %208 = vst [vmem:[%s170 + $0xa8] sm:$0xff] %v207
                %v209 = vld [vmem:[%s169 + $0x158] sm:$0xff]
                %210 = vst [vmem:[%s170 + $0xb0] sm:$0xff] %v209
                %v211 = vld [vmem:[%s169 + $0x160] sm:$0xff]
                %212 = vst [vmem:[%s170 + $0xb8] sm:$0xff] %v211
                %v213 = vld [vmem:[%s169 + $0x188] sm:$0xff]
                %214 = vst [vmem:[%s170 + $0xc4] sm:$0xff] %v213
                %v215 = vld [vmem:[%s169 + $0x190] sm:$0xff]
                %216 = vst [vmem:[%s170 + $0xcc] sm:$0xff] %v215
                %v217 = vld [vmem:[%s169 + $0x198] sm:$0xff]
                %218 = vst [vmem:[%s170 + $0xd4] sm:$0xff] %v217
              $region37: #{_lambda_.14} parent=31 // loop_footer
                %s168 = sadd.s32 1, %s164
              $region38: #{_lambda_.14} parent=31 // loop_footer_branch
                %163 = sbr.rel target = $region34
              $region39: #{_lambda_.14} parent=31 // loop_exit
                _
              loop: start=0, step=1, limit=1
              $region40: #{_lambda_.14} parent=31 // loop_pre_header
                _
              $region41: #{_lambda_.14} parent=31 // loop_header
                %s221 = sphi 0, %s225
                %p222 = scmp.ge.s32.totalorder %s221, 1
                %s226 = sphi %s161, %s161
                %s227 = sphi %s162, %s162
              $region42: #{_lambda_.14} parent=31 // loop_header_branch
                %224 = sbr.rel (%p222) target = $region46
              $region43: #{_lambda_.14} parent=31 // loop_body
                %v228 = vld [vmem:[%s226] sm:$0xf]
                %229 = vst [vmem:[%s227] sm:$0xf] %v228
                %v230 = vld [vmem:[%s226 + $0x38] sm:$0xf]
                %231 = vst [vmem:[%s227 + $0x1c] sm:$0xf] %v230
                %v232 = vld [vmem:[%s226 + $0x70] sm:$0xf]
                %233 = vst [vmem:[%s227 + $0x38] sm:$0xf] %v232
                %v234 = vld [vmem:[%s226 + $0xa8] sm:$0xf]
                %235 = vst [vmem:[%s227 + $0x54] sm:$0xf] %v234
                %v236 = vld [vmem:[%s226 + $0xe0] sm:$0xf]
                %237 = vst [vmem:[%s227 + $0x70] sm:$0xf] %v236
                %v238 = vld [vmem:[%s226 + $0x118] sm:$0xf]
                %239 = vst [vmem:[%s227 + $0x8c] sm:$0xf] %v238
                %v240 = vld [vmem:[%s226 + $0x150] sm:$0xf]
                %241 = vst [vmem:[%s227 + $0xa8] sm:$0xf] %v240
                %v242 = vld [vmem:[%s226 + $0x188] sm:$0xf]
                %243 = vst [vmem:[%s227 + $0xc4] sm:$0xf] %v242
              $region44: #{_lambda_.14} parent=31 // loop_footer
                %s225 = sadd.s32 1, %s221
              $region45: #{_lambda_.14} parent=31 // loop_footer_branch
                %220 = sbr.rel target = $region41
              $region46: #{_lambda_.14} parent=31 // loop_exit
                _
            $region32: #{_lambda_.14} parent=27 // pred_fallthru
              _
          $region28: #{_lambda_.14} parent=23 // pred_fallthru
            _
          %244 = vnop
        $region24: #{_lambda_.14} parent=19 // pred_fallthru
          _
        // Predicated region
        $region47: #{_lambda_.14} parent=19 // pred_check
          %p245 = pneg %p69
        $region48: #{_lambda_.14} parent=19 // pred_check_branch
          %247 = sbr.rel (%p245) target = $region50
        $region49: #{_lambda_.14} parent=19 // pred_region
          %s248 = smul.u32 112, %s17
          %p249 = scmp.lt.s32.totalorder %s248, 223
          %s250 = scalar_select %p249, %s248, 223
          %s251 = smul.addr %s250, 4
          %s252 = scalar_lea.vmem %s1, %s251
          %s253 = smul.u32 112, %s17
        $region50: #{_lambda_.14} parent=19 // pred_fallthru
          _
      $region20: #{_lambda_.14} parent=5 // pred_fallthru
        _
      %p254 = scmp.le.s32.totalorder 1, %s9
      %p255 = scmp.lt.s32.totalorder %s9, 5
      %p256 = pnand %p254, %p255
      %p257 = pneg %p256
      // Predicated region
      $region51: #{_lambda_.14} parent=5 // pred_check
        _
      $region52: #{_lambda_.14} parent=5 // pred_check_branch
        %259 = sbr.rel (%p256) target = $region54
      $region53: #{_lambda_.14} parent=5 // pred_region
        %s260 = ssub.s32 %s9, 1
        %s261 = sand.u32 %s36, 1
        %s262 = sand.u32 %s36, 1
        %s263 = smul.addr %s262, 224
        %s264 = scalar_lea.vmem [#allocation3], %s263
        // Predicated region
        $region55: #{_lambda_.14} parent=53 // pred_check
          %p265 = pneg %p49
        $region56: #{_lambda_.14} parent=53 // pred_check_branch
          %267 = sbr.rel (%p265) target = $region58
        $region57: #{_lambda_.14} parent=53 // pred_region
          _
        $region58: #{_lambda_.14} parent=53 // pred_fallthru
          _
        %s268 = sand.u32 %s36, 1
        %s269 = sand.u32 %s36, 1
        %s270 = smul.addr %s269, 224
        %s271 = scalar_lea.vmem [#allocation3], %s270
        %p272 = pneg %p49
        %p273 = pneg %p46
        %s274 = smul.u32 112, %s19
        %p275 = scmp.lt.s32.totalorder %s274, 223
        %s276 = scalar_select %p275, %s274, 223
        %s277 = smul.addr %s276, 4
        %s278 = scalar_lea.vmem %s1, %s277
        %p279 = pneg %p75
        %p280 = pneg %p72
        %p281 = pneg %p96
        %p282 = pneg %p93
        %p283 = pneg %p122
        %p284 = pneg %p119
        %s285 = smul.u32 8, %s18
        %p286 = scmp.lt.s32.totalorder %s285, 15
        %s287 = scalar_select %p286, %s285, 15
        %s288 = smul.addr %s287, 4
        %s289 = scalar_lea.vmem %s3, %s288
        %s290 = smul.u32 8, %s18
        %s291 = smul.u32 7, %s19
        %s292 = smul.u32 112, %s19
        %p293 = scmp.lt.s32.totalorder %s292, 223
        %s294 = scalar_select %p293, %s292, 223
        %s295 = smul.addr %s294, 4
        %s296 = scalar_lea.vmem %s1, %s295
        %s297 = smul.u32 112, %s19
        %s298 = smul.u32 8, %s18
        %p299 = scmp.lt.s32.totalorder %s298, 15
        %s300 = scalar_select %p299, %s298, 15
        %s301 = smul.addr %s300, 4
        %s302 = scalar_lea.vmem %s3, %s301
        %s303 = smul.u32 8, %s18
        %p305 = scmp.eq.s32.totalorder %s19, 0
        // Predicated region
        $region59: #{_lambda_.14} parent=53 // pred_check
          %p306 = pneg %p305
        $region60: #{_lambda_.14} parent=53 // pred_check_branch
          %308 = sbr.rel (%p306) target = $region62
        $region61: #{_lambda_.14} parent=53 // pred_region
          %309 = vst [vmem:[#allocation2] sm:$0xff] 0.0
          %310 = vst [vmem:[#allocation2 + $0x8] sm:$0xff] 0.0
          %311 = vst [vmem:[#allocation2 + $0x10] sm:$0xff] 0.0
          %312 = vst [vmem:[#allocation2 + $0x18] sm:$0xff] 0.0
          %313 = vst [vmem:[#allocation2 + $0x20] sm:$0xff] 0.0
          %314 = vst [vmem:[#allocation2 + $0x28] sm:$0xff] 0.0
          %315 = vst [vmem:[#allocation2 + $0x30] sm:$0xff] 0.0
          %316 = vst [vmem:[#allocation2 + $0x38] sm:$0xff] 0.0
        $region62: #{_lambda_.14} parent=53 // pred_fallthru
          _
        %v317 = vld [vmem:[#allocation2] sm:$0xff]
        %v318 = vld [vmem:[#allocation2 + $0x8] sm:$0xff]
        %v319 = vld [vmem:[#allocation2 + $0x10] sm:$0xff]
        %v320 = vld [vmem:[#allocation2 + $0x18] sm:$0xff]
        %v321 = vld [vmem:[#allocation2 + $0x20] sm:$0xff]
        %v322 = vld [vmem:[#allocation2 + $0x28] sm:$0xff]
        %v323 = vld [vmem:[#allocation2 + $0x30] sm:$0xff]
        %v324 = vld [vmem:[#allocation2 + $0x38] sm:$0xff]
        %v325 = vld [vmem:[%s264] sm:$0xff]
        %v326 = vld [vmem:[%s264 + $0x8] sm:$0xff]
        %v327 = vld [vmem:[%s264 + $0x10] sm:$0xff]
        %v328 = vld [vmem:[%s264 + $0x18] sm:$0xf]
        %v329 = vld [vmem:[%s264 + $0x1c] sm:$0xff]
        %v330 = vld [vmem:[%s264 + $0x24] sm:$0xff]
        %v331 = vld [vmem:[%s264 + $0x2c] sm:$0xff]
        %v332 = vld [vmem:[%s264 + $0x34] sm:$0xf]
        %v333 = vld [vmem:[%s264 + $0x38] sm:$0xff]
        %v334 = vld [vmem:[%s264 + $0x40] sm:$0xff]
        %v335 = vld [vmem:[%s264 + $0x48] sm:$0xff]
        %v336 = vld [vmem:[%s264 + $0x50] sm:$0xf]
        %v337 = vld [vmem:[%s264 + $0x54] sm:$0xff]
        %v338 = vld [vmem:[%s264 + $0x5c] sm:$0xff]
        %v339 = vld [vmem:[%s264 + $0x64] sm:$0xff]
        %v340 = vld [vmem:[%s264 + $0x6c] sm:$0xf]
        %v341 = vld [vmem:[%s264 + $0x70] sm:$0xff]
        %v342 = vld [vmem:[%s264 + $0x78] sm:$0xff]
        %v343 = vld [vmem:[%s264 + $0x80] sm:$0xff]
        %v344 = vld [vmem:[%s264 + $0x88] sm:$0xf]
        %v345 = vld [vmem:[%s264 + $0x8c] sm:$0xff]
        %v346 = vld [vmem:[%s264 + $0x94] sm:$0xff]
        %v347 = vld [vmem:[%s264 + $0x9c] sm:$0xff]
        %v348 = vld [vmem:[%s264 + $0xa4] sm:$0xf]
        %v349 = vld [vmem:[%s264 + $0xa8] sm:$0xff]
        %v350 = vld [vmem:[%s264 + $0xb0] sm:$0xff]
        %v351 = vld [vmem:[%s264 + $0xb8] sm:$0xff]
        %v352 = vld [vmem:[%s264 + $0xc0] sm:$0xf]
        %v353 = vld [vmem:[%s264 + $0xc4] sm:$0xff]
        %v354 = vld [vmem:[%s264 + $0xcc] sm:$0xff]
        %v355 = vld [vmem:[%s264 + $0xd4] sm:$0xff]
        %v356 = vld [vmem:[%s264 + $0xdc] sm:$0xf]
        %v357 = vld [vmem:[%s296] sm:$0xf]
        %v358 = vld [vmem:[%s296 + $0x4] sm:$0xf]
        %v359 = vld [vmem:[%s296 + $0x8] sm:$0xf]
        %v360 = vld [vmem:[%s296 + $0xc] sm:$0xf]
        %v361 = vld [vmem:[%s296 + $0x10] sm:$0xf]
        %v362 = vld [vmem:[%s296 + $0x14] sm:$0xf]
        %v363 = vld [vmem:[%s296 + $0x18] sm:$0xf]
        %v364 = vld [vmem:[%s296 + $0x1c] sm:$0xf]
        %v365 = vld [vmem:[%s296 + $0x20] sm:$0xf]
        %v366 = vld [vmem:[%s296 + $0x24] sm:$0xf]
        %v367 = vld [vmem:[%s296 + $0x28] sm:$0xf]
        %v368 = vld [vmem:[%s296 + $0x2c] sm:$0xf]
        %v369 = vld [vmem:[%s296 + $0x30] sm:$0xf]
        %v370 = vld [vmem:[%s296 + $0x34] sm:$0xf]
        %v371 = vld [vmem:[%s296 + $0x38] sm:$0xf]
        %v372 = vld [vmem:[%s296 + $0x3c] sm:$0xf]
        %v373 = vld [vmem:[%s296 + $0x40] sm:$0xf]
        %v374 = vld [vmem:[%s296 + $0x44] sm:$0xf]
        %v375 = vld [vmem:[%s296 + $0x48] sm:$0xf]
        %v376 = vld [vmem:[%s296 + $0x4c] sm:$0xf]
        %v377 = vld [vmem:[%s296 + $0x50] sm:$0xf]
        %v378 = vld [vmem:[%s296 + $0x54] sm:$0xf]
        %v379 = vld [vmem:[%s296 + $0x58] sm:$0xf]
        %v380 = vld [vmem:[%s296 + $0x5c] sm:$0xf]
        %v381 = vld [vmem:[%s296 + $0x60] sm:$0xf]
        %v382 = vld [vmem:[%s296 + $0x64] sm:$0xf]
        %v383 = vld [vmem:[%s296 + $0x68] sm:$0xf]
        %v384 = vld [vmem:[%s296 + $0x6c] sm:$0xf]
        %v385 = vld [vmem:[%s296 + $0x70] sm:$0xf]
        %v386 = vld [vmem:[%s296 + $0x74] sm:$0xf]
        %v387 = vld [vmem:[%s296 + $0x78] sm:$0xf]
        %v388 = vld [vmem:[%s296 + $0x7c] sm:$0xf]
        %v389 = vld [vmem:[%s296 + $0x80] sm:$0xf]
        %v390 = vld [vmem:[%s296 + $0x84] sm:$0xf]
        %v391 = vld [vmem:[%s296 + $0x88] sm:$0xf]
        %v392 = vld [vmem:[%s296 + $0x8c] sm:$0xf]
        %v393 = vld [vmem:[%s296 + $0x90] sm:$0xf]
        %v394 = vld [vmem:[%s296 + $0x94] sm:$0xf]
        %v395 = vld [vmem:[%s296 + $0x98] sm:$0xf]
        %v396 = vld [vmem:[%s296 + $0x9c] sm:$0xf]
        %v397 = vld [vmem:[%s296 + $0xa0] sm:$0xf]
        %v398 = vld [vmem:[%s296 + $0xa4] sm:$0xf]
        %v399 = vld [vmem:[%s296 + $0xa8] sm:$0xf]
        %v400 = vld [vmem:[%s296 + $0xac] sm:$0xf]
        %v401 = vld [vmem:[%s296 + $0xb0] sm:$0xf]
        %v402 = vld [vmem:[%s296 + $0xb4] sm:$0xf]
        %v403 = vld [vmem:[%s296 + $0xb8] sm:$0xf]
        %v404 = vld [vmem:[%s296 + $0xbc] sm:$0xf]
        %v405 = vld [vmem:[%s296 + $0xc0] sm:$0xf]
        %v406 = vld [vmem:[%s296 + $0xc4] sm:$0xf]
        %v407 = vld [vmem:[%s296 + $0xc8] sm:$0xf]
        %v408 = vld [vmem:[%s296 + $0xcc] sm:$0xf]
        %v409 = vld [vmem:[%s296 + $0xd0] sm:$0xf]
        %v410 = vld [vmem:[%s296 + $0xd4] sm:$0xf]
        %v411 = vld [vmem:[%s296 + $0xd8] sm:$0xf]
        %v412 = vld [vmem:[%s296 + $0xdc] sm:$0xf]
        %v413 = vld [vmem:[%s296 + $0xe0] sm:$0xf]
        %v414 = vld [vmem:[%s296 + $0xe4] sm:$0xf]
        %v415 = vld [vmem:[%s296 + $0xe8] sm:$0xf]
        %v416 = vld [vmem:[%s296 + $0xec] sm:$0xf]
        %v417 = vld [vmem:[%s296 + $0xf0] sm:$0xf]
        %v418 = vld [vmem:[%s296 + $0xf4] sm:$0xf]
        %v419 = vld [vmem:[%s296 + $0xf8] sm:$0xf]
        %v420 = vld [vmem:[%s296 + $0xfc] sm:$0xf]
        %v421 = vld [vmem:[%s296 + $0x100] sm:$0xf]
        %v422 = vld [vmem:[%s296 + $0x104] sm:$0xf]
        %v423 = vld [vmem:[%s296 + $0x108] sm:$0xf]
        %v424 = vld [vmem:[%s296 + $0x10c] sm:$0xf]
        %v425 = vld [vmem:[%s296 + $0x110] sm:$0xf]
        %v426 = vld [vmem:[%s296 + $0x114] sm:$0xf]
        %v427 = vld [vmem:[%s296 + $0x118] sm:$0xf]
        %v428 = vld [vmem:[%s296 + $0x11c] sm:$0xf]
        %v429 = vld [vmem:[%s296 + $0x120] sm:$0xf]
        %v430 = vld [vmem:[%s296 + $0x124] sm:$0xf]
        %v431 = vld [vmem:[%s296 + $0x128] sm:$0xf]
        %v432 = vld [vmem:[%s296 + $0x12c] sm:$0xf]
        %v433 = vld [vmem:[%s296 + $0x130] sm:$0xf]
        %v434 = vld [vmem:[%s296 + $0x134] sm:$0xf]
        %v435 = vld [vmem:[%s296 + $0x138] sm:$0xf]
        %v436 = vld [vmem:[%s296 + $0x13c] sm:$0xf]
        %v437 = vld [vmem:[%s296 + $0x140] sm:$0xf]
        %v438 = vld [vmem:[%s296 + $0x144] sm:$0xf]
        %v439 = vld [vmem:[%s296 + $0x148] sm:$0xf]
        %v440 = vld [vmem:[%s296 + $0x14c] sm:$0xf]
        %v441 = vld [vmem:[%s296 + $0x150] sm:$0xf]
        %v442 = vld [vmem:[%s296 + $0x154] sm:$0xf]
        %v443 = vld [vmem:[%s296 + $0x158] sm:$0xf]
        %v444 = vld [vmem:[%s296 + $0x15c] sm:$0xf]
        %v445 = vld [vmem:[%s296 + $0x160] sm:$0xf]
        %v446 = vld [vmem:[%s296 + $0x164] sm:$0xf]
        %v447 = vld [vmem:[%s296 + $0x168] sm:$0xf]
        %v448 = vld [vmem:[%s296 + $0x16c] sm:$0xf]
        %v449 = vld [vmem:[%s296 + $0x170] sm:$0xf]
        %v450 = vld [vmem:[%s296 + $0x174] sm:$0xf]
        %v451 = vld [vmem:[%s296 + $0x178] sm:$0xf]
        %v452 = vld [vmem:[%s296 + $0x17c] sm:$0xf]
        %v453 = vld [vmem:[%s296 + $0x180] sm:$0xf]
        %v454 = vld [vmem:[%s296 + $0x184] sm:$0xf]
        %v455 = vld [vmem:[%s296 + $0x188] sm:$0xf]
        %v456 = vld [vmem:[%s296 + $0x18c] sm:$0xf]
        %v457 = vld [vmem:[%s296 + $0x190] sm:$0xf]
        %v458 = vld [vmem:[%s296 + $0x194] sm:$0xf]
        %v459 = vld [vmem:[%s296 + $0x198] sm:$0xf]
        %v460 = vld [vmem:[%s296 + $0x19c] sm:$0xf]
        %v461 = vld [vmem:[%s296 + $0x1a0] sm:$0xf]
        %v462 = vld [vmem:[%s296 + $0x1a4] sm:$0xf]
        %v463 = vld [vmem:[%s296 + $0x1a8] sm:$0xf]
        %v464 = vld [vmem:[%s296 + $0x1ac] sm:$0xf]
        %v465 = vld [vmem:[%s296 + $0x1b0] sm:$0xf]
        %v466 = vld [vmem:[%s296 + $0x1b4] sm:$0xf]
        %v467 = vld [vmem:[%s296 + $0x1b8] sm:$0xf]
        %v468 = vld [vmem:[%s296 + $0x1bc] sm:$0xf]
        %v501 = vunpack.c.l.b16 %v325
        %v502 = vunpack.c.h.b16 %v325
        %v503 = vunpack.c.l.b16 %v326
        %v504 = vunpack.c.h.b16 %v326
        %v505 = vunpack.c.l.b16 %v327
        %v506 = vunpack.c.h.b16 %v327
        %v507 = vunpack.c.l.b16 %v328
        %v508 = vunpack.c.l.b16 %v329
        %v509 = vunpack.c.h.b16 %v329
        %v510 = vunpack.c.l.b16 %v330
        %v511 = vunpack.c.h.b16 %v330
        %v512 = vunpack.c.l.b16 %v331
        %v513 = vunpack.c.h.b16 %v331
        %v514 = vunpack.c.l.b16 %v332
        %v515 = vunpack.c.l.b16 %v333
        %v516 = vunpack.c.h.b16 %v333
        %v517 = vunpack.c.l.b16 %v334
        %v518 = vunpack.c.h.b16 %v334
        %v519 = vunpack.c.l.b16 %v335
        %v520 = vunpack.c.h.b16 %v335
        %v521 = vunpack.c.l.b16 %v336
        %v522 = vunpack.c.l.b16 %v337
        %v523 = vunpack.c.h.b16 %v337
        %v524 = vunpack.c.l.b16 %v338
        %v525 = vunpack.c.h.b16 %v338
        %v526 = vunpack.c.l.b16 %v339
        %v527 = vunpack.c.h.b16 %v339
        %v528 = vunpack.c.l.b16 %v340
        %v529 = vunpack.c.l.b16 %v341
        %v530 = vunpack.c.h.b16 %v341
        %v531 = vunpack.c.l.b16 %v342
        %v532 = vunpack.c.h.b16 %v342
        %v533 = vunpack.c.l.b16 %v343
        %v534 = vunpack.c.h.b16 %v343
        %v535 = vunpack.c.l.b16 %v344
        %v536 = vunpack.c.l.b16 %v345
        %v537 = vunpack.c.h.b16 %v345
        %v538 = vunpack.c.l.b16 %v346
        %v539 = vunpack.c.h.b16 %v346
        %v540 = vunpack.c.l.b16 %v347
        %v541 = vunpack.c.h.b16 %v347
        %v542 = vunpack.c.l.b16 %v348
        %v543 = vunpack.c.l.b16 %v349
        %v544 = vunpack.c.h.b16 %v349
        %v545 = vunpack.c.l.b16 %v350
        %v546 = vunpack.c.h.b16 %v350
        %v547 = vunpack.c.l.b16 %v351
        %v548 = vunpack.c.h.b16 %v351
        %v549 = vunpack.c.l.b16 %v352
        %v550 = vunpack.c.l.b16 %v353
        %v551 = vunpack.c.h.b16 %v353
        %v552 = vunpack.c.l.b16 %v354
        %v553 = vunpack.c.h.b16 %v354
        %v554 = vunpack.c.l.b16 %v355
        %v555 = vunpack.c.h.b16 %v355
        %v556 = vunpack.c.l.b16 %v356
        %v557 = vpack.c.b16 %v508, %v501
        %v558 = vpack.c.b16 %v509, %v502
        %v559 = vpack.c.b16 %v510, %v503
        %v560 = vpack.c.b16 %v511, %v504
        %v561 = vpack.c.b16 %v512, %v505
        %v562 = vpack.c.b16 %v513, %v506
        %v563 = vpack.c.b16 %v514, %v507
        %v564 = vpack.c.b16 %v522, %v515
        %v565 = vpack.c.b16 %v523, %v516
        %v566 = vpack.c.b16 %v524, %v517
        %v567 = vpack.c.b16 %v525, %v518
        %v568 = vpack.c.b16 %v526, %v519
        %v569 = vpack.c.b16 %v527, %v520
        %v570 = vpack.c.b16 %v528, %v521
        %v571 = vpack.c.b16 %v536, %v529
        %v572 = vpack.c.b16 %v537, %v530
        %v573 = vpack.c.b16 %v538, %v531
        %v574 = vpack.c.b16 %v539, %v532
        %v575 = vpack.c.b16 %v540, %v533
        %v576 = vpack.c.b16 %v541, %v534
        %v577 = vpack.c.b16 %v542, %v535
        %v578 = vpack.c.b16 %v550, %v543
        %v579 = vpack.c.b16 %v551, %v544
        %v580 = vpack.c.b16 %v552, %v545
        %v581 = vpack.c.b16 %v553, %v546
        %v582 = vpack.c.b16 %v554, %v547
        %v583 = vpack.c.b16 %v555, %v548
        %v584 = vpack.c.b16 %v556, %v549
        %v725 = vunpack.c.l.b16 %v357
        %v726 = vunpack.c.l.b16 %v358
        %v727 = vunpack.c.l.b16 %v359
        %v728 = vunpack.c.l.b16 %v360
        %v729 = vunpack.c.l.b16 %v361
        %v730 = vunpack.c.l.b16 %v362
        %v731 = vunpack.c.l.b16 %v363
        %v732 = vunpack.c.l.b16 %v364
        %v733 = vunpack.c.l.b16 %v365
        %v734 = vunpack.c.l.b16 %v366
        %v735 = vunpack.c.l.b16 %v367
        %v736 = vunpack.c.l.b16 %v368
        %v737 = vunpack.c.l.b16 %v369
        %v738 = vunpack.c.l.b16 %v370
        %v739 = vunpack.c.l.b16 %v371
        %v740 = vunpack.c.l.b16 %v372
        %v741 = vunpack.c.l.b16 %v373
        %v742 = vunpack.c.l.b16 %v374
        %v743 = vunpack.c.l.b16 %v375
        %v744 = vunpack.c.l.b16 %v376
        %v745 = vunpack.c.l.b16 %v377
        %v746 = vunpack.c.l.b16 %v378
        %v747 = vunpack.c.l.b16 %v379
        %v748 = vunpack.c.l.b16 %v380
        %v749 = vunpack.c.l.b16 %v381
        %v750 = vunpack.c.l.b16 %v382
        %v751 = vunpack.c.l.b16 %v383
        %v752 = vunpack.c.l.b16 %v384
        %v753 = vunpack.c.l.b16 %v385
        %v754 = vunpack.c.l.b16 %v386
        %v755 = vunpack.c.l.b16 %v387
        %v756 = vunpack.c.l.b16 %v388
        %v757 = vunpack.c.l.b16 %v389
        %v758 = vunpack.c.l.b16 %v390
        %v759 = vunpack.c.l.b16 %v391
        %v760 = vunpack.c.l.b16 %v392
        %v761 = vunpack.c.l.b16 %v393
        %v762 = vunpack.c.l.b16 %v394
        %v763 = vunpack.c.l.b16 %v395
        %v764 = vunpack.c.l.b16 %v396
        %v765 = vunpack.c.l.b16 %v397
        %v766 = vunpack.c.l.b16 %v398
        %v767 = vunpack.c.l.b16 %v399
        %v768 = vunpack.c.l.b16 %v400
        %v769 = vunpack.c.l.b16 %v401
        %v770 = vunpack.c.l.b16 %v402
        %v771 = vunpack.c.l.b16 %v403
        %v772 = vunpack.c.l.b16 %v404
        %v773 = vunpack.c.l.b16 %v405
        %v774 = vunpack.c.l.b16 %v406
        %v775 = vunpack.c.l.b16 %v407
        %v776 = vunpack.c.l.b16 %v408
        %v777 = vunpack.c.l.b16 %v409
        %v778 = vunpack.c.l.b16 %v410
        %v779 = vunpack.c.l.b16 %v411
        %v780 = vunpack.c.l.b16 %v412
        %v781 = vunpack.c.l.b16 %v413
        %v782 = vunpack.c.l.b16 %v414
        %v783 = vunpack.c.l.b16 %v415
        %v784 = vunpack.c.l.b16 %v416
        %v785 = vunpack.c.l.b16 %v417
        %v786 = vunpack.c.l.b16 %v418
        %v787 = vunpack.c.l.b16 %v419
        %v788 = vunpack.c.l.b16 %v420
        %v789 = vunpack.c.l.b16 %v421
        %v790 = vunpack.c.l.b16 %v422
        %v791 = vunpack.c.l.b16 %v423
        %v792 = vunpack.c.l.b16 %v424
        %v793 = vunpack.c.l.b16 %v425
        %v794 = vunpack.c.l.b16 %v426
        %v795 = vunpack.c.l.b16 %v427
        %v796 = vunpack.c.l.b16 %v428
        %v797 = vunpack.c.l.b16 %v429
        %v798 = vunpack.c.l.b16 %v430
        %v799 = vunpack.c.l.b16 %v431
        %v800 = vunpack.c.l.b16 %v432
        %v801 = vunpack.c.l.b16 %v433
        %v802 = vunpack.c.l.b16 %v434
        %v803 = vunpack.c.l.b16 %v435
        %v804 = vunpack.c.l.b16 %v436
        %v805 = vunpack.c.l.b16 %v437
        %v806 = vunpack.c.l.b16 %v438
        %v807 = vunpack.c.l.b16 %v439
        %v808 = vunpack.c.l.b16 %v440
        %v809 = vunpack.c.l.b16 %v441
        %v810 = vunpack.c.l.b16 %v442
        %v811 = vunpack.c.l.b16 %v443
        %v812 = vunpack.c.l.b16 %v444
        %v813 = vunpack.c.l.b16 %v445
        %v814 = vunpack.c.l.b16 %v446
        %v815 = vunpack.c.l.b16 %v447
        %v816 = vunpack.c.l.b16 %v448
        %v817 = vunpack.c.l.b16 %v449
        %v818 = vunpack.c.l.b16 %v450
        %v819 = vunpack.c.l.b16 %v451
        %v820 = vunpack.c.l.b16 %v452
        %v821 = vunpack.c.l.b16 %v453
        %v822 = vunpack.c.l.b16 %v454
        %v823 = vunpack.c.l.b16 %v455
        %v824 = vunpack.c.l.b16 %v456
        %v825 = vunpack.c.l.b16 %v457
        %v826 = vunpack.c.l.b16 %v458
        %v827 = vunpack.c.l.b16 %v459
        %v828 = vunpack.c.l.b16 %v460
        %v829 = vunpack.c.l.b16 %v461
        %v830 = vunpack.c.l.b16 %v462
        %v831 = vunpack.c.l.b16 %v463
        %v832 = vunpack.c.l.b16 %v464
        %v833 = vunpack.c.l.b16 %v465
        %v834 = vunpack.c.l.b16 %v466
        %v835 = vunpack.c.l.b16 %v467
        %v836 = vunpack.c.l.b16 %v468
        %v837 = vpack.c.b16 %v726, %v725
        %v838 = vpack.c.b16 %v728, %v727
        %v839 = vpack.c.b16 %v730, %v729
        %v840 = vpack.c.b16 %v732, %v731
        %v841 = vpack.c.b16 %v734, %v733
        %v842 = vpack.c.b16 %v736, %v735
        %v843 = vpack.c.b16 %v738, %v737
        %v844 = vpack.c.b16 %v740, %v739
        %v845 = vpack.c.b16 %v742, %v741
        %v846 = vpack.c.b16 %v744, %v743
        %v847 = vpack.c.b16 %v746, %v745
        %v848 = vpack.c.b16 %v748, %v747
        %v849 = vpack.c.b16 %v750, %v749
        %v850 = vpack.c.b16 %v752, %v751
        %v851 = vpack.c.b16 %v754, %v753
        %v852 = vpack.c.b16 %v756, %v755
        %v853 = vpack.c.b16 %v758, %v757
        %v854 = vpack.c.b16 %v760, %v759
        %v855 = vpack.c.b16 %v762, %v761
        %v856 = vpack.c.b16 %v764, %v763
        %v857 = vpack.c.b16 %v766, %v765
        %v858 = vpack.c.b16 %v768, %v767
        %v859 = vpack.c.b16 %v770, %v769
        %v860 = vpack.c.b16 %v772, %v771
        %v861 = vpack.c.b16 %v774, %v773
        %v862 = vpack.c.b16 %v776, %v775
        %v863 = vpack.c.b16 %v778, %v777
        %v864 = vpack.c.b16 %v780, %v779
        %v865 = vpack.c.b16 %v782, %v781
        %v866 = vpack.c.b16 %v784, %v783
        %v867 = vpack.c.b16 %v786, %v785
        %v868 = vpack.c.b16 %v788, %v787
        %v869 = vpack.c.b16 %v790, %v789
        %v870 = vpack.c.b16 %v792, %v791
        %v871 = vpack.c.b16 %v794, %v793
        %v872 = vpack.c.b16 %v796, %v795
        %v873 = vpack.c.b16 %v798, %v797
        %v874 = vpack.c.b16 %v800, %v799
        %v875 = vpack.c.b16 %v802, %v801
        %v876 = vpack.c.b16 %v804, %v803
        %v877 = vpack.c.b16 %v806, %v805
        %v878 = vpack.c.b16 %v808, %v807
        %v879 = vpack.c.b16 %v810, %v809
        %v880 = vpack.c.b16 %v812, %v811
        %v881 = vpack.c.b16 %v814, %v813
        %v882 = vpack.c.b16 %v816, %v815
        %v883 = vpack.c.b16 %v818, %v817
        %v884 = vpack.c.b16 %v820, %v819
        %v885 = vpack.c.b16 %v822, %v821
        %v886 = vpack.c.b16 %v824, %v823
        %v887 = vpack.c.b16 %v826, %v825
        %v888 = vpack.c.b16 %v828, %v827
        %v889 = vpack.c.b16 %v830, %v829
        %v890 = vpack.c.b16 %v832, %v831
        %v891 = vpack.c.b16 %v834, %v833
        %v892 = vpack.c.b16 %v836, %v835
        %949 = vmatprep.subr.bf16.mxu0 0
        %950 = vmatpush1.bf16.msra.mxu0 %v837
        %951 = vmatprep.subr.bf16.mxu0 0
        %952 = vmatpush1.bf16.msra.mxu0 %v838
        %953 = vmatprep.subr.bf16.mxu0 0
        %954 = vmatpush1.bf16.msra.mxu0 %v839
        %955 = vmatprep.subr.bf16.mxu0 0
        %956 = vmatpush1.bf16.msra.mxu0 %v840
        %957 = vmatprep.subr.bf16.mxu0 0
        %958 = vmatpush1.bf16.msra.mxu0 %v841
        %959 = vmatprep.subr.bf16.mxu0 0
        %960 = vmatpush1.bf16.msra.mxu0 %v842
        %961 = vmatprep.subr.bf16.mxu0 0
        %962 = vmatpush1.bf16.msra.mxu0 %v843
        %963 = vmatprep.subr.bf16.mxu0 0
        %964 = vmatpush1.bf16.msra.mxu0 %v844
        %965 = vmatprep.subr.bf16.mxu0 0
        %966 = vmatpush1.bf16.msra.mxu0 %v845
        %967 = vmatprep.subr.bf16.mxu0 0
        %968 = vmatpush1.bf16.msra.mxu0 %v846
        %969 = vmatprep.subr.bf16.mxu0 0
        %970 = vmatpush1.bf16.msra.mxu0 %v847
        %971 = vmatprep.subr.bf16.mxu0 0
        %972 = vmatpush1.bf16.msra.mxu0 %v848
        %973 = vmatprep.subr.bf16.mxu0 0
        %974 = vmatpush1.bf16.msra.mxu0 %v849
        %975 = vmatprep.subr.bf16.mxu0 0
        %976 = vmatpush1.bf16.msra.mxu0 %v850
        %977 = vmatprep.subr.bf16.mxu0 0
        %978 = vmatpush1.bf16.msra.mxu0 %v851
        %979 = vmatprep.subr.bf16.mxu0 0
        %980 = vmatpush1.bf16.msra.mxu0 %v852
        %981 = vmatprep.mubr.bf16.mxu0 %v558
        %982 = vmatmul.mubr.bf16.gmra.mrb[0].mxu0 %v557
        %v983 = vpop.f32.mrb[0].mxu0
        %v984 = vadd.f32 0.0, %v983
        %v985 = vpop.f32.mrb[0].mxu0
        %v986 = vpop.f32.mrb[0].mxu0
        %v987 = vadd.f32 0.0, %v986
        %v988 = vpop.f32.mrb[0].mxu0
        %989 = vmatprep.mubr.bf16.mxu0 %v565
        %990 = vmatmul.mubr.bf16.gmra.mrb[0].mxu0 %v564
        %v991 = vpop.f32.mrb[0].mxu0
        %v992 = vadd.f32 0.0, %v991
        %v993 = vpop.f32.mrb[0].mxu0
        %v994 = vpop.f32.mrb[0].mxu0
        %v995 = vadd.f32 0.0, %v994
        %v996 = vpop.f32.mrb[0].mxu0
        %997 = vmatprep.mubr.bf16.mxu0 %v572
        %998 = vmatmul.mubr.bf16.gmra.mrb[0].mxu0 %v571
        %v999 = vpop.f32.mrb[0].mxu0
        %v1000 = vadd.f32 0.0, %v999
        %v1001 = vpop.f32.mrb[0].mxu0
        %v1002 = vpop.f32.mrb[0].mxu0
        %v1003 = vadd.f32 0.0, %v1002
        %v1004 = vpop.f32.mrb[0].mxu0
        %1005 = vmatprep.mubr.bf16.mxu0 %v579
        %1006 = vmatmul.mubr.bf16.gmra.mrb[0].mxu0 %v578
        %v1007 = vpop.f32.mrb[0].mxu0
        %v1008 = vadd.f32 0.0, %v1007
        %v1009 = vpop.f32.mrb[0].mxu0
        %v1010 = vpop.f32.mrb[0].mxu0
        %v1011 = vadd.f32 0.0, %v1010
        %v1012 = vpop.f32.mrb[0].mxu0
        %1013 = vdwg.mxu0
        %1014 = vmatprep.subr.bf16.mxu0 0
        %1015 = vmatpush1.bf16.msra.mxu0 %v853
        %1016 = vmatprep.subr.bf16.mxu0 0
        %1017 = vmatpush1.bf16.msra.mxu0 %v854
        %1018 = vmatprep.subr.bf16.mxu0 0
        %1019 = vmatpush1.bf16.msra.mxu0 %v855
        %1020 = vmatprep.subr.bf16.mxu0 0
        %1021 = vmatpush1.bf16.msra.mxu0 %v856
        %1022 = vmatprep.subr.bf16.mxu0 0
        %1023 = vmatpush1.bf16.msra.mxu0 %v857
        %1024 = vmatprep.subr.bf16.mxu0 0
        %1025 = vmatpush1.bf16.msra.mxu0 %v858
        %1026 = vmatprep.subr.bf16.mxu0 0
        %1027 = vmatpush1.bf16.msra.mxu0 %v859
        %1028 = vmatprep.subr.bf16.mxu0 0
        %1029 = vmatpush1.bf16.msra.mxu0 %v860
        %1030 = vmatprep.subr.bf16.mxu0 0
        %1031 = vmatpush1.bf16.msra.mxu0 %v861
        %1032 = vmatprep.subr.bf16.mxu0 0
        %1033 = vmatpush1.bf16.msra.mxu0 %v862
        %1034 = vmatprep.subr.bf16.mxu0 0
        %1035 = vmatpush1.bf16.msra.mxu0 %v863
        %1036 = vmatprep.subr.bf16.mxu0 0
        %1037 = vmatpush1.bf16.msra.mxu0 %v864
        %1038 = vmatprep.subr.bf16.mxu0 0
        %1039 = vmatpush1.bf16.msra.mxu0 %v865
        %1040 = vmatprep.subr.bf16.mxu0 0
        %1041 = vmatpush1.bf16.msra.mxu0 %v866
        %1042 = vmatprep.subr.bf16.mxu0 0
        %1043 = vmatpush1.bf16.msra.mxu0 %v867
        %1044 = vmatprep.subr.bf16.mxu0 0
        %1045 = vmatpush1.bf16.msra.mxu0 %v868
        %1046 = vmatprep.mubr.bf16.mxu0 %v560
        %1047 = vmatmul.mubr.bf16.gmra.mrb[0].mxu0 %v559
        %v1048 = vpop.f32.mrb[0].mxu0
        %v1049 = vadd.f32 %v984, %v1048
        %v1050 = vpop.f32.mrb[0].mxu0
        %v1051 = vpop.f32.mrb[0].mxu0
        %v1052 = vadd.f32 %v987, %v1051
        %v1053 = vpop.f32.mrb[0].mxu0
        %1054 = vmatprep.mubr.bf16.mxu0 %v567
        %1055 = vmatmul.mubr.bf16.gmra.mrb[0].mxu0 %v566
        %v1056 = vpop.f32.mrb[0].mxu0
        %v1057 = vadd.f32 %v992, %v1056
        %v1058 = vpop.f32.mrb[0].mxu0
        %v1059 = vpop.f32.mrb[0].mxu0
        %v1060 = vadd.f32 %v995, %v1059
        %v1061 = vpop.f32.mrb[0].mxu0
        %1062 = vmatprep.mubr.bf16.mxu0 %v574
        %1063 = vmatmul.mubr.bf16.gmra.mrb[0].mxu0 %v573
        %v1064 = vpop.f32.mrb[0].mxu0
        %v1065 = vadd.f32 %v1000, %v1064
        %v1066 = vpop.f32.mrb[0].mxu0
        %v1067 = vpop.f32.mrb[0].mxu0
        %v1068 = vadd.f32 %v1003, %v1067
        %v1069 = vpop.f32.mrb[0].mxu0
        %1070 = vmatprep.mubr.bf16.mxu0 %v581
        %1071 = vmatmul.mubr.bf16.gmra.mrb[0].mxu0 %v580
        %v1072 = vpop.f32.mrb[0].mxu0
        %v1073 = vadd.f32 %v1008, %v1072
        %v1074 = vpop.f32.mrb[0].mxu0
        %v1075 = vpop.f32.mrb[0].mxu0
        %v1076 = vadd.f32 %v1011, %v1075
        %v1077 = vpop.f32.mrb[0].mxu0
        %1078 = vdwg.mxu0
        %1079 = vmatprep.subr.bf16.mxu0 0
        %1080 = vmatpush1.bf16.msra.mxu0 %v869
        %1081 = vmatprep.subr.bf16.mxu0 0
        %1082 = vmatpush1.bf16.msra.mxu0 %v870
        %1083 = vmatprep.subr.bf16.mxu0 0
        %1084 = vmatpush1.bf16.msra.mxu0 %v871
        %1085 = vmatprep.subr.bf16.mxu0 0
        %1086 = vmatpush1.bf16.msra.mxu0 %v872
        %1087 = vmatprep.subr.bf16.mxu0 0
        %1088 = vmatpush1.bf16.msra.mxu0 %v873
        %1089 = vmatprep.subr.bf16.mxu0 0
        %1090 = vmatpush1.bf16.msra.mxu0 %v874
        %1091 = vmatprep.subr.bf16.mxu0 0
        %1092 = vmatpush1.bf16.msra.mxu0 %v875
        %1093 = vmatprep.subr.bf16.mxu0 0
        %1094 = vmatpush1.bf16.msra.mxu0 %v876
        %1095 = vmatprep.subr.bf16.mxu0 0
        %1096 = vmatpush1.bf16.msra.mxu0 %v877
        %1097 = vmatprep.subr.bf16.mxu0 0
        %1098 = vmatpush1.bf16.msra.mxu0 %v878
        %1099 = vmatprep.subr.bf16.mxu0 0
        %1100 = vmatpush1.bf16.msra.mxu0 %v879
        %1101 = vmatprep.subr.bf16.mxu0 0
        %1102 = vmatpush1.bf16.msra.mxu0 %v880
        %1103 = vmatprep.subr.bf16.mxu0 0
        %1104 = vmatpush1.bf16.msra.mxu0 %v881
        %1105 = vmatprep.subr.bf16.mxu0 0
        %1106 = vmatpush1.bf16.msra.mxu0 %v882
        %1107 = vmatprep.subr.bf16.mxu0 0
        %1108 = vmatpush1.bf16.msra.mxu0 %v883
        %1109 = vmatprep.subr.bf16.mxu0 0
        %1110 = vmatpush1.bf16.msra.mxu0 %v884
        %1111 = vmatprep.mubr.bf16.mxu0 %v562
        %1112 = vmatmul.mubr.bf16.gmra.mrb[0].mxu0 %v561
        %v1113 = vpop.f32.mrb[0].mxu0
        %v1114 = vadd.f32 %v1049, %v1113
        %v1115 = vpop.f32.mrb[0].mxu0
        %v1116 = vpop.f32.mrb[0].mxu0
        %v1117 = vadd.f32 %v1052, %v1116
        %v1118 = vpop.f32.mrb[0].mxu0
        %1119 = vmatprep.mubr.bf16.mxu0 %v569
        %1120 = vmatmul.mubr.bf16.gmra.mrb[0].mxu0 %v568
        %v1121 = vpop.f32.mrb[0].mxu0
        %v1122 = vadd.f32 %v1057, %v1121
        %v1123 = vpop.f32.mrb[0].mxu0
        %v1124 = vpop.f32.mrb[0].mxu0
        %v1125 = vadd.f32 %v1060, %v1124
        %v1126 = vpop.f32.mrb[0].mxu0
        %1127 = vmatprep.mubr.bf16.mxu0 %v576
        %1128 = vmatmul.mubr.bf16.gmra.mrb[0].mxu0 %v575
        %v1129 = vpop.f32.mrb[0].mxu0
        %v1130 = vadd.f32 %v1065, %v1129
        %v1131 = vpop.f32.mrb[0].mxu0
        %v1132 = vpop.f32.mrb[0].mxu0
        %v1133 = vadd.f32 %v1068, %v1132
        %v1134 = vpop.f32.mrb[0].mxu0
        %1135 = vmatprep.mubr.bf16.mxu0 %v583
        %1136 = vmatmul.mubr.bf16.gmra.mrb[0].mxu0 %v582
        %v1137 = vpop.f32.mrb[0].mxu0
        %v1138 = vadd.f32 %v1073, %v1137
        %v1139 = vpop.f32.mrb[0].mxu0
        %v1140 = vpop.f32.mrb[0].mxu0
        %v1141 = vadd.f32 %v1076, %v1140
        %v1142 = vpop.f32.mrb[0].mxu0
        %1143 = vdwg.mxu0
        %1144 = vmatprep.subr.bf16.mxu0 0
        %1145 = vmatpush1.bf16.msra.mxu0 %v885
        %1146 = vmatprep.subr.bf16.mxu0 0
        %1147 = vmatpush1.bf16.msra.mxu0 %v886
        %1148 = vmatprep.subr.bf16.mxu0 0
        %1149 = vmatpush1.bf16.msra.mxu0 %v887
        %1150 = vmatprep.subr.bf16.mxu0 0
        %1151 = vmatpush1.bf16.msra.mxu0 %v888
        %1152 = vmatprep.subr.bf16.mxu0 0
        %1153 = vmatpush1.bf16.msra.mxu0 %v889
        %1154 = vmatprep.subr.bf16.mxu0 0
        %1155 = vmatpush1.bf16.msra.mxu0 %v890
        %1156 = vmatprep.subr.bf16.mxu0 0
        %1157 = vmatpush1.bf16.msra.mxu0 %v891
        %1158 = vmatprep.subr.bf16.mxu0 0
        %1159 = vmatpush1.bf16.msra.mxu0 %v892
        %1160 = vmatprep.subr.bf16.mxu0 0
        %1161 = vmatpush1.bf16.msra.mxu0 0
        %1162 = vmatprep.subr.bf16.mxu0 0
        %1163 = vmatpush1.bf16.msra.mxu0 0
        %1164 = vmatprep.subr.bf16.mxu0 0
        %1165 = vmatpush1.bf16.msra.mxu0 0
        %1166 = vmatprep.subr.bf16.mxu0 0
        %1167 = vmatpush1.bf16.msra.mxu0 0
        %1168 = vmatprep.subr.bf16.mxu0 0
        %1169 = vmatpush1.bf16.msra.mxu0 0
        %1170 = vmatprep.subr.bf16.mxu0 0
        %1171 = vmatpush1.bf16.msra.mxu0 0
        %1172 = vmatprep.subr.bf16.mxu0 0
        %1173 = vmatpush1.bf16.msra.mxu0 0
        %1174 = vmatprep.subr.bf16.mxu0 0
        %1175 = vmatpush1.bf16.msra.mxu0 0
        %1176 = vmatprep.mubr.bf16.mxu0 0
        %1177 = vmatmul.mubr.bf16.gmra.mrb[0].mxu0 %v563
        %v1178 = vpop.f32.mrb[0].mxu0
        %v1179 = vadd.f32 %v1114, %v1178
        %v1180 = vpop.f32.mrb[0].mxu0
        %v1181 = vpop.f32.mrb[0].mxu0
        %v1182 = vadd.f32 %v1117, %v1181
        %v1183 = vpop.f32.mrb[0].mxu0
        %1184 = vmatprep.mubr.bf16.mxu0 0
        %1185 = vmatmul.mubr.bf16.gmra.mrb[0].mxu0 %v570
        %v1186 = vpop.f32.mrb[0].mxu0
        %v1187 = vadd.f32 %v1122, %v1186
        %v1188 = vpop.f32.mrb[0].mxu0
        %v1189 = vpop.f32.mrb[0].mxu0
        %v1190 = vadd.f32 %v1125, %v1189
        %v1191 = vpop.f32.mrb[0].mxu0
        %1192 = vmatprep.mubr.bf16.mxu0 0
        %1193 = vmatmul.mubr.bf16.gmra.mrb[0].mxu0 %v577
        %v1194 = vpop.f32.mrb[0].mxu0
        %v1195 = vadd.f32 %v1130, %v1194
        %v1196 = vpop.f32.mrb[0].mxu0
        %v1197 = vpop.f32.mrb[0].mxu0
        %v1198 = vadd.f32 %v1133, %v1197
        %v1199 = vpop.f32.mrb[0].mxu0
        %1200 = vmatprep.mubr.bf16.mxu0 0
        %1201 = vmatmul.mubr.bf16.gmra.mrb[0].mxu0 %v584
        %v1202 = vpop.f32.mrb[0].mxu0
        %v1203 = vadd.f32 %v1138, %v1202
        %v1204 = vpop.f32.mrb[0].mxu0
        %v1205 = vpop.f32.mrb[0].mxu0
        %v1206 = vadd.f32 %v1141, %v1205
        %v1207 = vpop.f32.mrb[0].mxu0
        %1208 = vdwg.mxu0
        %v1209 = vadd.f32 %v317, %v1179
        %v1210 = vadd.f32 %v318, %v1182
        %v1211 = vadd.f32 %v319, %v1187
        %v1212 = vadd.f32 %v320, %v1190
        %v1213 = vadd.f32 %v321, %v1195
        %v1214 = vadd.f32 %v322, %v1198
        %v1215 = vadd.f32 %v323, %v1203
        %v1216 = vadd.f32 %v324, %v1206
        %1217 = vst [vmem:[#allocation2] sm:$0xff] %v1209
        %1218 = vst [vmem:[#allocation2 + $0x8] sm:$0xff] %v1210
        %1219 = vst [vmem:[#allocation2 + $0x10] sm:$0xff] %v1211
        %1220 = vst [vmem:[#allocation2 + $0x18] sm:$0xff] %v1212
        %1221 = vst [vmem:[#allocation2 + $0x20] sm:$0xff] %v1213
        %1222 = vst [vmem:[#allocation2 + $0x28] sm:$0xff] %v1214
        %1223 = vst [vmem:[#allocation2 + $0x30] sm:$0xff] %v1215
        %1224 = vst [vmem:[#allocation2 + $0x38] sm:$0xff] %v1216
        %p1225 = scmp.eq.s32.totalorder %s19, 1
        // Predicated region
        $region63: #{_lambda_.14} parent=53 // pred_check
          %p1226 = pneg %p1225
        $region64: #{_lambda_.14} parent=53 // pred_check_branch
          %1228 = sbr.rel (%p1226) target = $region66
        $region65: #{_lambda_.14} parent=53 // pred_region
          %v1229 = vld [vmem:[#allocation2] sm:$0xff]
          %v1230 = vld [vmem:[#allocation2 + $0x8] sm:$0xff]
          %v1231 = vld [vmem:[#allocation2 + $0x10] sm:$0xff]
          %v1232 = vld [vmem:[#allocation2 + $0x18] sm:$0xff]
          %v1233 = vld [vmem:[#allocation2 + $0x20] sm:$0xff]
          %v1234 = vld [vmem:[#allocation2 + $0x28] sm:$0xff]
          %v1235 = vld [vmem:[#allocation2 + $0x30] sm:$0xff]
          %v1236 = vld [vmem:[#allocation2 + $0x38] sm:$0xff]
          %v1237 = vld [vmem:[%s2] sm:$0x1]
          %v1239 = vlaneseq
          %v1240 = vshrl.u32 %v1239, 7
          %v1241 = vsub.s32 0, %v1240
          %v1242 = vrot.slane %v1237, %v1241
          %v1244 = vadd.f32 %v1229, %v1242
          %v1245 = vadd.f32 %v1230, %v1242
          %v1246 = vadd.f32 %v1231, %v1242
          %v1247 = vadd.f32 %v1232, %v1242
          %v1248 = vadd.f32 %v1233, %v1242
          %v1249 = vadd.f32 %v1234, %v1242
          %v1250 = vadd.f32 %v1235, %v1242
          %v1251 = vadd.f32 %v1236, %v1242
          %v1252 = vmax.f32 %v1244, 0.0
          %v1253 = vmax.f32 %v1245, 0.0
          %v1254 = vmax.f32 %v1246, 0.0
          %v1255 = vmax.f32 %v1247, 0.0
          %v1256 = vmax.f32 %v1248, 0.0
          %v1257 = vmax.f32 %v1249, 0.0
          %v1258 = vmax.f32 %v1250, 0.0
          %v1259 = vmax.f32 %v1251, 0.0
          %v1260 = vpack.c.bf16 %v1253, %v1252
          %v1261 = vpack.c.bf16 %v1255, %v1254
          %v1262 = vpack.c.bf16 %v1257, %v1256
          %v1263 = vpack.c.bf16 %v1259, %v1258
          %v1268 = vunpack.c.l.b16 %v1260
          %v1269 = vunpack.c.h.b16 %v1260
          %v1270 = vunpack.c.l.b16 %v1261
          %v1271 = vunpack.c.h.b16 %v1261
          %v1272 = vunpack.c.l.b16 %v1262
          %v1273 = vunpack.c.h.b16 %v1262
          %v1274 = vunpack.c.l.b16 %v1263
          %v1275 = vunpack.c.h.b16 %v1263
          %v1276 = vpack.c.b16 %v1268, %v1268
          %v1277 = vpack.c.b16 %v1269, %v1269
          %v1278 = vpack.c.b16 %v1270, %v1270
          %v1279 = vpack.c.b16 %v1271, %v1271
          %v1280 = vpack.c.b16 %v1272, %v1272
          %v1281 = vpack.c.b16 %v1273, %v1273
          %v1282 = vpack.c.b16 %v1274, %v1274
          %v1283 = vpack.c.b16 %v1275, %v1275
          %1292 = vst [vmem:[%s302] sm:$0xf] %v1276
          %1293 = vst [vmem:[%s302 + $0x4] sm:$0xf] %v1277
          %1294 = vst [vmem:[%s302 + $0x8] sm:$0xf] %v1278
          %1295 = vst [vmem:[%s302 + $0xc] sm:$0xf] %v1279
          %1296 = vst [vmem:[%s302 + $0x10] sm:$0xf] %v1280
          %1297 = vst [vmem:[%s302 + $0x14] sm:$0xf] %v1281
          %1298 = vst [vmem:[%s302 + $0x18] sm:$0xf] %v1282
          %1299 = vst [vmem:[%s302 + $0x1c] sm:$0xf] %v1283
        $region66: #{_lambda_.14} parent=53 // pred_fallthru
          _
        %s1300 = smul.u32 8, %s18
        %p1301 = scmp.lt.s32.totalorder %s1300, 15
        %s1302 = scalar_select %p1301, %s1300, 15
        %s1303 = smul.addr %s1302, 4
        %s1304 = scalar_lea.vmem %s3, %s1303
        // Predicated region
        $region67: #{_lambda_.14} parent=53 // pred_check
          %p1305 = pneg %p119
        $region68: #{_lambda_.14} parent=53 // pred_check_branch
          %1307 = sbr.rel (%p1305) target = $region70
        $region69: #{_lambda_.14} parent=53 // pred_region
          %s1308 = smul.u32 8, %s18
        $region70: #{_lambda_.14} parent=53 // pred_fallthru
          _
      $region54: #{_lambda_.14} parent=5 // pred_fallthru
        _
      %p1309 = scmp.le.s32.totalorder 2, %s9
      // Predicated region
      $region71: #{_lambda_.14} parent=5 // pred_check
        %p1310 = pneg %p1309
      $region72: #{_lambda_.14} parent=5 // pred_check_branch
        %1312 = sbr.rel (%p1310) target = $region74
      $region73: #{_lambda_.14} parent=5 // pred_region
        %s1313 = ssub.s32 %s9, 2
        // Predicated region
        $region75: #{_lambda_.14} parent=73 // pred_check
          %p1314 = pneg %p125
        $region76: #{_lambda_.14} parent=73 // pred_check_branch
          %1316 = sbr.rel (%p1314) target = $region78
        $region77: #{_lambda_.14} parent=73 // pred_region
          %s1317 = smul.u32 8, %s20
          %p1318 = scmp.lt.s32.totalorder %s1317, 15
          %s1319 = scalar_select %p1318, %s1317, 15
          %s1320 = smul.addr %s1319, 4
          %s1321 = scalar_lea.vmem %s3, %s1320
        $region78: #{_lambda_.14} parent=73 // pred_fallthru
          _
      $region74: #{_lambda_.14} parent=5 // pred_fallthru
        _
    $region6: #{_lambda_.14} parent=1 // loop_footer
      %s13 = sadd.s32 1, %s9
    $region7: #{_lambda_.14} parent=1 // loop_footer_branch
      %8 = sbr.rel target = $region3
    $region8: #{_lambda_.14} parent=1 // loop_exit
      _

// kernel: _lambda_.12
$region0: #{_lambda_.12}
  #allocation0 [shape = 'u32[]', space=smem, size = 0x4, offset = 0x4, fixed_abs, tag = 'smem constant byte address 0x4 - core index']
  #allocation1 [shape = 'u32[144,128]{1,0:T(1,128)}', space=vmem, size = 0x12000, scoped, tag = 'internal scratch']
  #allocation2 [shape = 'f32[64,128]{1,0:T(8,128)}', space=vmem, size = 0x8000, scoped, tag = 'scratch operand']
  %s0 = inlined_call_operand.vmem [shape: bf16[128,1280], index: 0, kind: input, shape index: {}]
  %s1 = inlined_call_operand.vmem [shape: bf16[1280,128], index: 1, kind: input, shape index: {}]
  %s2 = inlined_call_operand.vmem [shape: f32[1,128], index: 2, kind: input, shape index: {}]
  %s3 = inlined_call_operand.vmem [shape: bf16[128,128], index: 3, kind: output, shape index: {}]
  %s4 = sld [smem:[#allocation0]]
  $region79: #{_lambda_.12} parent=0
    _
  %s6 = ssub.s32 1, %s4
  %s7 = scalar_select 0, %s6, %s4
  $region1: #{_lambda_.12} parent=0
    #allocation3 [shape = 'u8[163840]{0}', space=vmem, size = 0x28000, scoped, tag = 'input window, operand 0']
    loop: start=0, step=1, limit=6
    $region2: #{_lambda_.12} parent=1 // loop_pre_header
      _
    $region3: #{_lambda_.12} parent=1 // loop_header
      %s9 = sphi 0, %s13
      %p10 = scmp.ge.s32.totalorder %s9, 6
      %s16 = sphi 0, %s28
      %s17 = sphi 0, %s24
      %s18 = sphi 0, %s16
      %s19 = sphi 0, %s17
      %s20 = sphi 0, %s18
      %s21 = sphi 0, %s19
      %s33 = sphi 0, %s35
      %s36 = sphi 0, %s33
      %s37 = sphi 0, %s36
      %s53 = sphi 0, %s37
      %s59 = sphi 0, %s61
      %s62 = sphi 0, %s59
      %s63 = sphi 0, %s62
      %s79 = sphi 0, %s63
      %s83 = sphi 0, %s83
      %s85 = sphi 0, %s83
      %s86 = sphi 0, %s85
      %s100 = sphi 0, %s86
      %s106 = sphi 0, %s108
      %s109 = sphi 0, %s106
      %s110 = sphi 0, %s109
      %s126 = sphi 0, %s110
    $region4: #{_lambda_.12} parent=1 // loop_header_branch
      %12 = sbr.rel (%p10) target = $region8
    $region5: #{_lambda_.12} parent=1 // loop_body
      %s14 = ssub.s32 %s9, 1
      %s15 = ssub.s32 %s9, 2
      %s22 = sadd.s32 1, %s17
      %p23 = scmp.ge.s32.totalorder %s22, 2
      %s24 = scalar_select %p23, 0, %s22
      %s25 = sadd.s32 1, %s16
      %s26 = scalar_select %p23, %s25, %s16
      %p27 = scmp.ge.s32.totalorder %s26, 2
      %s28 = scalar_select %p27, 0, %s26
      %s29 = ssub.s32 %s16, %s28
      %s30 = ssub.s32 %s17, %s24
      %s31 = sor.u32 %s29, %s30
      %p32 = scmp.eq.s32.totalorder %s31, 0
      %s34 = sadd.s32 %s33, 1
      %s35 = scalar_select %p32, %s33, %s34
      %p38 = pneg %p32
      %p39 = scmp.eq.s32.totalorder %s9, 3
      %p40 = por %p38, %p39
      %p41 = scmp.ne.s32.totalorder %s33, %s36
      %p42 = scmp.eq.s32.totalorder %s9, 0
      %p43 = por %p41, %p42
      %p44 = scmp.ne.s32.totalorder %s33, %s36
      %p45 = scmp.eq.s32.totalorder %s14, 3
      %p46 = por %p44, %p45
      %p47 = scmp.ne.s32.totalorder %s36, %s37
      %p48 = scmp.eq.s32.totalorder %s14, 0
      %p49 = por %p47, %p48
      %p50 = scmp.ne.s32.totalorder %s36, %s37
      %p51 = scmp.eq.s32.totalorder %s15, 3
      %p52 = por %p50, %p51
      %p54 = scmp.ne.s32.totalorder %s37, %s53
      %p55 = scmp.eq.s32.totalorder %s15, 0
      %p56 = por %p54, %p55
      %s57 = ssub.s32 %s17, %s24
      %p58 = scmp.eq.s32.totalorder %s57, 0
      %s60 = sadd.s32 %s59, 1
      %s61 = scalar_select %p58, %s59, %s60
      %p64 = pneg %p58
      %p65 = scmp.eq.s32.totalorder %s9, 3
      %p66 = por %p64, %p65
      %p67 = scmp.ne.s32.totalorder %s59, %s62
      %p68 = scmp.eq.s32.totalorder %s9, 0
      %p69 = por %p67, %p68
      %p70 = scmp.ne.s32.totalorder %s59, %s62
      %p71 = scmp.eq.s32.totalorder %s14, 3
      %p72 = por %p70, %p71
      %p73 = scmp.ne.s32.totalorder %s62, %s63
      %p74 = scmp.eq.s32.totalorder %s14, 0
      %p75 = por %p73, %p74
      %p76 = scmp.ne.s32.totalorder %s62, %s63
      %p77 = scmp.eq.s32.totalorder %s15, 3
      %p78 = por %p76, %p77
      %p80 = scmp.ne.s32.totalorder %s63, %s79
      %p81 = scmp.eq.s32.totalorder %s15, 0
      %p82 = por %p80, %p81
      %s84 = sadd.s32 %s83, 1
      %p87 = scmp.eq.s32.totalorder %s9, 3
      %p88 = scmp.ne.s32.totalorder %s83, %s85
      %p89 = scmp.eq.s32.totalorder %s9, 0
      %p90 = por %p88, %p89
      %p91 = scmp.ne.s32.totalorder %s83, %s85
      %p92 = scmp.eq.s32.totalorder %s14, 3
      %p93 = por %p91, %p92
      %p94 = scmp.ne.s32.totalorder %s85, %s86
      %p95 = scmp.eq.s32.totalorder %s14, 0
      %p96 = por %p94, %p95
      %p97 = scmp.ne.s32.totalorder %s85, %s86
      %p98 = scmp.eq.s32.totalorder %s15, 3
      %p99 = por %p97, %p98
      %p101 = scmp.ne.s32.totalorder %s86, %s100
      %p102 = scmp.eq.s32.totalorder %s15, 0
      %p103 = por %p101, %p102
      %s104 = ssub.s32 %s16, %s28
      %p105 = scmp.eq.s32.totalorder %s104, 0
      %s107 = sadd.s32 %s106, 1
      %s108 = scalar_select %p105, %s106, %s107
      %p111 = pneg %p105
      %p112 = scmp.eq.s32.totalorder %s9, 3
      %p113 = por %p111, %p112
      %p114 = scmp.ne.s32.totalorder %s106, %s109
      %p115 = scmp.eq.s32.totalorder %s9, 0
      %p116 = por %p114, %p115
      %p117 = scmp.ne.s32.totalorder %s106, %s109
      %p118 = scmp.eq.s32.totalorder %s14, 3
      %p119 = por %p117, %p118
      %p120 = scmp.ne.s32.totalorder %s109, %s110
      %p121 = scmp.eq.s32.totalorder %s14, 0
      %p122 = por %p120, %p121
      %p123 = scmp.ne.s32.totalorder %s109, %s110
      %p124 = scmp.eq.s32.totalorder %s15, 3
      %p125 = por %p123, %p124
      %p127 = scmp.ne.s32.totalorder %s110, %s126
      %p128 = scmp.eq.s32.totalorder %s15, 0
      %p129 = por %p127, %p128
      %p130 = scmp.le.s32.totalorder 1, %s9
      %p131 = scmp.lt.s32.totalorder %s9, 5
      %p132 = pnand %p130, %p131
      %p133 = pneg %p132
      // Predicated region
      $region9: #{_lambda_.12} parent=5 // pred_check
        _
      $region10: #{_lambda_.12} parent=5 // pred_check_branch
        %135 = sbr.rel (%p132) target = $region12
      $region11: #{_lambda_.12} parent=5 // pred_region
        %s136 = ssub.s32 %s9, 1
        // Predicated region
        $region13: #{_lambda_.12} parent=11 // pred_check
          %p137 = pneg %p96
        $region14: #{_lambda_.12} parent=11 // pred_check_branch
          %139 = sbr.rel (%p137) target = $region16
        $region15: #{_lambda_.12} parent=11 // pred_region
          _
        $region16: #{_lambda_.12} parent=11 // pred_fallthru
          _
      $region12: #{_lambda_.12} parent=5 // pred_fallthru
        _
      %p140 = scmp.lt.s32.totalorder %s9, 4
      // Predicated region
      $region17: #{_lambda_.12} parent=5 // pred_check
        %p141 = pneg %p140
      $region18: #{_lambda_.12} parent=5 // pred_check_branch
        %143 = sbr.rel (%p141) target = $region20
      $region19: #{_lambda_.12} parent=5 // pred_region
        // Predicated region
        $region21: #{_lambda_.12} parent=19 // pred_check
          %p144 = pneg %p43
        $region22: #{_lambda_.12} parent=19 // pred_check_branch
          %146 = sbr.rel (%p144) target = $region24
        $region23: #{_lambda_.12} parent=19 // pred_region
          %s147 = sand.u32 %s33, 1
          %s148 = sand.u32 %s33, 1
          %s149 = smul.addr %s148, 160
          %s150 = scalar_lea.vmem [#allocation3], %s149
          %s151 = smul.u32 8, %s16
          %s152 = smul.u32 5, %s17
          %s153 = smul.addr %s151, 10
          %s154 = sadd.s32 %s152, %s153
          %s155 = smul.addr %s154, 4
          %s156 = scalar_lea.vmem %s0, %s155
          // Predicated region
          $region25: #{_lambda_.12} parent=23 // pred_check
            _
          $region26: #{_lambda_.12} parent=23 // pred_check_branch
            %158 = sbr.rel (0) target = $region28
          $region27: #{_lambda_.12} parent=23 // pred_region
            // Predicated region
            $region29: #{_lambda_.12} parent=27 // pred_check
              _
            $region30: #{_lambda_.12} parent=27 // pred_check_branch
              %160 = sbr.rel (0) target = $region32
            $region31: #{_lambda_.12} parent=27 // pred_region
              %s161 = scalar_lea.vmem %s156, 16
              %s162 = scalar_lea.vmem %s150, 16 [#allocation3]
              loop: start=0, step=1, limit=1
              $region33: #{_lambda_.12} parent=31 // loop_pre_header
                _
              $region34: #{_lambda_.12} parent=31 // loop_header
                %s164 = sphi 0, %s168
                %p165 = scmp.ge.s32.totalorder %s164, 1
                %s169 = sphi %s156, %s156
                %s170 = sphi %s150, %s150
              $region35: #{_lambda_.12} parent=31 // loop_header_branch
                %167 = sbr.rel (%p165) target = $region39
              $region36: #{_lambda_.12} parent=31 // loop_body
                %v171 = vld [vmem:[%s169] sm:$0xff]
                %172 = vst [vmem:[%s170] sm:$0xff] %v171
                %v173 = vld [vmem:[%s169 + $0x8] sm:$0xff]
                %174 = vst [vmem:[%s170 + $0x8] sm:$0xff] %v173
                %v175 = vld [vmem:[%s169 + $0x28] sm:$0xff]
                %176 = vst [vmem:[%s170 + $0x14] sm:$0xff] %v175
                %v177 = vld [vmem:[%s169 + $0x30] sm:$0xff]
                %178 = vst [vmem:[%s170 + $0x1c] sm:$0xff] %v177
                %v179 = vld [vmem:[%s169 + $0x50] sm:$0xff]
                %180 = vst [vmem:[%s170 + $0x28] sm:$0xff] %v179
                %v181 = vld [vmem:[%s169 + $0x58] sm:$0xff]
                %182 = vst [vmem:[%s170 + $0x30] sm:$0xff] %v181
                %v183 = vld [vmem:[%s169 + $0x78] sm:$0xff]
                %184 = vst [vmem:[%s170 + $0x3c] sm:$0xff] %v183
                %v185 = vld [vmem:[%s169 + $0x80] sm:$0xff]
                %186 = vst [vmem:[%s170 + $0x44] sm:$0xff] %v185
                %v187 = vld [vmem:[%s169 + $0xa0] sm:$0xff]
                %188 = vst [vmem:[%s170 + $0x50] sm:$0xff] %v187
                %v189 = vld [vmem:[%s169 + $0xa8] sm:$0xff]
                %190 = vst [vmem:[%s170 + $0x58] sm:$0xff] %v189
                %v191 = vld [vmem:[%s169 + $0xc8] sm:$0xff]
                %192 = vst [vmem:[%s170 + $0x64] sm:$0xff] %v191
                %v193 = vld [vmem:[%s169 + $0xd0] sm:$0xff]
                %194 = vst [vmem:[%s170 + $0x6c] sm:$0xff] %v193
                %v195 = vld [vmem:[%s169 + $0xf0] sm:$0xff]
                %196 = vst [vmem:[%s170 + $0x78] sm:$0xff] %v195
                %v197 = vld [vmem:[%s169 + $0xf8] sm:$0xff]
                %198 = vst [vmem:[%s170 + $0x80] sm:$0xff] %v197
                %v199 = vld [vmem:[%s169 + $0x118] sm:$0xff]
                %200 = vst [vmem:[%s170 + $0x8c] sm:$0xff] %v199
                %v201 = vld [vmem:[%s169 + $0x120] sm:$0xff]
                %202 = vst [vmem:[%s170 + $0x94] sm:$0xff] %v201
              $region37: #{_lambda_.12} parent=31 // loop_footer
                %s168 = sadd.s32 1, %s164
              $region38: #{_lambda_.12} parent=31 // loop_footer_branch
                %163 = sbr.rel target = $region34
              $region39: #{_lambda_.12} parent=31 // loop_exit
                _
              loop: start=0, step=1, limit=1
              $region40: #{_lambda_.12} parent=31 // loop_pre_header
                _
              $region41: #{_lambda_.12} parent=31 // loop_header
                %s205 = sphi 0, %s209
                %p206 = scmp.ge.s32.totalorder %s205, 1
                %s210 = sphi %s161, %s161
                %s211 = sphi %s162, %s162
              $region42: #{_lambda_.12} parent=31 // loop_header_branch
                %208 = sbr.rel (%p206) target = $region46
              $region43: #{_lambda_.12} parent=31 // loop_body
                %v212 = vld [vmem:[%s210] sm:$0xf]
                %213 = vst [vmem:[%s211] sm:$0xf] %v212
                %v214 = vld [vmem:[%s210 + $0x28] sm:$0xf]
                %215 = vst [vmem:[%s211 + $0x14] sm:$0xf] %v214
                %v216 = vld [vmem:[%s210 + $0x50] sm:$0xf]
                %217 = vst [vmem:[%s211 + $0x28] sm:$0xf] %v216
                %v218 = vld [vmem:[%s210 + $0x78] sm:$0xf]
                %219 = vst [vmem:[%s211 + $0x3c] sm:$0xf] %v218
                %v220 = vld [vmem:[%s210 + $0xa0] sm:$0xf]
                %221 = vst [vmem:[%s211 + $0x50] sm:$0xf] %v220
                %v222 = vld [vmem:[%s210 + $0xc8] sm:$0xf]
                %223 = vst [vmem:[%s211 + $0x64] sm:$0xf] %v222
                %v224 = vld [vmem:[%s210 + $0xf0] sm:$0xf]
                %225 = vst [vmem:[%s211 + $0x78] sm:$0xf] %v224
                %v226 = vld [vmem:[%s210 + $0x118] sm:$0xf]
                %227 = vst [vmem:[%s211 + $0x8c] sm:$0xf] %v226
              $region44: #{_lambda_.12} parent=31 // loop_footer
                %s209 = sadd.s32 1, %s205
              $region45: #{_lambda_.12} parent=31 // loop_footer_branch
                %204 = sbr.rel target = $region41
              $region46: #{_lambda_.12} parent=31 // loop_exit
                _
            $region32: #{_lambda_.12} parent=27 // pred_fallthru
              _
          $region28: #{_lambda_.12} parent=23 // pred_fallthru
            _
          %228 = vnop
        $region24: #{_lambda_.12} parent=19 // pred_fallthru
          _
        // Predicated region
        $region47: #{_lambda_.12} parent=19 // pred_check
          %p229 = pneg %p69
        $region48: #{_lambda_.12} parent=19 // pred_check_branch
          %231 = sbr.rel (%p229) target = $region50
        $region49: #{_lambda_.12} parent=19 // pred_region
          %s232 = smul.u32 80, %s17
          %p233 = scmp.lt.s32.totalorder %s232, 159
          %s234 = scalar_select %p233, %s232, 159
          %s235 = smul.addr %s234, 4
          %s236 = scalar_lea.vmem %s1, %s235
          %s237 = smul.u32 80, %s17
        $region50: #{_lambda_.12} parent=19 // pred_fallthru
          _
      $region20: #{_lambda_.12} parent=5 // pred_fallthru
        _
      %p238 = scmp.le.s32.totalorder 1, %s9
      %p239 = scmp.lt.s32.totalorder %s9, 5
      %p240 = pnand %p238, %p239
      %p241 = pneg %p240
      // Predicated region
      $region51: #{_lambda_.12} parent=5 // pred_check
        _
      $region52: #{_lambda_.12} parent=5 // pred_check_branch
        %243 = sbr.rel (%p240) target = $region54
      $region53: #{_lambda_.12} parent=5 // pred_region
        %s244 = ssub.s32 %s9, 1
        %s245 = sand.u32 %s36, 1
        %s246 = sand.u32 %s36, 1
        %s247 = smul.addr %s246, 160
        %s248 = scalar_lea.vmem [#allocation3], %s247
        // Predicated region
        $region55: #{_lambda_.12} parent=53 // pred_check
          %p249 = pneg %p49
        $region56: #{_lambda_.12} parent=53 // pred_check_branch
          %251 = sbr.rel (%p249) target = $region58
        $region57: #{_lambda_.12} parent=53 // pred_region
          _
        $region58: #{_lambda_.12} parent=53 // pred_fallthru
          _
        %s252 = sand.u32 %s36, 1
        %s253 = sand.u32 %s36, 1
        %s254 = smul.addr %s253, 160
        %s255 = scalar_lea.vmem [#allocation3], %s254
        %p256 = pneg %p49
        %p257 = pneg %p46
        %s258 = smul.u32 80, %s19
        %p259 = scmp.lt.s32.totalorder %s258, 159
        %s260 = scalar_select %p259, %s258, 159
        %s261 = smul.addr %s260, 4
        %s262 = scalar_lea.vmem %s1, %s261
        %p263 = pneg %p75
        %p264 = pneg %p72
        %p265 = pneg %p96
        %p266 = pneg %p93
        %p267 = pneg %p122
        %p268 = pneg %p119
        %s269 = smul.u32 8, %s18
        %p270 = scmp.lt.s32.totalorder %s269, 15
        %s271 = scalar_select %p270, %s269, 15
        %s272 = smul.addr %s271, 4
        %s273 = scalar_lea.vmem %s3, %s272
        %s274 = smul.u32 8, %s18
        %s275 = smul.u32 5, %s19
        %s276 = smul.u32 80, %s19
        %p277 = scmp.lt.s32.totalorder %s276, 159
        %s278 = scalar_select %p277, %s276, 159
        %s279 = smul.addr %s278, 4
        %s280 = scalar_lea.vmem %s1, %s279
        %s281 = smul.u32 80, %s19
        %s282 = smul.u32 8, %s18
        %p283 = scmp.lt.s32.totalorder %s282, 15
        %s284 = scalar_select %p283, %s282, 15
        %s285 = smul.addr %s284, 4
        %s286 = scalar_lea.vmem %s3, %s285
        %s287 = smul.u32 8, %s18
        %p289 = scmp.eq.s32.totalorder %s19, 0
        // Predicated region
        $region59: #{_lambda_.12} parent=53 // pred_check
          %p290 = pneg %p289
        $region60: #{_lambda_.12} parent=53 // pred_check_branch
          %292 = sbr.rel (%p290) target = $region62
        $region61: #{_lambda_.12} parent=53 // pred_region
          %293 = vst [vmem:[#allocation2] sm:$0xff] 0.0
          %294 = vst [vmem:[#allocation2 + $0x8] sm:$0xff] 0.0
          %295 = vst [vmem:[#allocation2 + $0x10] sm:$0xff] 0.0
          %296 = vst [vmem:[#allocation2 + $0x18] sm:$0xff] 0.0
          %297 = vst [vmem:[#allocation2 + $0x20] sm:$0xff] 0.0
          %298 = vst [vmem:[#allocation2 + $0x28] sm:$0xff] 0.0
          %299 = vst [vmem:[#allocation2 + $0x30] sm:$0xff] 0.0
          %300 = vst [vmem:[#allocation2 + $0x38] sm:$0xff] 0.0
        $region62: #{_lambda_.12} parent=53 // pred_fallthru
          _
        %v301 = vld [vmem:[#allocation2] sm:$0xff]
        %v302 = vld [vmem:[#allocation2 + $0x8] sm:$0xff]
        %v303 = vld [vmem:[#allocation2 + $0x10] sm:$0xff]
        %v304 = vld [vmem:[#allocation2 + $0x18] sm:$0xff]
        %v305 = vld [vmem:[#allocation2 + $0x20] sm:$0xff]
        %v306 = vld [vmem:[#allocation2 + $0x28] sm:$0xff]
        %v307 = vld [vmem:[#allocation2 + $0x30] sm:$0xff]
        %v308 = vld [vmem:[#allocation2 + $0x38] sm:$0xff]
        %v309 = vld [vmem:[%s248] sm:$0xff]
        %v310 = vld [vmem:[%s248 + $0x8] sm:$0xff]
        %v311 = vld [vmem:[%s248 + $0x10] sm:$0xf]
        %v312 = vld [vmem:[%s248 + $0x14] sm:$0xff]
        %v313 = vld [vmem:[%s248 + $0x1c] sm:$0xff]
        %v314 = vld [vmem:[%s248 + $0x24] sm:$0xf]
        %v315 = vld [vmem:[%s248 + $0x28] sm:$0xff]
        %v316 = vld [vmem:[%s248 + $0x30] sm:$0xff]
        %v317 = vld [vmem:[%s248 + $0x38] sm:$0xf]
        %v318 = vld [vmem:[%s248 + $0x3c] sm:$0xff]
        %v319 = vld [vmem:[%s248 + $0x44] sm:$0xff]
        %v320 = vld [vmem:[%s248 + $0x4c] sm:$0xf]
        %v321 = vld [vmem:[%s248 + $0x50] sm:$0xff]
        %v322 = vld [vmem:[%s248 + $0x58] sm:$0xff]
        %v323 = vld [vmem:[%s248 + $0x60] sm:$0xf]
        %v324 = vld [vmem:[%s248 + $0x64] sm:$0xff]
        %v325 = vld [vmem:[%s248 + $0x6c] sm:$0xff]
        %v326 = vld [vmem:[%s248 + $0x74] sm:$0xf]
        %v327 = vld [vmem:[%s248 + $0x78] sm:$0xff]
        %v328 = vld [vmem:[%s248 + $0x80] sm:$0xff]
        %v329 = vld [vmem:[%s248 + $0x88] sm:$0xf]
        %v330 = vld [vmem:[%s248 + $0x8c] sm:$0xff]
        %v331 = vld [vmem:[%s248 + $0x94] sm:$0xff]
        %v332 = vld [vmem:[%s248 + $0x9c] sm:$0xf]
        %v333 = vld [vmem:[%s280] sm:$0xf]
        %v334 = vld [vmem:[%s280 + $0x4] sm:$0xf]
        %v335 = vld [vmem:[%s280 + $0x8] sm:$0xf]
        %v336 = vld [vmem:[%s280 + $0xc] sm:$0xf]
        %v337 = vld [vmem:[%s280 + $0x10] sm:$0xf]
        %v338 = vld [vmem:[%s280 + $0x14] sm:$0xf]
        %v339 = vld [vmem:[%s280 + $0x18] sm:$0xf]
        %v340 = vld [vmem:[%s280 + $0x1c] sm:$0xf]
        %v341 = vld [vmem:[%s280 + $0x20] sm:$0xf]
        %v342 = vld [vmem:[%s280 + $0x24] sm:$0xf]
        %v343 = vld [vmem:[%s280 + $0x28] sm:$0xf]
        %v344 = vld [vmem:[%s280 + $0x2c] sm:$0xf]
        %v345 = vld [vmem:[%s280 + $0x30] sm:$0xf]
        %v346 = vld [vmem:[%s280 + $0x34] sm:$0xf]
        %v347 = vld [vmem:[%s280 + $0x38] sm:$0xf]
        %v348 = vld [vmem:[%s280 + $0x3c] sm:$0xf]
        %v349 = vld [vmem:[%s280 + $0x40] sm:$0xf]
        %v350 = vld [vmem:[%s280 + $0x44] sm:$0xf]
        %v351 = vld [vmem:[%s280 + $0x48] sm:$0xf]
        %v352 = vld [vmem:[%s280 + $0x4c] sm:$0xf]
        %v353 = vld [vmem:[%s280 + $0x50] sm:$0xf]
        %v354 = vld [vmem:[%s280 + $0x54] sm:$0xf]
        %v355 = vld [vmem:[%s280 + $0x58] sm:$0xf]
        %v356 = vld [vmem:[%s280 + $0x5c] sm:$0xf]
        %v357 = vld [vmem:[%s280 + $0x60] sm:$0xf]
        %v358 = vld [vmem:[%s280 + $0x64] sm:$0xf]
        %v359 = vld [vmem:[%s280 + $0x68] sm:$0xf]
        %v360 = vld [vmem:[%s280 + $0x6c] sm:$0xf]
        %v361 = vld [vmem:[%s280 + $0x70] sm:$0xf]
        %v362 = vld [vmem:[%s280 + $0x74] sm:$0xf]
        %v363 = vld [vmem:[%s280 + $0x78] sm:$0xf]
        %v364 = vld [vmem:[%s280 + $0x7c] sm:$0xf]
        %v365 = vld [vmem:[%s280 + $0x80] sm:$0xf]
        %v366 = vld [vmem:[%s280 + $0x84] sm:$0xf]
        %v367 = vld [vmem:[%s280 + $0x88] sm:$0xf]
        %v368 = vld [vmem:[%s280 + $0x8c] sm:$0xf]
        %v369 = vld [vmem:[%s280 + $0x90] sm:$0xf]
        %v370 = vld [vmem:[%s280 + $0x94] sm:$0xf]
        %v371 = vld [vmem:[%s280 + $0x98] sm:$0xf]
        %v372 = vld [vmem:[%s280 + $0x9c] sm:$0xf]
        %v373 = vld [vmem:[%s280 + $0xa0] sm:$0xf]
        %v374 = vld [vmem:[%s280 + $0xa4] sm:$0xf]
        %v375 = vld [vmem:[%s280 + $0xa8] sm:$0xf]
        %v376 = vld [vmem:[%s280 + $0xac] sm:$0xf]
        %v377 = vld [vmem:[%s280 + $0xb0] sm:$0xf]
        %v378 = vld [vmem:[%s280 + $0xb4] sm:$0xf]
        %v379 = vld [vmem:[%s280 + $0xb8] sm:$0xf]
        %v380 = vld [vmem:[%s280 + $0xbc] sm:$0xf]
        %v381 = vld [vmem:[%s280 + $0xc0] sm:$0xf]
        %v382 = vld [vmem:[%s280 + $0xc4] sm:$0xf]
        %v383 = vld [vmem:[%s280 + $0xc8] sm:$0xf]
        %v384 = vld [vmem:[%s280 + $0xcc] sm:$0xf]
        %v385 = vld [vmem:[%s280 + $0xd0] sm:$0xf]
        %v386 = vld [vmem:[%s280 + $0xd4] sm:$0xf]
        %v387 = vld [vmem:[%s280 + $0xd8] sm:$0xf]
        %v388 = vld [vmem:[%s280 + $0xdc] sm:$0xf]
        %v389 = vld [vmem:[%s280 + $0xe0] sm:$0xf]
        %v390 = vld [vmem:[%s280 + $0xe4] sm:$0xf]
        %v391 = vld [vmem:[%s280 + $0xe8] sm:$0xf]
        %v392 = vld [vmem:[%s280 + $0xec] sm:$0xf]
        %v393 = vld [vmem:[%s280 + $0xf0] sm:$0xf]
        %v394 = vld [vmem:[%s280 + $0xf4] sm:$0xf]
        %v395 = vld [vmem:[%s280 + $0xf8] sm:$0xf]
        %v396 = vld [vmem:[%s280 + $0xfc] sm:$0xf]
        %v397 = vld [vmem:[%s280 + $0x100] sm:$0xf]
        %v398 = vld [vmem:[%s280 + $0x104] sm:$0xf]
        %v399 = vld [vmem:[%s280 + $0x108] sm:$0xf]
        %v400 = vld [vmem:[%s280 + $0x10c] sm:$0xf]
        %v401 = vld [vmem:[%s280 + $0x110] sm:$0xf]
        %v402 = vld [vmem:[%s280 + $0x114] sm:$0xf]
        %v403 = vld [vmem:[%s280 + $0x118] sm:$0xf]
        %v404 = vld [vmem:[%s280 + $0x11c] sm:$0xf]
        %v405 = vld [vmem:[%s280 + $0x120] sm:$0xf]
        %v406 = vld [vmem:[%s280 + $0x124] sm:$0xf]
        %v407 = vld [vmem:[%s280 + $0x128] sm:$0xf]
        %v408 = vld [vmem:[%s280 + $0x12c] sm:$0xf]
        %v409 = vld [vmem:[%s280 + $0x130] sm:$0xf]
        %v410 = vld [vmem:[%s280 + $0x134] sm:$0xf]
        %v411 = vld [vmem:[%s280 + $0x138] sm:$0xf]
        %v412 = vld [vmem:[%s280 + $0x13c] sm:$0xf]
        %v437 = vunpack.c.l.b16 %v309
        %v438 = vunpack.c.h.b16 %v309
        %v439 = vunpack.c.l.b16 %v310
        %v440 = vunpack.c.h.b16 %v310
        %v441 = vunpack.c.l.b16 %v311
        %v442 = vunpack.c.l.b16 %v312
        %v443 = vunpack.c.h.b16 %v312
        %v444 = vunpack.c.l.b16 %v313
        %v445 = vunpack.c.h.b16 %v313
        %v446 = vunpack.c.l.b16 %v314
        %v447 = vunpack.c.l.b16 %v315
        %v448 = vunpack.c.h.b16 %v315
        %v449 = vunpack.c.l.b16 %v316
        %v450 = vunpack.c.h.b16 %v316
        %v451 = vunpack.c.l.b16 %v317
        %v452 = vunpack.c.l.b16 %v318
        %v453 = vunpack.c.h.b16 %v318
        %v454 = vunpack.c.l.b16 %v319
        %v455 = vunpack.c.h.b16 %v319
        %v456 = vunpack.c.l.b16 %v320
        %v457 = vunpack.c.l.b16 %v321
        %v458 = vunpack.c.h.b16 %v321
        %v459 = vunpack.c.l.b16 %v322
        %v460 = vunpack.c.h.b16 %v322
        %v461 = vunpack.c.l.b16 %v323
        %v462 = vunpack.c.l.b16 %v324
        %v463 = vunpack.c.h.b16 %v324
        %v464 = vunpack.c.l.b16 %v325
        %v465 = vunpack.c.h.b16 %v325
        %v466 = vunpack.c.l.b16 %v326
        %v467 = vunpack.c.l.b16 %v327
        %v468 = vunpack.c.h.b16 %v327
        %v469 = vunpack.c.l.b16 %v328
        %v470 = vunpack.c.h.b16 %v328
        %v471 = vunpack.c.l.b16 %v329
        %v472 = vunpack.c.l.b16 %v330
        %v473 = vunpack.c.h.b16 %v330
        %v474 = vunpack.c.l.b16 %v331
        %v475 = vunpack.c.h.b16 %v331
        %v476 = vunpack.c.l.b16 %v332
        %v477 = vpack.c.b16 %v442, %v437
        %v478 = vpack.c.b16 %v443, %v438
        %v479 = vpack.c.b16 %v444, %v439
        %v480 = vpack.c.b16 %v445, %v440
        %v481 = vpack.c.b16 %v446, %v441
        %v482 = vpack.c.b16 %v452, %v447
        %v483 = vpack.c.b16 %v453, %v448
        %v484 = vpack.c.b16 %v454, %v449
        %v485 = vpack.c.b16 %v455, %v450
        %v486 = vpack.c.b16 %v456, %v451
        %v487 = vpack.c.b16 %v462, %v457
        %v488 = vpack.c.b16 %v463, %v458
        %v489 = vpack.c.b16 %v464, %v459
        %v490 = vpack.c.b16 %v465, %v460
        %v491 = vpack.c.b16 %v466, %v461
        %v492 = vpack.c.b16 %v472, %v467
        %v493 = vpack.c.b16 %v473, %v468
        %v494 = vpack.c.b16 %v474, %v469
        %v495 = vpack.c.b16 %v475, %v470
        %v496 = vpack.c.b16 %v476, %v471
        %v597 = vunpack.c.l.b16 %v333
        %v598 = vunpack.c.l.b16 %v334
        %v599 = vunpack.c.l.b16 %v335
        %v600 = vunpack.c.l.b16 %v336
        %v601 = vunpack.c.l.b16 %v337
        %v602 = vunpack.c.l.b16 %v338
        %v603 = vunpack.c.l.b16 %v339
        %v604 = vunpack.c.l.b16 %v340
        %v605 = vunpack.c.l.b16 %v341
        %v606 = vunpack.c.l.b16 %v342
        %v607 = vunpack.c.l.b16 %v343
        %v608 = vunpack.c.l.b16 %v344
        %v609 = vunpack.c.l.b16 %v345
        %v610 = vunpack.c.l.b16 %v346
        %v611 = vunpack.c.l.b16 %v347
        %v612 = vunpack.c.l.b16 %v348
        %v613 = vunpack.c.l.b16 %v349
        %v614 = vunpack.c.l.b16 %v350
        %v615 = vunpack.c.l.b16 %v351
        %v616 = vunpack.c.l.b16 %v352
        %v617 = vunpack.c.l.b16 %v353
        %v618 = vunpack.c.l.b16 %v354
        %v619 = vunpack.c.l.b16 %v355
        %v620 = vunpack.c.l.b16 %v356
        %v621 = vunpack.c.l.b16 %v357
        %v622 = vunpack.c.l.b16 %v358
        %v623 = vunpack.c.l.b16 %v359
        %v624 = vunpack.c.l.b16 %v360
        %v625 = vunpack.c.l.b16 %v361
        %v626 = vunpack.c.l.b16 %v362
        %v627 = vunpack.c.l.b16 %v363
        %v628 = vunpack.c.l.b16 %v364
        %v629 = vunpack.c.l.b16 %v365
        %v630 = vunpack.c.l.b16 %v366
        %v631 = vunpack.c.l.b16 %v367
        %v632 = vunpack.c.l.b16 %v368
        %v633 = vunpack.c.l.b16 %v369
        %v634 = vunpack.c.l.b16 %v370
        %v635 = vunpack.c.l.b16 %v371
        %v636 = vunpack.c.l.b16 %v372
        %v637 = vunpack.c.l.b16 %v373
        %v638 = vunpack.c.l.b16 %v374
        %v639 = vunpack.c.l.b16 %v375
        %v640 = vunpack.c.l.b16 %v376
        %v641 = vunpack.c.l.b16 %v377
        %v642 = vunpack.c.l.b16 %v378
        %v643 = vunpack.c.l.b16 %v379
        %v644 = vunpack.c.l.b16 %v380
        %v645 = vunpack.c.l.b16 %v381
        %v646 = vunpack.c.l.b16 %v382
        %v647 = vunpack.c.l.b16 %v383
        %v648 = vunpack.c.l.b16 %v384
        %v649 = vunpack.c.l.b16 %v385
        %v650 = vunpack.c.l.b16 %v386
        %v651 = vunpack.c.l.b16 %v387
        %v652 = vunpack.c.l.b16 %v388
        %v653 = vunpack.c.l.b16 %v389
        %v654 = vunpack.c.l.b16 %v390
        %v655 = vunpack.c.l.b16 %v391
        %v656 = vunpack.c.l.b16 %v392
        %v657 = vunpack.c.l.b16 %v393
        %v658 = vunpack.c.l.b16 %v394
        %v659 = vunpack.c.l.b16 %v395
        %v660 = vunpack.c.l.b16 %v396
        %v661 = vunpack.c.l.b16 %v397
        %v662 = vunpack.c.l.b16 %v398
        %v663 = vunpack.c.l.b16 %v399
        %v664 = vunpack.c.l.b16 %v400
        %v665 = vunpack.c.l.b16 %v401
        %v666 = vunpack.c.l.b16 %v402
        %v667 = vunpack.c.l.b16 %v403
        %v668 = vunpack.c.l.b16 %v404
        %v669 = vunpack.c.l.b16 %v405
        %v670 = vunpack.c.l.b16 %v406
        %v671 = vunpack.c.l.b16 %v407
        %v672 = vunpack.c.l.b16 %v408
        %v673 = vunpack.c.l.b16 %v409
        %v674 = vunpack.c.l.b16 %v410
        %v675 = vunpack.c.l.b16 %v411
        %v676 = vunpack.c.l.b16 %v412
        %v677 = vpack.c.b16 %v598, %v597
        %v678 = vpack.c.b16 %v600, %v599
        %v679 = vpack.c.b16 %v602, %v601
        %v680 = vpack.c.b16 %v604, %v603
        %v681 = vpack.c.b16 %v606, %v605
        %v682 = vpack.c.b16 %v608, %v607
        %v683 = vpack.c.b16 %v610, %v609
        %v684 = vpack.c.b16 %v612, %v611
        %v685 = vpack.c.b16 %v614, %v613
        %v686 = vpack.c.b16 %v616, %v615
        %v687 = vpack.c.b16 %v618, %v617
        %v688 = vpack.c.b16 %v620, %v619
        %v689 = vpack.c.b16 %v622, %v621
        %v690 = vpack.c.b16 %v624, %v623
        %v691 = vpack.c.b16 %v626, %v625
        %v692 = vpack.c.b16 %v628, %v627
        %v693 = vpack.c.b16 %v630, %v629
        %v694 = vpack.c.b16 %v632, %v631
        %v695 = vpack.c.b16 %v634, %v633
        %v696 = vpack.c.b16 %v636, %v635
        %v697 = vpack.c.b16 %v638, %v637
        %v698 = vpack.c.b16 %v640, %v639
        %v699 = vpack.c.b16 %v642, %v641
        %v700 = vpack.c.b16 %v644, %v643
        %v701 = vpack.c.b16 %v646, %v645
        %v702 = vpack.c.b16 %v648, %v647
        %v703 = vpack.c.b16 %v650, %v649
        %v704 = vpack.c.b16 %v652, %v651
        %v705 = vpack.c.b16 %v654, %v653
        %v706 = vpack.c.b16 %v656, %v655
        %v707 = vpack.c.b16 %v658, %v657
        %v708 = vpack.c.b16 %v660, %v659
        %v709 = vpack.c.b16 %v662, %v661
        %v710 = vpack.c.b16 %v664, %v663
        %v711 = vpack.c.b16 %v666, %v665
        %v712 = vpack.c.b16 %v668, %v667
        %v713 = vpack.c.b16 %v670, %v669
        %v714 = vpack.c.b16 %v672, %v671
        %v715 = vpack.c.b16 %v674, %v673
        %v716 = vpack.c.b16 %v676, %v675
        %757 = vmatprep.subr.bf16.mxu0 0
        %758 = vmatpush1.bf16.msra.mxu0 %v677
        %759 = vmatprep.subr.bf16.mxu0 0
        %760 = vmatpush1.bf16.msra.mxu0 %v678
        %761 = vmatprep.subr.bf16.mxu0 0
        %762 = vmatpush1.bf16.msra.mxu0 %v679
        %763 = vmatprep.subr.bf16.mxu0 0
        %764 = vmatpush1.bf16.msra.mxu0 %v680
        %765 = vmatprep.subr.bf16.mxu0 0
        %766 = vmatpush1.bf16.msra.mxu0 %v681
        %767 = vmatprep.subr.bf16.mxu0 0
        %768 = vmatpush1.bf16.msra.mxu0 %v682
        %769 = vmatprep.subr.bf16.mxu0 0
        %770 = vmatpush1.bf16.msra.mxu0 %v683
        %771 = vmatprep.subr.bf16.mxu0 0
        %772 = vmatpush1.bf16.msra.mxu0 %v684
        %773 = vmatprep.subr.bf16.mxu0 0
        %774 = vmatpush1.bf16.msra.mxu0 %v685
        %775 = vmatprep.subr.bf16.mxu0 0
        %776 = vmatpush1.bf16.msra.mxu0 %v686
        %777 = vmatprep.subr.bf16.mxu0 0
        %778 = vmatpush1.bf16.msra.mxu0 %v687
        %779 = vmatprep.subr.bf16.mxu0 0
        %780 = vmatpush1.bf16.msra.mxu0 %v688
        %781 = vmatprep.subr.bf16.mxu0 0
        %782 = vmatpush1.bf16.msra.mxu0 %v689
        %783 = vmatprep.subr.bf16.mxu0 0
        %784 = vmatpush1.bf16.msra.mxu0 %v690
        %785 = vmatprep.subr.bf16.mxu0 0
        %786 = vmatpush1.bf16.msra.mxu0 %v691
        %787 = vmatprep.subr.bf16.mxu0 0
        %788 = vmatpush1.bf16.msra.mxu0 %v692
        %789 = vmatprep.mubr.bf16.mxu0 %v478
        %790 = vmatmul.mubr.bf16.gmra.mrb[0].mxu0 %v477
        %v791 = vpop.f32.mrb[0].mxu0
        %v792 = vadd.f32 0.0, %v791
        %v793 = vpop.f32.mrb[0].mxu0
        %v794 = vpop.f32.mrb[0].mxu0
        %v795 = vadd.f32 0.0, %v794
        %v796 = vpop.f32.mrb[0].mxu0
        %797 = vmatprep.mubr.bf16.mxu0 %v483
        %798 = vmatmul.mubr.bf16.gmra.mrb[0].mxu0 %v482
        %v799 = vpop.f32.mrb[0].mxu0
        %v800 = vadd.f32 0.0, %v799
        %v801 = vpop.f32.mrb[0].mxu0
        %v802 = vpop.f32.mrb[0].mxu0
        %v803 = vadd.f32 0.0, %v802
        %v804 = vpop.f32.mrb[0].mxu0
        %805 = vmatprep.mubr.bf16.mxu0 %v488
        %806 = vmatmul.mubr.bf16.gmra.mrb[0].mxu0 %v487
        %v807 = vpop.f32.mrb[0].mxu0
        %v808 = vadd.f32 0.0, %v807
        %v809 = vpop.f32.mrb[0].mxu0
        %v810 = vpop.f32.mrb[0].mxu0
        %v811 = vadd.f32 0.0, %v810
        %v812 = vpop.f32.mrb[0].mxu0
        %813 = vmatprep.mubr.bf16.mxu0 %v493
        %814 = vmatmul.mubr.bf16.gmra.mrb[0].mxu0 %v492
        %v815 = vpop.f32.mrb[0].mxu0
        %v816 = vadd.f32 0.0, %v815
        %v817 = vpop.f32.mrb[0].mxu0
        %v818 = vpop.f32.mrb[0].mxu0
        %v819 = vadd.f32 0.0, %v818
        %v820 = vpop.f32.mrb[0].mxu0
        %821 = vdwg.mxu0
        %822 = vmatprep.subr.bf16.mxu0 0
        %823 = vmatpush1.bf16.msra.mxu0 %v693
        %824 = vmatprep.subr.bf16.mxu0 0
        %825 = vmatpush1.bf16.msra.mxu0 %v694
        %826 = vmatprep.subr.bf16.mxu0 0
        %827 = vmatpush1.bf16.msra.mxu0 %v695
        %828 = vmatprep.subr.bf16.mxu0 0
        %829 = vmatpush1.bf16.msra.mxu0 %v696
        %830 = vmatprep.subr.bf16.mxu0 0
        %831 = vmatpush1.bf16.msra.mxu0 %v697
        %832 = vmatprep.subr.bf16.mxu0 0
        %833 = vmatpush1.bf16.msra.mxu0 %v698
        %834 = vmatprep.subr.bf16.mxu0 0
        %835 = vmatpush1.bf16.msra.mxu0 %v699
        %836 = vmatprep.subr.bf16.mxu0 0
        %837 = vmatpush1.bf16.msra.mxu0 %v700
        %838 = vmatprep.subr.bf16.mxu0 0
        %839 = vmatpush1.bf16.msra.mxu0 %v701
        %840 = vmatprep.subr.bf16.mxu0 0
        %841 = vmatpush1.bf16.msra.mxu0 %v702
        %842 = vmatprep.subr.bf16.mxu0 0
        %843 = vmatpush1.bf16.msra.mxu0 %v703
        %844 = vmatprep.subr.bf16.mxu0 0
        %845 = vmatpush1.bf16.msra.mxu0 %v704
        %846 = vmatprep.subr.bf16.mxu0 0
        %847 = vmatpush1.bf16.msra.mxu0 %v705
        %848 = vmatprep.subr.bf16.mxu0 0
        %849 = vmatpush1.bf16.msra.mxu0 %v706
        %850 = vmatprep.subr.bf16.mxu0 0
        %851 = vmatpush1.bf16.msra.mxu0 %v707
        %852 = vmatprep.subr.bf16.mxu0 0
        %853 = vmatpush1.bf16.msra.mxu0 %v708
        %854 = vmatprep.mubr.bf16.mxu0 %v480
        %855 = vmatmul.mubr.bf16.gmra.mrb[0].mxu0 %v479
        %v856 = vpop.f32.mrb[0].mxu0
        %v857 = vadd.f32 %v792, %v856
        %v858 = vpop.f32.mrb[0].mxu0
        %v859 = vpop.f32.mrb[0].mxu0
        %v860 = vadd.f32 %v795, %v859
        %v861 = vpop.f32.mrb[0].mxu0
        %862 = vmatprep.mubr.bf16.mxu0 %v485
        %863 = vmatmul.mubr.bf16.gmra.mrb[0].mxu0 %v484
        %v864 = vpop.f32.mrb[0].mxu0
        %v865 = vadd.f32 %v800, %v864
        %v866 = vpop.f32.mrb[0].mxu0
        %v867 = vpop.f32.mrb[0].mxu0
        %v868 = vadd.f32 %v803, %v867
        %v869 = vpop.f32.mrb[0].mxu0
        %870 = vmatprep.mubr.bf16.mxu0 %v490
        %871 = vmatmul.mubr.bf16.gmra.mrb[0].mxu0 %v489
        %v872 = vpop.f32.mrb[0].mxu0
        %v873 = vadd.f32 %v808, %v872
        %v874 = vpop.f32.mrb[0].mxu0
        %v875 = vpop.f32.mrb[0].mxu0
        %v876 = vadd.f32 %v811, %v875
        %v877 = vpop.f32.mrb[0].mxu0
        %878 = vmatprep.mubr.bf16.mxu0 %v495
        %879 = vmatmul.mubr.bf16.gmra.mrb[0].mxu0 %v494
        %v880 = vpop.f32.mrb[0].mxu0
        %v881 = vadd.f32 %v816, %v880
        %v882 = vpop.f32.mrb[0].mxu0
        %v883 = vpop.f32.mrb[0].mxu0
        %v884 = vadd.f32 %v819, %v883
        %v885 = vpop.f32.mrb[0].mxu0
        %886 = vdwg.mxu0
        %887 = vmatprep.subr.bf16.mxu0 0
        %888 = vmatpush1.bf16.msra.mxu0 %v709
        %889 = vmatprep.subr.bf16.mxu0 0
        %890 = vmatpush1.bf16.msra.mxu0 %v710
        %891 = vmatprep.subr.bf16.mxu0 0
        %892 = vmatpush1.bf16.msra.mxu0 %v711
        %893 = vmatprep.subr.bf16.mxu0 0
        %894 = vmatpush1.bf16.msra.mxu0 %v712
        %895 = vmatprep.subr.bf16.mxu0 0
        %896 = vmatpush1.bf16.msra.mxu0 %v713
        %897 = vmatprep.subr.bf16.mxu0 0
        %898 = vmatpush1.bf16.msra.mxu0 %v714
        %899 = vmatprep.subr.bf16.mxu0 0
        %900 = vmatpush1.bf16.msra.mxu0 %v715
        %901 = vmatprep.subr.bf16.mxu0 0
        %902 = vmatpush1.bf16.msra.mxu0 %v716
        %903 = vmatprep.subr.bf16.mxu0 0
        %904 = vmatpush1.bf16.msra.mxu0 0
        %905 = vmatprep.subr.bf16.mxu0 0
        %906 = vmatpush1.bf16.msra.mxu0 0
        %907 = vmatprep.subr.bf16.mxu0 0
        %908 = vmatpush1.bf16.msra.mxu0 0
        %909 = vmatprep.subr.bf16.mxu0 0
        %910 = vmatpush1.bf16.msra.mxu0 0
        %911 = vmatprep.subr.bf16.mxu0 0
        %912 = vmatpush1.bf16.msra.mxu0 0
        %913 = vmatprep.subr.bf16.mxu0 0
        %914 = vmatpush1.bf16.msra.mxu0 0
        %915 = vmatprep.subr.bf16.mxu0 0
        %916 = vmatpush1.bf16.msra.mxu0 0
        %917 = vmatprep.subr.bf16.mxu0 0
        %918 = vmatpush1.bf16.msra.mxu0 0
        %919 = vmatprep.mubr.bf16.mxu0 0
        %920 = vmatmul.mubr.bf16.gmra.mrb[0].mxu0 %v481
        %v921 = vpop.f32.mrb[0].mxu0
        %v922 = vadd.f32 %v857, %v921
        %v923 = vpop.f32.mrb[0].mxu0
        %v924 = vpop.f32.mrb[0].mxu0
        %v925 = vadd.f32 %v860, %v924
        %v926 = vpop.f32.mrb[0].mxu0
        %927 = vmatprep.mubr.bf16.mxu0 0
        %928 = vmatmul.mubr.bf16.gmra.mrb[0].mxu0 %v486
        %v929 = vpop.f32.mrb[0].mxu0
        %v930 = vadd.f32 %v865, %v929
        %v931 = vpop.f32.mrb[0].mxu0
        %v932 = vpop.f32.mrb[0].mxu0
        %v933 = vadd.f32 %v868, %v932
        %v934 = vpop.f32.mrb[0].mxu0
        %935 = vmatprep.mubr.bf16.mxu0 0
        %936 = vmatmul.mubr.bf16.gmra.mrb[0].mxu0 %v491
        %v937 = vpop.f32.mrb[0].mxu0
        %v938 = vadd.f32 %v873, %v937
        %v939 = vpop.f32.mrb[0].mxu0
        %v940 = vpop.f32.mrb[0].mxu0
        %v941 = vadd.f32 %v876, %v940
        %v942 = vpop.f32.mrb[0].mxu0
        %943 = vmatprep.mubr.bf16.mxu0 0
        %944 = vmatmul.mubr.bf16.gmra.mrb[0].mxu0 %v496
        %v945 = vpop.f32.mrb[0].mxu0
        %v946 = vadd.f32 %v881, %v945
        %v947 = vpop.f32.mrb[0].mxu0
        %v948 = vpop.f32.mrb[0].mxu0
        %v949 = vadd.f32 %v884, %v948
        %v950 = vpop.f32.mrb[0].mxu0
        %951 = vdwg.mxu0
        %v952 = vadd.f32 %v301, %v922
        %v953 = vadd.f32 %v302, %v925
        %v954 = vadd.f32 %v303, %v930
        %v955 = vadd.f32 %v304, %v933
        %v956 = vadd.f32 %v305, %v938
        %v957 = vadd.f32 %v306, %v941
        %v958 = vadd.f32 %v307, %v946
        %v959 = vadd.f32 %v308, %v949
        %960 = vst [vmem:[#allocation2] sm:$0xff] %v952
        %961 = vst [vmem:[#allocation2 + $0x8] sm:$0xff] %v953
        %962 = vst [vmem:[#allocation2 + $0x10] sm:$0xff] %v954
        %963 = vst [vmem:[#allocation2 + $0x18] sm:$0xff] %v955
        %964 = vst [vmem:[#allocation2 + $0x20] sm:$0xff] %v956
        %965 = vst [vmem:[#allocation2 + $0x28] sm:$0xff] %v957
        %966 = vst [vmem:[#allocation2 + $0x30] sm:$0xff] %v958
        %967 = vst [vmem:[#allocation2 + $0x38] sm:$0xff] %v959
        %p968 = scmp.eq.s32.totalorder %s19, 1
        // Predicated region
        $region63: #{_lambda_.12} parent=53 // pred_check
          %p969 = pneg %p968
        $region64: #{_lambda_.12} parent=53 // pred_check_branch
          %971 = sbr.rel (%p969) target = $region66
        $region65: #{_lambda_.12} parent=53 // pred_region
          %v972 = vld [vmem:[#allocation2] sm:$0xff]
          %v973 = vld [vmem:[#allocation2 + $0x8] sm:$0xff]
          %v974 = vld [vmem:[#allocation2 + $0x10] sm:$0xff]
          %v975 = vld [vmem:[#allocation2 + $0x18] sm:$0xff]
          %v976 = vld [vmem:[#allocation2 + $0x20] sm:$0xff]
          %v977 = vld [vmem:[#allocation2 + $0x28] sm:$0xff]
          %v978 = vld [vmem:[#allocation2 + $0x30] sm:$0xff]
          %v979 = vld [vmem:[#allocation2 + $0x38] sm:$0xff]
          %v980 = vld [vmem:[%s2] sm:$0x1]
          %v982 = vlaneseq
          %v983 = vshrl.u32 %v982, 7
          %v984 = vsub.s32 0, %v983
          %v985 = vrot.slane %v980, %v984
          %v987 = vadd.f32 %v972, %v985
          %v988 = vadd.f32 %v973, %v985
          %v989 = vadd.f32 %v974, %v985
          %v990 = vadd.f32 %v975, %v985
          %v991 = vadd.f32 %v976, %v985
          %v992 = vadd.f32 %v977, %v985
          %v993 = vadd.f32 %v978, %v985
          %v994 = vadd.f32 %v979, %v985
          %v995 = vmax.f32 %v987, 0.0
          %v996 = vmax.f32 %v988, 0.0
          %v997 = vmax.f32 %v989, 0.0
          %v998 = vmax.f32 %v990, 0.0
          %v999 = vmax.f32 %v991, 0.0
          %v1000 = vmax.f32 %v992, 0.0
          %v1001 = vmax.f32 %v993, 0.0
          %v1002 = vmax.f32 %v994, 0.0
          %v1003 = vpack.c.bf16 %v996, %v995
          %v1004 = vpack.c.bf16 %v998, %v997
          %v1005 = vpack.c.bf16 %v1000, %v999
          %v1006 = vpack.c.bf16 %v1002, %v1001
          %v1011 = vunpack.c.l.b16 %v1003
          %v1012 = vunpack.c.h.b16 %v1003
          %v1013 = vunpack.c.l.b16 %v1004
          %v1014 = vunpack.c.h.b16 %v1004
          %v1015 = vunpack.c.l.b16 %v1005
          %v1016 = vunpack.c.h.b16 %v1005
          %v1017 = vunpack.c.l.b16 %v1006
          %v1018 = vunpack.c.h.b16 %v1006
          %v1019 = vpack.c.b16 %v1011, %v1011
          %v1020 = vpack.c.b16 %v1012, %v1012
          %v1021 = vpack.c.b16 %v1013, %v1013
          %v1022 = vpack.c.b16 %v1014, %v1014
          %v1023 = vpack.c.b16 %v1015, %v1015
          %v1024 = vpack.c.b16 %v1016, %v1016
          %v1025 = vpack.c.b16 %v1017, %v1017
          %v1026 = vpack.c.b16 %v1018, %v1018
          %1035 = vst [vmem:[%s286] sm:$0xf] %v1019
          %1036 = vst [vmem:[%s286 + $0x4] sm:$0xf] %v1020
          %1037 = vst [vmem:[%s286 + $0x8] sm:$0xf] %v1021
          %1038 = vst [vmem:[%s286 + $0xc] sm:$0xf] %v1022
          %1039 = vst [vmem:[%s286 + $0x10] sm:$0xf] %v1023
          %1040 = vst [vmem:[%s286 + $0x14] sm:$0xf] %v1024
          %1041 = vst [vmem:[%s286 + $0x18] sm:$0xf] %v1025
          %1042 = vst [vmem:[%s286 + $0x1c] sm:$0xf] %v1026
        $region66: #{_lambda_.12} parent=53 // pred_fallthru
          _
        %s1043 = smul.u32 8, %s18
        %p1044 = scmp.lt.s32.totalorder %s1043, 15
        %s1045 = scalar_select %p1044, %s1043, 15
        %s1046 = smul.addr %s1045, 4
        %s1047 = scalar_lea.vmem %s3, %s1046
        // Predicated region
        $region67: #{_lambda_.12} parent=53 // pred_check
          %p1048 = pneg %p119
        $region68: #{_lambda_.12} parent=53 // pred_check_branch
          %1050 = sbr.rel (%p1048) target = $region70
        $region69: #{_lambda_.12} parent=53 // pred_region
          %s1051 = smul.u32 8, %s18
        $region70: #{_lambda_.12} parent=53 // pred_fallthru
          _
      $region54: #{_lambda_.12} parent=5 // pred_fallthru
        _
      %p1052 = scmp.le.s32.totalorder 2, %s9
      // Predicated region
      $region71: #{_lambda_.12} parent=5 // pred_check
        %p1053 = pneg %p1052
      $region72: #{_lambda_.12} parent=5 // pred_check_branch
        %1055 = sbr.rel (%p1053) target = $region74
      $region73: #{_lambda_.12} parent=5 // pred_region
        %s1056 = ssub.s32 %s9, 2
        // Predicated region
        $region75: #{_lambda_.12} parent=73 // pred_check
          %p1057 = pneg %p125
        $region76: #{_lambda_.12} parent=73 // pred_check_branch
          %1059 = sbr.rel (%p1057) target = $region78
        $region77: #{_lambda_.12} parent=73 // pred_region
          %s1060 = smul.u32 8, %s20
          %p1061 = scmp.lt.s32.totalorder %s1060, 15
          %s1062 = scalar_select %p1061, %s1060, 15
          %s1063 = smul.addr %s1062, 4
          %s1064 = scalar_lea.vmem %s3, %s1063
        $region78: #{_lambda_.12} parent=73 // pred_fallthru
          _
      $region74: #{_lambda_.12} parent=5 // pred_fallthru
        _
    $region6: #{_lambda_.12} parent=1 // loop_footer
      %s13 = sadd.s32 1, %s9
    $region7: #{_lambda_.12} parent=1 // loop_footer_branch
      %8 = sbr.rel target = $region3
    $region8: #{_lambda_.12} parent=1 // loop_exit
      _

// kernel: _lambda_.10
$region0: #{_lambda_.10}
  #allocation0 [shape = 'u32[]', space=smem, size = 0x4, offset = 0x4, fixed_abs, tag = 'smem constant byte address 0x4 - core index']
  #allocation1 [shape = 'u32[144,128]{1,0:T(1,128)}', space=vmem, size = 0x12000, scoped, tag = 'internal scratch']
  %s0 = inlined_call_operand.vmem [shape: bf16[128,640], index: 0, kind: input, shape index: {}]
  %s1 = inlined_call_operand.vmem [shape: bf16[640,128], index: 1, kind: input, shape index: {}]
  %s2 = inlined_call_operand.vmem [shape: f32[1,128], index: 2, kind: input, shape index: {}]
  %s3 = inlined_call_operand.vmem [shape: bf16[128,128], index: 3, kind: output, shape index: {}]
  %s4 = sld [smem:[#allocation0]]
  $region45: #{_lambda_.10} parent=0
    _
  %s6 = ssub.s32 1, %s4
  %s7 = scalar_select 0, %s6, %s4
  loop: start=0, step=1, limit=4
  $region2: #{_lambda_.10} parent=0 // loop_pre_header
    _
  $region3: #{_lambda_.10} parent=0 // loop_header
    %s9 = sphi 0, %s13
    %p10 = scmp.ge.s32.totalorder %s9, 4
    %s16 = sphi 0, %s28
    %s17 = sphi 0, %s24
    %s18 = sphi 0, %s16
    %s19 = sphi 0, %s17
    %s20 = sphi 0, %s18
    %s21 = sphi 0, %s19
    %s33 = sphi 0, %s35
    %s36 = sphi 0, %s33
    %s37 = sphi 0, %s36
    %s53 = sphi 0, %s37
    %s59 = sphi 0, %s61
    %s62 = sphi 0, %s59
    %s63 = sphi 0, %s62
    %s79 = sphi 0, %s63
    %s83 = sphi 0, %s83
    %s85 = sphi 0, %s83
    %s86 = sphi 0, %s85
    %s100 = sphi 0, %s86
    %s106 = sphi 0, %s108
    %s109 = sphi 0, %s106
    %s110 = sphi 0, %s109
    %s126 = sphi 0, %s110
  $region4: #{_lambda_.10} parent=0 // loop_header_branch
    %12 = sbr.rel (%p10) target = $region8
  $region5: #{_lambda_.10} parent=0 // loop_body
    %s14 = ssub.s32 %s9, 1
    %s15 = ssub.s32 %s9, 2
    %s22 = sadd.s32 1, %s17
    %p23 = scmp.ge.s32.totalorder %s22, 1
    %s24 = scalar_select %p23, 0, %s22
    %s25 = sadd.s32 1, %s16
    %s26 = scalar_select %p23, %s25, %s16
    %p27 = scmp.ge.s32.totalorder %s26, 2
    %s28 = scalar_select %p27, 0, %s26
    %s29 = ssub.s32 %s16, %s28
    %s30 = ssub.s32 %s17, %s24
    %s31 = sor.u32 %s29, %s30
    %p32 = scmp.eq.s32.totalorder %s31, 0
    %s34 = sadd.s32 %s33, 1
    %s35 = scalar_select %p32, %s33, %s34
    %p38 = pneg %p32
    %p39 = scmp.eq.s32.totalorder %s9, 1
    %p40 = por %p38, %p39
    %p41 = scmp.ne.s32.totalorder %s33, %s36
    %p42 = scmp.eq.s32.totalorder %s9, 0
    %p43 = por %p41, %p42
    %p44 = scmp.ne.s32.totalorder %s33, %s36
    %p45 = scmp.eq.s32.totalorder %s14, 1
    %p46 = por %p44, %p45
    %p47 = scmp.ne.s32.totalorder %s36, %s37
    %p48 = scmp.eq.s32.totalorder %s14, 0
    %p49 = por %p47, %p48
    %p50 = scmp.ne.s32.totalorder %s36, %s37
    %p51 = scmp.eq.s32.totalorder %s15, 1
    %p52 = por %p50, %p51
    %p54 = scmp.ne.s32.totalorder %s37, %s53
    %p55 = scmp.eq.s32.totalorder %s15, 0
    %p56 = por %p54, %p55
    %s57 = ssub.s32 %s17, %s24
    %p58 = scmp.eq.s32.totalorder %s57, 0
    %s60 = sadd.s32 %s59, 1
    %s61 = scalar_select %p58, %s59, %s60
    %p64 = pneg %p58
    %p65 = scmp.eq.s32.totalorder %s9, 1
    %p66 = por %p64, %p65
    %p67 = scmp.ne.s32.totalorder %s59, %s62
    %p68 = scmp.eq.s32.totalorder %s9, 0
    %p69 = por %p67, %p68
    %p70 = scmp.ne.s32.totalorder %s59, %s62
    %p71 = scmp.eq.s32.totalorder %s14, 1
    %p72 = por %p70, %p71
    %p73 = scmp.ne.s32.totalorder %s62, %s63
    %p74 = scmp.eq.s32.totalorder %s14, 0
    %p75 = por %p73, %p74
    %p76 = scmp.ne.s32.totalorder %s62, %s63
    %p77 = scmp.eq.s32.totalorder %s15, 1
    %p78 = por %p76, %p77
    %p80 = scmp.ne.s32.totalorder %s63, %s79
    %p81 = scmp.eq.s32.totalorder %s15, 0
    %p82 = por %p80, %p81
    %s84 = sadd.s32 %s83, 1
    %p87 = scmp.eq.s32.totalorder %s9, 1
    %p88 = scmp.ne.s32.totalorder %s83, %s85
    %p89 = scmp.eq.s32.totalorder %s9, 0
    %p90 = por %p88, %p89
    %p91 = scmp.ne.s32.totalorder %s83, %s85
    %p92 = scmp.eq.s32.totalorder %s14, 1
    %p93 = por %p91, %p92
    %p94 = scmp.ne.s32.totalorder %s85, %s86
    %p95 = scmp.eq.s32.totalorder %s14, 0
    %p96 = por %p94, %p95
    %p97 = scmp.ne.s32.totalorder %s85, %s86
    %p98 = scmp.eq.s32.totalorder %s15, 1
    %p99 = por %p97, %p98
    %p101 = scmp.ne.s32.totalorder %s86, %s100
    %p102 = scmp.eq.s32.totalorder %s15, 0
    %p103 = por %p101, %p102
    %s104 = ssub.s32 %s16, %s28
    %p105 = scmp.eq.s32.totalorder %s104, 0
    %s107 = sadd.s32 %s106, 1
    %s108 = scalar_select %p105, %s106, %s107
    %p111 = pneg %p105
    %p112 = scmp.eq.s32.totalorder %s9, 1
    %p113 = por %p111, %p112
    %p114 = scmp.ne.s32.totalorder %s106, %s109
    %p115 = scmp.eq.s32.totalorder %s9, 0
    %p116 = por %p114, %p115
    %p117 = scmp.ne.s32.totalorder %s106, %s109
    %p118 = scmp.eq.s32.totalorder %s14, 1
    %p119 = por %p117, %p118
    %p120 = scmp.ne.s32.totalorder %s109, %s110
    %p121 = scmp.eq.s32.totalorder %s14, 0
    %p122 = por %p120, %p121
    %p123 = scmp.ne.s32.totalorder %s109, %s110
    %p124 = scmp.eq.s32.totalorder %s15, 1
    %p125 = por %p123, %p124
    %p127 = scmp.ne.s32.totalorder %s110, %s126
    %p128 = scmp.eq.s32.totalorder %s15, 0
    %p129 = por %p127, %p128
    %p130 = scmp.le.s32.totalorder 1, %s9
    %p131 = scmp.lt.s32.totalorder %s9, 3
    %p132 = pnand %p130, %p131
    %p133 = pneg %p132
    // Predicated region
    $region9: #{_lambda_.10} parent=5 // pred_check
      _
    $region10: #{_lambda_.10} parent=5 // pred_check_branch
      %135 = sbr.rel (%p132) target = $region12
    $region11: #{_lambda_.10} parent=5 // pred_region
      %s136 = ssub.s32 %s9, 1
      // Predicated region
      $region13: #{_lambda_.10} parent=11 // pred_check
        %p137 = pneg %p75
      $region14: #{_lambda_.10} parent=11 // pred_check_branch
        %139 = sbr.rel (%p137) target = $region16
      $region15: #{_lambda_.10} parent=11 // pred_region
        %s140 = smul.u32 80, %s19
        %p141 = scmp.lt.s32.totalorder %s140, 79
        %s142 = scalar_select %p141, %s140, 79
        %s143 = smul.addr %s142, 4
        %s144 = scalar_lea.vmem %s1, %s143
        %s145 = smul.u32 80, %s19
      $region16: #{_lambda_.10} parent=11 // pred_fallthru
        _
      // Predicated region
      $region17: #{_lambda_.10} parent=11 // pred_check
        %p146 = pneg %p96
      $region18: #{_lambda_.10} parent=11 // pred_check_branch
        %148 = sbr.rel (%p146) target = $region20
      $region19: #{_lambda_.10} parent=11 // pred_region
        _
      $region20: #{_lambda_.10} parent=11 // pred_fallthru
        _
    $region12: #{_lambda_.10} parent=5 // pred_fallthru
      _
    %p149 = scmp.lt.s32.totalorder %s9, 2
    // Predicated region
    $region21: #{_lambda_.10} parent=5 // pred_check
      %p150 = pneg %p149
    $region22: #{_lambda_.10} parent=5 // pred_check_branch
      %152 = sbr.rel (%p150) target = $region24
    $region23: #{_lambda_.10} parent=5 // pred_region
      // Predicated region
      $region25: #{_lambda_.10} parent=23 // pred_check
        %p153 = pneg %p43
      $region26: #{_lambda_.10} parent=23 // pred_check_branch
        %155 = sbr.rel (%p153) target = $region28
      $region27: #{_lambda_.10} parent=23 // pred_region
        %s156 = smul.u32 8, %s16
        %s157 = smul.u32 5, %s17
        %p158 = scmp.lt.s32.totalorder %s156, 15
        %s159 = scalar_select %p158, %s156, 15
        %p160 = scmp.lt.s32.totalorder %s157, 4
        %s161 = scalar_select %p160, %s157, 4
        %s162 = smul.addr %s159, 5
        %s163 = sadd.s32 %s161, %s162
        %s164 = smul.addr %s163, 4
        %s165 = scalar_lea.vmem %s0, %s164
        %s166 = smul.u32 8, %s16
        %s167 = smul.u32 5, %s17
      $region28: #{_lambda_.10} parent=23 // pred_fallthru
        _
    $region24: #{_lambda_.10} parent=5 // pred_fallthru
      _
    %p168 = scmp.le.s32.totalorder 1, %s9
    %p169 = scmp.lt.s32.totalorder %s9, 3
    %p170 = pnand %p168, %p169
    %p171 = pneg %p170
    // Predicated region
    $region29: #{_lambda_.10} parent=5 // pred_check
      _
    $region30: #{_lambda_.10} parent=5 // pred_check_branch
      %173 = sbr.rel (%p170) target = $region32
    $region31: #{_lambda_.10} parent=5 // pred_region
      %s174 = ssub.s32 %s9, 1
      %s175 = smul.u32 8, %s18
      %s176 = smul.u32 5, %s19
      %p177 = scmp.lt.s32.totalorder %s175, 15
      %s178 = scalar_select %p177, %s175, 15
      %p179 = scmp.lt.s32.totalorder %s176, 4
      %s180 = scalar_select %p179, %s176, 4
      %s181 = smul.addr %s178, 5
      %s182 = sadd.s32 %s180, %s181
      %s183 = smul.addr %s182, 4
      %s184 = scalar_lea.vmem %s0, %s183
      %p185 = pneg %p49
      %p186 = pneg %p46
      %s187 = smul.u32 80, %s19
      %p188 = scmp.lt.s32.totalorder %s187, 79
      %s189 = scalar_select %p188, %s187, 79
      %s190 = smul.addr %s189, 4
      %s191 = scalar_lea.vmem %s1, %s190
      %p192 = pneg %p75
      %p193 = pneg %p72
      %p194 = pneg %p96
      %p195 = pneg %p93
      %p196 = pneg %p122
      %p197 = pneg %p119
      %s198 = smul.u32 8, %s18
      %p199 = scmp.lt.s32.totalorder %s198, 15
      %s200 = scalar_select %p199, %s198, 15
      %s201 = smul.addr %s200, 4
      %s202 = scalar_lea.vmem %s3, %s201
      %s203 = smul.u32 8, %s18
      %s204 = smul.u32 5, %s19
      %p205 = scmp.lt.s32.totalorder %s203, 15
      %s206 = scalar_select %p205, %s203, 15
      %p207 = scmp.lt.s32.totalorder %s204, 4
      %s208 = scalar_select %p207, %s204, 4
      %s209 = smul.addr %s206, 5
      %s210 = sadd.s32 %s208, %s209
      %s211 = smul.addr %s210, 4
      %s212 = scalar_lea.vmem %s0, %s211
      %s213 = smul.u32 8, %s18
      %s214 = smul.u32 5, %s19
      %s215 = smul.u32 80, %s19
      %p216 = scmp.lt.s32.totalorder %s215, 79
      %s217 = scalar_select %p216, %s215, 79
      %s218 = smul.addr %s217, 4
      %s219 = scalar_lea.vmem %s1, %s218
      %s220 = smul.u32 80, %s19
      %s221 = smul.u32 8, %s18
      %p222 = scmp.lt.s32.totalorder %s221, 15
      %s223 = scalar_select %p222, %s221, 15
      %s224 = smul.addr %s223, 4
      %s225 = scalar_lea.vmem %s3, %s224
      %s226 = smul.u32 8, %s18
      %v228 = vld [vmem:[%s212] sm:$0xff]
      %v229 = vld [vmem:[%s212 + $0x8] sm:$0xff]
      %v230 = vld [vmem:[%s212 + $0x10] sm:$0xf]
      %v231 = vld [vmem:[%s212 + $0x14] sm:$0xff]
      %v232 = vld [vmem:[%s212 + $0x1c] sm:$0xff]
      %v233 = vld [vmem:[%s212 + $0x24] sm:$0xf]
      %v234 = vld [vmem:[%s212 + $0x28] sm:$0xff]
      %v235 = vld [vmem:[%s212 + $0x30] sm:$0xff]
      %v236 = vld [vmem:[%s212 + $0x38] sm:$0xf]
      %v237 = vld [vmem:[%s212 + $0x3c] sm:$0xff]
      %v238 = vld [vmem:[%s212 + $0x44] sm:$0xff]
      %v239 = vld [vmem:[%s212 + $0x4c] sm:$0xf]
      %v240 = vld [vmem:[%s212 + $0x50] sm:$0xff]
      %v241 = vld [vmem:[%s212 + $0x58] sm:$0xff]
      %v242 = vld [vmem:[%s212 + $0x60] sm:$0xf]
      %v243 = vld [vmem:[%s212 + $0x64] sm:$0xff]
      %v244 = vld [vmem:[%s212 + $0x6c] sm:$0xff]
      %v245 = vld [vmem:[%s212 + $0x74] sm:$0xf]
      %v246 = vld [vmem:[%s212 + $0x78] sm:$0xff]
      %v247 = vld [vmem:[%s212 + $0x80] sm:$0xff]
      %v248 = vld [vmem:[%s212 + $0x88] sm:$0xf]
      %v249 = vld [vmem:[%s212 + $0x8c] sm:$0xff]
      %v250 = vld [vmem:[%s212 + $0x94] sm:$0xff]
      %v251 = vld [vmem:[%s212 + $0x9c] sm:$0xf]
      %v252 = vld [vmem:[%s219] sm:$0xf]
      %v253 = vld [vmem:[%s219 + $0x4] sm:$0xf]
      %v254 = vld [vmem:[%s219 + $0x8] sm:$0xf]
      %v255 = vld [vmem:[%s219 + $0xc] sm:$0xf]
      %v256 = vld [vmem:[%s219 + $0x10] sm:$0xf]
      %v257 = vld [vmem:[%s219 + $0x14] sm:$0xf]
      %v258 = vld [vmem:[%s219 + $0x18] sm:$0xf]
      %v259 = vld [vmem:[%s219 + $0x1c] sm:$0xf]
      %v260 = vld [vmem:[%s219 + $0x20] sm:$0xf]
      %v261 = vld [vmem:[%s219 + $0x24] sm:$0xf]
      %v262 = vld [vmem:[%s219 + $0x28] sm:$0xf]
      %v263 = vld [vmem:[%s219 + $0x2c] sm:$0xf]
      %v264 = vld [vmem:[%s219 + $0x30] sm:$0xf]
      %v265 = vld [vmem:[%s219 + $0x34] sm:$0xf]
      %v266 = vld [vmem:[%s219 + $0x38] sm:$0xf]
      %v267 = vld [vmem:[%s219 + $0x3c] sm:$0xf]
      %v268 = vld [vmem:[%s219 + $0x40] sm:$0xf]
      %v269 = vld [vmem:[%s219 + $0x44] sm:$0xf]
      %v270 = vld [vmem:[%s219 + $0x48] sm:$0xf]
      %v271 = vld [vmem:[%s219 + $0x4c] sm:$0xf]
      %v272 = vld [vmem:[%s219 + $0x50] sm:$0xf]
      %v273 = vld [vmem:[%s219 + $0x54] sm:$0xf]
      %v274 = vld [vmem:[%s219 + $0x58] sm:$0xf]
      %v275 = vld [vmem:[%s219 + $0x5c] sm:$0xf]
      %v276 = vld [vmem:[%s219 + $0x60] sm:$0xf]
      %v277 = vld [vmem:[%s219 + $0x64] sm:$0xf]
      %v278 = vld [vmem:[%s219 + $0x68] sm:$0xf]
      %v279 = vld [vmem:[%s219 + $0x6c] sm:$0xf]
      %v280 = vld [vmem:[%s219 + $0x70] sm:$0xf]
      %v281 = vld [vmem:[%s219 + $0x74] sm:$0xf]
      %v282 = vld [vmem:[%s219 + $0x78] sm:$0xf]
      %v283 = vld [vmem:[%s219 + $0x7c] sm:$0xf]
      %v284 = vld [vmem:[%s219 + $0x80] sm:$0xf]
      %v285 = vld [vmem:[%s219 + $0x84] sm:$0xf]
      %v286 = vld [vmem:[%s219 + $0x88] sm:$0xf]
      %v287 = vld [vmem:[%s219 + $0x8c] sm:$0xf]
      %v288 = vld [vmem:[%s219 + $0x90] sm:$0xf]
      %v289 = vld [vmem:[%s219 + $0x94] sm:$0xf]
      %v290 = vld [vmem:[%s219 + $0x98] sm:$0xf]
      %v291 = vld [vmem:[%s219 + $0x9c] sm:$0xf]
      %v292 = vld [vmem:[%s219 + $0xa0] sm:$0xf]
      %v293 = vld [vmem:[%s219 + $0xa4] sm:$0xf]
      %v294 = vld [vmem:[%s219 + $0xa8] sm:$0xf]
      %v295 = vld [vmem:[%s219 + $0xac] sm:$0xf]
      %v296 = vld [vmem:[%s219 + $0xb0] sm:$0xf]
      %v297 = vld [vmem:[%s219 + $0xb4] sm:$0xf]
      %v298 = vld [vmem:[%s219 + $0xb8] sm:$0xf]
      %v299 = vld [vmem:[%s219 + $0xbc] sm:$0xf]
      %v300 = vld [vmem:[%s219 + $0xc0] sm:$0xf]
      %v301 = vld [vmem:[%s219 + $0xc4] sm:$0xf]
      %v302 = vld [vmem:[%s219 + $0xc8] sm:$0xf]
      %v303 = vld [vmem:[%s219 + $0xcc] sm:$0xf]
      %v304 = vld [vmem:[%s219 + $0xd0] sm:$0xf]
      %v305 = vld [vmem:[%s219 + $0xd4] sm:$0xf]
      %v306 = vld [vmem:[%s219 + $0xd8] sm:$0xf]
      %v307 = vld [vmem:[%s219 + $0xdc] sm:$0xf]
      %v308 = vld [vmem:[%s219 + $0xe0] sm:$0xf]
      %v309 = vld [vmem:[%s219 + $0xe4] sm:$0xf]
      %v310 = vld [vmem:[%s219 + $0xe8] sm:$0xf]
      %v311 = vld [vmem:[%s219 + $0xec] sm:$0xf]
      %v312 = vld [vmem:[%s219 + $0xf0] sm:$0xf]
      %v313 = vld [vmem:[%s219 + $0xf4] sm:$0xf]
      %v314 = vld [vmem:[%s219 + $0xf8] sm:$0xf]
      %v315 = vld [vmem:[%s219 + $0xfc] sm:$0xf]
      %v316 = vld [vmem:[%s219 + $0x100] sm:$0xf]
      %v317 = vld [vmem:[%s219 + $0x104] sm:$0xf]
      %v318 = vld [vmem:[%s219 + $0x108] sm:$0xf]
      %v319 = vld [vmem:[%s219 + $0x10c] sm:$0xf]
      %v320 = vld [vmem:[%s219 + $0x110] sm:$0xf]
      %v321 = vld [vmem:[%s219 + $0x114] sm:$0xf]
      %v322 = vld [vmem:[%s219 + $0x118] sm:$0xf]
      %v323 = vld [vmem:[%s219 + $0x11c] sm:$0xf]
      %v324 = vld [vmem:[%s219 + $0x120] sm:$0xf]
      %v325 = vld [vmem:[%s219 + $0x124] sm:$0xf]
      %v326 = vld [vmem:[%s219 + $0x128] sm:$0xf]
      %v327 = vld [vmem:[%s219 + $0x12c] sm:$0xf]
      %v328 = vld [vmem:[%s219 + $0x130] sm:$0xf]
      %v329 = vld [vmem:[%s219 + $0x134] sm:$0xf]
      %v330 = vld [vmem:[%s219 + $0x138] sm:$0xf]
      %v331 = vld [vmem:[%s219 + $0x13c] sm:$0xf]
      %v332 = vld [vmem:[%s2] sm:$0x1]
      %v334 = vlaneseq
      %v335 = vshrl.u32 %v334, 7
      %v336 = vsub.s32 0, %v335
      %v337 = vrot.slane %v332, %v336
      %v363 = vunpack.c.l.b16 %v228
      %v364 = vunpack.c.h.b16 %v228
      %v365 = vunpack.c.l.b16 %v229
      %v366 = vunpack.c.h.b16 %v229
      %v367 = vunpack.c.l.b16 %v230
      %v368 = vunpack.c.l.b16 %v231
      %v369 = vunpack.c.h.b16 %v231
      %v370 = vunpack.c.l.b16 %v232
      %v371 = vunpack.c.h.b16 %v232
      %v372 = vunpack.c.l.b16 %v233
      %v373 = vunpack.c.l.b16 %v234
      %v374 = vunpack.c.h.b16 %v234
      %v375 = vunpack.c.l.b16 %v235
      %v376 = vunpack.c.h.b16 %v235
      %v377 = vunpack.c.l.b16 %v236
      %v378 = vunpack.c.l.b16 %v237
      %v379 = vunpack.c.h.b16 %v237
      %v380 = vunpack.c.l.b16 %v238
      %v381 = vunpack.c.h.b16 %v238
      %v382 = vunpack.c.l.b16 %v239
      %v383 = vunpack.c.l.b16 %v240
      %v384 = vunpack.c.h.b16 %v240
      %v385 = vunpack.c.l.b16 %v241
      %v386 = vunpack.c.h.b16 %v241
      %v387 = vunpack.c.l.b16 %v242
      %v388 = vunpack.c.l.b16 %v243
      %v389 = vunpack.c.h.b16 %v243
      %v390 = vunpack.c.l.b16 %v244
      %v391 = vunpack.c.h.b16 %v244
      %v392 = vunpack.c.l.b16 %v245
      %v393 = vunpack.c.l.b16 %v246
      %v394 = vunpack.c.h.b16 %v246
      %v395 = vunpack.c.l.b16 %v247
      %v396 = vunpack.c.h.b16 %v247
      %v397 = vunpack.c.l.b16 %v248
      %v398 = vunpack.c.l.b16 %v249
      %v399 = vunpack.c.h.b16 %v249
      %v400 = vunpack.c.l.b16 %v250
      %v401 = vunpack.c.h.b16 %v250
      %v402 = vunpack.c.l.b16 %v251
      %v403 = vpack.c.b16 %v368, %v363
      %v404 = vpack.c.b16 %v369, %v364
      %v405 = vpack.c.b16 %v370, %v365
      %v406 = vpack.c.b16 %v371, %v366
      %v407 = vpack.c.b16 %v372, %v367
      %v408 = vpack.c.b16 %v378, %v373
      %v409 = vpack.c.b16 %v379, %v374
      %v410 = vpack.c.b16 %v380, %v375
      %v411 = vpack.c.b16 %v381, %v376
      %v412 = vpack.c.b16 %v382, %v377
      %v413 = vpack.c.b16 %v388, %v383
      %v414 = vpack.c.b16 %v389, %v384
      %v415 = vpack.c.b16 %v390, %v385
      %v416 = vpack.c.b16 %v391, %v386
      %v417 = vpack.c.b16 %v392, %v387
      %v418 = vpack.c.b16 %v398, %v393
      %v419 = vpack.c.b16 %v399, %v394
      %v420 = vpack.c.b16 %v400, %v395
      %v421 = vpack.c.b16 %v401, %v396
      %v422 = vpack.c.b16 %v402, %v397
      %v523 = vunpack.c.l.b16 %v252
      %v524 = vunpack.c.l.b16 %v253
      %v525 = vunpack.c.l.b16 %v254
      %v526 = vunpack.c.l.b16 %v255
      %v527 = vunpack.c.l.b16 %v256
      %v528 = vunpack.c.l.b16 %v257
      %v529 = vunpack.c.l.b16 %v258
      %v530 = vunpack.c.l.b16 %v259
      %v531 = vunpack.c.l.b16 %v260
      %v532 = vunpack.c.l.b16 %v261
      %v533 = vunpack.c.l.b16 %v262
      %v534 = vunpack.c.l.b16 %v263
      %v535 = vunpack.c.l.b16 %v264
      %v536 = vunpack.c.l.b16 %v265
      %v537 = vunpack.c.l.b16 %v266
      %v538 = vunpack.c.l.b16 %v267
      %v539 = vunpack.c.l.b16 %v268
      %v540 = vunpack.c.l.b16 %v269
      %v541 = vunpack.c.l.b16 %v270
      %v542 = vunpack.c.l.b16 %v271
      %v543 = vunpack.c.l.b16 %v272
      %v544 = vunpack.c.l.b16 %v273
      %v545 = vunpack.c.l.b16 %v274
      %v546 = vunpack.c.l.b16 %v275
      %v547 = vunpack.c.l.b16 %v276
      %v548 = vunpack.c.l.b16 %v277
      %v549 = vunpack.c.l.b16 %v278
      %v550 = vunpack.c.l.b16 %v279
      %v551 = vunpack.c.l.b16 %v280
      %v552 = vunpack.c.l.b16 %v281
      %v553 = vunpack.c.l.b16 %v282
      %v554 = vunpack.c.l.b16 %v283
      %v555 = vunpack.c.l.b16 %v284
      %v556 = vunpack.c.l.b16 %v285
      %v557 = vunpack.c.l.b16 %v286
      %v558 = vunpack.c.l.b16 %v287
      %v559 = vunpack.c.l.b16 %v288
      %v560 = vunpack.c.l.b16 %v289
      %v561 = vunpack.c.l.b16 %v290
      %v562 = vunpack.c.l.b16 %v291
      %v563 = vunpack.c.l.b16 %v292
      %v564 = vunpack.c.l.b16 %v293
      %v565 = vunpack.c.l.b16 %v294
      %v566 = vunpack.c.l.b16 %v295
      %v567 = vunpack.c.l.b16 %v296
      %v568 = vunpack.c.l.b16 %v297
      %v569 = vunpack.c.l.b16 %v298
      %v570 = vunpack.c.l.b16 %v299
      %v571 = vunpack.c.l.b16 %v300
      %v572 = vunpack.c.l.b16 %v301
      %v573 = vunpack.c.l.b16 %v302
      %v574 = vunpack.c.l.b16 %v303
      %v575 = vunpack.c.l.b16 %v304
      %v576 = vunpack.c.l.b16 %v305
      %v577 = vunpack.c.l.b16 %v306
      %v578 = vunpack.c.l.b16 %v307
      %v579 = vunpack.c.l.b16 %v308
      %v580 = vunpack.c.l.b16 %v309
      %v581 = vunpack.c.l.b16 %v310
      %v582 = vunpack.c.l.b16 %v311
      %v583 = vunpack.c.l.b16 %v312
      %v584 = vunpack.c.l.b16 %v313
      %v585 = vunpack.c.l.b16 %v314
      %v586 = vunpack.c.l.b16 %v315
      %v587 = vunpack.c.l.b16 %v316
      %v588 = vunpack.c.l.b16 %v317
      %v589 = vunpack.c.l.b16 %v318
      %v590 = vunpack.c.l.b16 %v319
      %v591 = vunpack.c.l.b16 %v320
      %v592 = vunpack.c.l.b16 %v321
      %v593 = vunpack.c.l.b16 %v322
      %v594 = vunpack.c.l.b16 %v323
      %v595 = vunpack.c.l.b16 %v324
      %v596 = vunpack.c.l.b16 %v325
      %v597 = vunpack.c.l.b16 %v326
      %v598 = vunpack.c.l.b16 %v327
      %v599 = vunpack.c.l.b16 %v328
      %v600 = vunpack.c.l.b16 %v329
      %v601 = vunpack.c.l.b16 %v330
      %v602 = vunpack.c.l.b16 %v331
      %v603 = vpack.c.b16 %v524, %v523
      %v604 = vpack.c.b16 %v526, %v525
      %v605 = vpack.c.b16 %v528, %v527
      %v606 = vpack.c.b16 %v530, %v529
      %v607 = vpack.c.b16 %v532, %v531
      %v608 = vpack.c.b16 %v534, %v533
      %v609 = vpack.c.b16 %v536, %v535
      %v610 = vpack.c.b16 %v538, %v537
      %v611 = vpack.c.b16 %v540, %v539
      %v612 = vpack.c.b16 %v542, %v541
      %v613 = vpack.c.b16 %v544, %v543
      %v614 = vpack.c.b16 %v546, %v545
      %v615 = vpack.c.b16 %v548, %v547
      %v616 = vpack.c.b16 %v550, %v549
      %v617 = vpack.c.b16 %v552, %v551
      %v618 = vpack.c.b16 %v554, %v553
      %v619 = vpack.c.b16 %v556, %v555
      %v620 = vpack.c.b16 %v558, %v557
      %v621 = vpack.c.b16 %v560, %v559
      %v622 = vpack.c.b16 %v562, %v561
      %v623 = vpack.c.b16 %v564, %v563
      %v624 = vpack.c.b16 %v566, %v565
      %v625 = vpack.c.b16 %v568, %v567
      %v626 = vpack.c.b16 %v570, %v569
      %v627 = vpack.c.b16 %v572, %v571
      %v628 = vpack.c.b16 %v574, %v573
      %v629 = vpack.c.b16 %v576, %v575
      %v630 = vpack.c.b16 %v578, %v577
      %v631 = vpack.c.b16 %v580, %v579
      %v632 = vpack.c.b16 %v582, %v581
      %v633 = vpack.c.b16 %v584, %v583
      %v634 = vpack.c.b16 %v586, %v585
      %v635 = vpack.c.b16 %v588, %v587
      %v636 = vpack.c.b16 %v590, %v589
      %v637 = vpack.c.b16 %v592, %v591
      %v638 = vpack.c.b16 %v594, %v593
      %v639 = vpack.c.b16 %v596, %v595
      %v640 = vpack.c.b16 %v598, %v597
      %v641 = vpack.c.b16 %v600, %v599
      %v642 = vpack.c.b16 %v602, %v601
      %683 = vmatprep.subr.bf16.mxu0 0
      %684 = vmatpush1.bf16.msra.mxu0 %v603
      %685 = vmatprep.subr.bf16.mxu0 0
      %686 = vmatpush1.bf16.msra.mxu0 %v604
      %687 = vmatprep.subr.bf16.mxu0 0
      %688 = vmatpush1.bf16.msra.mxu0 %v605
      %689 = vmatprep.subr.bf16.mxu0 0
      %690 = vmatpush1.bf16.msra.mxu0 %v606
      %691 = vmatprep.subr.bf16.mxu0 0
      %692 = vmatpush1.bf16.msra.mxu0 %v607
      %693 = vmatprep.subr.bf16.mxu0 0
      %694 = vmatpush1.bf16.msra.mxu0 %v608
      %695 = vmatprep.subr.bf16.mxu0 0
      %696 = vmatpush1.bf16.msra.mxu0 %v609
      %697 = vmatprep.subr.bf16.mxu0 0
      %698 = vmatpush1.bf16.msra.mxu0 %v610
      %699 = vmatprep.subr.bf16.mxu0 0
      %700 = vmatpush1.bf16.msra.mxu0 %v611
      %701 = vmatprep.subr.bf16.mxu0 0
      %702 = vmatpush1.bf16.msra.mxu0 %v612
      %703 = vmatprep.subr.bf16.mxu0 0
      %704 = vmatpush1.bf16.msra.mxu0 %v613
      %705 = vmatprep.subr.bf16.mxu0 0
      %706 = vmatpush1.bf16.msra.mxu0 %v614
      %707 = vmatprep.subr.bf16.mxu0 0
      %708 = vmatpush1.bf16.msra.mxu0 %v615
      %709 = vmatprep.subr.bf16.mxu0 0
      %710 = vmatpush1.bf16.msra.mxu0 %v616
      %711 = vmatprep.subr.bf16.mxu0 0
      %712 = vmatpush1.bf16.msra.mxu0 %v617
      %713 = vmatprep.subr.bf16.mxu0 0
      %714 = vmatpush1.bf16.msra.mxu0 %v618
      %715 = vmatprep.mubr.bf16.mxu0 %v404
      %716 = vmatmul.mubr.bf16.gmra.mrb[0].mxu0 %v403
      %v717 = vpop.f32.mrb[0].mxu0
      %v718 = vadd.f32 %v337, %v717
      %v719 = vpop.f32.mrb[0].mxu0
      %v720 = vpop.f32.mrb[0].mxu0
      %v721 = vadd.f32 %v337, %v720
      %v722 = vpop.f32.mrb[0].mxu0
      %723 = vmatprep.mubr.bf16.mxu0 %v409
      %724 = vmatmul.mubr.bf16.gmra.mrb[0].mxu0 %v408
      %v725 = vpop.f32.mrb[0].mxu0
      %v726 = vadd.f32 %v337, %v725
      %v727 = vpop.f32.mrb[0].mxu0
      %v728 = vpop.f32.mrb[0].mxu0
      %v729 = vadd.f32 %v337, %v728
      %v730 = vpop.f32.mrb[0].mxu0
      %731 = vmatprep.mubr.bf16.mxu0 %v414
      %732 = vmatmul.mubr.bf16.gmra.mrb[0].mxu0 %v413
      %v733 = vpop.f32.mrb[0].mxu0
      %v734 = vadd.f32 %v337, %v733
      %v735 = vpop.f32.mrb[0].mxu0
      %v736 = vpop.f32.mrb[0].mxu0
      %v737 = vadd.f32 %v337, %v736
      %v738 = vpop.f32.mrb[0].mxu0
      %739 = vmatprep.mubr.bf16.mxu0 %v419
      %740 = vmatmul.mubr.bf16.gmra.mrb[0].mxu0 %v418
      %v741 = vpop.f32.mrb[0].mxu0
      %v742 = vadd.f32 %v337, %v741
      %v743 = vpop.f32.mrb[0].mxu0
      %v744 = vpop.f32.mrb[0].mxu0
      %v745 = vadd.f32 %v337, %v744
      %v746 = vpop.f32.mrb[0].mxu0
      %747 = vdwg.mxu0
      %748 = vmatprep.subr.bf16.mxu0 0
      %749 = vmatpush1.bf16.msra.mxu0 %v619
      %750 = vmatprep.subr.bf16.mxu0 0
      %751 = vmatpush1.bf16.msra.mxu0 %v620
      %752 = vmatprep.subr.bf16.mxu0 0
      %753 = vmatpush1.bf16.msra.mxu0 %v621
      %754 = vmatprep.subr.bf16.mxu0 0
      %755 = vmatpush1.bf16.msra.mxu0 %v622
      %756 = vmatprep.subr.bf16.mxu0 0
      %757 = vmatpush1.bf16.msra.mxu0 %v623
      %758 = vmatprep.subr.bf16.mxu0 0
      %759 = vmatpush1.bf16.msra.mxu0 %v624
      %760 = vmatprep.subr.bf16.mxu0 0
      %761 = vmatpush1.bf16.msra.mxu0 %v625
      %762 = vmatprep.subr.bf16.mxu0 0
      %763 = vmatpush1.bf16.msra.mxu0 %v626
      %764 = vmatprep.subr.bf16.mxu0 0
      %765 = vmatpush1.bf16.msra.mxu0 %v627
      %766 = vmatprep.subr.bf16.mxu0 0
      %767 = vmatpush1.bf16.msra.mxu0 %v628
      %768 = vmatprep.subr.bf16.mxu0 0
      %769 = vmatpush1.bf16.msra.mxu0 %v629
      %770 = vmatprep.subr.bf16.mxu0 0
      %771 = vmatpush1.bf16.msra.mxu0 %v630
      %772 = vmatprep.subr.bf16.mxu0 0
      %773 = vmatpush1.bf16.msra.mxu0 %v631
      %774 = vmatprep.subr.bf16.mxu0 0
      %775 = vmatpush1.bf16.msra.mxu0 %v632
      %776 = vmatprep.subr.bf16.mxu0 0
      %777 = vmatpush1.bf16.msra.mxu0 %v633
      %778 = vmatprep.subr.bf16.mxu0 0
      %779 = vmatpush1.bf16.msra.mxu0 %v634
      %780 = vmatprep.mubr.bf16.mxu0 %v406
      %781 = vmatmul.mubr.bf16.gmra.mrb[0].mxu0 %v405
      %v782 = vpop.f32.mrb[0].mxu0
      %v783 = vadd.f32 %v718, %v782
      %v784 = vpop.f32.mrb[0].mxu0
      %v785 = vpop.f32.mrb[0].mxu0
      %v786 = vadd.f32 %v721, %v785
      %v787 = vpop.f32.mrb[0].mxu0
      %788 = vmatprep.mubr.bf16.mxu0 %v411
      %789 = vmatmul.mubr.bf16.gmra.mrb[0].mxu0 %v410
      %v790 = vpop.f32.mrb[0].mxu0
      %v791 = vadd.f32 %v726, %v790
      %v792 = vpop.f32.mrb[0].mxu0
      %v793 = vpop.f32.mrb[0].mxu0
      %v794 = vadd.f32 %v729, %v793
      %v795 = vpop.f32.mrb[0].mxu0
      %796 = vmatprep.mubr.bf16.mxu0 %v416
      %797 = vmatmul.mubr.bf16.gmra.mrb[0].mxu0 %v415
      %v798 = vpop.f32.mrb[0].mxu0
      %v799 = vadd.f32 %v734, %v798
      %v800 = vpop.f32.mrb[0].mxu0
      %v801 = vpop.f32.mrb[0].mxu0
      %v802 = vadd.f32 %v737, %v801
      %v803 = vpop.f32.mrb[0].mxu0
      %804 = vmatprep.mubr.bf16.mxu0 %v421
      %805 = vmatmul.mubr.bf16.gmra.mrb[0].mxu0 %v420
      %v806 = vpop.f32.mrb[0].mxu0
      %v807 = vadd.f32 %v742, %v806
      %v808 = vpop.f32.mrb[0].mxu0
      %v809 = vpop.f32.mrb[0].mxu0
      %v810 = vadd.f32 %v745, %v809
      %v811 = vpop.f32.mrb[0].mxu0
      %812 = vdwg.mxu0
      %813 = vmatprep.subr.bf16.mxu0 0
      %814 = vmatpush1.bf16.msra.mxu0 %v635
      %815 = vmatprep.subr.bf16.mxu0 0
      %816 = vmatpush1.bf16.msra.mxu0 %v636
      %817 = vmatprep.subr.bf16.mxu0 0
      %818 = vmatpush1.bf16.msra.mxu0 %v637
      %819 = vmatprep.subr.bf16.mxu0 0
      %820 = vmatpush1.bf16.msra.mxu0 %v638
      %821 = vmatprep.subr.bf16.mxu0 0
      %822 = vmatpush1.bf16.msra.mxu0 %v639
      %823 = vmatprep.subr.bf16.mxu0 0
      %824 = vmatpush1.bf16.msra.mxu0 %v640
      %825 = vmatprep.subr.bf16.mxu0 0
      %826 = vmatpush1.bf16.msra.mxu0 %v641
      %827 = vmatprep.subr.bf16.mxu0 0
      %828 = vmatpush1.bf16.msra.mxu0 %v642
      %829 = vmatprep.subr.bf16.mxu0 0
      %830 = vmatpush1.bf16.msra.mxu0 0
      %831 = vmatprep.subr.bf16.mxu0 0
      %832 = vmatpush1.bf16.msra.mxu0 0
      %833 = vmatprep.subr.bf16.mxu0 0
      %834 = vmatpush1.bf16.msra.mxu0 0
      %835 = vmatprep.subr.bf16.mxu0 0
      %836 = vmatpush1.bf16.msra.mxu0 0
      %837 = vmatprep.subr.bf16.mxu0 0
      %838 = vmatpush1.bf16.msra.mxu0 0
      %839 = vmatprep.subr.bf16.mxu0 0
      %840 = vmatpush1.bf16.msra.mxu0 0
      %841 = vmatprep.subr.bf16.mxu0 0
      %842 = vmatpush1.bf16.msra.mxu0 0
      %843 = vmatprep.subr.bf16.mxu0 0
      %844 = vmatpush1.bf16.msra.mxu0 0
      %845 = vmatprep.mubr.bf16.mxu0 0
      %846 = vmatmul.mubr.bf16.gmra.mrb[0].mxu0 %v407
      %v847 = vpop.f32.mrb[0].mxu0
      %v848 = vadd.f32 %v783, %v847
      %v849 = vpop.f32.mrb[0].mxu0
      %v850 = vpop.f32.mrb[0].mxu0
      %v851 = vadd.f32 %v786, %v850
      %v852 = vpop.f32.mrb[0].mxu0
      %853 = vmatprep.mubr.bf16.mxu0 0
      %854 = vmatmul.mubr.bf16.gmra.mrb[0].mxu0 %v412
      %v855 = vpop.f32.mrb[0].mxu0
      %v856 = vadd.f32 %v791, %v855
      %v857 = vpop.f32.mrb[0].mxu0
      %v858 = vpop.f32.mrb[0].mxu0
      %v859 = vadd.f32 %v794, %v858
      %v860 = vpop.f32.mrb[0].mxu0
      %861 = vmatprep.mubr.bf16.mxu0 0
      %862 = vmatmul.mubr.bf16.gmra.mrb[0].mxu0 %v417
      %v863 = vpop.f32.mrb[0].mxu0
      %v864 = vadd.f32 %v799, %v863
      %v865 = vpop.f32.mrb[0].mxu0
      %v866 = vpop.f32.mrb[0].mxu0
      %v867 = vadd.f32 %v802, %v866
      %v868 = vpop.f32.mrb[0].mxu0
      %869 = vmatprep.mubr.bf16.mxu0 0
      %870 = vmatmul.mubr.bf16.gmra.mrb[0].mxu0 %v422
      %v871 = vpop.f32.mrb[0].mxu0
      %v872 = vadd.f32 %v807, %v871
      %v873 = vpop.f32.mrb[0].mxu0
      %v874 = vpop.f32.mrb[0].mxu0
      %v875 = vadd.f32 %v810, %v874
      %v876 = vpop.f32.mrb[0].mxu0
      %877 = vdwg.mxu0
      %v878 = vpack.c.bf16 %v851, %v848
      %v879 = vpack.c.bf16 %v859, %v856
      %v880 = vpack.c.bf16 %v867, %v864
      %v881 = vpack.c.bf16 %v875, %v872
      %v886 = vunpack.c.l.b16 %v878
      %v887 = vunpack.c.h.b16 %v878
      %v888 = vunpack.c.l.b16 %v879
      %v889 = vunpack.c.h.b16 %v879
      %v890 = vunpack.c.l.b16 %v880
      %v891 = vunpack.c.h.b16 %v880
      %v892 = vunpack.c.l.b16 %v881
      %v893 = vunpack.c.h.b16 %v881
      %v894 = vpack.c.b16 %v886, %v886
      %v895 = vpack.c.b16 %v887, %v887
      %v896 = vpack.c.b16 %v888, %v888
      %v897 = vpack.c.b16 %v889, %v889
      %v898 = vpack.c.b16 %v890, %v890
      %v899 = vpack.c.b16 %v891, %v891
      %v900 = vpack.c.b16 %v892, %v892
      %v901 = vpack.c.b16 %v893, %v893
      %910 = vst [vmem:[%s225] sm:$0xf] %v894
      %911 = vst [vmem:[%s225 + $0x4] sm:$0xf] %v895
      %912 = vst [vmem:[%s225 + $0x8] sm:$0xf] %v896
      %913 = vst [vmem:[%s225 + $0xc] sm:$0xf] %v897
      %914 = vst [vmem:[%s225 + $0x10] sm:$0xf] %v898
      %915 = vst [vmem:[%s225 + $0x14] sm:$0xf] %v899
      %916 = vst [vmem:[%s225 + $0x18] sm:$0xf] %v900
      %917 = vst [vmem:[%s225 + $0x1c] sm:$0xf] %v901
      %s918 = smul.u32 8, %s18
      %p919 = scmp.lt.s32.totalorder %s918, 15
      %s920 = scalar_select %p919, %s918, 15
      %s921 = smul.addr %s920, 4
      %s922 = scalar_lea.vmem %s3, %s921
      // Predicated region
      $region33: #{_lambda_.10} parent=31 // pred_check
        %p923 = pneg %p119
      $region34: #{_lambda_.10} parent=31 // pred_check_branch
        %925 = sbr.rel (%p923) target = $region36
      $region35: #{_lambda_.10} parent=31 // pred_region
        %s926 = smul.u32 8, %s18
      $region36: #{_lambda_.10} parent=31 // pred_fallthru
        _
    $region32: #{_lambda_.10} parent=5 // pred_fallthru
      _
    %p927 = scmp.le.s32.totalorder 2, %s9
    // Predicated region
    $region37: #{_lambda_.10} parent=5 // pred_check
      %p928 = pneg %p927
    $region38: #{_lambda_.10} parent=5 // pred_check_branch
      %930 = sbr.rel (%p928) target = $region40
    $region39: #{_lambda_.10} parent=5 // pred_region
      %s931 = ssub.s32 %s9, 2
      // Predicated region
      $region41: #{_lambda_.10} parent=39 // pred_check
        %p932 = pneg %p125
      $region42: #{_lambda_.10} parent=39 // pred_check_branch
        %934 = sbr.rel (%p932) target = $region44
      $region43: #{_lambda_.10} parent=39 // pred_region
        %s935 = smul.u32 8, %s20
        %p936 = scmp.lt.s32.totalorder %s935, 15
        %s937 = scalar_select %p936, %s935, 15
        %s938 = smul.addr %s937, 4
        %s939 = scalar_lea.vmem %s3, %s938
      $region44: #{_lambda_.10} parent=39 // pred_fallthru
        _
    $region40: #{_lambda_.10} parent=5 // pred_fallthru
      _
  $region6: #{_lambda_.10} parent=0 // loop_footer
    %s13 = sadd.s32 1, %s9
  $region7: #{_lambda_.10} parent=0 // loop_footer_branch
    %8 = sbr.rel target = $region3
  $region8: #{_lambda_.10} parent=0 // loop_exit
    _

// kernel: _lambda_.15
$region0: #{_lambda_.15}
  #allocation0 [shape = 'u32[]', space=smem, size = 0x4, offset = 0x4, fixed_abs, tag = 'smem constant byte address 0x4 - core index']
  #allocation1 [shape = 'u32[144,128]{1,0:T(1,128)}', space=vmem, size = 0x12000, scoped, tag = 'internal scratch']
  %s0 = inlined_call_operand.vmem [shape: bf16[16,10240], index: 0, kind: input, shape index: {}]
  %s1 = inlined_call_operand.vmem [shape: bf16[10240,128], index: 1, kind: input, shape index: {}]
  %s2 = inlined_call_operand.vmem [shape: f32[1,128], index: 2, kind: input, shape index: {}]
  %s3 = inlined_call_operand.vmem [shape: f32[16,128], index: 3, kind: output, shape index: {}]
  %s4 = sld [smem:[#allocation0]]
  $region76: #{_lambda_.15} parent=0
    _
  %s6 = ssub.s32 1, %s4
  %s7 = scalar_select 0, %s6, %s4
  $region1: #{_lambda_.15} parent=0
    #allocation2 [shape = 'u8[65536]{0}', space=vmem, size = 0x10000, scoped, tag = 'input window, operand 0']
    loop: start=0, step=1, limit=12
    $region2: #{_lambda_.15} parent=1 // loop_pre_header
      _
    $region3: #{_lambda_.15} parent=1 // loop_header
      %s9 = sphi 0, %s13
      %p10 = scmp.ge.s32.totalorder %s9, 12
      %s16 = sphi 0, %s28
      %s17 = sphi 0, %s24
      %s18 = sphi 0, %s16
      %s19 = sphi 0, %s17
      %s20 = sphi 0, %s18
      %s21 = sphi 0, %s19
      %s33 = sphi 0, %s35
      %s36 = sphi 0, %s33
      %s37 = sphi 0, %s36
      %s53 = sphi 0, %s37
      %s59 = sphi 0, %s61
      %s62 = sphi 0, %s59
      %s63 = sphi 0, %s62
      %s79 = sphi 0, %s63
      %s83 = sphi 0, %s83
      %s85 = sphi 0, %s83
      %s86 = sphi 0, %s85
      %s100 = sphi 0, %s86
      %s106 = sphi 0, %s108
      %s109 = sphi 0, %s106
      %s110 = sphi 0, %s109
      %s126 = sphi 0, %s110
    $region4: #{_lambda_.15} parent=1 // loop_header_branch
      %12 = sbr.rel (%p10) target = $region8
    $region5: #{_lambda_.15} parent=1 // loop_body
      %s14 = ssub.s32 %s9, 1
      %s15 = ssub.s32 %s9, 2
      %s22 = sadd.s32 1, %s17
      %p23 = scmp.ge.s32.totalorder %s22, 10
      %s24 = scalar_select %p23, 0, %s22
      %s25 = sadd.s32 1, %s16
      %s26 = scalar_select %p23, %s25, %s16
      %p27 = scmp.ge.s32.totalorder %s26, 1
      %s28 = scalar_select %p27, 0, %s26
      %s29 = ssub.s32 %s16, %s28
      %s30 = ssub.s32 %s17, %s24
      %s31 = sor.u32 %s29, %s30
      %p32 = scmp.eq.s32.totalorder %s31, 0
      %s34 = sadd.s32 %s33, 1
      %s35 = scalar_select %p32, %s33, %s34
      %p38 = pneg %p32
      %p39 = scmp.eq.s32.totalorder %s9, 9
      %p40 = por %p38, %p39
      %p41 = scmp.ne.s32.totalorder %s33, %s36
      %p42 = scmp.eq.s32.totalorder %s9, 0
      %p43 = por %p41, %p42
      %p44 = scmp.ne.s32.totalorder %s33, %s36
      %p45 = scmp.eq.s32.totalorder %s14, 9
      %p46 = por %p44, %p45
      %p47 = scmp.ne.s32.totalorder %s36, %s37
      %p48 = scmp.eq.s32.totalorder %s14, 0
      %p49 = por %p47, %p48
      %p50 = scmp.ne.s32.totalorder %s36, %s37
      %p51 = scmp.eq.s32.totalorder %s15, 9
      %p52 = por %p50, %p51
      %p54 = scmp.ne.s32.totalorder %s37, %s53
      %p55 = scmp.eq.s32.totalorder %s15, 0
      %p56 = por %p54, %p55
      %s57 = ssub.s32 %s17, %s24
      %p58 = scmp.eq.s32.totalorder %s57, 0
      %s60 = sadd.s32 %s59, 1
      %s61 = scalar_select %p58, %s59, %s60
      %p64 = pneg %p58
      %p65 = scmp.eq.s32.totalorder %s9, 9
      %p66 = por %p64, %p65
      %p67 = scmp.ne.s32.totalorder %s59, %s62
      %p68 = scmp.eq.s32.totalorder %s9, 0
      %p69 = por %p67, %p68
      %p70 = scmp.ne.s32.totalorder %s59, %s62
      %p71 = scmp.eq.s32.totalorder %s14, 9
      %p72 = por %p70, %p71
      %p73 = scmp.ne.s32.totalorder %s62, %s63
      %p74 = scmp.eq.s32.totalorder %s14, 0
      %p75 = por %p73, %p74
      %p76 = scmp.ne.s32.totalorder %s62, %s63
      %p77 = scmp.eq.s32.totalorder %s15, 9
      %p78 = por %p76, %p77
      %p80 = scmp.ne.s32.totalorder %s63, %s79
      %p81 = scmp.eq.s32.totalorder %s15, 0
      %p82 = por %p80, %p81
      %s84 = sadd.s32 %s83, 1
      %p87 = scmp.eq.s32.totalorder %s9, 9
      %p88 = scmp.ne.s32.totalorder %s83, %s85
      %p89 = scmp.eq.s32.totalorder %s9, 0
      %p90 = por %p88, %p89
      %p91 = scmp.ne.s32.totalorder %s83, %s85
      %p92 = scmp.eq.s32.totalorder %s14, 9
      %p93 = por %p91, %p92
      %p94 = scmp.ne.s32.totalorder %s85, %s86
      %p95 = scmp.eq.s32.totalorder %s14, 0
      %p96 = por %p94, %p95
      %p97 = scmp.ne.s32.totalorder %s85, %s86
      %p98 = scmp.eq.s32.totalorder %s15, 9
      %p99 = por %p97, %p98
      %p101 = scmp.ne.s32.totalorder %s86, %s100
      %p102 = scmp.eq.s32.totalorder %s15, 0
      %p103 = por %p101, %p102
      %s104 = ssub.s32 %s16, %s28
      %p105 = scmp.eq.s32.totalorder %s104, 0
      %s107 = sadd.s32 %s106, 1
      %s108 = scalar_select %p105, %s106, %s107
      %p111 = pneg %p105
      %p112 = scmp.eq.s32.totalorder %s9, 9
      %p113 = por %p111, %p112
      %p114 = scmp.ne.s32.totalorder %s106, %s109
      %p115 = scmp.eq.s32.totalorder %s9, 0
      %p116 = por %p114, %p115
      %p117 = scmp.ne.s32.totalorder %s106, %s109
      %p118 = scmp.eq.s32.totalorder %s14, 9
      %p119 = por %p117, %p118
      %p120 = scmp.ne.s32.totalorder %s109, %s110
      %p121 = scmp.eq.s32.totalorder %s14, 0
      %p122 = por %p120, %p121
      %p123 = scmp.ne.s32.totalorder %s109, %s110
      %p124 = scmp.eq.s32.totalorder %s15, 9
      %p125 = por %p123, %p124
      %p127 = scmp.ne.s32.totalorder %s110, %s126
      %p128 = scmp.eq.s32.totalorder %s15, 0
      %p129 = por %p127, %p128
      %p130 = scmp.le.s32.totalorder 1, %s9
      %p131 = scmp.lt.s32.totalorder %s9, 11
      %p132 = pnand %p130, %p131
      %p133 = pneg %p132
      // Predicated region
      $region9: #{_lambda_.15} parent=5 // pred_check
        _
      $region10: #{_lambda_.15} parent=5 // pred_check_branch
        %135 = sbr.rel (%p132) target = $region12
      $region11: #{_lambda_.15} parent=5 // pred_region
        %s136 = ssub.s32 %s9, 1
        // Predicated region
        $region13: #{_lambda_.15} parent=11 // pred_check
          %p137 = pneg %p96
        $region14: #{_lambda_.15} parent=11 // pred_check_branch
          %139 = sbr.rel (%p137) target = $region16
        $region15: #{_lambda_.15} parent=11 // pred_region
          _
        $region16: #{_lambda_.15} parent=11 // pred_fallthru
          _
      $region12: #{_lambda_.15} parent=5 // pred_fallthru
        _
      %p140 = scmp.lt.s32.totalorder %s9, 10
      // Predicated region
      $region17: #{_lambda_.15} parent=5 // pred_check
        %p141 = pneg %p140
      $region18: #{_lambda_.15} parent=5 // pred_check_branch
        %143 = sbr.rel (%p141) target = $region20
      $region19: #{_lambda_.15} parent=5 // pred_region
        // Predicated region
        $region21: #{_lambda_.15} parent=19 // pred_check
          %p144 = pneg %p43
        $region22: #{_lambda_.15} parent=19 // pred_check_branch
          %146 = sbr.rel (%p144) target = $region24
        $region23: #{_lambda_.15} parent=19 // pred_region
          %s147 = sand.u32 %s33, 1
          %s148 = sand.u32 %s33, 1
          %s149 = smul.addr %s148, 64
          %s150 = scalar_lea.vmem [#allocation2], %s149
          %s151 = smul.u32 2, %s16
          %s152 = smul.u32 8, %s17
          %s153 = smul.addr %s151, 80
          %s154 = sadd.s32 %s152, %s153
          %s155 = smul.addr %s154, 4
          %s156 = scalar_lea.vmem %s0, %s155
          // Predicated region
          $region25: #{_lambda_.15} parent=23 // pred_check
            _
          $region26: #{_lambda_.15} parent=23 // pred_check_branch
            %158 = sbr.rel (0) target = $region28
          $region27: #{_lambda_.15} parent=23 // pred_region
            // Predicated region
            $region29: #{_lambda_.15} parent=27 // pred_check
              _
            $region30: #{_lambda_.15} parent=27 // pred_check_branch
              %160 = sbr.rel (0) target = $region32
            $region31: #{_lambda_.15} parent=27 // pred_region
              loop: start=0, step=1, limit=1
              $region33: #{_lambda_.15} parent=31 // loop_pre_header
                _
              $region34: #{_lambda_.15} parent=31 // loop_header
                %s162 = sphi 0, %s166
                %p163 = scmp.ge.s32.totalorder %s162, 1
                %s167 = sphi %s156, %s156
                %s168 = sphi %s150, %s150
              $region35: #{_lambda_.15} parent=31 // loop_header_branch
                %165 = sbr.rel (%p163) target = $region39
              $region36: #{_lambda_.15} parent=31 // loop_body
                %v169 = vld [vmem:[%s167] sm:$0xff]
                %170 = vst [vmem:[%s168] sm:$0xff] %v169
                %v171 = vld [vmem:[%s167 + $0x8] sm:$0xff]
                %172 = vst [vmem:[%s168 + $0x8] sm:$0xff] %v171
                %v173 = vld [vmem:[%s167 + $0x10] sm:$0xff]
                %174 = vst [vmem:[%s168 + $0x10] sm:$0xff] %v173
                %v175 = vld [vmem:[%s167 + $0x18] sm:$0xff]
                %176 = vst [vmem:[%s168 + $0x18] sm:$0xff] %v175
                %v177 = vld [vmem:[%s167 + $0x140] sm:$0xff]
                %178 = vst [vmem:[%s168 + $0x20] sm:$0xff] %v177
                %v179 = vld [vmem:[%s167 + $0x148] sm:$0xff]
                %180 = vst [vmem:[%s168 + $0x28] sm:$0xff] %v179
                %v181 = vld [vmem:[%s167 + $0x150] sm:$0xff]
                %182 = vst [vmem:[%s168 + $0x30] sm:$0xff] %v181
                %v183 = vld [vmem:[%s167 + $0x158] sm:$0xff]
                %184 = vst [vmem:[%s168 + $0x38] sm:$0xff] %v183
              $region37: #{_lambda_.15} parent=31 // loop_footer
                %s166 = sadd.s32 1, %s162
              $region38: #{_lambda_.15} parent=31 // loop_footer_branch
                %161 = sbr.rel target = $region34
              $region39: #{_lambda_.15} parent=31 // loop_exit
                _
            $region32: #{_lambda_.15} parent=27 // pred_fallthru
              _
            // Predicated region
            $region40: #{_lambda_.15} parent=27 // pred_check
              _
            $region41: #{_lambda_.15} parent=27 // pred_check_branch
              %186 = sbr.rel target = $region43
            $region42: #{_lambda_.15} parent=27 // pred_region
              _
            $region43: #{_lambda_.15} parent=27 // pred_fallthru
              _
          $region28: #{_lambda_.15} parent=23 // pred_fallthru
            _
          %187 = vnop
        $region24: #{_lambda_.15} parent=19 // pred_fallthru
          _
        // Predicated region
        $region44: #{_lambda_.15} parent=19 // pred_check
          %p188 = pneg %p69
        $region45: #{_lambda_.15} parent=19 // pred_check_branch
          %190 = sbr.rel (%p188) target = $region47
        $region46: #{_lambda_.15} parent=19 // pred_region
          %s191 = smul.u32 128, %s17
          %p192 = scmp.lt.s32.totalorder %s191, 1279
          %s193 = scalar_select %p192, %s191, 1279
          %s194 = smul.addr %s193, 4
          %s195 = scalar_lea.vmem %s1, %s194
          %s196 = smul.u32 128, %s17
        $region47: #{_lambda_.15} parent=19 // pred_fallthru
          _
      $region20: #{_lambda_.15} parent=5 // pred_fallthru
        _
      %p197 = scmp.le.s32.totalorder 1, %s9
      %p198 = scmp.lt.s32.totalorder %s9, 11
      %p199 = pnand %p197, %p198
      %p200 = pneg %p199
      // Predicated region
      $region48: #{_lambda_.15} parent=5 // pred_check
        _
      $region49: #{_lambda_.15} parent=5 // pred_check_branch
        %202 = sbr.rel (%p199) target = $region51
      $region50: #{_lambda_.15} parent=5 // pred_region
        %s203 = ssub.s32 %s9, 1
        %s204 = sand.u32 %s36, 1
        %s205 = sand.u32 %s36, 1
        %s206 = smul.addr %s205, 64
        %s207 = scalar_lea.vmem [#allocation2], %s206
        // Predicated region
        $region52: #{_lambda_.15} parent=50 // pred_check
          %p208 = pneg %p49
        $region53: #{_lambda_.15} parent=50 // pred_check_branch
          %210 = sbr.rel (%p208) target = $region55
        $region54: #{_lambda_.15} parent=50 // pred_region
          _
        $region55: #{_lambda_.15} parent=50 // pred_fallthru
          _
        %s211 = sand.u32 %s36, 1
        %s212 = sand.u32 %s36, 1
        %s213 = smul.addr %s212, 64
        %s214 = scalar_lea.vmem [#allocation2], %s213
        %p215 = pneg %p49
        %p216 = pneg %p46
        %s217 = smul.u32 128, %s19
        %p218 = scmp.lt.s32.totalorder %s217, 1279
        %s219 = scalar_select %p218, %s217, 1279
        %s220 = smul.addr %s219, 4
        %s221 = scalar_lea.vmem %s1, %s220
        %p222 = pneg %p75
        %p223 = pneg %p72
        %p224 = pneg %p96
        %p225 = pneg %p93
        %p226 = pneg %p122
        %p227 = pneg %p119
        %s228 = smul.u32 2, %s18
        %p229 = scmp.lt.s32.totalorder %s228, 1
        %s230 = scalar_select %p229, %s228, 1
        %s231 = smul.addr %s230, 8
        %s232 = scalar_lea.vmem %s3, %s231
        %s233 = smul.u32 2, %s18
        %s234 = smul.u32 8, %s19
        %s235 = smul.u32 128, %s19
        %p236 = scmp.lt.s32.totalorder %s235, 1279
        %s237 = scalar_select %p236, %s235, 1279
        %s238 = smul.addr %s237, 4
        %s239 = scalar_lea.vmem %s1, %s238
        %s240 = smul.u32 128, %s19
        %s241 = smul.u32 2, %s18
        %p242 = scmp.lt.s32.totalorder %s241, 1
        %s243 = scalar_select %p242, %s241, 1
        %s244 = smul.addr %s243, 8
        %s245 = scalar_lea.vmem %s3, %s244
        %s246 = smul.u32 2, %s18
        %p248 = scmp.eq.s32.totalorder %s19, 0
        // Predicated region
        $region56: #{_lambda_.15} parent=50 // pred_check
          %p249 = pneg %p248
        $region57: #{_lambda_.15} parent=50 // pred_check_branch
          %251 = sbr.rel (%p249) target = $region59
        $region58: #{_lambda_.15} parent=50 // pred_region
          %252 = vst [vmem:[%s245] sm:$0xff] 0.0
          %253 = vst [vmem:[%s245 + $0x8] sm:$0xff] 0.0
        $region59: #{_lambda_.15} parent=50 // pred_fallthru
          _
        %v254 = vld [vmem:[%s245] sm:$0xff]
        %v255 = vld [vmem:[%s245 + $0x8] sm:$0xff]
        %v256 = vld [vmem:[%s207] sm:$0xff]
        %v257 = vld [vmem:[%s207 + $0x8] sm:$0xff]
        %v258 = vld [vmem:[%s207 + $0x10] sm:$0xff]
        %v259 = vld [vmem:[%s207 + $0x18] sm:$0xff]
        %v260 = vld [vmem:[%s207 + $0x20] sm:$0xff]
        %v261 = vld [vmem:[%s207 + $0x28] sm:$0xff]
        %v262 = vld [vmem:[%s207 + $0x30] sm:$0xff]
        %v263 = vld [vmem:[%s207 + $0x38] sm:$0xff]
        %v264 = vld [vmem:[%s239] sm:$0xf]
        %v265 = vld [vmem:[%s239 + $0x4] sm:$0xf]
        %v266 = vld [vmem:[%s239 + $0x8] sm:$0xf]
        %v267 = vld [vmem:[%s239 + $0xc] sm:$0xf]
        %v268 = vld [vmem:[%s239 + $0x10] sm:$0xf]
        %v269 = vld [vmem:[%s239 + $0x14] sm:$0xf]
        %v270 = vld [vmem:[%s239 + $0x18] sm:$0xf]
        %v271 = vld [vmem:[%s239 + $0x1c] sm:$0xf]
        %v272 = vld [vmem:[%s239 + $0x20] sm:$0xf]
        %v273 = vld [vmem:[%s239 + $0x24] sm:$0xf]
        %v274 = vld [vmem:[%s239 + $0x28] sm:$0xf]
        %v275 = vld [vmem:[%s239 + $0x2c] sm:$0xf]
        %v276 = vld [vmem:[%s239 + $0x30] sm:$0xf]
        %v277 = vld [vmem:[%s239 + $0x34] sm:$0xf]
        %v278 = vld [vmem:[%s239 + $0x38] sm:$0xf]
        %v279 = vld [vmem:[%s239 + $0x3c] sm:$0xf]
        %v280 = vld [vmem:[%s239 + $0x40] sm:$0xf]
        %v281 = vld [vmem:[%s239 + $0x44] sm:$0xf]
        %v282 = vld [vmem:[%s239 + $0x48] sm:$0xf]
        %v283 = vld [vmem:[%s239 + $0x4c] sm:$0xf]
        %v284 = vld [vmem:[%s239 + $0x50] sm:$0xf]
        %v285 = vld [vmem:[%s239 + $0x54] sm:$0xf]
        %v286 = vld [vmem:[%s239 + $0x58] sm:$0xf]
        %v287 = vld [vmem:[%s239 + $0x5c] sm:$0xf]
        %v288 = vld [vmem:[%s239 + $0x60] sm:$0xf]
        %v289 = vld [vmem:[%s239 + $0x64] sm:$0xf]
        %v290 = vld [vmem:[%s239 + $0x68] sm:$0xf]
        %v291 = vld [vmem:[%s239 + $0x6c] sm:$0xf]
        %v292 = vld [vmem:[%s239 + $0x70] sm:$0xf]
        %v293 = vld [vmem:[%s239 + $0x74] sm:$0xf]
        %v294 = vld [vmem:[%s239 + $0x78] sm:$0xf]
        %v295 = vld [vmem:[%s239 + $0x7c] sm:$0xf]
        %v296 = vld [vmem:[%s239 + $0x80] sm:$0xf]
        %v297 = vld [vmem:[%s239 + $0x84] sm:$0xf]
        %v298 = vld [vmem:[%s239 + $0x88] sm:$0xf]
        %v299 = vld [vmem:[%s239 + $0x8c] sm:$0xf]
        %v300 = vld [vmem:[%s239 + $0x90] sm:$0xf]
        %v301 = vld [vmem:[%s239 + $0x94] sm:$0xf]
        %v302 = vld [vmem:[%s239 + $0x98] sm:$0xf]
        %v303 = vld [vmem:[%s239 + $0x9c] sm:$0xf]
        %v304 = vld [vmem:[%s239 + $0xa0] sm:$0xf]
        %v305 = vld [vmem:[%s239 + $0xa4] sm:$0xf]
        %v306 = vld [vmem:[%s239 + $0xa8] sm:$0xf]
        %v307 = vld [vmem:[%s239 + $0xac] sm:$0xf]
        %v308 = vld [vmem:[%s239 + $0xb0] sm:$0xf]
        %v309 = vld [vmem:[%s239 + $0xb4] sm:$0xf]
        %v310 = vld [vmem:[%s239 + $0xb8] sm:$0xf]
        %v311 = vld [vmem:[%s239 + $0xbc] sm:$0xf]
        %v312 = vld [vmem:[%s239 + $0xc0] sm:$0xf]
        %v313 = vld [vmem:[%s239 + $0xc4] sm:$0xf]
        %v314 = vld [vmem:[%s239 + $0xc8] sm:$0xf]
        %v315 = vld [vmem:[%s239 + $0xcc] sm:$0xf]
        %v316 = vld [vmem:[%s239 + $0xd0] sm:$0xf]
        %v317 = vld [vmem:[%s239 + $0xd4] sm:$0xf]
        %v318 = vld [vmem:[%s239 + $0xd8] sm:$0xf]
        %v319 = vld [vmem:[%s239 + $0xdc] sm:$0xf]
        %v320 = vld [vmem:[%s239 + $0xe0] sm:$0xf]
        %v321 = vld [vmem:[%s239 + $0xe4] sm:$0xf]
        %v322 = vld [vmem:[%s239 + $0xe8] sm:$0xf]
        %v323 = vld [vmem:[%s239 + $0xec] sm:$0xf]
        %v324 = vld [vmem:[%s239 + $0xf0] sm:$0xf]
        %v325 = vld [vmem:[%s239 + $0xf4] sm:$0xf]
        %v326 = vld [vmem:[%s239 + $0xf8] sm:$0xf]
        %v327 = vld [vmem:[%s239 + $0xfc] sm:$0xf]
        %v328 = vld [vmem:[%s239 + $0x100] sm:$0xf]
        %v329 = vld [vmem:[%s239 + $0x104] sm:$0xf]
        %v330 = vld [vmem:[%s239 + $0x108] sm:$0xf]
        %v331 = vld [vmem:[%s239 + $0x10c] sm:$0xf]
        %v332 = vld [vmem:[%s239 + $0x110] sm:$0xf]
        %v333 = vld [vmem:[%s239 + $0x114] sm:$0xf]
        %v334 = vld [vmem:[%s239 + $0x118] sm:$0xf]
        %v335 = vld [vmem:[%s239 + $0x11c] sm:$0xf]
        %v336 = vld [vmem:[%s239 + $0x120] sm:$0xf]
        %v337 = vld [vmem:[%s239 + $0x124] sm:$0xf]
        %v338 = vld [vmem:[%s239 + $0x128] sm:$0xf]
        %v339 = vld [vmem:[%s239 + $0x12c] sm:$0xf]
        %v340 = vld [vmem:[%s239 + $0x130] sm:$0xf]
        %v341 = vld [vmem:[%s239 + $0x134] sm:$0xf]
        %v342 = vld [vmem:[%s239 + $0x138] sm:$0xf]
        %v343 = vld [vmem:[%s239 + $0x13c] sm:$0xf]
        %v344 = vld [vmem:[%s239 + $0x140] sm:$0xf]
        %v345 = vld [vmem:[%s239 + $0x144] sm:$0xf]
        %v346 = vld [vmem:[%s239 + $0x148] sm:$0xf]
        %v347 = vld [vmem:[%s239 + $0x14c] sm:$0xf]
        %v348 = vld [vmem:[%s239 + $0x150] sm:$0xf]
        %v349 = vld [vmem:[%s239 + $0x154] sm:$0xf]
        %v350 = vld [vmem:[%s239 + $0x158] sm:$0xf]
        %v351 = vld [vmem:[%s239 + $0x15c] sm:$0xf]
        %v352 = vld [vmem:[%s239 + $0x160] sm:$0xf]
        %v353 = vld [vmem:[%s239 + $0x164] sm:$0xf]
        %v354 = vld [vmem:[%s239 + $0x168] sm:$0xf]
        %v355 = vld [vmem:[%s239 + $0x16c] sm:$0xf]
        %v356 = vld [vmem:[%s239 + $0x170] sm:$0xf]
        %v357 = vld [vmem:[%s239 + $0x174] sm:$0xf]
        %v358 = vld [vmem:[%s239 + $0x178] sm:$0xf]
        %v359 = vld [vmem:[%s239 + $0x17c] sm:$0xf]
        %v360 = vld [vmem:[%s239 + $0x180] sm:$0xf]
        %v361 = vld [vmem:[%s239 + $0x184] sm:$0xf]
        %v362 = vld [vmem:[%s239 + $0x188] sm:$0xf]
        %v363 = vld [vmem:[%s239 + $0x18c] sm:$0xf]
        %v364 = vld [vmem:[%s239 + $0x190] sm:$0xf]
        %v365 = vld [vmem:[%s239 + $0x194] sm:$0xf]
        %v366 = vld [vmem:[%s239 + $0x198] sm:$0xf]
        %v367 = vld [vmem:[%s239 + $0x19c] sm:$0xf]
        %v368 = vld [vmem:[%s239 + $0x1a0] sm:$0xf]
        %v369 = vld [vmem:[%s239 + $0x1a4] sm:$0xf]
        %v370 = vld [vmem:[%s239 + $0x1a8] sm:$0xf]
        %v371 = vld [vmem:[%s239 + $0x1ac] sm:$0xf]
        %v372 = vld [vmem:[%s239 + $0x1b0] sm:$0xf]
        %v373 = vld [vmem:[%s239 + $0x1b4] sm:$0xf]
        %v374 = vld [vmem:[%s239 + $0x1b8] sm:$0xf]
        %v375 = vld [vmem:[%s239 + $0x1bc] sm:$0xf]
        %v376 = vld [vmem:[%s239 + $0x1c0] sm:$0xf]
        %v377 = vld [vmem:[%s239 + $0x1c4] sm:$0xf]
        %v378 = vld [vmem:[%s239 + $0x1c8] sm:$0xf]
        %v379 = vld [vmem:[%s239 + $0x1cc] sm:$0xf]
        %v380 = vld [vmem:[%s239 + $0x1d0] sm:$0xf]
        %v381 = vld [vmem:[%s239 + $0x1d4] sm:$0xf]
        %v382 = vld [vmem:[%s239 + $0x1d8] sm:$0xf]
        %v383 = vld [vmem:[%s239 + $0x1dc] sm:$0xf]
        %v384 = vld [vmem:[%s239 + $0x1e0] sm:$0xf]
        %v385 = vld [vmem:[%s239 + $0x1e4] sm:$0xf]
        %v386 = vld [vmem:[%s239 + $0x1e8] sm:$0xf]
        %v387 = vld [vmem:[%s239 + $0x1ec] sm:$0xf]
        %v388 = vld [vmem:[%s239 + $0x1f0] sm:$0xf]
        %v389 = vld [vmem:[%s239 + $0x1f4] sm:$0xf]
        %v390 = vld [vmem:[%s239 + $0x1f8] sm:$0xf]
        %v391 = vld [vmem:[%s239 + $0x1fc] sm:$0xf]
        %v400 = vunpack.c.l.b16 %v256
        %v401 = vunpack.c.h.b16 %v256
        %v402 = vunpack.c.l.b16 %v257
        %v403 = vunpack.c.h.b16 %v257
        %v404 = vunpack.c.l.b16 %v258
        %v405 = vunpack.c.h.b16 %v258
        %v406 = vunpack.c.l.b16 %v259
        %v407 = vunpack.c.h.b16 %v259
        %v408 = vunpack.c.l.b16 %v260
        %v409 = vunpack.c.h.b16 %v260
        %v410 = vunpack.c.l.b16 %v261
        %v411 = vunpack.c.h.b16 %v261
        %v412 = vunpack.c.l.b16 %v262
        %v413 = vunpack.c.h.b16 %v262
        %v414 = vunpack.c.l.b16 %v263
        %v415 = vunpack.c.h.b16 %v263
        %v416 = vpack.c.b16 %v408, %v400
        %v417 = vpack.c.b16 %v409, %v401
        %v418 = vpack.c.b16 %v410, %v402
        %v419 = vpack.c.b16 %v411, %v403
        %v420 = vpack.c.b16 %v412, %v404
        %v421 = vpack.c.b16 %v413, %v405
        %v422 = vpack.c.b16 %v414, %v406
        %v423 = vpack.c.b16 %v415, %v407
        %v560 = vunpack.c.l.b16 %v264
        %v561 = vunpack.c.l.b16 %v265
        %v562 = vunpack.c.l.b16 %v266
        %v563 = vunpack.c.l.b16 %v267
        %v564 = vunpack.c.l.b16 %v268
        %v565 = vunpack.c.l.b16 %v269
        %v566 = vunpack.c.l.b16 %v270
        %v567 = vunpack.c.l.b16 %v271
        %v568 = vunpack.c.l.b16 %v272
        %v569 = vunpack.c.l.b16 %v273
        %v570 = vunpack.c.l.b16 %v274
        %v571 = vunpack.c.l.b16 %v275
        %v572 = vunpack.c.l.b16 %v276
        %v573 = vunpack.c.l.b16 %v277
        %v574 = vunpack.c.l.b16 %v278
        %v575 = vunpack.c.l.b16 %v279
        %v576 = vunpack.c.l.b16 %v280
        %v577 = vunpack.c.l.b16 %v281
        %v578 = vunpack.c.l.b16 %v282
        %v579 = vunpack.c.l.b16 %v283
        %v580 = vunpack.c.l.b16 %v284
        %v581 = vunpack.c.l.b16 %v285
        %v582 = vunpack.c.l.b16 %v286
        %v583 = vunpack.c.l.b16 %v287
        %v584 = vunpack.c.l.b16 %v288
        %v585 = vunpack.c.l.b16 %v289
        %v586 = vunpack.c.l.b16 %v290
        %v587 = vunpack.c.l.b16 %v291
        %v588 = vunpack.c.l.b16 %v292
        %v589 = vunpack.c.l.b16 %v293
        %v590 = vunpack.c.l.b16 %v294
        %v591 = vunpack.c.l.b16 %v295
        %v592 = vunpack.c.l.b16 %v296
        %v593 = vunpack.c.l.b16 %v297
        %v594 = vunpack.c.l.b16 %v298
        %v595 = vunpack.c.l.b16 %v299
        %v596 = vunpack.c.l.b16 %v300
        %v597 = vunpack.c.l.b16 %v301
        %v598 = vunpack.c.l.b16 %v302
        %v599 = vunpack.c.l.b16 %v303
        %v600 = vunpack.c.l.b16 %v304
        %v601 = vunpack.c.l.b16 %v305
        %v602 = vunpack.c.l.b16 %v306
        %v603 = vunpack.c.l.b16 %v307
        %v604 = vunpack.c.l.b16 %v308
        %v605 = vunpack.c.l.b16 %v309
        %v606 = vunpack.c.l.b16 %v310
        %v607 = vunpack.c.l.b16 %v311
        %v608 = vunpack.c.l.b16 %v312
        %v609 = vunpack.c.l.b16 %v313
        %v610 = vunpack.c.l.b16 %v314
        %v611 = vunpack.c.l.b16 %v315
        %v612 = vunpack.c.l.b16 %v316
        %v613 = vunpack.c.l.b16 %v317
        %v614 = vunpack.c.l.b16 %v318
        %v615 = vunpack.c.l.b16 %v319
        %v616 = vunpack.c.l.b16 %v320
        %v617 = vunpack.c.l.b16 %v321
        %v618 = vunpack.c.l.b16 %v322
        %v619 = vunpack.c.l.b16 %v323
        %v620 = vunpack.c.l.b16 %v324
        %v621 = vunpack.c.l.b16 %v325
        %v622 = vunpack.c.l.b16 %v326
        %v623 = vunpack.c.l.b16 %v327
        %v624 = vunpack.c.l.b16 %v328
        %v625 = vunpack.c.l.b16 %v329
        %v626 = vunpack.c.l.b16 %v330
        %v627 = vunpack.c.l.b16 %v331
        %v628 = vunpack.c.l.b16 %v332
        %v629 = vunpack.c.l.b16 %v333
        %v630 = vunpack.c.l.b16 %v334
        %v631 = vunpack.c.l.b16 %v335
        %v632 = vunpack.c.l.b16 %v336
        %v633 = vunpack.c.l.b16 %v337
        %v634 = vunpack.c.l.b16 %v338
        %v635 = vunpack.c.l.b16 %v339
        %v636 = vunpack.c.l.b16 %v340
        %v637 = vunpack.c.l.b16 %v341
        %v638 = vunpack.c.l.b16 %v342
        %v639 = vunpack.c.l.b16 %v343
        %v640 = vunpack.c.l.b16 %v344
        %v641 = vunpack.c.l.b16 %v345
        %v642 = vunpack.c.l.b16 %v346
        %v643 = vunpack.c.l.b16 %v347
        %v644 = vunpack.c.l.b16 %v348
        %v645 = vunpack.c.l.b16 %v349
        %v646 = vunpack.c.l.b16 %v350
        %v647 = vunpack.c.l.b16 %v351
        %v648 = vunpack.c.l.b16 %v352
        %v649 = vunpack.c.l.b16 %v353
        %v650 = vunpack.c.l.b16 %v354
        %v651 = vunpack.c.l.b16 %v355
        %v652 = vunpack.c.l.b16 %v356
        %v653 = vunpack.c.l.b16 %v357
        %v654 = vunpack.c.l.b16 %v358
        %v655 = vunpack.c.l.b16 %v359
        %v656 = vunpack.c.l.b16 %v360
        %v657 = vunpack.c.l.b16 %v361
        %v658 = vunpack.c.l.b16 %v362
        %v659 = vunpack.c.l.b16 %v363
        %v660 = vunpack.c.l.b16 %v364
        %v661 = vunpack.c.l.b16 %v365
        %v662 = vunpack.c.l.b16 %v366
        %v663 = vunpack.c.l.b16 %v367
        %v664 = vunpack.c.l.b16 %v368
        %v665 = vunpack.c.l.b16 %v369
        %v666 = vunpack.c.l.b16 %v370
        %v667 = vunpack.c.l.b16 %v371
        %v668 = vunpack.c.l.b16 %v372
        %v669 = vunpack.c.l.b16 %v373
        %v670 = vunpack.c.l.b16 %v374
        %v671 = vunpack.c.l.b16 %v375
        %v672 = vunpack.c.l.b16 %v376
        %v673 = vunpack.c.l.b16 %v377
        %v674 = vunpack.c.l.b16 %v378
        %v675 = vunpack.c.l.b16 %v379
        %v676 = vunpack.c.l.b16 %v380
        %v677 = vunpack.c.l.b16 %v381
        %v678 = vunpack.c.l.b16 %v382
        %v679 = vunpack.c.l.b16 %v383
        %v680 = vunpack.c.l.b16 %v384
        %v681 = vunpack.c.l.b16 %v385
        %v682 = vunpack.c.l.b16 %v386
        %v683 = vunpack.c.l.b16 %v387
        %v684 = vunpack.c.l.b16 %v388
        %v685 = vunpack.c.l.b16 %v389
        %v686 = vunpack.c.l.b16 %v390
        %v687 = vunpack.c.l.b16 %v391
        %v688 = vpack.c.b16 %v561, %v560
        %v689 = vpack.c.b16 %v563, %v562
        %v690 = vpack.c.b16 %v565, %v564
        %v691 = vpack.c.b16 %v567, %v566
        %v692 = vpack.c.b16 %v569, %v568
        %v693 = vpack.c.b16 %v571, %v570
        %v694 = vpack.c.b16 %v573, %v572
        %v695 = vpack.c.b16 %v575, %v574
        %v696 = vpack.c.b16 %v577, %v576
        %v697 = vpack.c.b16 %v579, %v578
        %v698 = vpack.c.b16 %v581, %v580
        %v699 = vpack.c.b16 %v583, %v582
        %v700 = vpack.c.b16 %v585, %v584
        %v701 = vpack.c.b16 %v587, %v586
        %v702 = vpack.c.b16 %v589, %v588
        %v703 = vpack.c.b16 %v591, %v590
        %v704 = vpack.c.b16 %v593, %v592
        %v705 = vpack.c.b16 %v595, %v594
        %v706 = vpack.c.b16 %v597, %v596
        %v707 = vpack.c.b16 %v599, %v598
        %v708 = vpack.c.b16 %v601, %v600
        %v709 = vpack.c.b16 %v603, %v602
        %v710 = vpack.c.b16 %v605, %v604
        %v711 = vpack.c.b16 %v607, %v606
        %v712 = vpack.c.b16 %v609, %v608
        %v713 = vpack.c.b16 %v611, %v610
        %v714 = vpack.c.b16 %v613, %v612
        %v715 = vpack.c.b16 %v615, %v614
        %v716 = vpack.c.b16 %v617, %v616
        %v717 = vpack.c.b16 %v619, %v618
        %v718 = vpack.c.b16 %v621, %v620
        %v719 = vpack.c.b16 %v623, %v622
        %v720 = vpack.c.b16 %v625, %v624
        %v721 = vpack.c.b16 %v627, %v626
        %v722 = vpack.c.b16 %v629, %v628
        %v723 = vpack.c.b16 %v631, %v630
        %v724 = vpack.c.b16 %v633, %v632
        %v725 = vpack.c.b16 %v635, %v634
        %v726 = vpack.c.b16 %v637, %v636
        %v727 = vpack.c.b16 %v639, %v638
        %v728 = vpack.c.b16 %v641, %v640
        %v729 = vpack.c.b16 %v643, %v642
        %v730 = vpack.c.b16 %v645, %v644
        %v731 = vpack.c.b16 %v647, %v646
        %v732 = vpack.c.b16 %v649, %v648
        %v733 = vpack.c.b16 %v651, %v650
        %v734 = vpack.c.b16 %v653, %v652
        %v735 = vpack.c.b16 %v655, %v654
        %v736 = vpack.c.b16 %v657, %v656
        %v737 = vpack.c.b16 %v659, %v658
        %v738 = vpack.c.b16 %v661, %v660
        %v739 = vpack.c.b16 %v663, %v662
        %v740 = vpack.c.b16 %v665, %v664
        %v741 = vpack.c.b16 %v667, %v666
        %v742 = vpack.c.b16 %v669, %v668
        %v743 = vpack.c.b16 %v671, %v670
        %v744 = vpack.c.b16 %v673, %v672
        %v745 = vpack.c.b16 %v675, %v674
        %v746 = vpack.c.b16 %v677, %v676
        %v747 = vpack.c.b16 %v679, %v678
        %v748 = vpack.c.b16 %v681, %v680
        %v749 = vpack.c.b16 %v683, %v682
        %v750 = vpack.c.b16 %v685, %v684
        %v751 = vpack.c.b16 %v687, %v686
        %816 = vmatprep.subr.bf16.mxu0 0
        %817 = vmatpush1.bf16.msra.mxu0 %v688
        %818 = vmatprep.subr.bf16.mxu0 0
        %819 = vmatpush1.bf16.msra.mxu0 %v689
        %820 = vmatprep.subr.bf16.mxu0 0
        %821 = vmatpush1.bf16.msra.mxu0 %v690
        %822 = vmatprep.subr.bf16.mxu0 0
        %823 = vmatpush1.bf16.msra.mxu0 %v691
        %824 = vmatprep.subr.bf16.mxu0 0
        %825 = vmatpush1.bf16.msra.mxu0 %v692
        %826 = vmatprep.subr.bf16.mxu0 0
        %827 = vmatpush1.bf16.msra.mxu0 %v693
        %828 = vmatprep.subr.bf16.mxu0 0
        %829 = vmatpush1.bf16.msra.mxu0 %v694
        %830 = vmatprep.subr.bf16.mxu0 0
        %831 = vmatpush1.bf16.msra.mxu0 %v695
        %832 = vmatprep.subr.bf16.mxu0 0
        %833 = vmatpush1.bf16.msra.mxu0 %v696
        %834 = vmatprep.subr.bf16.mxu0 0
        %835 = vmatpush1.bf16.msra.mxu0 %v697
        %836 = vmatprep.subr.bf16.mxu0 0
        %837 = vmatpush1.bf16.msra.mxu0 %v698
        %838 = vmatprep.subr.bf16.mxu0 0
        %839 = vmatpush1.bf16.msra.mxu0 %v699
        %840 = vmatprep.subr.bf16.mxu0 0
        %841 = vmatpush1.bf16.msra.mxu0 %v700
        %842 = vmatprep.subr.bf16.mxu0 0
        %843 = vmatpush1.bf16.msra.mxu0 %v701
        %844 = vmatprep.subr.bf16.mxu0 0
        %845 = vmatpush1.bf16.msra.mxu0 %v702
        %846 = vmatprep.subr.bf16.mxu0 0
        %847 = vmatpush1.bf16.msra.mxu0 %v703
        %848 = vmatprep.mubr.bf16.mxu0 %v417
        %849 = vmatmul.mubr.bf16.gmra.mrb[0].mxu0 %v416
        %v850 = vpop.f32.mrb[0].mxu0
        %v851 = vadd.f32 0.0, %v850
        %v852 = vpop.f32.mrb[0].mxu0
        %v853 = vpop.f32.mrb[0].mxu0
        %v854 = vadd.f32 0.0, %v853
        %v855 = vpop.f32.mrb[0].mxu0
        %856 = vdwg.mxu0
        %857 = vmatprep.subr.bf16.mxu0 0
        %858 = vmatpush1.bf16.msra.mxu0 %v704
        %859 = vmatprep.subr.bf16.mxu0 0
        %860 = vmatpush1.bf16.msra.mxu0 %v705
        %861 = vmatprep.subr.bf16.mxu0 0
        %862 = vmatpush1.bf16.msra.mxu0 %v706
        %863 = vmatprep.subr.bf16.mxu0 0
        %864 = vmatpush1.bf16.msra.mxu0 %v707
        %865 = vmatprep.subr.bf16.mxu0 0
        %866 = vmatpush1.bf16.msra.mxu0 %v708
        %867 = vmatprep.subr.bf16.mxu0 0
        %868 = vmatpush1.bf16.msra.mxu0 %v709
        %869 = vmatprep.subr.bf16.mxu0 0
        %870 = vmatpush1.bf16.msra.mxu0 %v710
        %871 = vmatprep.subr.bf16.mxu0 0
        %872 = vmatpush1.bf16.msra.mxu0 %v711
        %873 = vmatprep.subr.bf16.mxu0 0
        %874 = vmatpush1.bf16.msra.mxu0 %v712
        %875 = vmatprep.subr.bf16.mxu0 0
        %876 = vmatpush1.bf16.msra.mxu0 %v713
        %877 = vmatprep.subr.bf16.mxu0 0
        %878 = vmatpush1.bf16.msra.mxu0 %v714
        %879 = vmatprep.subr.bf16.mxu0 0
        %880 = vmatpush1.bf16.msra.mxu0 %v715
        %881 = vmatprep.subr.bf16.mxu0 0
        %882 = vmatpush1.bf16.msra.mxu0 %v716
        %883 = vmatprep.subr.bf16.mxu0 0
        %884 = vmatpush1.bf16.msra.mxu0 %v717
        %885 = vmatprep.subr.bf16.mxu0 0
        %886 = vmatpush1.bf16.msra.mxu0 %v718
        %887 = vmatprep.subr.bf16.mxu0 0
        %888 = vmatpush1.bf16.msra.mxu0 %v719
        %889 = vmatprep.mubr.bf16.mxu0 %v419
        %890 = vmatmul.mubr.bf16.gmra.mrb[0].mxu0 %v418
        %v891 = vpop.f32.mrb[0].mxu0
        %v892 = vadd.f32 %v851, %v891
        %v893 = vpop.f32.mrb[0].mxu0
        %v894 = vpop.f32.mrb[0].mxu0
        %v895 = vadd.f32 %v854, %v894
        %v896 = vpop.f32.mrb[0].mxu0
        %897 = vdwg.mxu0
        %898 = vmatprep.subr.bf16.mxu0 0
        %899 = vmatpush1.bf16.msra.mxu0 %v720
        %900 = vmatprep.subr.bf16.mxu0 0
        %901 = vmatpush1.bf16.msra.mxu0 %v721
        %902 = vmatprep.subr.bf16.mxu0 0
        %903 = vmatpush1.bf16.msra.mxu0 %v722
        %904 = vmatprep.subr.bf16.mxu0 0
        %905 = vmatpush1.bf16.msra.mxu0 %v723
        %906 = vmatprep.subr.bf16.mxu0 0
        %907 = vmatpush1.bf16.msra.mxu0 %v724
        %908 = vmatprep.subr.bf16.mxu0 0
        %909 = vmatpush1.bf16.msra.mxu0 %v725
        %910 = vmatprep.subr.bf16.mxu0 0
        %911 = vmatpush1.bf16.msra.mxu0 %v726
        %912 = vmatprep.subr.bf16.mxu0 0
        %913 = vmatpush1.bf16.msra.mxu0 %v727
        %914 = vmatprep.subr.bf16.mxu0 0
        %915 = vmatpush1.bf16.msra.mxu0 %v728
        %916 = vmatprep.subr.bf16.mxu0 0
        %917 = vmatpush1.bf16.msra.mxu0 %v729
        %918 = vmatprep.subr.bf16.mxu0 0
        %919 = vmatpush1.bf16.msra.mxu0 %v730
        %920 = vmatprep.subr.bf16.mxu0 0
        %921 = vmatpush1.bf16.msra.mxu0 %v731
        %922 = vmatprep.subr.bf16.mxu0 0
        %923 = vmatpush1.bf16.msra.mxu0 %v732
        %924 = vmatprep.subr.bf16.mxu0 0
        %925 = vmatpush1.bf16.msra.mxu0 %v733
        %926 = vmatprep.subr.bf16.mxu0 0
        %927 = vmatpush1.bf16.msra.mxu0 %v734
        %928 = vmatprep.subr.bf16.mxu0 0
        %929 = vmatpush1.bf16.msra.mxu0 %v735
        %930 = vmatprep.mubr.bf16.mxu0 %v421
        %931 = vmatmul.mubr.bf16.gmra.mrb[0].mxu0 %v420
        %v932 = vpop.f32.mrb[0].mxu0
        %v933 = vadd.f32 %v892, %v932
        %v934 = vpop.f32.mrb[0].mxu0
        %v935 = vpop.f32.mrb[0].mxu0
        %v936 = vadd.f32 %v895, %v935
        %v937 = vpop.f32.mrb[0].mxu0
        %938 = vdwg.mxu0
        %939 = vmatprep.subr.bf16.mxu0 0
        %940 = vmatpush1.bf16.msra.mxu0 %v736
        %941 = vmatprep.subr.bf16.mxu0 0
        %942 = vmatpush1.bf16.msra.mxu0 %v737
        %943 = vmatprep.subr.bf16.mxu0 0
        %944 = vmatpush1.bf16.msra.mxu0 %v738
        %945 = vmatprep.subr.bf16.mxu0 0
        %946 = vmatpush1.bf16.msra.mxu0 %v739
        %947 = vmatprep.subr.bf16.mxu0 0
        %948 = vmatpush1.bf16.msra.mxu0 %v740
        %949 = vmatprep.subr.bf16.mxu0 0
        %950 = vmatpush1.bf16.msra.mxu0 %v741
        %951 = vmatprep.subr.bf16.mxu0 0
        %952 = vmatpush1.bf16.msra.mxu0 %v742
        %953 = vmatprep.subr.bf16.mxu0 0
        %954 = vmatpush1.bf16.msra.mxu0 %v743
        %955 = vmatprep.subr.bf16.mxu0 0
        %956 = vmatpush1.bf16.msra.mxu0 %v744
        %957 = vmatprep.subr.bf16.mxu0 0
        %958 = vmatpush1.bf16.msra.mxu0 %v745
        %959 = vmatprep.subr.bf16.mxu0 0
        %960 = vmatpush1.bf16.msra.mxu0 %v746
        %961 = vmatprep.subr.bf16.mxu0 0
        %962 = vmatpush1.bf16.msra.mxu0 %v747
        %963 = vmatprep.subr.bf16.mxu0 0
        %964 = vmatpush1.bf16.msra.mxu0 %v748
        %965 = vmatprep.subr.bf16.mxu0 0
        %966 = vmatpush1.bf16.msra.mxu0 %v749
        %967 = vmatprep.subr.bf16.mxu0 0
        %968 = vmatpush1.bf16.msra.mxu0 %v750
        %969 = vmatprep.subr.bf16.mxu0 0
        %970 = vmatpush1.bf16.msra.mxu0 %v751
        %971 = vmatprep.mubr.bf16.mxu0 %v423
        %972 = vmatmul.mubr.bf16.gmra.mrb[0].mxu0 %v422
        %v973 = vpop.f32.mrb[0].mxu0
        %v974 = vadd.f32 %v933, %v973
        %v975 = vpop.f32.mrb[0].mxu0
        %v976 = vpop.f32.mrb[0].mxu0
        %v977 = vadd.f32 %v936, %v976
        %v978 = vpop.f32.mrb[0].mxu0
        %979 = vdwg.mxu0
        %v980 = vadd.f32 %v254, %v974
        %v981 = vadd.f32 %v255, %v977
        %982 = vst [vmem:[%s245] sm:$0xff] %v980
        %983 = vst [vmem:[%s245 + $0x8] sm:$0xff] %v981
        %p984 = scmp.eq.s32.totalorder %s19, 9
        // Predicated region
        $region60: #{_lambda_.15} parent=50 // pred_check
          %p985 = pneg %p984
        $region61: #{_lambda_.15} parent=50 // pred_check_branch
          %987 = sbr.rel (%p985) target = $region63
        $region62: #{_lambda_.15} parent=50 // pred_region
          %v988 = vld [vmem:[%s245] sm:$0xff]
          %v989 = vld [vmem:[%s245 + $0x8] sm:$0xff]
          %v990 = vld [vmem:[%s2] sm:$0x1]
          %v992 = vlaneseq
          %v993 = vshrl.u32 %v992, 7
          %v994 = vsub.s32 0, %v993
          %v995 = vrot.slane %v990, %v994
          %v997 = vadd.f32 %v988, %v995
          %v998 = vadd.f32 %v989, %v995
          %999 = vst [vmem:[%s245] sm:$0xff] %v997
          %1000 = vst [vmem:[%s245 + $0x8] sm:$0xff] %v998
        $region63: #{_lambda_.15} parent=50 // pred_fallthru
          _
        %s1001 = smul.u32 2, %s18
        %p1002 = scmp.lt.s32.totalorder %s1001, 1
        %s1003 = scalar_select %p1002, %s1001, 1
        %s1004 = smul.addr %s1003, 8
        %s1005 = scalar_lea.vmem %s3, %s1004
        // Predicated region
        $region64: #{_lambda_.15} parent=50 // pred_check
          %p1006 = pneg %p119
        $region65: #{_lambda_.15} parent=50 // pred_check_branch
          %1008 = sbr.rel (%p1006) target = $region67
        $region66: #{_lambda_.15} parent=50 // pred_region
          %s1009 = smul.u32 2, %s18
        $region67: #{_lambda_.15} parent=50 // pred_fallthru
          _
        // Predicated region
        $region68: #{_lambda_.15} parent=50 // pred_check
          %p1010 = pneg %p119
        $region69: #{_lambda_.15} parent=50 // pred_check_branch
          %1012 = sbr.rel (%p1010) target = $region71
        $region70: #{_lambda_.15} parent=50 // pred_region
          %s1013 = smul.u32 2, %s18
          %p1014 = scmp.lt.s32.totalorder %s1013, 1
          %s1015 = scalar_select %p1014, %s1013, 1
          %s1016 = smul.addr %s1015, 8
          %s1017 = scalar_lea.vmem %s3, %s1016
        $region71: #{_lambda_.15} parent=50 // pred_fallthru
          _
      $region51: #{_lambda_.15} parent=5 // pred_fallthru
        _
      %p1018 = scmp.le.s32.totalorder 2, %s9
      // Predicated region
      $region72: #{_lambda_.15} parent=5 // pred_check
        %p1019 = pneg %p1018
      $region73: #{_lambda_.15} parent=5 // pred_check_branch
        %1021 = sbr.rel (%p1019) target = $region75
      $region74: #{_lambda_.15} parent=5 // pred_region
        %s1022 = ssub.s32 %s9, 2
      $region75: #{_lambda_.15} parent=5 // pred_fallthru
        _
    $region6: #{_lambda_.15} parent=1 // loop_footer
      %s13 = sadd.s32 1, %s9
    $region7: #{_lambda_.15} parent=1 // loop_footer_branch
      %8 = sbr.rel target = $region3
    $region8: #{_lambda_.15} parent=1 // loop_exit
      _

</llo_original>
